<compile_context>
chip_gen: v5e
topology: v5e:2x2
jax: 0.10.0
libtpu: 0.0.40
codegen_flags: <defaults>
</compile_context>

<pallas_src>
import jax
import jax.numpy as jnp
from jax import lax
from jax.experimental import pallas as pl
from jax.experimental.pallas import tpu as pltpu


# ----------------------------------------------------------------------------
# Pallas kernel: whole STConvBlock forward in one invocation
# ----------------------------------------------------------------------------
def _st_block_kernel(x_ref, w1p_ref, w1q_ref, b1p_ref, b1q_ref,
                     wg_ref, abar_ref, w2p_ref, w2q_ref, b2p_ref, b2q_ref,
                     gamma_ref, beta_ref, out_ref):
    # Layout: rows ordered (batch, time, node); channels on the lane axis.
    #   x_ref     : (B, T*N, cin)     bf16
    #   w1p/w1q   : (k, cin, cout)    bf16   per-tap conv-1 weights (P / Q gate)
    #   b1p/b1q   : (1, cout)         f32
    #   wg_ref    : (cout, cout)      bf16   theta.weight.T
    #   abar_ref  : (B*T, N, N)       bf16   Abar broadcast over (batch, time)
    #   w2p/w2q   : (k, cout, cout)   bf16   per-tap conv-2 weights
    #   b2p/b2q   : (1, cout)         f32
    #   gamma/beta: (1, cout)         f32    BatchNorm2d affine
    #   out_ref   : (B*T*N, cout)     f32
    B, TN, _ = x_ref.shape
    k = w1p_ref.shape[0]
    cout = w1p_ref.shape[2]
    BT, N, _ = abar_ref.shape
    pad = k // 2
    R = B * TN                                   # total rows = B*T*N

    def temporal_glu(a, wp_ref, wq_ref, bp_ref, bq_ref):
        # a: (B, T*N, C) bf16  ->  (B*T*N, cout) f32.  'same' temporal conv
        # built from k row-shifted views (shift over t == shift by N rows),
        # then GLU.  P/Q computed by separate compact matmuls.
        C = a.shape[-1]
        zpad = jnp.zeros((B, pad * N, C), a.dtype)
        ap = jnp.concatenate([zpad, a, zpad], axis=1)      # (B, (T+2*pad)*N, C)
        accp = jnp.zeros((R, cout), jnp.float32)
        accq = jnp.zeros((R, cout), jnp.float32)
        for j in range(k):                                 # static unroll, k taps
            tap = ap[:, j * N:j * N + TN, :].reshape(R, C)
            accp = accp + jnp.dot(tap, wp_ref[j],
                                  preferred_element_type=jnp.float32)
            accq = accq + jnp.dot(tap, wq_ref[j],
                                  preferred_element_type=jnp.float32)
        p = accp + bp_ref[...]
        q = accq + bq_ref[...]
        return p * jax.nn.sigmoid(q)

    # ---- temporal gated conv 1 -------------------------------------------
    y1 = temporal_glu(x_ref[...], w1p_ref, w1q_ref, b1p_ref, b1q_ref)   # (R, cout)

    # ---- graph conv: theta (channel mix) then Abar (node mix) -------------
    # theta and the Abar node mix act on different axes, so they commute.
    yw = jnp.dot(y1.astype(jnp.bfloat16), wg_ref[...],
                 preferred_element_type=jnp.float32)                    # (R, cout)
    yw3 = yw.reshape(BT, N, cout).astype(jnp.bfloat16)                  # (B*T, N, cout)
    z3 = lax.dot_general(abar_ref[...], yw3,
                         dimension_numbers=(((2,), (1,)), ((0,), (0,))),
                         preferred_element_type=jnp.float32)            # (B*T, N, cout)
    z3 = jnp.maximum(z3, 0.0)                                           # ReLU

    # ---- temporal gated conv 2 -------------------------------------------
    z_rows = z3.reshape(B, TN, cout).astype(jnp.bfloat16)               # (B, T*N, cout)
    y2 = temporal_glu(z_rows, w2p_ref, w2q_ref, b2p_ref, b2q_ref)       # (R, cout)

    # ---- BatchNorm2d (training-mode batch statistics over B*N*T) ----------
    mean = jnp.mean(y2, axis=0, keepdims=True)                          # (1, cout)
    d = y2 - mean
    var = jnp.mean(d * d, axis=0, keepdims=True)                        # biased, as torch
    scale = gamma_ref[...] * lax.rsqrt(var + 1e-5)
    out_ref[...] = d * scale + beta_ref[...]


# ----------------------------------------------------------------------------
# Wrapper: layout glue + pallas_call
# ----------------------------------------------------------------------------
def normalize_adj(A):
    n = A.shape[0]
    A_hat = A + jnp.eye(n, dtype=A.dtype)
    d = jnp.sum(A_hat, axis=1)
    d_inv_sqrt = 1.0 / jnp.sqrt(d)
    return (d_inv_sqrt[:, None] * A_hat) * d_inv_sqrt[None, :]


def _full_block(shape):
    # Whole-array block (block_shape == array shape, so no (8,128) constraint).
    return pl.BlockSpec(shape, lambda i: (0,) * len(shape))


def st_conv_block_forward(x_nchw, params):
    """STConvBlock forward. x_nchw: (B, C_in, N, T) -> (B, C_out, N, T)."""
    B, cin, N, T = x_nchw.shape
    w1, w2 = params['w1'], params['w2']           # (k, cin, 2*cout), (k, cout, 2*cout)
    cout = w1.shape[-1] // 2

    # rows ordered (batch, time, node); channels on lanes; cast once to bf16
    x_rows = jnp.transpose(x_nchw, (0, 3, 2, 1)).reshape(B, T * N, cin)
    x_rows = x_rows.astype(jnp.bfloat16)

    w1p = w1[..., :cout].astype(jnp.bfloat16)     # (k, cin, cout)
    w1q = w1[..., cout:].astype(jnp.bfloat16)
    w2p = w2[..., :cout].astype(jnp.bfloat16)     # (k, cout, cout)
    w2q = w2[..., cout:].astype(jnp.bfloat16)
    b1p = params['b1'][:cout].reshape(1, cout).astype(jnp.float32)
    b1q = params['b1'][cout:].reshape(1, cout).astype(jnp.float32)
    b2p = params['b2'][:cout].reshape(1, cout).astype(jnp.float32)
    b2q = params['b2'][cout:].reshape(1, cout).astype(jnp.float32)
    wg = params['wg_t'].astype(jnp.bfloat16)      # (cout, cout) == theta.weight.T
    abar_bt = jnp.broadcast_to(
        params['abar'].astype(jnp.bfloat16)[None], (B * T, N, N))       # tiny (16 KB)
    gamma = params['bn_gamma'].reshape(1, cout).astype(jnp.float32)
    beta = params['bn_beta'].reshape(1, cout).astype(jnp.float32)

    operands = (x_rows, w1p, w1q, b1p, b1q, wg, abar_bt,
                w2p, w2q, b2p, b2q, gamma, beta)

    out_rows = pl.pallas_call(
        _st_block_kernel,
        out_shape=jax.ShapeDtypeStruct((B * T * N, cout), jnp.float32),
        grid=(1,),
        in_specs=[_full_block(a.shape) for a in operands],
        out_specs=_full_block((B * T * N, cout)),
        compiler_params=pltpu.CompilerParams(
            dimension_semantics=("arbitrary",)),
    )(*operands)

    out = out_rows.reshape(B, T, N, cout)
    return jnp.transpose(out, (0, 3, 2, 1))        # back to NCHW (B, cout, N, T)


# ----------------------------------------------------------------------------
# Pure-JAX f32 reference (test only; mirrors the PyTorch module)
# ----------------------------------------------------------------------------
def _reference_forward(x, params):
    B, cin, N, T = x.shape
    w1, b1, w2, b2 = params['w1'], params['b1'], params['w2'], params['b2']
    cout = w1.shape[-1] // 2
    k = w1.shape[0]
    pad = k // 2

    def temporal_conv(a, w, b):                    # a: (B, C, N, T)
        ap = jnp.pad(a, ((0, 0), (0, 0), (0, 0), (pad, pad)))
        h = jnp.zeros((B, N, T, 2 * cout), jnp.float32) + b
        for j in range(k):
            h = h + jnp.einsum('bcnt,cd->bntd', ap[..., j:j + T], w[j])
        y = h[..., :cout] * jax.nn.sigmoid(h[..., cout:])
        return jnp.transpose(y, (0, 3, 1, 2))      # (B, cout, N, T)

    x1 = temporal_conv(x, w1, b1)
    xt = jnp.transpose(x1, (0, 3, 2, 1))           # (B, T, N, cout)
    g = jnp.einsum('ij,btjc->btic', params['abar'], xt)
    g = jnp.einsum('btic,cd->btid', g, params['wg_t'])
    x2 = jnp.maximum(jnp.transpose(g, (0, 3, 2, 1)), 0.0)
    x3 = temporal_conv(x2, w2, b2)
    mean = jnp.mean(x3, axis=(0, 2, 3), keepdims=True)
    var = jnp.mean((x3 - mean) ** 2, axis=(0, 2, 3), keepdims=True)
    gamma = params['bn_gamma'].reshape(1, cout, 1, 1)
    beta = params['bn_beta'].reshape(1, cout, 1, 1)
    return gamma * (x3 - mean) * lax.rsqrt(var + 1e-5) + beta


# ----------------------------------------------------------------------------
# Deterministic parameter construction + run
# ----------------------------------------------------------------------------
if __name__ == "__main__":
    B, cin, cout, N, T, k = 2, 4, 32, 16, 16, 3

    key = jax.random.PRNGKey(0)
    k0, k1, k2, k3, k4, k5, k6 = jax.random.split(key, 7)

    # Conv2d(in_c, 2*out_c, (1,k), padding=(0,k//2)) weights stored (k, in, 2*out).
    w1 = 0.1 * jax.random.normal(k0, (k, cin, 2 * cout), jnp.float32)
    b1 = 0.1 * jax.random.normal(k1, (2 * cout,), jnp.float32)
    w2 = 0.1 * jax.random.normal(k2, (k, cout, 2 * cout), jnp.float32)
    b2 = 0.1 * jax.random.normal(k3, (2 * cout,), jnp.float32)
    # GraphConv: nn.Linear(out_c, out_c, bias=False); stored as weight.T
    wg_t = 0.1 * jax.random.normal(k4, (cout, cout), jnp.float32)
    # BatchNorm2d default affine init
    bn_gamma = jnp.ones((cout,), jnp.float32)
    bn_beta = jnp.zeros((cout,), jnp.float32)
    # Deterministic symmetric adjacency, then normalize_adj (buffer Abar)
    A = (jax.random.uniform(k5, (N, N)) < 0.3).astype(jnp.float32)
    A = jnp.maximum(A, A.T)
    abar = normalize_adj(A)

    params = dict(w1=w1, b1=b1, w2=w2, b2=b2, wg_t=wg_t,
                  bn_gamma=bn_gamma, bn_beta=bn_beta, abar=abar)

    x = jax.random.normal(k6, (B, cin, N, T), jnp.float32)   # NCHW input

    out = jax.jit(st_conv_block_forward)(x, params)
    jax.block_until_ready(out)
    assert out.shape == (B, cout, N, T)

    # Correctness vs f32 reference (bf16 matmul pipeline -> loose tolerance).
    ref = _reference_forward(x, params)
    err = float(jnp.max(jnp.abs(out - ref)))
    assert err < 0.25, f"max abs error vs f32 reference too large: {err}"
    print("KERNEL_OK")
</pallas_src>

<mosaic_0001>
module attributes {stable_mosaic.version = 11 : i64} {
  func.func @_st_block_kernel(%arg0: i32, %arg1: memref<2x256x4xbf16, #tpu.memory_space<vmem>>, %arg2: memref<3x4x32xbf16, #tpu.memory_space<vmem>>, %arg3: memref<3x4x32xbf16, #tpu.memory_space<vmem>>, %arg4: memref<1x32xf32, #tpu.memory_space<vmem>>, %arg5: memref<1x32xf32, #tpu.memory_space<vmem>>, %arg6: memref<32x32xbf16, #tpu.memory_space<vmem>>, %arg7: memref<32x16x16xbf16, #tpu.memory_space<vmem>>, %arg8: memref<3x32x32xbf16, #tpu.memory_space<vmem>>, %arg9: memref<3x32x32xbf16, #tpu.memory_space<vmem>>, %arg10: memref<1x32xf32, #tpu.memory_space<vmem>>, %arg11: memref<1x32xf32, #tpu.memory_space<vmem>>, %arg12: memref<1x32xf32, #tpu.memory_space<vmem>>, %arg13: memref<1x32xf32, #tpu.memory_space<vmem>>, %arg14: memref<512x32xf32, #tpu.memory_space<vmem>>) attributes {dimension_semantics = [#tpu.dimension_semantics<arbitrary>], iteration_bounds = array<i64: 1>, scalar_prefetch = 0 : i64, scratch_operands = 0 : i64, tpu.core_type = #tpu.core_type<tc>, window_params = [{pipeline_mode = #tpu.pipeline_mode<synchronous>, transform_indices = @transform_0, window_bounds = array<i64: 2, 256, 4>}, {pipeline_mode = #tpu.pipeline_mode<synchronous>, transform_indices = @transform_1, window_bounds = array<i64: 3, 4, 32>}, {pipeline_mode = #tpu.pipeline_mode<synchronous>, transform_indices = @transform_2, window_bounds = array<i64: 3, 4, 32>}, {pipeline_mode = #tpu.pipeline_mode<synchronous>, transform_indices = @transform_3, window_bounds = array<i64: 1, 32>}, {pipeline_mode = #tpu.pipeline_mode<synchronous>, transform_indices = @transform_4, window_bounds = array<i64: 1, 32>}, {pipeline_mode = #tpu.pipeline_mode<synchronous>, transform_indices = @transform_5, window_bounds = array<i64: 32, 32>}, {pipeline_mode = #tpu.pipeline_mode<synchronous>, transform_indices = @transform_6, window_bounds = array<i64: 32, 16, 16>}, {pipeline_mode = #tpu.pipeline_mode<synchronous>, transform_indices = @transform_7, window_bounds = array<i64: 3, 32, 32>}, {pipeline_mode = #tpu.pipeline_mode<synchronous>, transform_indices = @transform_8, window_bounds = array<i64: 3, 32, 32>}, {pipeline_mode = #tpu.pipeline_mode<synchronous>, transform_indices = @transform_9, window_bounds = array<i64: 1, 32>}, {pipeline_mode = #tpu.pipeline_mode<synchronous>, transform_indices = @transform_10, window_bounds = array<i64: 1, 32>}, {pipeline_mode = #tpu.pipeline_mode<synchronous>, transform_indices = @transform_11, window_bounds = array<i64: 1, 32>}, {pipeline_mode = #tpu.pipeline_mode<synchronous>, transform_indices = @transform_12, window_bounds = array<i64: 1, 32>}, {pipeline_mode = #tpu.pipeline_mode<synchronous>, transform_indices = @transform_13, window_bounds = array<i64: 512, 32>}]} {
    %c0 = arith.constant 0 : index
    %c0_0 = arith.constant 0 : index
    %c0_1 = arith.constant 0 : index
    %0 = vector.load %arg1[%c0, %c0_0, %c0_1] : memref<2x256x4xbf16, #tpu.memory_space<vmem>>, vector<2x256x4xbf16>
    %cst = arith.constant 0.000000e+00 : bf16
    %1 = vector.broadcast %cst : bf16 to vector<2x16x4xbf16>
    %2 = tpu.concatenate %1, %0, %1 in 1 : vector<2x16x4xbf16>, vector<2x256x4xbf16>, vector<2x16x4xbf16> -> vector<2x288x4xbf16>
    %cst_2 = arith.constant 0.000000e+00 : f32
    %3 = vector.broadcast %cst_2 : f32 to vector<512x32xf32>
    %cst_3 = arith.constant 0.000000e+00 : f32
    %4 = vector.broadcast %cst_3 : f32 to vector<512x32xf32>
    %5 = vector.extract_strided_slice %2 {offsets = [0, 0, 0], sizes = [2, 256, 4], strides = [1, 1, 1]} : vector<2x288x4xbf16> to vector<2x256x4xbf16>
    %6 = vector.shape_cast %5 : vector<2x256x4xbf16> to vector<512x4xbf16>
    %c0_4 = arith.constant 0 : index
    %c0_5 = arith.constant 0 : index
    %c0_6 = arith.constant 0 : index
    %7 = vector.load %arg2[%c0_4, %c0_5, %c0_6] : memref<3x4x32xbf16, #tpu.memory_space<vmem>>, vector<1x4x32xbf16>
    %8 = vector.shape_cast %7 : vector<1x4x32xbf16> to vector<4x32xbf16>
    %cst_7 = arith.constant dense<0.000000e+00> : vector<512x32xf32>
    %9 = tpu.matmul %6, %8, %cst_7 {dimension_numbers = #tpu.dot_dimension_numbers<[1], [0], [0], [1], [0, 0, 1, 1], [], []>} : vector<512x4xbf16>, vector<4x32xbf16>, vector<512x32xf32> -> vector<512x32xf32>
    %10 = arith.addf %3, %9 : vector<512x32xf32>
    %c0_8 = arith.constant 0 : index
    %c0_9 = arith.constant 0 : index
    %c0_10 = arith.constant 0 : index
    %11 = vector.load %arg3[%c0_8, %c0_9, %c0_10] : memref<3x4x32xbf16, #tpu.memory_space<vmem>>, vector<1x4x32xbf16>
    %12 = vector.shape_cast %11 : vector<1x4x32xbf16> to vector<4x32xbf16>
    %cst_11 = arith.constant dense<0.000000e+00> : vector<512x32xf32>
    %13 = tpu.matmul %6, %12, %cst_11 {dimension_numbers = #tpu.dot_dimension_numbers<[1], [0], [0], [1], [0, 0, 1, 1], [], []>} : vector<512x4xbf16>, vector<4x32xbf16>, vector<512x32xf32> -> vector<512x32xf32>
    %14 = arith.addf %4, %13 : vector<512x32xf32>
    %15 = vector.extract_strided_slice %2 {offsets = [0, 16, 0], sizes = [2, 256, 4], strides = [1, 1, 1]} : vector<2x288x4xbf16> to vector<2x256x4xbf16>
    %16 = vector.shape_cast %15 : vector<2x256x4xbf16> to vector<512x4xbf16>
    %c1 = arith.constant 1 : index
    %c0_12 = arith.constant 0 : index
    %c0_13 = arith.constant 0 : index
    %17 = vector.load %arg2[%c1, %c0_12, %c0_13] : memref<3x4x32xbf16, #tpu.memory_space<vmem>>, vector<1x4x32xbf16>
    %18 = vector.shape_cast %17 : vector<1x4x32xbf16> to vector<4x32xbf16>
    %cst_14 = arith.constant dense<0.000000e+00> : vector<512x32xf32>
    %19 = tpu.matmul %16, %18, %cst_14 {dimension_numbers = #tpu.dot_dimension_numbers<[1], [0], [0], [1], [0, 0, 1, 1], [], []>} : vector<512x4xbf16>, vector<4x32xbf16>, vector<512x32xf32> -> vector<512x32xf32>
    %20 = arith.addf %10, %19 : vector<512x32xf32>
    %c1_15 = arith.constant 1 : index
    %c0_16 = arith.constant 0 : index
    %c0_17 = arith.constant 0 : index
    %21 = vector.load %arg3[%c1_15, %c0_16, %c0_17] : memref<3x4x32xbf16, #tpu.memory_space<vmem>>, vector<1x4x32xbf16>
    %22 = vector.shape_cast %21 : vector<1x4x32xbf16> to vector<4x32xbf16>
    %cst_18 = arith.constant dense<0.000000e+00> : vector<512x32xf32>
    %23 = tpu.matmul %16, %22, %cst_18 {dimension_numbers = #tpu.dot_dimension_numbers<[1], [0], [0], [1], [0, 0, 1, 1], [], []>} : vector<512x4xbf16>, vector<4x32xbf16>, vector<512x32xf32> -> vector<512x32xf32>
    %24 = arith.addf %14, %23 : vector<512x32xf32>
    %25 = vector.extract_strided_slice %2 {offsets = [0, 32, 0], sizes = [2, 256, 4], strides = [1, 1, 1]} : vector<2x288x4xbf16> to vector<2x256x4xbf16>
    %26 = vector.shape_cast %25 : vector<2x256x4xbf16> to vector<512x4xbf16>
    %c2 = arith.constant 2 : index
    %c0_19 = arith.constant 0 : index
    %c0_20 = arith.constant 0 : index
    %27 = vector.load %arg2[%c2, %c0_19, %c0_20] : memref<3x4x32xbf16, #tpu.memory_space<vmem>>, vector<1x4x32xbf16>
    %28 = vector.shape_cast %27 : vector<1x4x32xbf16> to vector<4x32xbf16>
    %cst_21 = arith.constant dense<0.000000e+00> : vector<512x32xf32>
    %29 = tpu.matmul %26, %28, %cst_21 {dimension_numbers = #tpu.dot_dimension_numbers<[1], [0], [0], [1], [0, 0, 1, 1], [], []>} : vector<512x4xbf16>, vector<4x32xbf16>, vector<512x32xf32> -> vector<512x32xf32>
    %30 = arith.addf %20, %29 : vector<512x32xf32>
    %c2_22 = arith.constant 2 : index
    %c0_23 = arith.constant 0 : index
    %c0_24 = arith.constant 0 : index
    %31 = vector.load %arg3[%c2_22, %c0_23, %c0_24] : memref<3x4x32xbf16, #tpu.memory_space<vmem>>, vector<1x4x32xbf16>
    %32 = vector.shape_cast %31 : vector<1x4x32xbf16> to vector<4x32xbf16>
    %cst_25 = arith.constant dense<0.000000e+00> : vector<512x32xf32>
    %33 = tpu.matmul %26, %32, %cst_25 {dimension_numbers = #tpu.dot_dimension_numbers<[1], [0], [0], [1], [0, 0, 1, 1], [], []>} : vector<512x4xbf16>, vector<4x32xbf16>, vector<512x32xf32> -> vector<512x32xf32>
    %34 = arith.addf %24, %33 : vector<512x32xf32>
    %c0_26 = arith.constant 0 : index
    %c0_27 = arith.constant 0 : index
    %35 = vector.load %arg4[%c0_26, %c0_27] : memref<1x32xf32, #tpu.memory_space<vmem>>, vector<1x32xf32>
    %36 = vector.broadcast %35 : vector<1x32xf32> to vector<512x32xf32>
    %37 = arith.addf %30, %36 : vector<512x32xf32>
    %c0_28 = arith.constant 0 : index
    %c0_29 = arith.constant 0 : index
    %38 = vector.load %arg5[%c0_28, %c0_29] : memref<1x32xf32, #tpu.memory_space<vmem>>, vector<1x32xf32>
    %39 = vector.broadcast %38 : vector<1x32xf32> to vector<512x32xf32>
    %40 = arith.addf %34, %39 : vector<512x32xf32>
    %41 = arith.negf %40 : vector<512x32xf32>
    %42 = math.exp %41 : vector<512x32xf32>
    %cst_30 = arith.constant 1.000000e+00 : f32
    %43 = vector.broadcast %cst_30 : f32 to vector<512x32xf32>
    %44 = arith.addf %43, %42 : vector<512x32xf32>
    %45 = arith.divf %43, %44 : vector<512x32xf32>
    %46 = arith.mulf %37, %45 : vector<512x32xf32>
    %47 = arith.truncf %46 : vector<512x32xf32> to vector<512x32xbf16>
    %c0_31 = arith.constant 0 : index
    %c0_32 = arith.constant 0 : index
    %48 = vector.load %arg6[%c0_31, %c0_32] : memref<32x32xbf16, #tpu.memory_space<vmem>>, vector<32x32xbf16>
    %cst_33 = arith.constant dense<0.000000e+00> : vector<512x32xf32>
    %49 = tpu.matmul %47, %48, %cst_33 {dimension_numbers = #tpu.dot_dimension_numbers<[1], [0], [0], [1], [0, 0, 1, 1], [], []>} : vector<512x32xbf16>, vector<32x32xbf16>, vector<512x32xf32> -> vector<512x32xf32>
    %50 = vector.shape_cast %49 : vector<512x32xf32> to vector<32x16x32xf32>
    %51 = arith.truncf %50 : vector<32x16x32xf32> to vector<32x16x32xbf16>
    %c0_34 = arith.constant 0 : index
    %c0_35 = arith.constant 0 : index
    %c0_36 = arith.constant 0 : index
    %52 = vector.load %arg7[%c0_34, %c0_35, %c0_36] : memref<32x16x16xbf16, #tpu.memory_space<vmem>>, vector<32x16x16xbf16>
    %cst_37 = arith.constant dense<0.000000e+00> : vector<32x16x32xf32>
    %53 = tpu.matmul %52, %51, %cst_37 {dimension_numbers = #tpu.dot_dimension_numbers<[2], [1], [1], [2], [0, 0, 0, 1, 1, 2], [0], [0]>} : vector<32x16x16xbf16>, vector<32x16x32xbf16>, vector<32x16x32xf32> -> vector<32x16x32xf32>
    %cst_38 = arith.constant 0.000000e+00 : f32
    %54 = vector.broadcast %cst_38 : f32 to vector<32x16x32xf32>
    %55 = arith.maximumf %53, %54 : vector<32x16x32xf32>
    %56 = vector.shape_cast %55 : vector<32x16x32xf32> to vector<2x256x32xf32>
    %57 = arith.truncf %56 : vector<2x256x32xf32> to vector<2x256x32xbf16>
    %cst_39 = arith.constant 0.000000e+00 : bf16
    %58 = vector.broadcast %cst_39 : bf16 to vector<2x16x32xbf16>
    %59 = tpu.concatenate %58, %57, %58 in 1 : vector<2x16x32xbf16>, vector<2x256x32xbf16>, vector<2x16x32xbf16> -> vector<2x288x32xbf16>
    %cst_40 = arith.constant 0.000000e+00 : f32
    %60 = vector.broadcast %cst_40 : f32 to vector<512x32xf32>
    %cst_41 = arith.constant 0.000000e+00 : f32
    %61 = vector.broadcast %cst_41 : f32 to vector<512x32xf32>
    %62 = vector.extract_strided_slice %59 {offsets = [0, 0, 0], sizes = [2, 256, 32], strides = [1, 1, 1]} : vector<2x288x32xbf16> to vector<2x256x32xbf16>
    %63 = vector.shape_cast %62 : vector<2x256x32xbf16> to vector<512x32xbf16>
    %c0_42 = arith.constant 0 : index
    %c0_43 = arith.constant 0 : index
    %c0_44 = arith.constant 0 : index
    %64 = vector.load %arg8[%c0_42, %c0_43, %c0_44] : memref<3x32x32xbf16, #tpu.memory_space<vmem>>, vector<1x32x32xbf16>
    %65 = vector.shape_cast %64 : vector<1x32x32xbf16> to vector<32x32xbf16>
    %cst_45 = arith.constant dense<0.000000e+00> : vector<512x32xf32>
    %66 = tpu.matmul %63, %65, %cst_45 {dimension_numbers = #tpu.dot_dimension_numbers<[1], [0], [0], [1], [0, 0, 1, 1], [], []>} : vector<512x32xbf16>, vector<32x32xbf16>, vector<512x32xf32> -> vector<512x32xf32>
    %67 = arith.addf %60, %66 : vector<512x32xf32>
    %c0_46 = arith.constant 0 : index
    %c0_47 = arith.constant 0 : index
    %c0_48 = arith.constant 0 : index
    %68 = vector.load %arg9[%c0_46, %c0_47, %c0_48] : memref<3x32x32xbf16, #tpu.memory_space<vmem>>, vector<1x32x32xbf16>
    %69 = vector.shape_cast %68 : vector<1x32x32xbf16> to vector<32x32xbf16>
    %cst_49 = arith.constant dense<0.000000e+00> : vector<512x32xf32>
    %70 = tpu.matmul %63, %69, %cst_49 {dimension_numbers = #tpu.dot_dimension_numbers<[1], [0], [0], [1], [0, 0, 1, 1], [], []>} : vector<512x32xbf16>, vector<32x32xbf16>, vector<512x32xf32> -> vector<512x32xf32>
    %71 = arith.addf %61, %70 : vector<512x32xf32>
    %72 = vector.extract_strided_slice %59 {offsets = [0, 16, 0], sizes = [2, 256, 32], strides = [1, 1, 1]} : vector<2x288x32xbf16> to vector<2x256x32xbf16>
    %73 = vector.shape_cast %72 : vector<2x256x32xbf16> to vector<512x32xbf16>
    %c1_50 = arith.constant 1 : index
    %c0_51 = arith.constant 0 : index
    %c0_52 = arith.constant 0 : index
    %74 = vector.load %arg8[%c1_50, %c0_51, %c0_52] : memref<3x32x32xbf16, #tpu.memory_space<vmem>>, vector<1x32x32xbf16>
    %75 = vector.shape_cast %74 : vector<1x32x32xbf16> to vector<32x32xbf16>
    %cst_53 = arith.constant dense<0.000000e+00> : vector<512x32xf32>
    %76 = tpu.matmul %73, %75, %cst_53 {dimension_numbers = #tpu.dot_dimension_numbers<[1], [0], [0], [1], [0, 0, 1, 1], [], []>} : vector<512x32xbf16>, vector<32x32xbf16>, vector<512x32xf32> -> vector<512x32xf32>
    %77 = arith.addf %67, %76 : vector<512x32xf32>
    %c1_54 = arith.constant 1 : index
    %c0_55 = arith.constant 0 : index
    %c0_56 = arith.constant 0 : index
    %78 = vector.load %arg9[%c1_54, %c0_55, %c0_56] : memref<3x32x32xbf16, #tpu.memory_space<vmem>>, vector<1x32x32xbf16>
    %79 = vector.shape_cast %78 : vector<1x32x32xbf16> to vector<32x32xbf16>
    %cst_57 = arith.constant dense<0.000000e+00> : vector<512x32xf32>
    %80 = tpu.matmul %73, %79, %cst_57 {dimension_numbers = #tpu.dot_dimension_numbers<[1], [0], [0], [1], [0, 0, 1, 1], [], []>} : vector<512x32xbf16>, vector<32x32xbf16>, vector<512x32xf32> -> vector<512x32xf32>
    %81 = arith.addf %71, %80 : vector<512x32xf32>
    %82 = vector.extract_strided_slice %59 {offsets = [0, 32, 0], sizes = [2, 256, 32], strides = [1, 1, 1]} : vector<2x288x32xbf16> to vector<2x256x32xbf16>
    %83 = vector.shape_cast %82 : vector<2x256x32xbf16> to vector<512x32xbf16>
    %c2_58 = arith.constant 2 : index
    %c0_59 = arith.constant 0 : index
    %c0_60 = arith.constant 0 : index
    %84 = vector.load %arg8[%c2_58, %c0_59, %c0_60] : memref<3x32x32xbf16, #tpu.memory_space<vmem>>, vector<1x32x32xbf16>
    %85 = vector.shape_cast %84 : vector<1x32x32xbf16> to vector<32x32xbf16>
    %cst_61 = arith.constant dense<0.000000e+00> : vector<512x32xf32>
    %86 = tpu.matmul %83, %85, %cst_61 {dimension_numbers = #tpu.dot_dimension_numbers<[1], [0], [0], [1], [0, 0, 1, 1], [], []>} : vector<512x32xbf16>, vector<32x32xbf16>, vector<512x32xf32> -> vector<512x32xf32>
    %87 = arith.addf %77, %86 : vector<512x32xf32>
    %c2_62 = arith.constant 2 : index
    %c0_63 = arith.constant 0 : index
    %c0_64 = arith.constant 0 : index
    %88 = vector.load %arg9[%c2_62, %c0_63, %c0_64] : memref<3x32x32xbf16, #tpu.memory_space<vmem>>, vector<1x32x32xbf16>
    %89 = vector.shape_cast %88 : vector<1x32x32xbf16> to vector<32x32xbf16>
    %cst_65 = arith.constant dense<0.000000e+00> : vector<512x32xf32>
    %90 = tpu.matmul %83, %89, %cst_65 {dimension_numbers = #tpu.dot_dimension_numbers<[1], [0], [0], [1], [0, 0, 1, 1], [], []>} : vector<512x32xbf16>, vector<32x32xbf16>, vector<512x32xf32> -> vector<512x32xf32>
    %91 = arith.addf %81, %90 : vector<512x32xf32>
    %c0_66 = arith.constant 0 : index
    %c0_67 = arith.constant 0 : index
    %92 = vector.load %arg10[%c0_66, %c0_67] : memref<1x32xf32, #tpu.memory_space<vmem>>, vector<1x32xf32>
    %93 = vector.broadcast %92 : vector<1x32xf32> to vector<512x32xf32>
    %94 = arith.addf %87, %93 : vector<512x32xf32>
    %c0_68 = arith.constant 0 : index
    %c0_69 = arith.constant 0 : index
    %95 = vector.load %arg11[%c0_68, %c0_69] : memref<1x32xf32, #tpu.memory_space<vmem>>, vector<1x32xf32>
    %96 = vector.broadcast %95 : vector<1x32xf32> to vector<512x32xf32>
    %97 = arith.addf %91, %96 : vector<512x32xf32>
    %98 = arith.negf %97 : vector<512x32xf32>
    %99 = math.exp %98 : vector<512x32xf32>
    %cst_70 = arith.constant 1.000000e+00 : f32
    %100 = vector.broadcast %cst_70 : f32 to vector<512x32xf32>
    %101 = arith.addf %100, %99 : vector<512x32xf32>
    %102 = arith.divf %100, %101 : vector<512x32xf32>
    %103 = arith.mulf %94, %102 : vector<512x32xf32>
    %cst_71 = arith.constant dense<0.000000e+00> : vector<32xf32>
    %104 = vector.multi_reduction <add>, %103, %cst_71 [0] : vector<512x32xf32> to vector<32xf32>
    %105 = vector.shape_cast %104 : vector<32xf32> to vector<1x32xf32>
    %cst_72 = arith.constant 5.120000e+02 : f32
    %106 = vector.broadcast %cst_72 : f32 to vector<1x32xf32>
    %107 = arith.divf %105, %106 : vector<1x32xf32>
    %108 = vector.broadcast %107 : vector<1x32xf32> to vector<512x32xf32>
    %109 = arith.subf %103, %108 : vector<512x32xf32>
    %110 = arith.mulf %109, %109 : vector<512x32xf32>
    %cst_73 = arith.constant dense<0.000000e+00> : vector<32xf32>
    %111 = vector.multi_reduction <add>, %110, %cst_73 [0] : vector<512x32xf32> to vector<32xf32>
    %112 = vector.shape_cast %111 : vector<32xf32> to vector<1x32xf32>
    %cst_74 = arith.constant 5.120000e+02 : f32
    %113 = vector.broadcast %cst_74 : f32 to vector<1x32xf32>
    %114 = arith.divf %112, %113 : vector<1x32xf32>
    %c0_75 = arith.constant 0 : index
    %c0_76 = arith.constant 0 : index
    %115 = vector.load %arg12[%c0_75, %c0_76] : memref<1x32xf32, #tpu.memory_space<vmem>>, vector<1x32xf32>
    %cst_77 = arith.constant 9.99999974E-6 : f32
    %116 = vector.broadcast %cst_77 : f32 to vector<1x32xf32>
    %117 = arith.addf %114, %116 : vector<1x32xf32>
    %118 = math.rsqrt %117 : vector<1x32xf32>
    %119 = arith.mulf %115, %118 : vector<1x32xf32>
    %120 = vector.broadcast %119 : vector<1x32xf32> to vector<512x32xf32>
    %121 = arith.mulf %109, %120 : vector<512x32xf32>
    %c0_78 = arith.constant 0 : index
    %c0_79 = arith.constant 0 : index
    %122 = vector.load %arg13[%c0_78, %c0_79] : memref<1x32xf32, #tpu.memory_space<vmem>>, vector<1x32xf32>
    %123 = vector.broadcast %122 : vector<1x32xf32> to vector<512x32xf32>
    %124 = arith.addf %121, %123 : vector<512x32xf32>
    %c0_80 = arith.constant 0 : index
    %c0_81 = arith.constant 0 : index
    %125 = vector.load %arg14[%c0_80, %c0_81] : memref<512x32xf32, #tpu.memory_space<vmem>>, vector<512x32xf32>
    tpu.vector_store %arg14[%c0_80, %c0_81], %124 {strides = array<i32>} : memref<512x32xf32, #tpu.memory_space<vmem>>, vector<512x32xf32>,
    return
  }
  func.func @transform_0(%arg0: i32) -> (i32, i32, i32) {
    %c0_i32 = arith.constant 0 : i32
    %c0_i32_0 = arith.constant 0 : i32
    %c0_i32_1 = arith.constant 0 : i32
    %c0_i32_2 = arith.constant 0 : i32
    return %c0_i32, %c0_i32_0, %c0_i32_1 : i32, i32, i32
  }
  func.func @transform_1(%arg0: i32) -> (i32, i32, i32) {
    %c0_i32 = arith.constant 0 : i32
    %c0_i32_0 = arith.constant 0 : i32
    %c0_i32_1 = arith.constant 0 : i32
    %c0_i32_2 = arith.constant 0 : i32
    return %c0_i32, %c0_i32_0, %c0_i32_1 : i32, i32, i32
  }
  func.func @transform_2(%arg0: i32) -> (i32, i32, i32) {
    %c0_i32 = arith.constant 0 : i32
    %c0_i32_0 = arith.constant 0 : i32
    %c0_i32_1 = arith.constant 0 : i32
    %c0_i32_2 = arith.constant 0 : i32
    return %c0_i32, %c0_i32_0, %c0_i32_1 : i32, i32, i32
  }
  func.func @transform_3(%arg0: i32) -> (i32, i32) {
    %c0_i32 = arith.constant 0 : i32
    %c0_i32_0 = arith.constant 0 : i32
    %c0_i32_1 = arith.constant 0 : i32
    return %c0_i32, %c0_i32_0 : i32, i32
  }
  func.func @transform_4(%arg0: i32) -> (i32, i32) {
    %c0_i32 = arith.constant 0 : i32
    %c0_i32_0 = arith.constant 0 : i32
    %c0_i32_1 = arith.constant 0 : i32
    return %c0_i32, %c0_i32_0 : i32, i32
  }
  func.func @transform_5(%arg0: i32) -> (i32, i32) {
    %c0_i32 = arith.constant 0 : i32
    %c0_i32_0 = arith.constant 0 : i32
    %c0_i32_1 = arith.constant 0 : i32
    return %c0_i32, %c0_i32_0 : i32, i32
  }
  func.func @transform_6(%arg0: i32) -> (i32, i32, i32) {
    %c0_i32 = arith.constant 0 : i32
    %c0_i32_0 = arith.constant 0 : i32
    %c0_i32_1 = arith.constant 0 : i32
    %c0_i32_2 = arith.constant 0 : i32
    return %c0_i32, %c0_i32_0, %c0_i32_1 : i32, i32, i32
  }
  func.func @transform_7(%arg0: i32) -> (i32, i32, i32) {
    %c0_i32 = arith.constant 0 : i32
    %c0_i32_0 = arith.constant 0 : i32
    %c0_i32_1 = arith.constant 0 : i32
    %c0_i32_2 = arith.constant 0 : i32
    return %c0_i32, %c0_i32_0, %c0_i32_1 : i32, i32, i32
  }
  func.func @transform_8(%arg0: i32) -> (i32, i32, i32) {
    %c0_i32 = arith.constant 0 : i32
    %c0_i32_0 = arith.constant 0 : i32
    %c0_i32_1 = arith.constant 0 : i32
    %c0_i32_2 = arith.constant 0 : i32
    return %c0_i32, %c0_i32_0, %c0_i32_1 : i32, i32, i32
  }
  func.func @transform_9(%arg0: i32) -> (i32, i32) {
    %c0_i32 = arith.constant 0 : i32
    %c0_i32_0 = arith.constant 0 : i32
    %c0_i32_1 = arith.constant 0 : i32
    return %c0_i32, %c0_i32_0 : i32, i32
  }
  func.func @transform_10(%arg0: i32) -> (i32, i32) {
    %c0_i32 = arith.constant 0 : i32
    %c0_i32_0 = arith.constant 0 : i32
    %c0_i32_1 = arith.constant 0 : i32
    return %c0_i32, %c0_i32_0 : i32, i32
  }
  func.func @transform_11(%arg0: i32) -> (i32, i32) {
    %c0_i32 = arith.constant 0 : i32
    %c0_i32_0 = arith.constant 0 : i32
    %c0_i32_1 = arith.constant 0 : i32
    return %c0_i32, %c0_i32_0 : i32, i32
  }
  func.func @transform_12(%arg0: i32) -> (i32, i32) {
    %c0_i32 = arith.constant 0 : i32
    %c0_i32_0 = arith.constant 0 : i32
    %c0_i32_1 = arith.constant 0 : i32
    return %c0_i32, %c0_i32_0 : i32, i32
  }
  func.func @transform_13(%arg0: i32) -> (i32, i32) {
    %c0_i32 = arith.constant 0 : i32
    %c0_i32_0 = arith.constant 0 : i32
    %c0_i32_1 = arith.constant 0 : i32
    return %c0_i32, %c0_i32_0 : i32, i32
  }
}

</mosaic_0001>

<llo_original>
// kernel: st_conv_block_forward.1
$region0: #{st_conv_block_forward.1}
  #allocation0 [shape = 'u32[]', space=smem, size = 0x4, offset = 0x4, fixed_abs, tag = 'smem constant byte address 0x4 - core index']
  #allocation1 [shape = 'u32[72,128]{1,0:T(1,128)}', space=vmem, size = 0x9000, scoped, tag = 'internal scratch']
  %s0 = inlined_call_operand.vmem [shape: bf16[2,256,4], index: 0, kind: input, shape index: {}]
  %s1 = inlined_call_operand.vmem [shape: bf16[3,4,32], index: 1, kind: input, shape index: {}]
  %s2 = inlined_call_operand.vmem [shape: bf16[3,4,32], index: 2, kind: input, shape index: {}]
  %s3 = inlined_call_operand.vmem [shape: f32[1,32], index: 3, kind: input, shape index: {}]
  %s4 = inlined_call_operand.vmem [shape: f32[1,32], index: 4, kind: input, shape index: {}]
  %s5 = inlined_call_operand.vmem [shape: bf16[32,32], index: 5, kind: input, shape index: {}]
  %s6 = inlined_call_operand.vmem [shape: bf16[32,16,16], index: 6, kind: input, shape index: {}]
  %s7 = inlined_call_operand.vmem [shape: bf16[3,32,32], index: 7, kind: input, shape index: {}]
  %s8 = inlined_call_operand.vmem [shape: bf16[3,32,32], index: 8, kind: input, shape index: {}]
  %s9 = inlined_call_operand.vmem [shape: f32[1,32], index: 9, kind: input, shape index: {}]
  %s10 = inlined_call_operand.vmem [shape: f32[1,32], index: 10, kind: input, shape index: {}]
  %s11 = inlined_call_operand.vmem [shape: f32[1,32], index: 11, kind: input, shape index: {}]
  %s12 = inlined_call_operand.vmem [shape: f32[1,32], index: 12, kind: input, shape index: {}]
  %s13 = inlined_call_operand.vmem [shape: f32[512,32], index: 13, kind: output, shape index: {}]
  %s14 = sld [smem:[#allocation0]]
  $region62: #{st_conv_block_forward.1} parent=0
    _
  %s16 = ssub.s32 1, %s14
  %s17 = scalar_select 0, %s16, %s14
  // Predicated region
  $region2: #{st_conv_block_forward.1} parent=0 // pred_check
    _
  $region3: #{st_conv_block_forward.1} parent=0 // pred_check_branch
    %19 = sbr.rel (0) target = $region5
  $region4: #{st_conv_block_forward.1} parent=0 // pred_region
    _
  $region5: #{st_conv_block_forward.1} parent=0 // pred_fallthru
    _
  // Predicated region
  $region6: #{st_conv_block_forward.1} parent=0 // pred_check
    _
  $region7: #{st_conv_block_forward.1} parent=0 // pred_check_branch
    %21 = sbr.rel (0) target = $region9
  $region8: #{st_conv_block_forward.1} parent=0 // pred_region
    _
  $region9: #{st_conv_block_forward.1} parent=0 // pred_fallthru
    _
  // Predicated region
  $region10: #{st_conv_block_forward.1} parent=0 // pred_check
    _
  $region11: #{st_conv_block_forward.1} parent=0 // pred_check_branch
    %23 = sbr.rel (0) target = $region13
  $region12: #{st_conv_block_forward.1} parent=0 // pred_region
    _
  $region13: #{st_conv_block_forward.1} parent=0 // pred_fallthru
    _
  // Predicated region
  $region14: #{st_conv_block_forward.1} parent=0 // pred_check
    _
  $region15: #{st_conv_block_forward.1} parent=0 // pred_check_branch
    %25 = sbr.rel (0) target = $region17
  $region16: #{st_conv_block_forward.1} parent=0 // pred_region
    _
  $region17: #{st_conv_block_forward.1} parent=0 // pred_fallthru
    _
  // Predicated region
  $region18: #{st_conv_block_forward.1} parent=0 // pred_check
    _
  $region19: #{st_conv_block_forward.1} parent=0 // pred_check_branch
    %27 = sbr.rel (0) target = $region21
  $region20: #{st_conv_block_forward.1} parent=0 // pred_region
    _
  $region21: #{st_conv_block_forward.1} parent=0 // pred_fallthru
    _
  // Predicated region
  $region22: #{st_conv_block_forward.1} parent=0 // pred_check
    _
  $region23: #{st_conv_block_forward.1} parent=0 // pred_check_branch
    %29 = sbr.rel (0) target = $region25
  $region24: #{st_conv_block_forward.1} parent=0 // pred_region
    _
  $region25: #{st_conv_block_forward.1} parent=0 // pred_fallthru
    _
  // Predicated region
  $region26: #{st_conv_block_forward.1} parent=0 // pred_check
    _
  $region27: #{st_conv_block_forward.1} parent=0 // pred_check_branch
    %31 = sbr.rel (0) target = $region29
  $region28: #{st_conv_block_forward.1} parent=0 // pred_region
    _
  $region29: #{st_conv_block_forward.1} parent=0 // pred_fallthru
    _
  // Predicated region
  $region30: #{st_conv_block_forward.1} parent=0 // pred_check
    _
  $region31: #{st_conv_block_forward.1} parent=0 // pred_check_branch
    %33 = sbr.rel (0) target = $region33
  $region32: #{st_conv_block_forward.1} parent=0 // pred_region
    _
  $region33: #{st_conv_block_forward.1} parent=0 // pred_fallthru
    _
  // Predicated region
  $region34: #{st_conv_block_forward.1} parent=0 // pred_check
    _
  $region35: #{st_conv_block_forward.1} parent=0 // pred_check_branch
    %35 = sbr.rel (0) target = $region37
  $region36: #{st_conv_block_forward.1} parent=0 // pred_region
    _
  $region37: #{st_conv_block_forward.1} parent=0 // pred_fallthru
    _
  // Predicated region
  $region38: #{st_conv_block_forward.1} parent=0 // pred_check
    _
  $region39: #{st_conv_block_forward.1} parent=0 // pred_check_branch
    %37 = sbr.rel (0) target = $region41
  $region40: #{st_conv_block_forward.1} parent=0 // pred_region
    _
  $region41: #{st_conv_block_forward.1} parent=0 // pred_fallthru
    _
  // Predicated region
  $region42: #{st_conv_block_forward.1} parent=0 // pred_check
    _
  $region43: #{st_conv_block_forward.1} parent=0 // pred_check_branch
    %39 = sbr.rel (0) target = $region45
  $region44: #{st_conv_block_forward.1} parent=0 // pred_region
    _
  $region45: #{st_conv_block_forward.1} parent=0 // pred_fallthru
    _
  // Predicated region
  $region46: #{st_conv_block_forward.1} parent=0 // pred_check
    _
  $region47: #{st_conv_block_forward.1} parent=0 // pred_check_branch
    %41 = sbr.rel (0) target = $region49
  $region48: #{st_conv_block_forward.1} parent=0 // pred_region
    _
  $region49: #{st_conv_block_forward.1} parent=0 // pred_fallthru
    _
  // Predicated region
  $region50: #{st_conv_block_forward.1} parent=0 // pred_check
    _
  $region51: #{st_conv_block_forward.1} parent=0 // pred_check_branch
    %43 = sbr.rel (0) target = $region53
  $region52: #{st_conv_block_forward.1} parent=0 // pred_region
    _
  $region53: #{st_conv_block_forward.1} parent=0 // pred_fallthru
    _
  %v45 = vld [vmem:[%s0] sm:$0xf]
  %v46 = vld [vmem:[%s0 + $0x4] sm:$0xf]
  %v47 = vld [vmem:[%s0 + $0x8] sm:$0xf]
  %v48 = vld [vmem:[%s0 + $0xc] sm:$0xf]
  %v49 = vld [vmem:[%s0 + $0x10] sm:$0xf]
  %v50 = vld [vmem:[%s0 + $0x14] sm:$0xf]
  %v51 = vld [vmem:[%s0 + $0x18] sm:$0xf]
  %v52 = vld [vmem:[%s0 + $0x1c] sm:$0xf]
  %v53 = vld [vmem:[%s0 + $0x20] sm:$0xf]
  %v54 = vld [vmem:[%s0 + $0x24] sm:$0xf]
  %v55 = vld [vmem:[%s0 + $0x28] sm:$0xf]
  %v56 = vld [vmem:[%s0 + $0x2c] sm:$0xf]
  %v57 = vld [vmem:[%s0 + $0x30] sm:$0xf]
  %v58 = vld [vmem:[%s0 + $0x34] sm:$0xf]
  %v59 = vld [vmem:[%s0 + $0x38] sm:$0xf]
  %v60 = vld [vmem:[%s0 + $0x3c] sm:$0xf]
  %v61 = vld [vmem:[%s0 + $0x40] sm:$0xf]
  %v62 = vld [vmem:[%s0 + $0x44] sm:$0xf]
  %v63 = vld [vmem:[%s0 + $0x48] sm:$0xf]
  %v64 = vld [vmem:[%s0 + $0x4c] sm:$0xf]
  %v65 = vld [vmem:[%s0 + $0x50] sm:$0xf]
  %v66 = vld [vmem:[%s0 + $0x54] sm:$0xf]
  %v67 = vld [vmem:[%s0 + $0x58] sm:$0xf]
  %v68 = vld [vmem:[%s0 + $0x5c] sm:$0xf]
  %v69 = vld [vmem:[%s0 + $0x60] sm:$0xf]
  %v70 = vld [vmem:[%s0 + $0x64] sm:$0xf]
  %v71 = vld [vmem:[%s0 + $0x68] sm:$0xf]
  %v72 = vld [vmem:[%s0 + $0x6c] sm:$0xf]
  %v73 = vld [vmem:[%s0 + $0x70] sm:$0xf]
  %v74 = vld [vmem:[%s0 + $0x74] sm:$0xf]
  %v75 = vld [vmem:[%s0 + $0x78] sm:$0xf]
  %v76 = vld [vmem:[%s0 + $0x7c] sm:$0xf]
  %v77 = vld [vmem:[%s0 + $0x80] sm:$0xf]
  %v78 = vld [vmem:[%s0 + $0x84] sm:$0xf]
  %v79 = vld [vmem:[%s0 + $0x88] sm:$0xf]
  %v80 = vld [vmem:[%s0 + $0x8c] sm:$0xf]
  %v81 = vld [vmem:[%s0 + $0x90] sm:$0xf]
  %v82 = vld [vmem:[%s0 + $0x94] sm:$0xf]
  %v83 = vld [vmem:[%s0 + $0x98] sm:$0xf]
  %v84 = vld [vmem:[%s0 + $0x9c] sm:$0xf]
  %v85 = vld [vmem:[%s0 + $0xa0] sm:$0xf]
  %v86 = vld [vmem:[%s0 + $0xa4] sm:$0xf]
  %v87 = vld [vmem:[%s0 + $0xa8] sm:$0xf]
  %v88 = vld [vmem:[%s0 + $0xac] sm:$0xf]
  %v89 = vld [vmem:[%s0 + $0xb0] sm:$0xf]
  %v90 = vld [vmem:[%s0 + $0xb4] sm:$0xf]
  %v91 = vld [vmem:[%s0 + $0xb8] sm:$0xf]
  %v92 = vld [vmem:[%s0 + $0xbc] sm:$0xf]
  %v93 = vld [vmem:[%s0 + $0xc0] sm:$0xf]
  %v94 = vld [vmem:[%s0 + $0xc4] sm:$0xf]
  %v95 = vld [vmem:[%s0 + $0xc8] sm:$0xf]
  %v96 = vld [vmem:[%s0 + $0xcc] sm:$0xf]
  %v97 = vld [vmem:[%s0 + $0xd0] sm:$0xf]
  %v98 = vld [vmem:[%s0 + $0xd4] sm:$0xf]
  %v99 = vld [vmem:[%s0 + $0xd8] sm:$0xf]
  %v100 = vld [vmem:[%s0 + $0xdc] sm:$0xf]
  %v101 = vld [vmem:[%s0 + $0xe0] sm:$0xf]
  %v102 = vld [vmem:[%s0 + $0xe4] sm:$0xf]
  %v103 = vld [vmem:[%s0 + $0xe8] sm:$0xf]
  %v104 = vld [vmem:[%s0 + $0xec] sm:$0xf]
  %v105 = vld [vmem:[%s0 + $0xf0] sm:$0xf]
  %v106 = vld [vmem:[%s0 + $0xf4] sm:$0xf]
  %v107 = vld [vmem:[%s0 + $0xf8] sm:$0xf]
  %v108 = vld [vmem:[%s0 + $0xfc] sm:$0xf]
  %v173 = vunpack.c.l.b16 %v45
  %v174 = vunpack.c.l.b16 %v46
  %v175 = vunpack.c.l.b16 %v47
  %v176 = vunpack.c.l.b16 %v48
  %v177 = vunpack.c.l.b16 %v49
  %v178 = vunpack.c.l.b16 %v50
  %v179 = vunpack.c.l.b16 %v51
  %v180 = vunpack.c.l.b16 %v52
  %v181 = vunpack.c.l.b16 %v53
  %v182 = vunpack.c.l.b16 %v54
  %v183 = vunpack.c.l.b16 %v55
  %v184 = vunpack.c.l.b16 %v56
  %v185 = vunpack.c.l.b16 %v57
  %v186 = vunpack.c.l.b16 %v58
  %v187 = vunpack.c.l.b16 %v59
  %v188 = vunpack.c.l.b16 %v60
  %v189 = vunpack.c.l.b16 %v61
  %v190 = vunpack.c.l.b16 %v62
  %v191 = vunpack.c.l.b16 %v63
  %v192 = vunpack.c.l.b16 %v64
  %v193 = vunpack.c.l.b16 %v65
  %v194 = vunpack.c.l.b16 %v66
  %v195 = vunpack.c.l.b16 %v67
  %v196 = vunpack.c.l.b16 %v68
  %v197 = vunpack.c.l.b16 %v69
  %v198 = vunpack.c.l.b16 %v70
  %v199 = vunpack.c.l.b16 %v71
  %v200 = vunpack.c.l.b16 %v72
  %v201 = vunpack.c.l.b16 %v73
  %v202 = vunpack.c.l.b16 %v74
  %v203 = vunpack.c.l.b16 %v75
  %v204 = vunpack.c.l.b16 %v76
  %v205 = vunpack.c.l.b16 %v77
  %v206 = vunpack.c.l.b16 %v78
  %v207 = vunpack.c.l.b16 %v79
  %v208 = vunpack.c.l.b16 %v80
  %v209 = vunpack.c.l.b16 %v81
  %v210 = vunpack.c.l.b16 %v82
  %v211 = vunpack.c.l.b16 %v83
  %v212 = vunpack.c.l.b16 %v84
  %v213 = vunpack.c.l.b16 %v85
  %v214 = vunpack.c.l.b16 %v86
  %v215 = vunpack.c.l.b16 %v87
  %v216 = vunpack.c.l.b16 %v88
  %v217 = vunpack.c.l.b16 %v89
  %v218 = vunpack.c.l.b16 %v90
  %v219 = vunpack.c.l.b16 %v91
  %v220 = vunpack.c.l.b16 %v92
  %v221 = vunpack.c.l.b16 %v93
  %v222 = vunpack.c.l.b16 %v94
  %v223 = vunpack.c.l.b16 %v95
  %v224 = vunpack.c.l.b16 %v96
  %v225 = vunpack.c.l.b16 %v97
  %v226 = vunpack.c.l.b16 %v98
  %v227 = vunpack.c.l.b16 %v99
  %v228 = vunpack.c.l.b16 %v100
  %v229 = vunpack.c.l.b16 %v101
  %v230 = vunpack.c.l.b16 %v102
  %v231 = vunpack.c.l.b16 %v103
  %v232 = vunpack.c.l.b16 %v104
  %v233 = vunpack.c.l.b16 %v105
  %v234 = vunpack.c.l.b16 %v106
  %v235 = vunpack.c.l.b16 %v107
  %v236 = vunpack.c.l.b16 %v108
  %v237 = vpack.c.b16 %v174, %v173
  %v238 = vpack.c.b16 %v176, %v175
  %v239 = vpack.c.b16 %v178, %v177
  %v240 = vpack.c.b16 %v180, %v179
  %v241 = vpack.c.b16 %v182, %v181
  %v242 = vpack.c.b16 %v184, %v183
  %v243 = vpack.c.b16 %v186, %v185
  %v244 = vpack.c.b16 %v188, %v187
  %v245 = vpack.c.b16 %v190, %v189
  %v246 = vpack.c.b16 %v192, %v191
  %v247 = vpack.c.b16 %v194, %v193
  %v248 = vpack.c.b16 %v196, %v195
  %v249 = vpack.c.b16 %v198, %v197
  %v250 = vpack.c.b16 %v200, %v199
  %v251 = vpack.c.b16 %v202, %v201
  %v252 = vpack.c.b16 %v204, %v203
  %v253 = vpack.c.b16 %v206, %v205
  %v254 = vpack.c.b16 %v208, %v207
  %v255 = vpack.c.b16 %v210, %v209
  %v256 = vpack.c.b16 %v212, %v211
  %v257 = vpack.c.b16 %v214, %v213
  %v258 = vpack.c.b16 %v216, %v215
  %v259 = vpack.c.b16 %v218, %v217
  %v260 = vpack.c.b16 %v220, %v219
  %v261 = vpack.c.b16 %v222, %v221
  %v262 = vpack.c.b16 %v224, %v223
  %v263 = vpack.c.b16 %v226, %v225
  %v264 = vpack.c.b16 %v228, %v227
  %v265 = vpack.c.b16 %v230, %v229
  %v266 = vpack.c.b16 %v232, %v231
  %v267 = vpack.c.b16 %v234, %v233
  %v268 = vpack.c.b16 %v236, %v235
  %v269 = vld [vmem:[%s1] sm:$0x3]
  %v270 = vld [vmem:[%s2] sm:$0x3]
  %s271 = scalar_lea.vmem %s1, 2
  %v272 = vld [vmem:[%s271] sm:$0x3]
  %vm273 = vcmask 31744
  %v275 = vsel %vm273, %v237, 0
  %v278 = vsel %vm273, %v238, 0
  %v281 = vsel %vm273, %v239, 0
  %v284 = vsel %vm273, %v240, 0
  %v287 = vsel %vm273, %v241, 0
  %v290 = vsel %vm273, %v242, 0
  %v293 = vsel %vm273, %v243, 0
  %v296 = vsel %vm273, %v244, 0
  %v299 = vsel %vm273, %v245, 0
  %v302 = vsel %vm273, %v246, 0
  %v305 = vsel %vm273, %v247, 0
  %v308 = vsel %vm273, %v248, 0
  %v311 = vsel %vm273, %v249, 0
  %v314 = vsel %vm273, %v250, 0
  %v317 = vsel %vm273, %v251, 0
  %v320 = vsel %vm273, %v252, 0
  %v323 = vsel %vm273, %v253, 0
  %v326 = vsel %vm273, %v254, 0
  %v329 = vsel %vm273, %v255, 0
  %v332 = vsel %vm273, %v256, 0
  %v335 = vsel %vm273, %v257, 0
  %v338 = vsel %vm273, %v258, 0
  %v341 = vsel %vm273, %v259, 0
  %v344 = vsel %vm273, %v260, 0
  %v347 = vsel %vm273, %v261, 0
  %v350 = vsel %vm273, %v262, 0
  %v353 = vsel %vm273, %v263, 0
  %v356 = vsel %vm273, %v264, 0
  %v359 = vsel %vm273, %v265, 0
  %v362 = vsel %vm273, %v266, 0
  %v365 = vsel %vm273, %v267, 0
  %v368 = vsel %vm273, %v268, 0
  %vm370 = vcmask 1041408
  %v372 = vsel %vm370, %v272, 0
  %374 = vmatpush.bf16.msra.mxu0 0
  %375 = vmatpush.bf16.msra.mxu0 0
  %376 = vmatpush.bf16.msra.mxu0 0
  %377 = vmatpush.bf16.msra.mxu0 0
  %378 = vmatpush.bf16.msra.mxu0 0
  %379 = vmatpush.bf16.msra.mxu0 0
  %380 = vmatpush.bf16.msra.mxu0 0
  %381 = vmatpush.bf16.msra.mxu0 %v372
  %382 = vmatmul.bf16.gmra.mxu0 %v275
  %v383 = vpop.f32.mrf.mxu0
  %v384 = vadd.f32 0.0, %v383
  %v385 = vpop.f32.mrf.mxu0
  %v386 = vadd.f32 0.0, %v385
  %387 = vmatmul.bf16.gmra.mxu0 %v278
  %v388 = vpop.f32.mrf.mxu0
  %v389 = vadd.f32 0.0, %v388
  %v390 = vpop.f32.mrf.mxu0
  %v391 = vadd.f32 0.0, %v390
  %392 = vmatmul.bf16.gmra.mxu0 %v281
  %v393 = vpop.f32.mrf.mxu0
  %v394 = vadd.f32 0.0, %v393
  %v395 = vpop.f32.mrf.mxu0
  %v396 = vadd.f32 0.0, %v395
  %397 = vmatmul.bf16.gmra.mxu0 %v284
  %v398 = vpop.f32.mrf.mxu0
  %v399 = vadd.f32 0.0, %v398
  %v400 = vpop.f32.mrf.mxu0
  %v401 = vadd.f32 0.0, %v400
  %402 = vmatmul.bf16.gmra.mxu0 %v287
  %v403 = vpop.f32.mrf.mxu0
  %v404 = vadd.f32 0.0, %v403
  %v405 = vpop.f32.mrf.mxu0
  %v406 = vadd.f32 0.0, %v405
  %407 = vmatmul.bf16.gmra.mxu0 %v290
  %v408 = vpop.f32.mrf.mxu0
  %v409 = vadd.f32 0.0, %v408
  %v410 = vpop.f32.mrf.mxu0
  %v411 = vadd.f32 0.0, %v410
  %412 = vmatmul.bf16.gmra.mxu0 %v293
  %v413 = vpop.f32.mrf.mxu0
  %v414 = vadd.f32 0.0, %v413
  %v415 = vpop.f32.mrf.mxu0
  %v416 = vadd.f32 0.0, %v415
  %417 = vmatmul.bf16.gmra.mxu0 %v296
  %v418 = vpop.f32.mrf.mxu0
  %v419 = vadd.f32 0.0, %v418
  %v420 = vpop.f32.mrf.mxu0
  %v421 = vadd.f32 0.0, %v420
  %422 = vmatmul.bf16.gmra.mxu0 %v299
  %v423 = vpop.f32.mrf.mxu0
  %v424 = vadd.f32 0.0, %v423
  %v425 = vpop.f32.mrf.mxu0
  %v426 = vadd.f32 0.0, %v425
  %427 = vmatmul.bf16.gmra.mxu0 %v302
  %v428 = vpop.f32.mrf.mxu0
  %v429 = vadd.f32 0.0, %v428
  %v430 = vpop.f32.mrf.mxu0
  %v431 = vadd.f32 0.0, %v430
  %432 = vmatmul.bf16.gmra.mxu0 %v305
  %v433 = vpop.f32.mrf.mxu0
  %v434 = vadd.f32 0.0, %v433
  %v435 = vpop.f32.mrf.mxu0
  %v436 = vadd.f32 0.0, %v435
  %437 = vmatmul.bf16.gmra.mxu0 %v308
  %v438 = vpop.f32.mrf.mxu0
  %v439 = vadd.f32 0.0, %v438
  %v440 = vpop.f32.mrf.mxu0
  %v441 = vadd.f32 0.0, %v440
  %442 = vmatmul.bf16.gmra.mxu0 %v311
  %v443 = vpop.f32.mrf.mxu0
  %v444 = vadd.f32 0.0, %v443
  %v445 = vpop.f32.mrf.mxu0
  %v446 = vadd.f32 0.0, %v445
  %447 = vmatmul.bf16.gmra.mxu0 %v314
  %v448 = vpop.f32.mrf.mxu0
  %v449 = vadd.f32 0.0, %v448
  %v450 = vpop.f32.mrf.mxu0
  %v451 = vadd.f32 0.0, %v450
  %452 = vmatmul.bf16.gmra.mxu0 %v317
  %v453 = vpop.f32.mrf.mxu0
  %v454 = vadd.f32 0.0, %v453
  %v455 = vpop.f32.mrf.mxu0
  %v456 = vadd.f32 0.0, %v455
  %457 = vmatmul.bf16.gmra.mxu0 %v320
  %v458 = vpop.f32.mrf.mxu0
  %v459 = vadd.f32 0.0, %v458
  %v460 = vpop.f32.mrf.mxu0
  %v461 = vadd.f32 0.0, %v460
  %462 = vmatmul.bf16.gmra.mxu0 %v323
  %v463 = vpop.f32.mrf.mxu0
  %v464 = vadd.f32 0.0, %v463
  %v465 = vpop.f32.mrf.mxu0
  %v466 = vadd.f32 0.0, %v465
  %467 = vmatmul.bf16.gmra.mxu0 %v326
  %v468 = vpop.f32.mrf.mxu0
  %v469 = vadd.f32 0.0, %v468
  %v470 = vpop.f32.mrf.mxu0
  %v471 = vadd.f32 0.0, %v470
  %472 = vmatmul.bf16.gmra.mxu0 %v329
  %v473 = vpop.f32.mrf.mxu0
  %v474 = vadd.f32 0.0, %v473
  %v475 = vpop.f32.mrf.mxu0
  %v476 = vadd.f32 0.0, %v475
  %477 = vmatmul.bf16.gmra.mxu0 %v332
  %v478 = vpop.f32.mrf.mxu0
  %v479 = vadd.f32 0.0, %v478
  %v480 = vpop.f32.mrf.mxu0
  %v481 = vadd.f32 0.0, %v480
  %482 = vmatmul.bf16.gmra.mxu0 %v335
  %v483 = vpop.f32.mrf.mxu0
  %v484 = vadd.f32 0.0, %v483
  %v485 = vpop.f32.mrf.mxu0
  %v486 = vadd.f32 0.0, %v485
  %487 = vmatmul.bf16.gmra.mxu0 %v338
  %v488 = vpop.f32.mrf.mxu0
  %v489 = vadd.f32 0.0, %v488
  %v490 = vpop.f32.mrf.mxu0
  %v491 = vadd.f32 0.0, %v490
  %492 = vmatmul.bf16.gmra.mxu0 %v341
  %v493 = vpop.f32.mrf.mxu0
  %v494 = vadd.f32 0.0, %v493
  %v495 = vpop.f32.mrf.mxu0
  %v496 = vadd.f32 0.0, %v495
  %497 = vmatmul.bf16.gmra.mxu0 %v344
  %v498 = vpop.f32.mrf.mxu0
  %v499 = vadd.f32 0.0, %v498
  %v500 = vpop.f32.mrf.mxu0
  %v501 = vadd.f32 0.0, %v500
  %502 = vmatmul.bf16.gmra.mxu0 %v347
  %v503 = vpop.f32.mrf.mxu0
  %v504 = vadd.f32 0.0, %v503
  %v505 = vpop.f32.mrf.mxu0
  %v506 = vadd.f32 0.0, %v505
  %507 = vmatmul.bf16.gmra.mxu0 %v350
  %v508 = vpop.f32.mrf.mxu0
  %v509 = vadd.f32 0.0, %v508
  %v510 = vpop.f32.mrf.mxu0
  %v511 = vadd.f32 0.0, %v510
  %512 = vmatmul.bf16.gmra.mxu0 %v353
  %v513 = vpop.f32.mrf.mxu0
  %v514 = vadd.f32 0.0, %v513
  %v515 = vpop.f32.mrf.mxu0
  %v516 = vadd.f32 0.0, %v515
  %517 = vmatmul.bf16.gmra.mxu0 %v356
  %v518 = vpop.f32.mrf.mxu0
  %v519 = vadd.f32 0.0, %v518
  %v520 = vpop.f32.mrf.mxu0
  %v521 = vadd.f32 0.0, %v520
  %522 = vmatmul.bf16.gmra.mxu0 %v359
  %v523 = vpop.f32.mrf.mxu0
  %v524 = vadd.f32 0.0, %v523
  %v525 = vpop.f32.mrf.mxu0
  %v526 = vadd.f32 0.0, %v525
  %527 = vmatmul.bf16.gmra.mxu0 %v362
  %v528 = vpop.f32.mrf.mxu0
  %v529 = vadd.f32 0.0, %v528
  %v530 = vpop.f32.mrf.mxu0
  %v531 = vadd.f32 0.0, %v530
  %532 = vmatmul.bf16.gmra.mxu0 %v365
  %v533 = vpop.f32.mrf.mxu0
  %v534 = vadd.f32 0.0, %v533
  %v535 = vpop.f32.mrf.mxu0
  %v536 = vadd.f32 0.0, %v535
  %537 = vmatmul.bf16.gmra.mxu0 %v368
  %v538 = vpop.f32.mrf.mxu0
  %v539 = vadd.f32 0.0, %v538
  %v540 = vpop.f32.mrf.mxu0
  %v541 = vadd.f32 0.0, %v540
  %542 = vdwg.mxu0
  %v544 = vsel %vm273, 0, 0
  %v547 = vsel %vm370, %v269, 0
  %549 = vmatpush.bf16.msra.mxu0 0
  %550 = vmatpush.bf16.msra.mxu0 0
  %551 = vmatpush.bf16.msra.mxu0 0
  %552 = vmatpush.bf16.msra.mxu0 0
  %553 = vmatpush.bf16.msra.mxu0 0
  %554 = vmatpush.bf16.msra.mxu0 0
  %555 = vmatpush.bf16.msra.mxu0 0
  %556 = vmatpush.bf16.msra.mxu0 %v547
  %557 = vmatmul.bf16.gmra.mxu0 %v544
  %v558 = vpop.f32.mrf.mxu0
  %v559 = vadd.f32 %v384, %v558
  %v560 = vpop.f32.mrf.mxu0
  %v561 = vadd.f32 %v386, %v560
  %562 = vmatmul.bf16.gmra.mxu0 %v275
  %v563 = vpop.f32.mrf.mxu0
  %v564 = vadd.f32 %v389, %v563
  %v565 = vpop.f32.mrf.mxu0
  %v566 = vadd.f32 %v391, %v565
  %567 = vmatmul.bf16.gmra.mxu0 %v278
  %v568 = vpop.f32.mrf.mxu0
  %v569 = vadd.f32 %v394, %v568
  %v570 = vpop.f32.mrf.mxu0
  %v571 = vadd.f32 %v396, %v570
  %572 = vmatmul.bf16.gmra.mxu0 %v281
  %v573 = vpop.f32.mrf.mxu0
  %v574 = vadd.f32 %v399, %v573
  %v575 = vpop.f32.mrf.mxu0
  %v576 = vadd.f32 %v401, %v575
  %577 = vmatmul.bf16.gmra.mxu0 %v284
  %v578 = vpop.f32.mrf.mxu0
  %v579 = vadd.f32 %v404, %v578
  %v580 = vpop.f32.mrf.mxu0
  %v581 = vadd.f32 %v406, %v580
  %582 = vmatmul.bf16.gmra.mxu0 %v287
  %v583 = vpop.f32.mrf.mxu0
  %v584 = vadd.f32 %v409, %v583
  %v585 = vpop.f32.mrf.mxu0
  %v586 = vadd.f32 %v411, %v585
  %587 = vmatmul.bf16.gmra.mxu0 %v290
  %v588 = vpop.f32.mrf.mxu0
  %v589 = vadd.f32 %v414, %v588
  %v590 = vpop.f32.mrf.mxu0
  %v591 = vadd.f32 %v416, %v590
  %592 = vmatmul.bf16.gmra.mxu0 %v293
  %v593 = vpop.f32.mrf.mxu0
  %v594 = vadd.f32 %v419, %v593
  %v595 = vpop.f32.mrf.mxu0
  %v596 = vadd.f32 %v421, %v595
  %597 = vmatmul.bf16.gmra.mxu0 %v296
  %v598 = vpop.f32.mrf.mxu0
  %v599 = vadd.f32 %v424, %v598
  %v600 = vpop.f32.mrf.mxu0
  %v601 = vadd.f32 %v426, %v600
  %602 = vmatmul.bf16.gmra.mxu0 %v299
  %v603 = vpop.f32.mrf.mxu0
  %v604 = vadd.f32 %v429, %v603
  %v605 = vpop.f32.mrf.mxu0
  %v606 = vadd.f32 %v431, %v605
  %607 = vmatmul.bf16.gmra.mxu0 %v302
  %v608 = vpop.f32.mrf.mxu0
  %v609 = vadd.f32 %v434, %v608
  %v610 = vpop.f32.mrf.mxu0
  %v611 = vadd.f32 %v436, %v610
  %612 = vmatmul.bf16.gmra.mxu0 %v305
  %v613 = vpop.f32.mrf.mxu0
  %v614 = vadd.f32 %v439, %v613
  %v615 = vpop.f32.mrf.mxu0
  %v616 = vadd.f32 %v441, %v615
  %617 = vmatmul.bf16.gmra.mxu0 %v308
  %v618 = vpop.f32.mrf.mxu0
  %v619 = vadd.f32 %v444, %v618
  %v620 = vpop.f32.mrf.mxu0
  %v621 = vadd.f32 %v446, %v620
  %622 = vmatmul.bf16.gmra.mxu0 %v311
  %v623 = vpop.f32.mrf.mxu0
  %v624 = vadd.f32 %v449, %v623
  %v625 = vpop.f32.mrf.mxu0
  %v626 = vadd.f32 %v451, %v625
  %627 = vmatmul.bf16.gmra.mxu0 %v314
  %v628 = vpop.f32.mrf.mxu0
  %v629 = vadd.f32 %v454, %v628
  %v630 = vpop.f32.mrf.mxu0
  %v631 = vadd.f32 %v456, %v630
  %632 = vmatmul.bf16.gmra.mxu0 %v317
  %v633 = vpop.f32.mrf.mxu0
  %v634 = vadd.f32 %v459, %v633
  %v635 = vpop.f32.mrf.mxu0
  %v636 = vadd.f32 %v461, %v635
  %637 = vmatmul.bf16.gmra.mxu0 %v544
  %v638 = vpop.f32.mrf.mxu0
  %v639 = vadd.f32 %v464, %v638
  %v640 = vpop.f32.mrf.mxu0
  %v641 = vadd.f32 %v466, %v640
  %642 = vmatmul.bf16.gmra.mxu0 %v323
  %v643 = vpop.f32.mrf.mxu0
  %v644 = vadd.f32 %v469, %v643
  %v645 = vpop.f32.mrf.mxu0
  %v646 = vadd.f32 %v471, %v645
  %647 = vmatmul.bf16.gmra.mxu0 %v326
  %v648 = vpop.f32.mrf.mxu0
  %v649 = vadd.f32 %v474, %v648
  %v650 = vpop.f32.mrf.mxu0
  %v651 = vadd.f32 %v476, %v650
  %652 = vmatmul.bf16.gmra.mxu0 %v329
  %v653 = vpop.f32.mrf.mxu0
  %v654 = vadd.f32 %v479, %v653
  %v655 = vpop.f32.mrf.mxu0
  %v656 = vadd.f32 %v481, %v655
  %657 = vmatmul.bf16.gmra.mxu0 %v332
  %v658 = vpop.f32.mrf.mxu0
  %v659 = vadd.f32 %v484, %v658
  %v660 = vpop.f32.mrf.mxu0
  %v661 = vadd.f32 %v486, %v660
  %662 = vmatmul.bf16.gmra.mxu0 %v335
  %v663 = vpop.f32.mrf.mxu0
  %v664 = vadd.f32 %v489, %v663
  %v665 = vpop.f32.mrf.mxu0
  %v666 = vadd.f32 %v491, %v665
  %667 = vmatmul.bf16.gmra.mxu0 %v338
  %v668 = vpop.f32.mrf.mxu0
  %v669 = vadd.f32 %v494, %v668
  %v670 = vpop.f32.mrf.mxu0
  %v671 = vadd.f32 %v496, %v670
  %672 = vmatmul.bf16.gmra.mxu0 %v341
  %v673 = vpop.f32.mrf.mxu0
  %v674 = vadd.f32 %v499, %v673
  %v675 = vpop.f32.mrf.mxu0
  %v676 = vadd.f32 %v501, %v675
  %677 = vmatmul.bf16.gmra.mxu0 %v344
  %v678 = vpop.f32.mrf.mxu0
  %v679 = vadd.f32 %v504, %v678
  %v680 = vpop.f32.mrf.mxu0
  %v681 = vadd.f32 %v506, %v680
  %682 = vmatmul.bf16.gmra.mxu0 %v347
  %v683 = vpop.f32.mrf.mxu0
  %v684 = vadd.f32 %v509, %v683
  %v685 = vpop.f32.mrf.mxu0
  %v686 = vadd.f32 %v511, %v685
  %687 = vmatmul.bf16.gmra.mxu0 %v350
  %v688 = vpop.f32.mrf.mxu0
  %v689 = vadd.f32 %v514, %v688
  %v690 = vpop.f32.mrf.mxu0
  %v691 = vadd.f32 %v516, %v690
  %692 = vmatmul.bf16.gmra.mxu0 %v353
  %v693 = vpop.f32.mrf.mxu0
  %v694 = vadd.f32 %v519, %v693
  %v695 = vpop.f32.mrf.mxu0
  %v696 = vadd.f32 %v521, %v695
  %697 = vmatmul.bf16.gmra.mxu0 %v356
  %v698 = vpop.f32.mrf.mxu0
  %v699 = vadd.f32 %v524, %v698
  %v700 = vpop.f32.mrf.mxu0
  %v701 = vadd.f32 %v526, %v700
  %702 = vmatmul.bf16.gmra.mxu0 %v359
  %v703 = vpop.f32.mrf.mxu0
  %v704 = vadd.f32 %v529, %v703
  %v705 = vpop.f32.mrf.mxu0
  %v706 = vadd.f32 %v531, %v705
  %707 = vmatmul.bf16.gmra.mxu0 %v362
  %v708 = vpop.f32.mrf.mxu0
  %v709 = vadd.f32 %v534, %v708
  %v710 = vpop.f32.mrf.mxu0
  %v711 = vadd.f32 %v536, %v710
  %712 = vmatmul.bf16.gmra.mxu0 %v365
  %v713 = vpop.f32.mrf.mxu0
  %v714 = vadd.f32 %v539, %v713
  %v715 = vpop.f32.mrf.mxu0
  %v716 = vadd.f32 %v541, %v715
  %717 = vdwg.mxu0
  %s718 = scalar_lea.vmem %s2, 2
  %v719 = vld [vmem:[%s718] sm:$0x3]
  %v721 = vsel %vm370, %v719, 0
  %723 = vmatpush.bf16.msra.mxu0 0
  %724 = vmatpush.bf16.msra.mxu0 0
  %725 = vmatpush.bf16.msra.mxu0 0
  %726 = vmatpush.bf16.msra.mxu0 0
  %727 = vmatpush.bf16.msra.mxu0 0
  %728 = vmatpush.bf16.msra.mxu0 0
  %729 = vmatpush.bf16.msra.mxu0 0
  %730 = vmatpush.bf16.msra.mxu0 %v721
  %731 = vmatmul.bf16.gmra.mxu0 %v275
  %v732 = vpop.f32.mrf.mxu0
  %v733 = vadd.f32 0.0, %v732
  %v734 = vpop.f32.mrf.mxu0
  %v735 = vadd.f32 0.0, %v734
  %736 = vmatmul.bf16.gmra.mxu0 %v278
  %v737 = vpop.f32.mrf.mxu0
  %v738 = vadd.f32 0.0, %v737
  %v739 = vpop.f32.mrf.mxu0
  %v740 = vadd.f32 0.0, %v739
  %741 = vmatmul.bf16.gmra.mxu0 %v281
  %v742 = vpop.f32.mrf.mxu0
  %v743 = vadd.f32 0.0, %v742
  %v744 = vpop.f32.mrf.mxu0
  %v745 = vadd.f32 0.0, %v744
  %746 = vmatmul.bf16.gmra.mxu0 %v284
  %v747 = vpop.f32.mrf.mxu0
  %v748 = vadd.f32 0.0, %v747
  %v749 = vpop.f32.mrf.mxu0
  %v750 = vadd.f32 0.0, %v749
  %751 = vmatmul.bf16.gmra.mxu0 %v287
  %v752 = vpop.f32.mrf.mxu0
  %v753 = vadd.f32 0.0, %v752
  %v754 = vpop.f32.mrf.mxu0
  %v755 = vadd.f32 0.0, %v754
  %756 = vmatmul.bf16.gmra.mxu0 %v290
  %v757 = vpop.f32.mrf.mxu0
  %v758 = vadd.f32 0.0, %v757
  %v759 = vpop.f32.mrf.mxu0
  %v760 = vadd.f32 0.0, %v759
  %761 = vmatmul.bf16.gmra.mxu0 %v293
  %v762 = vpop.f32.mrf.mxu0
  %v763 = vadd.f32 0.0, %v762
  %v764 = vpop.f32.mrf.mxu0
  %v765 = vadd.f32 0.0, %v764
  %766 = vmatmul.bf16.gmra.mxu0 %v296
  %v767 = vpop.f32.mrf.mxu0
  %v768 = vadd.f32 0.0, %v767
  %v769 = vpop.f32.mrf.mxu0
  %v770 = vadd.f32 0.0, %v769
  %771 = vmatmul.bf16.gmra.mxu0 %v299
  %v772 = vpop.f32.mrf.mxu0
  %v773 = vadd.f32 0.0, %v772
  %v774 = vpop.f32.mrf.mxu0
  %v775 = vadd.f32 0.0, %v774
  %776 = vmatmul.bf16.gmra.mxu0 %v302
  %v777 = vpop.f32.mrf.mxu0
  %v778 = vadd.f32 0.0, %v777
  %v779 = vpop.f32.mrf.mxu0
  %v780 = vadd.f32 0.0, %v779
  %781 = vmatmul.bf16.gmra.mxu0 %v305
  %v782 = vpop.f32.mrf.mxu0
  %v783 = vadd.f32 0.0, %v782
  %v784 = vpop.f32.mrf.mxu0
  %v785 = vadd.f32 0.0, %v784
  %786 = vmatmul.bf16.gmra.mxu0 %v308
  %v787 = vpop.f32.mrf.mxu0
  %v788 = vadd.f32 0.0, %v787
  %v789 = vpop.f32.mrf.mxu0
  %v790 = vadd.f32 0.0, %v789
  %791 = vmatmul.bf16.gmra.mxu0 %v311
  %v792 = vpop.f32.mrf.mxu0
  %v793 = vadd.f32 0.0, %v792
  %v794 = vpop.f32.mrf.mxu0
  %v795 = vadd.f32 0.0, %v794
  %796 = vmatmul.bf16.gmra.mxu0 %v314
  %v797 = vpop.f32.mrf.mxu0
  %v798 = vadd.f32 0.0, %v797
  %v799 = vpop.f32.mrf.mxu0
  %v800 = vadd.f32 0.0, %v799
  %801 = vmatmul.bf16.gmra.mxu0 %v317
  %v802 = vpop.f32.mrf.mxu0
  %v803 = vadd.f32 0.0, %v802
  %v804 = vpop.f32.mrf.mxu0
  %v805 = vadd.f32 0.0, %v804
  %806 = vmatmul.bf16.gmra.mxu0 %v320
  %v807 = vpop.f32.mrf.mxu0
  %v808 = vadd.f32 0.0, %v807
  %v809 = vpop.f32.mrf.mxu0
  %v810 = vadd.f32 0.0, %v809
  %811 = vmatmul.bf16.gmra.mxu0 %v323
  %v812 = vpop.f32.mrf.mxu0
  %v813 = vadd.f32 0.0, %v812
  %v814 = vpop.f32.mrf.mxu0
  %v815 = vadd.f32 0.0, %v814
  %816 = vmatmul.bf16.gmra.mxu0 %v326
  %v817 = vpop.f32.mrf.mxu0
  %v818 = vadd.f32 0.0, %v817
  %v819 = vpop.f32.mrf.mxu0
  %v820 = vadd.f32 0.0, %v819
  %821 = vmatmul.bf16.gmra.mxu0 %v329
  %v822 = vpop.f32.mrf.mxu0
  %v823 = vadd.f32 0.0, %v822
  %v824 = vpop.f32.mrf.mxu0
  %v825 = vadd.f32 0.0, %v824
  %826 = vmatmul.bf16.gmra.mxu0 %v332
  %v827 = vpop.f32.mrf.mxu0
  %v828 = vadd.f32 0.0, %v827
  %v829 = vpop.f32.mrf.mxu0
  %v830 = vadd.f32 0.0, %v829
  %831 = vmatmul.bf16.gmra.mxu0 %v335
  %v832 = vpop.f32.mrf.mxu0
  %v833 = vadd.f32 0.0, %v832
  %v834 = vpop.f32.mrf.mxu0
  %v835 = vadd.f32 0.0, %v834
  %836 = vmatmul.bf16.gmra.mxu0 %v338
  %v837 = vpop.f32.mrf.mxu0
  %v838 = vadd.f32 0.0, %v837
  %v839 = vpop.f32.mrf.mxu0
  %v840 = vadd.f32 0.0, %v839
  %841 = vmatmul.bf16.gmra.mxu0 %v341
  %v842 = vpop.f32.mrf.mxu0
  %v843 = vadd.f32 0.0, %v842
  %v844 = vpop.f32.mrf.mxu0
  %v845 = vadd.f32 0.0, %v844
  %846 = vmatmul.bf16.gmra.mxu0 %v344
  %v847 = vpop.f32.mrf.mxu0
  %v848 = vadd.f32 0.0, %v847
  %v849 = vpop.f32.mrf.mxu0
  %v850 = vadd.f32 0.0, %v849
  %851 = vmatmul.bf16.gmra.mxu0 %v347
  %v852 = vpop.f32.mrf.mxu0
  %v853 = vadd.f32 0.0, %v852
  %v854 = vpop.f32.mrf.mxu0
  %v855 = vadd.f32 0.0, %v854
  %856 = vmatmul.bf16.gmra.mxu0 %v350
  %v857 = vpop.f32.mrf.mxu0
  %v858 = vadd.f32 0.0, %v857
  %v859 = vpop.f32.mrf.mxu0
  %v860 = vadd.f32 0.0, %v859
  %861 = vmatmul.bf16.gmra.mxu0 %v353
  %v862 = vpop.f32.mrf.mxu0
  %v863 = vadd.f32 0.0, %v862
  %v864 = vpop.f32.mrf.mxu0
  %v865 = vadd.f32 0.0, %v864
  %866 = vmatmul.bf16.gmra.mxu0 %v356
  %v867 = vpop.f32.mrf.mxu0
  %v868 = vadd.f32 0.0, %v867
  %v869 = vpop.f32.mrf.mxu0
  %v870 = vadd.f32 0.0, %v869
  %871 = vmatmul.bf16.gmra.mxu0 %v359
  %v872 = vpop.f32.mrf.mxu0
  %v873 = vadd.f32 0.0, %v872
  %v874 = vpop.f32.mrf.mxu0
  %v875 = vadd.f32 0.0, %v874
  %876 = vmatmul.bf16.gmra.mxu0 %v362
  %v877 = vpop.f32.mrf.mxu0
  %v878 = vadd.f32 0.0, %v877
  %v879 = vpop.f32.mrf.mxu0
  %v880 = vadd.f32 0.0, %v879
  %881 = vmatmul.bf16.gmra.mxu0 %v365
  %v882 = vpop.f32.mrf.mxu0
  %v883 = vadd.f32 0.0, %v882
  %v884 = vpop.f32.mrf.mxu0
  %v885 = vadd.f32 0.0, %v884
  %886 = vmatmul.bf16.gmra.mxu0 %v368
  %v887 = vpop.f32.mrf.mxu0
  %v888 = vadd.f32 0.0, %v887
  %v889 = vpop.f32.mrf.mxu0
  %v890 = vadd.f32 0.0, %v889
  %891 = vdwg.mxu0
  %v893 = vsel %vm370, %v270, 0
  %895 = vmatpush.bf16.msra.mxu0 0
  %896 = vmatpush.bf16.msra.mxu0 0
  %897 = vmatpush.bf16.msra.mxu0 0
  %898 = vmatpush.bf16.msra.mxu0 0
  %899 = vmatpush.bf16.msra.mxu0 0
  %900 = vmatpush.bf16.msra.mxu0 0
  %901 = vmatpush.bf16.msra.mxu0 0
  %902 = vmatpush.bf16.msra.mxu0 %v893
  %903 = vmatmul.bf16.gmra.mxu0 %v544
  %v904 = vpop.f32.mrf.mxu0
  %v905 = vadd.f32 %v733, %v904
  %v906 = vpop.f32.mrf.mxu0
  %v907 = vadd.f32 %v735, %v906
  %908 = vmatmul.bf16.gmra.mxu0 %v275
  %v909 = vpop.f32.mrf.mxu0
  %v910 = vadd.f32 %v738, %v909
  %v911 = vpop.f32.mrf.mxu0
  %v912 = vadd.f32 %v740, %v911
  %913 = vmatmul.bf16.gmra.mxu0 %v278
  %v914 = vpop.f32.mrf.mxu0
  %v915 = vadd.f32 %v743, %v914
  %v916 = vpop.f32.mrf.mxu0
  %v917 = vadd.f32 %v745, %v916
  %918 = vmatmul.bf16.gmra.mxu0 %v281
  %v919 = vpop.f32.mrf.mxu0
  %v920 = vadd.f32 %v748, %v919
  %v921 = vpop.f32.mrf.mxu0
  %v922 = vadd.f32 %v750, %v921
  %923 = vmatmul.bf16.gmra.mxu0 %v284
  %v924 = vpop.f32.mrf.mxu0
  %v925 = vadd.f32 %v753, %v924
  %v926 = vpop.f32.mrf.mxu0
  %v927 = vadd.f32 %v755, %v926
  %928 = vmatmul.bf16.gmra.mxu0 %v287
  %v929 = vpop.f32.mrf.mxu0
  %v930 = vadd.f32 %v758, %v929
  %v931 = vpop.f32.mrf.mxu0
  %v932 = vadd.f32 %v760, %v931
  %933 = vmatmul.bf16.gmra.mxu0 %v290
  %v934 = vpop.f32.mrf.mxu0
  %v935 = vadd.f32 %v763, %v934
  %v936 = vpop.f32.mrf.mxu0
  %v937 = vadd.f32 %v765, %v936
  %938 = vmatmul.bf16.gmra.mxu0 %v293
  %v939 = vpop.f32.mrf.mxu0
  %v940 = vadd.f32 %v768, %v939
  %v941 = vpop.f32.mrf.mxu0
  %v942 = vadd.f32 %v770, %v941
  %943 = vmatmul.bf16.gmra.mxu0 %v296
  %v944 = vpop.f32.mrf.mxu0
  %v945 = vadd.f32 %v773, %v944
  %v946 = vpop.f32.mrf.mxu0
  %v947 = vadd.f32 %v775, %v946
  %948 = vmatmul.bf16.gmra.mxu0 %v299
  %v949 = vpop.f32.mrf.mxu0
  %v950 = vadd.f32 %v778, %v949
  %v951 = vpop.f32.mrf.mxu0
  %v952 = vadd.f32 %v780, %v951
  %953 = vmatmul.bf16.gmra.mxu0 %v302
  %v954 = vpop.f32.mrf.mxu0
  %v955 = vadd.f32 %v783, %v954
  %v956 = vpop.f32.mrf.mxu0
  %v957 = vadd.f32 %v785, %v956
  %958 = vmatmul.bf16.gmra.mxu0 %v305
  %v959 = vpop.f32.mrf.mxu0
  %v960 = vadd.f32 %v788, %v959
  %v961 = vpop.f32.mrf.mxu0
  %v962 = vadd.f32 %v790, %v961
  %963 = vmatmul.bf16.gmra.mxu0 %v308
  %v964 = vpop.f32.mrf.mxu0
  %v965 = vadd.f32 %v793, %v964
  %v966 = vpop.f32.mrf.mxu0
  %v967 = vadd.f32 %v795, %v966
  %968 = vmatmul.bf16.gmra.mxu0 %v311
  %v969 = vpop.f32.mrf.mxu0
  %v970 = vadd.f32 %v798, %v969
  %v971 = vpop.f32.mrf.mxu0
  %v972 = vadd.f32 %v800, %v971
  %973 = vmatmul.bf16.gmra.mxu0 %v314
  %v974 = vpop.f32.mrf.mxu0
  %v975 = vadd.f32 %v803, %v974
  %v976 = vpop.f32.mrf.mxu0
  %v977 = vadd.f32 %v805, %v976
  %978 = vmatmul.bf16.gmra.mxu0 %v317
  %v979 = vpop.f32.mrf.mxu0
  %v980 = vadd.f32 %v808, %v979
  %v981 = vpop.f32.mrf.mxu0
  %v982 = vadd.f32 %v810, %v981
  %983 = vmatmul.bf16.gmra.mxu0 %v544
  %v984 = vpop.f32.mrf.mxu0
  %v985 = vadd.f32 %v813, %v984
  %v986 = vpop.f32.mrf.mxu0
  %v987 = vadd.f32 %v815, %v986
  %988 = vmatmul.bf16.gmra.mxu0 %v323
  %v989 = vpop.f32.mrf.mxu0
  %v990 = vadd.f32 %v818, %v989
  %v991 = vpop.f32.mrf.mxu0
  %v992 = vadd.f32 %v820, %v991
  %993 = vmatmul.bf16.gmra.mxu0 %v326
  %v994 = vpop.f32.mrf.mxu0
  %v995 = vadd.f32 %v823, %v994
  %v996 = vpop.f32.mrf.mxu0
  %v997 = vadd.f32 %v825, %v996
  %998 = vmatmul.bf16.gmra.mxu0 %v329
  %v999 = vpop.f32.mrf.mxu0
  %v1000 = vadd.f32 %v828, %v999
  %v1001 = vpop.f32.mrf.mxu0
  %v1002 = vadd.f32 %v830, %v1001
  %1003 = vmatmul.bf16.gmra.mxu0 %v332
  %v1004 = vpop.f32.mrf.mxu0
  %v1005 = vadd.f32 %v833, %v1004
  %v1006 = vpop.f32.mrf.mxu0
  %v1007 = vadd.f32 %v835, %v1006
  %1008 = vmatmul.bf16.gmra.mxu0 %v335
  %v1009 = vpop.f32.mrf.mxu0
  %v1010 = vadd.f32 %v838, %v1009
  %v1011 = vpop.f32.mrf.mxu0
  %v1012 = vadd.f32 %v840, %v1011
  %1013 = vmatmul.bf16.gmra.mxu0 %v338
  %v1014 = vpop.f32.mrf.mxu0
  %v1015 = vadd.f32 %v843, %v1014
  %v1016 = vpop.f32.mrf.mxu0
  %v1017 = vadd.f32 %v845, %v1016
  %1018 = vmatmul.bf16.gmra.mxu0 %v341
  %v1019 = vpop.f32.mrf.mxu0
  %v1020 = vadd.f32 %v848, %v1019
  %v1021 = vpop.f32.mrf.mxu0
  %v1022 = vadd.f32 %v850, %v1021
  %1023 = vmatmul.bf16.gmra.mxu0 %v344
  %v1024 = vpop.f32.mrf.mxu0
  %v1025 = vadd.f32 %v853, %v1024
  %v1026 = vpop.f32.mrf.mxu0
  %v1027 = vadd.f32 %v855, %v1026
  %1028 = vmatmul.bf16.gmra.mxu0 %v347
  %v1029 = vpop.f32.mrf.mxu0
  %v1030 = vadd.f32 %v858, %v1029
  %v1031 = vpop.f32.mrf.mxu0
  %v1032 = vadd.f32 %v860, %v1031
  %1033 = vmatmul.bf16.gmra.mxu0 %v350
  %v1034 = vpop.f32.mrf.mxu0
  %v1035 = vadd.f32 %v863, %v1034
  %v1036 = vpop.f32.mrf.mxu0
  %v1037 = vadd.f32 %v865, %v1036
  %1038 = vmatmul.bf16.gmra.mxu0 %v353
  %v1039 = vpop.f32.mrf.mxu0
  %v1040 = vadd.f32 %v868, %v1039
  %v1041 = vpop.f32.mrf.mxu0
  %v1042 = vadd.f32 %v870, %v1041
  %1043 = vmatmul.bf16.gmra.mxu0 %v356
  %v1044 = vpop.f32.mrf.mxu0
  %v1045 = vadd.f32 %v873, %v1044
  %v1046 = vpop.f32.mrf.mxu0
  %v1047 = vadd.f32 %v875, %v1046
  %1048 = vmatmul.bf16.gmra.mxu0 %v359
  %v1049 = vpop.f32.mrf.mxu0
  %v1050 = vadd.f32 %v878, %v1049
  %v1051 = vpop.f32.mrf.mxu0
  %v1052 = vadd.f32 %v880, %v1051
  %1053 = vmatmul.bf16.gmra.mxu0 %v362
  %v1054 = vpop.f32.mrf.mxu0
  %v1055 = vadd.f32 %v883, %v1054
  %v1056 = vpop.f32.mrf.mxu0
  %v1057 = vadd.f32 %v885, %v1056
  %1058 = vmatmul.bf16.gmra.mxu0 %v365
  %v1059 = vpop.f32.mrf.mxu0
  %v1060 = vadd.f32 %v888, %v1059
  %v1061 = vpop.f32.mrf.mxu0
  %v1062 = vadd.f32 %v890, %v1061
  %1063 = vdwg.mxu0
  %s1064 = scalar_lea.vmem %s1, 4
  %v1065 = vld [vmem:[%s1064] sm:$0x3]
  %v1067 = vsel %vm370, %v1065, 0
  %1069 = vmatpush.bf16.msra.mxu0 0
  %1070 = vmatpush.bf16.msra.mxu0 0
  %1071 = vmatpush.bf16.msra.mxu0 0
  %1072 = vmatpush.bf16.msra.mxu0 0
  %1073 = vmatpush.bf16.msra.mxu0 0
  %1074 = vmatpush.bf16.msra.mxu0 0
  %1075 = vmatpush.bf16.msra.mxu0 0
  %1076 = vmatpush.bf16.msra.mxu0 %v1067
  %1077 = vmatmul.bf16.gmra.mxu0 %v278
  %v1078 = vpop.f32.mrf.mxu0
  %v1079 = vadd.f32 0.0, %v1078
  %v1080 = vpop.f32.mrf.mxu0
  %v1081 = vadd.f32 0.0, %v1080
  %1082 = vmatmul.bf16.gmra.mxu0 %v281
  %v1083 = vpop.f32.mrf.mxu0
  %v1084 = vadd.f32 0.0, %v1083
  %v1085 = vpop.f32.mrf.mxu0
  %v1086 = vadd.f32 0.0, %v1085
  %1087 = vmatmul.bf16.gmra.mxu0 %v284
  %v1088 = vpop.f32.mrf.mxu0
  %v1089 = vadd.f32 0.0, %v1088
  %v1090 = vpop.f32.mrf.mxu0
  %v1091 = vadd.f32 0.0, %v1090
  %1092 = vmatmul.bf16.gmra.mxu0 %v287
  %v1093 = vpop.f32.mrf.mxu0
  %v1094 = vadd.f32 0.0, %v1093
  %v1095 = vpop.f32.mrf.mxu0
  %v1096 = vadd.f32 0.0, %v1095
  %1097 = vmatmul.bf16.gmra.mxu0 %v290
  %v1098 = vpop.f32.mrf.mxu0
  %v1099 = vadd.f32 0.0, %v1098
  %v1100 = vpop.f32.mrf.mxu0
  %v1101 = vadd.f32 0.0, %v1100
  %1102 = vmatmul.bf16.gmra.mxu0 %v293
  %v1103 = vpop.f32.mrf.mxu0
  %v1104 = vadd.f32 0.0, %v1103
  %v1105 = vpop.f32.mrf.mxu0
  %v1106 = vadd.f32 0.0, %v1105
  %1107 = vmatmul.bf16.gmra.mxu0 %v296
  %v1108 = vpop.f32.mrf.mxu0
  %v1109 = vadd.f32 0.0, %v1108
  %v1110 = vpop.f32.mrf.mxu0
  %v1111 = vadd.f32 0.0, %v1110
  %1112 = vmatmul.bf16.gmra.mxu0 %v299
  %v1113 = vpop.f32.mrf.mxu0
  %v1114 = vadd.f32 0.0, %v1113
  %v1115 = vpop.f32.mrf.mxu0
  %v1116 = vadd.f32 0.0, %v1115
  %1117 = vmatmul.bf16.gmra.mxu0 %v302
  %v1118 = vpop.f32.mrf.mxu0
  %v1119 = vadd.f32 0.0, %v1118
  %v1120 = vpop.f32.mrf.mxu0
  %v1121 = vadd.f32 0.0, %v1120
  %1122 = vmatmul.bf16.gmra.mxu0 %v305
  %v1123 = vpop.f32.mrf.mxu0
  %v1124 = vadd.f32 0.0, %v1123
  %v1125 = vpop.f32.mrf.mxu0
  %v1126 = vadd.f32 0.0, %v1125
  %1127 = vmatmul.bf16.gmra.mxu0 %v308
  %v1128 = vpop.f32.mrf.mxu0
  %v1129 = vadd.f32 0.0, %v1128
  %v1130 = vpop.f32.mrf.mxu0
  %v1131 = vadd.f32 0.0, %v1130
  %1132 = vmatmul.bf16.gmra.mxu0 %v311
  %v1133 = vpop.f32.mrf.mxu0
  %v1134 = vadd.f32 0.0, %v1133
  %v1135 = vpop.f32.mrf.mxu0
  %v1136 = vadd.f32 0.0, %v1135
  %1137 = vmatmul.bf16.gmra.mxu0 %v314
  %v1138 = vpop.f32.mrf.mxu0
  %v1139 = vadd.f32 0.0, %v1138
  %v1140 = vpop.f32.mrf.mxu0
  %v1141 = vadd.f32 0.0, %v1140
  %1142 = vmatmul.bf16.gmra.mxu0 %v317
  %v1143 = vpop.f32.mrf.mxu0
  %v1144 = vadd.f32 0.0, %v1143
  %v1145 = vpop.f32.mrf.mxu0
  %v1146 = vadd.f32 0.0, %v1145
  %1147 = vmatmul.bf16.gmra.mxu0 %v320
  %v1148 = vpop.f32.mrf.mxu0
  %v1149 = vadd.f32 0.0, %v1148
  %v1150 = vpop.f32.mrf.mxu0
  %v1151 = vadd.f32 0.0, %v1150
  %1152 = vmatmul.bf16.gmra.mxu0 %v544
  %v1153 = vpop.f32.mrf.mxu0
  %v1154 = vadd.f32 0.0, %v1153
  %v1155 = vpop.f32.mrf.mxu0
  %v1156 = vadd.f32 0.0, %v1155
  %1157 = vmatmul.bf16.gmra.mxu0 %v326
  %v1158 = vpop.f32.mrf.mxu0
  %v1159 = vadd.f32 0.0, %v1158
  %v1160 = vpop.f32.mrf.mxu0
  %v1161 = vadd.f32 0.0, %v1160
  %1162 = vmatmul.bf16.gmra.mxu0 %v329
  %v1163 = vpop.f32.mrf.mxu0
  %v1164 = vadd.f32 0.0, %v1163
  %v1165 = vpop.f32.mrf.mxu0
  %v1166 = vadd.f32 0.0, %v1165
  %1167 = vmatmul.bf16.gmra.mxu0 %v332
  %v1168 = vpop.f32.mrf.mxu0
  %v1169 = vadd.f32 0.0, %v1168
  %v1170 = vpop.f32.mrf.mxu0
  %v1171 = vadd.f32 0.0, %v1170
  %1172 = vmatmul.bf16.gmra.mxu0 %v335
  %v1173 = vpop.f32.mrf.mxu0
  %v1174 = vadd.f32 0.0, %v1173
  %v1175 = vpop.f32.mrf.mxu0
  %v1176 = vadd.f32 0.0, %v1175
  %1177 = vmatmul.bf16.gmra.mxu0 %v338
  %v1178 = vpop.f32.mrf.mxu0
  %v1179 = vadd.f32 0.0, %v1178
  %v1180 = vpop.f32.mrf.mxu0
  %v1181 = vadd.f32 0.0, %v1180
  %1182 = vmatmul.bf16.gmra.mxu0 %v341
  %v1183 = vpop.f32.mrf.mxu0
  %v1184 = vadd.f32 0.0, %v1183
  %v1185 = vpop.f32.mrf.mxu0
  %v1186 = vadd.f32 0.0, %v1185
  %1187 = vmatmul.bf16.gmra.mxu0 %v344
  %v1188 = vpop.f32.mrf.mxu0
  %v1189 = vadd.f32 0.0, %v1188
  %v1190 = vpop.f32.mrf.mxu0
  %v1191 = vadd.f32 0.0, %v1190
  %1192 = vmatmul.bf16.gmra.mxu0 %v347
  %v1193 = vpop.f32.mrf.mxu0
  %v1194 = vadd.f32 0.0, %v1193
  %v1195 = vpop.f32.mrf.mxu0
  %v1196 = vadd.f32 0.0, %v1195
  %1197 = vmatmul.bf16.gmra.mxu0 %v350
  %v1198 = vpop.f32.mrf.mxu0
  %v1199 = vadd.f32 0.0, %v1198
  %v1200 = vpop.f32.mrf.mxu0
  %v1201 = vadd.f32 0.0, %v1200
  %1202 = vmatmul.bf16.gmra.mxu0 %v353
  %v1203 = vpop.f32.mrf.mxu0
  %v1204 = vadd.f32 0.0, %v1203
  %v1205 = vpop.f32.mrf.mxu0
  %v1206 = vadd.f32 0.0, %v1205
  %1207 = vmatmul.bf16.gmra.mxu0 %v356
  %v1208 = vpop.f32.mrf.mxu0
  %v1209 = vadd.f32 0.0, %v1208
  %v1210 = vpop.f32.mrf.mxu0
  %v1211 = vadd.f32 0.0, %v1210
  %1212 = vmatmul.bf16.gmra.mxu0 %v359
  %v1213 = vpop.f32.mrf.mxu0
  %v1214 = vadd.f32 0.0, %v1213
  %v1215 = vpop.f32.mrf.mxu0
  %v1216 = vadd.f32 0.0, %v1215
  %1217 = vmatmul.bf16.gmra.mxu0 %v362
  %v1218 = vpop.f32.mrf.mxu0
  %v1219 = vadd.f32 0.0, %v1218
  %v1220 = vpop.f32.mrf.mxu0
  %v1221 = vadd.f32 0.0, %v1220
  %1222 = vmatmul.bf16.gmra.mxu0 %v365
  %v1223 = vpop.f32.mrf.mxu0
  %v1224 = vadd.f32 0.0, %v1223
  %v1225 = vpop.f32.mrf.mxu0
  %v1226 = vadd.f32 0.0, %v1225
  %1227 = vmatmul.bf16.gmra.mxu0 %v368
  %v1228 = vpop.f32.mrf.mxu0
  %v1229 = vadd.f32 0.0, %v1228
  %v1230 = vpop.f32.mrf.mxu0
  %v1231 = vadd.f32 0.0, %v1230
  %1232 = vmatmul.bf16.gmra.mxu0 %v544
  %v1233 = vpop.f32.mrf.mxu0
  %v1234 = vadd.f32 0.0, %v1233
  %v1235 = vpop.f32.mrf.mxu0
  %v1236 = vadd.f32 0.0, %v1235
  %1237 = vdwg.mxu0
  %v1238 = vadd.f32 %v559, %v1079
  %v1239 = vadd.f32 %v561, %v1081
  %v1240 = vadd.f32 %v564, %v1084
  %v1241 = vadd.f32 %v566, %v1086
  %v1242 = vadd.f32 %v569, %v1089
  %v1243 = vadd.f32 %v571, %v1091
  %v1244 = vadd.f32 %v574, %v1094
  %v1245 = vadd.f32 %v576, %v1096
  %v1246 = vadd.f32 %v579, %v1099
  %v1247 = vadd.f32 %v581, %v1101
  %v1248 = vadd.f32 %v584, %v1104
  %v1249 = vadd.f32 %v586, %v1106
  %v1250 = vadd.f32 %v589, %v1109
  %v1251 = vadd.f32 %v591, %v1111
  %v1252 = vadd.f32 %v594, %v1114
  %v1253 = vadd.f32 %v596, %v1116
  %v1254 = vadd.f32 %v599, %v1119
  %v1255 = vadd.f32 %v601, %v1121
  %v1256 = vadd.f32 %v604, %v1124
  %v1257 = vadd.f32 %v606, %v1126
  %v1258 = vadd.f32 %v609, %v1129
  %v1259 = vadd.f32 %v611, %v1131
  %v1260 = vadd.f32 %v614, %v1134
  %v1261 = vadd.f32 %v616, %v1136
  %v1262 = vadd.f32 %v619, %v1139
  %v1263 = vadd.f32 %v621, %v1141
  %v1264 = vadd.f32 %v624, %v1144
  %v1265 = vadd.f32 %v626, %v1146
  %v1266 = vadd.f32 %v629, %v1149
  %v1267 = vadd.f32 %v631, %v1151
  %v1268 = vadd.f32 %v634, %v1154
  %v1269 = vadd.f32 %v636, %v1156
  %v1270 = vadd.f32 %v639, %v1159
  %v1271 = vadd.f32 %v641, %v1161
  %v1272 = vadd.f32 %v644, %v1164
  %v1273 = vadd.f32 %v646, %v1166
  %v1274 = vadd.f32 %v649, %v1169
  %v1275 = vadd.f32 %v651, %v1171
  %v1276 = vadd.f32 %v654, %v1174
  %v1277 = vadd.f32 %v656, %v1176
  %v1278 = vadd.f32 %v659, %v1179
  %v1279 = vadd.f32 %v661, %v1181
  %v1280 = vadd.f32 %v664, %v1184
  %v1281 = vadd.f32 %v666, %v1186
  %v1282 = vadd.f32 %v669, %v1189
  %v1283 = vadd.f32 %v671, %v1191
  %v1284 = vadd.f32 %v674, %v1194
  %v1285 = vadd.f32 %v676, %v1196
  %v1286 = vadd.f32 %v679, %v1199
  %v1287 = vadd.f32 %v681, %v1201
  %v1288 = vadd.f32 %v684, %v1204
  %v1289 = vadd.f32 %v686, %v1206
  %v1290 = vadd.f32 %v689, %v1209
  %v1291 = vadd.f32 %v691, %v1211
  %v1292 = vadd.f32 %v694, %v1214
  %v1293 = vadd.f32 %v696, %v1216
  %v1294 = vadd.f32 %v699, %v1219
  %v1295 = vadd.f32 %v701, %v1221
  %v1296 = vadd.f32 %v704, %v1224
  %v1297 = vadd.f32 %v706, %v1226
  %v1298 = vadd.f32 %v709, %v1229
  %v1299 = vadd.f32 %v711, %v1231
  %v1300 = vadd.f32 %v714, %v1234
  %v1301 = vadd.f32 %v716, %v1236
  %s1302 = scalar_lea.vmem %s2, 4
  %v1303 = vld [vmem:[%s1302] sm:$0x3]
  %v1305 = vsel %vm370, %v1303, 0
  %1307 = vmatpush.bf16.msra.mxu0 0
  %1308 = vmatpush.bf16.msra.mxu0 0
  %1309 = vmatpush.bf16.msra.mxu0 0
  %1310 = vmatpush.bf16.msra.mxu0 0
  %1311 = vmatpush.bf16.msra.mxu0 0
  %1312 = vmatpush.bf16.msra.mxu0 0
  %1313 = vmatpush.bf16.msra.mxu0 0
  %1314 = vmatpush.bf16.msra.mxu0 %v1305
  %1315 = vmatmul.bf16.gmra.mxu0 %v278
  %v1316 = vpop.f32.mrf.mxu0
  %v1317 = vadd.f32 0.0, %v1316
  %v1318 = vpop.f32.mrf.mxu0
  %v1319 = vadd.f32 0.0, %v1318
  %1320 = vmatmul.bf16.gmra.mxu0 %v281
  %v1321 = vpop.f32.mrf.mxu0
  %v1322 = vadd.f32 0.0, %v1321
  %v1323 = vpop.f32.mrf.mxu0
  %v1324 = vadd.f32 0.0, %v1323
  %1325 = vmatmul.bf16.gmra.mxu0 %v284
  %v1326 = vpop.f32.mrf.mxu0
  %v1327 = vadd.f32 0.0, %v1326
  %v1328 = vpop.f32.mrf.mxu0
  %v1329 = vadd.f32 0.0, %v1328
  %1330 = vmatmul.bf16.gmra.mxu0 %v287
  %v1331 = vpop.f32.mrf.mxu0
  %v1332 = vadd.f32 0.0, %v1331
  %v1333 = vpop.f32.mrf.mxu0
  %v1334 = vadd.f32 0.0, %v1333
  %1335 = vmatmul.bf16.gmra.mxu0 %v290
  %v1336 = vpop.f32.mrf.mxu0
  %v1337 = vadd.f32 0.0, %v1336
  %v1338 = vpop.f32.mrf.mxu0
  %v1339 = vadd.f32 0.0, %v1338
  %1340 = vmatmul.bf16.gmra.mxu0 %v293
  %v1341 = vpop.f32.mrf.mxu0
  %v1342 = vadd.f32 0.0, %v1341
  %v1343 = vpop.f32.mrf.mxu0
  %v1344 = vadd.f32 0.0, %v1343
  %1345 = vmatmul.bf16.gmra.mxu0 %v296
  %v1346 = vpop.f32.mrf.mxu0
  %v1347 = vadd.f32 0.0, %v1346
  %v1348 = vpop.f32.mrf.mxu0
  %v1349 = vadd.f32 0.0, %v1348
  %1350 = vmatmul.bf16.gmra.mxu0 %v299
  %v1351 = vpop.f32.mrf.mxu0
  %v1352 = vadd.f32 0.0, %v1351
  %v1353 = vpop.f32.mrf.mxu0
  %v1354 = vadd.f32 0.0, %v1353
  %1355 = vmatmul.bf16.gmra.mxu0 %v302
  %v1356 = vpop.f32.mrf.mxu0
  %v1357 = vadd.f32 0.0, %v1356
  %v1358 = vpop.f32.mrf.mxu0
  %v1359 = vadd.f32 0.0, %v1358
  %1360 = vmatmul.bf16.gmra.mxu0 %v305
  %v1361 = vpop.f32.mrf.mxu0
  %v1362 = vadd.f32 0.0, %v1361
  %v1363 = vpop.f32.mrf.mxu0
  %v1364 = vadd.f32 0.0, %v1363
  %1365 = vmatmul.bf16.gmra.mxu0 %v308
  %v1366 = vpop.f32.mrf.mxu0
  %v1367 = vadd.f32 0.0, %v1366
  %v1368 = vpop.f32.mrf.mxu0
  %v1369 = vadd.f32 0.0, %v1368
  %1370 = vmatmul.bf16.gmra.mxu0 %v311
  %v1371 = vpop.f32.mrf.mxu0
  %v1372 = vadd.f32 0.0, %v1371
  %v1373 = vpop.f32.mrf.mxu0
  %v1374 = vadd.f32 0.0, %v1373
  %1375 = vmatmul.bf16.gmra.mxu0 %v314
  %v1376 = vpop.f32.mrf.mxu0
  %v1377 = vadd.f32 0.0, %v1376
  %v1378 = vpop.f32.mrf.mxu0
  %v1379 = vadd.f32 0.0, %v1378
  %1380 = vmatmul.bf16.gmra.mxu0 %v317
  %v1381 = vpop.f32.mrf.mxu0
  %v1382 = vadd.f32 0.0, %v1381
  %v1383 = vpop.f32.mrf.mxu0
  %v1384 = vadd.f32 0.0, %v1383
  %1385 = vmatmul.bf16.gmra.mxu0 %v320
  %v1386 = vpop.f32.mrf.mxu0
  %v1387 = vadd.f32 0.0, %v1386
  %v1388 = vpop.f32.mrf.mxu0
  %v1389 = vadd.f32 0.0, %v1388
  %1390 = vmatmul.bf16.gmra.mxu0 %v544
  %v1391 = vpop.f32.mrf.mxu0
  %v1392 = vadd.f32 0.0, %v1391
  %v1393 = vpop.f32.mrf.mxu0
  %v1394 = vadd.f32 0.0, %v1393
  %1395 = vmatmul.bf16.gmra.mxu0 %v326
  %v1396 = vpop.f32.mrf.mxu0
  %v1397 = vadd.f32 0.0, %v1396
  %v1398 = vpop.f32.mrf.mxu0
  %v1399 = vadd.f32 0.0, %v1398
  %1400 = vmatmul.bf16.gmra.mxu0 %v329
  %v1401 = vpop.f32.mrf.mxu0
  %v1402 = vadd.f32 0.0, %v1401
  %v1403 = vpop.f32.mrf.mxu0
  %v1404 = vadd.f32 0.0, %v1403
  %1405 = vmatmul.bf16.gmra.mxu0 %v332
  %v1406 = vpop.f32.mrf.mxu0
  %v1407 = vadd.f32 0.0, %v1406
  %v1408 = vpop.f32.mrf.mxu0
  %v1409 = vadd.f32 0.0, %v1408
  %1410 = vmatmul.bf16.gmra.mxu0 %v335
  %v1411 = vpop.f32.mrf.mxu0
  %v1412 = vadd.f32 0.0, %v1411
  %v1413 = vpop.f32.mrf.mxu0
  %v1414 = vadd.f32 0.0, %v1413
  %1415 = vmatmul.bf16.gmra.mxu0 %v338
  %v1416 = vpop.f32.mrf.mxu0
  %v1417 = vadd.f32 0.0, %v1416
  %v1418 = vpop.f32.mrf.mxu0
  %v1419 = vadd.f32 0.0, %v1418
  %1420 = vmatmul.bf16.gmra.mxu0 %v341
  %v1421 = vpop.f32.mrf.mxu0
  %v1422 = vadd.f32 0.0, %v1421
  %v1423 = vpop.f32.mrf.mxu0
  %v1424 = vadd.f32 0.0, %v1423
  %1425 = vmatmul.bf16.gmra.mxu0 %v344
  %v1426 = vpop.f32.mrf.mxu0
  %v1427 = vadd.f32 0.0, %v1426
  %v1428 = vpop.f32.mrf.mxu0
  %v1429 = vadd.f32 0.0, %v1428
  %1430 = vmatmul.bf16.gmra.mxu0 %v347
  %v1431 = vpop.f32.mrf.mxu0
  %v1432 = vadd.f32 0.0, %v1431
  %v1433 = vpop.f32.mrf.mxu0
  %v1434 = vadd.f32 0.0, %v1433
  %1435 = vmatmul.bf16.gmra.mxu0 %v350
  %v1436 = vpop.f32.mrf.mxu0
  %v1437 = vadd.f32 0.0, %v1436
  %v1438 = vpop.f32.mrf.mxu0
  %v1439 = vadd.f32 0.0, %v1438
  %1440 = vmatmul.bf16.gmra.mxu0 %v353
  %v1441 = vpop.f32.mrf.mxu0
  %v1442 = vadd.f32 0.0, %v1441
  %v1443 = vpop.f32.mrf.mxu0
  %v1444 = vadd.f32 0.0, %v1443
  %1445 = vmatmul.bf16.gmra.mxu0 %v356
  %v1446 = vpop.f32.mrf.mxu0
  %v1447 = vadd.f32 0.0, %v1446
  %v1448 = vpop.f32.mrf.mxu0
  %v1449 = vadd.f32 0.0, %v1448
  %1450 = vmatmul.bf16.gmra.mxu0 %v359
  %v1451 = vpop.f32.mrf.mxu0
  %v1452 = vadd.f32 0.0, %v1451
  %v1453 = vpop.f32.mrf.mxu0
  %v1454 = vadd.f32 0.0, %v1453
  %1455 = vmatmul.bf16.gmra.mxu0 %v362
  %v1456 = vpop.f32.mrf.mxu0
  %v1457 = vadd.f32 0.0, %v1456
  %v1458 = vpop.f32.mrf.mxu0
  %v1459 = vadd.f32 0.0, %v1458
  %1460 = vmatmul.bf16.gmra.mxu0 %v365
  %v1461 = vpop.f32.mrf.mxu0
  %v1462 = vadd.f32 0.0, %v1461
  %v1463 = vpop.f32.mrf.mxu0
  %v1464 = vadd.f32 0.0, %v1463
  %1465 = vmatmul.bf16.gmra.mxu0 %v368
  %v1466 = vpop.f32.mrf.mxu0
  %v1467 = vadd.f32 0.0, %v1466
  %v1468 = vpop.f32.mrf.mxu0
  %v1469 = vadd.f32 0.0, %v1468
  %1470 = vmatmul.bf16.gmra.mxu0 %v544
  %v1471 = vpop.f32.mrf.mxu0
  %v1472 = vadd.f32 0.0, %v1471
  %v1473 = vpop.f32.mrf.mxu0
  %v1474 = vadd.f32 0.0, %v1473
  %1475 = vdwg.mxu0
  %v1476 = vadd.f32 %v905, %v1317
  %v1477 = vadd.f32 %v907, %v1319
  %v1478 = vadd.f32 %v910, %v1322
  %v1479 = vadd.f32 %v912, %v1324
  %v1480 = vadd.f32 %v915, %v1327
  %v1481 = vadd.f32 %v917, %v1329
  %v1482 = vadd.f32 %v920, %v1332
  %v1483 = vadd.f32 %v922, %v1334
  %v1484 = vadd.f32 %v925, %v1337
  %v1485 = vadd.f32 %v927, %v1339
  %v1486 = vadd.f32 %v930, %v1342
  %v1487 = vadd.f32 %v932, %v1344
  %v1488 = vadd.f32 %v935, %v1347
  %v1489 = vadd.f32 %v937, %v1349
  %v1490 = vadd.f32 %v940, %v1352
  %v1491 = vadd.f32 %v942, %v1354
  %v1492 = vadd.f32 %v945, %v1357
  %v1493 = vadd.f32 %v947, %v1359
  %v1494 = vadd.f32 %v950, %v1362
  %v1495 = vadd.f32 %v952, %v1364
  %v1496 = vadd.f32 %v955, %v1367
  %v1497 = vadd.f32 %v957, %v1369
  %v1498 = vadd.f32 %v960, %v1372
  %v1499 = vadd.f32 %v962, %v1374
  %v1500 = vadd.f32 %v965, %v1377
  %v1501 = vadd.f32 %v967, %v1379
  %v1502 = vadd.f32 %v970, %v1382
  %v1503 = vadd.f32 %v972, %v1384
  %v1504 = vadd.f32 %v975, %v1387
  %v1505 = vadd.f32 %v977, %v1389
  %v1506 = vadd.f32 %v980, %v1392
  %v1507 = vadd.f32 %v982, %v1394
  %v1508 = vadd.f32 %v985, %v1397
  %v1509 = vadd.f32 %v987, %v1399
  %v1510 = vadd.f32 %v990, %v1402
  %v1511 = vadd.f32 %v992, %v1404
  %v1512 = vadd.f32 %v995, %v1407
  %v1513 = vadd.f32 %v997, %v1409
  %v1514 = vadd.f32 %v1000, %v1412
  %v1515 = vadd.f32 %v1002, %v1414
  %v1516 = vadd.f32 %v1005, %v1417
  %v1517 = vadd.f32 %v1007, %v1419
  %v1518 = vadd.f32 %v1010, %v1422
  %v1519 = vadd.f32 %v1012, %v1424
  %v1520 = vadd.f32 %v1015, %v1427
  %v1521 = vadd.f32 %v1017, %v1429
  %v1522 = vadd.f32 %v1020, %v1432
  %v1523 = vadd.f32 %v1022, %v1434
  %v1524 = vadd.f32 %v1025, %v1437
  %v1525 = vadd.f32 %v1027, %v1439
  %v1526 = vadd.f32 %v1030, %v1442
  %v1527 = vadd.f32 %v1032, %v1444
  %v1528 = vadd.f32 %v1035, %v1447
  %v1529 = vadd.f32 %v1037, %v1449
  %v1530 = vadd.f32 %v1040, %v1452
  %v1531 = vadd.f32 %v1042, %v1454
  %v1532 = vadd.f32 %v1045, %v1457
  %v1533 = vadd.f32 %v1047, %v1459
  %v1534 = vadd.f32 %v1050, %v1462
  %v1535 = vadd.f32 %v1052, %v1464
  %v1536 = vadd.f32 %v1055, %v1467
  %v1537 = vadd.f32 %v1057, %v1469
  %v1538 = vadd.f32 %v1060, %v1472
  %v1539 = vadd.f32 %v1062, %v1474
  %v1540 = vld [vmem:[%s3] sm:$0x1]
  %v1542 = vperm.slane %v1540, 0
  %v1544 = vadd.f32 %v1238, %v1542
  %v1545 = vadd.f32 %v1239, %v1542
  %v1546 = vadd.f32 %v1240, %v1542
  %v1547 = vadd.f32 %v1241, %v1542
  %v1548 = vadd.f32 %v1242, %v1542
  %v1549 = vadd.f32 %v1243, %v1542
  %v1550 = vadd.f32 %v1244, %v1542
  %v1551 = vadd.f32 %v1245, %v1542
  %v1552 = vadd.f32 %v1246, %v1542
  %v1553 = vadd.f32 %v1247, %v1542
  %v1554 = vadd.f32 %v1248, %v1542
  %v1555 = vadd.f32 %v1249, %v1542
  %v1556 = vadd.f32 %v1250, %v1542
  %v1557 = vadd.f32 %v1251, %v1542
  %v1558 = vadd.f32 %v1252, %v1542
  %v1559 = vadd.f32 %v1253, %v1542
  %v1560 = vadd.f32 %v1254, %v1542
  %v1561 = vadd.f32 %v1255, %v1542
  %v1562 = vadd.f32 %v1256, %v1542
  %v1563 = vadd.f32 %v1257, %v1542
  %v1564 = vadd.f32 %v1258, %v1542
  %v1565 = vadd.f32 %v1259, %v1542
  %v1566 = vadd.f32 %v1260, %v1542
  %v1567 = vadd.f32 %v1261, %v1542
  %v1568 = vadd.f32 %v1262, %v1542
  %v1569 = vadd.f32 %v1263, %v1542
  %v1570 = vadd.f32 %v1264, %v1542
  %v1571 = vadd.f32 %v1265, %v1542
  %v1572 = vadd.f32 %v1266, %v1542
  %v1573 = vadd.f32 %v1267, %v1542
  %v1574 = vadd.f32 %v1268, %v1542
  %v1575 = vadd.f32 %v1269, %v1542
  %v1576 = vadd.f32 %v1270, %v1542
  %v1577 = vadd.f32 %v1271, %v1542
  %v1578 = vadd.f32 %v1272, %v1542
  %v1579 = vadd.f32 %v1273, %v1542
  %v1580 = vadd.f32 %v1274, %v1542
  %v1581 = vadd.f32 %v1275, %v1542
  %v1582 = vadd.f32 %v1276, %v1542
  %v1583 = vadd.f32 %v1277, %v1542
  %v1584 = vadd.f32 %v1278, %v1542
  %v1585 = vadd.f32 %v1279, %v1542
  %v1586 = vadd.f32 %v1280, %v1542
  %v1587 = vadd.f32 %v1281, %v1542
  %v1588 = vadd.f32 %v1282, %v1542
  %v1589 = vadd.f32 %v1283, %v1542
  %v1590 = vadd.f32 %v1284, %v1542
  %v1591 = vadd.f32 %v1285, %v1542
  %v1592 = vadd.f32 %v1286, %v1542
  %v1593 = vadd.f32 %v1287, %v1542
  %v1594 = vadd.f32 %v1288, %v1542
  %v1595 = vadd.f32 %v1289, %v1542
  %v1596 = vadd.f32 %v1290, %v1542
  %v1597 = vadd.f32 %v1291, %v1542
  %v1598 = vadd.f32 %v1292, %v1542
  %v1599 = vadd.f32 %v1293, %v1542
  %v1600 = vadd.f32 %v1294, %v1542
  %v1601 = vadd.f32 %v1295, %v1542
  %v1602 = vadd.f32 %v1296, %v1542
  %v1603 = vadd.f32 %v1297, %v1542
  %v1604 = vadd.f32 %v1298, %v1542
  %v1605 = vadd.f32 %v1299, %v1542
  %v1606 = vadd.f32 %v1300, %v1542
  %v1607 = vadd.f32 %v1301, %v1542
  %v1608 = vld [vmem:[%s4] sm:$0x1]
  %v1610 = vperm.slane %v1608, 0
  %v1612 = vadd.f32 %v1476, %v1610
  %v1613 = vadd.f32 %v1477, %v1610
  %v1614 = vadd.f32 %v1478, %v1610
  %v1615 = vadd.f32 %v1479, %v1610
  %v1616 = vadd.f32 %v1480, %v1610
  %v1617 = vadd.f32 %v1481, %v1610
  %v1618 = vadd.f32 %v1482, %v1610
  %v1619 = vadd.f32 %v1483, %v1610
  %v1620 = vadd.f32 %v1484, %v1610
  %v1621 = vadd.f32 %v1485, %v1610
  %v1622 = vadd.f32 %v1486, %v1610
  %v1623 = vadd.f32 %v1487, %v1610
  %v1624 = vadd.f32 %v1488, %v1610
  %v1625 = vadd.f32 %v1489, %v1610
  %v1626 = vadd.f32 %v1490, %v1610
  %v1627 = vadd.f32 %v1491, %v1610
  %v1628 = vadd.f32 %v1492, %v1610
  %v1629 = vadd.f32 %v1493, %v1610
  %v1630 = vadd.f32 %v1494, %v1610
  %v1631 = vadd.f32 %v1495, %v1610
  %v1632 = vadd.f32 %v1496, %v1610
  %v1633 = vadd.f32 %v1497, %v1610
  %v1634 = vadd.f32 %v1498, %v1610
  %v1635 = vadd.f32 %v1499, %v1610
  %v1636 = vadd.f32 %v1500, %v1610
  %v1637 = vadd.f32 %v1501, %v1610
  %v1638 = vadd.f32 %v1502, %v1610
  %v1639 = vadd.f32 %v1503, %v1610
  %v1640 = vadd.f32 %v1504, %v1610
  %v1641 = vadd.f32 %v1505, %v1610
  %v1642 = vadd.f32 %v1506, %v1610
  %v1643 = vadd.f32 %v1507, %v1610
  %v1644 = vadd.f32 %v1508, %v1610
  %v1645 = vadd.f32 %v1509, %v1610
  %v1646 = vadd.f32 %v1510, %v1610
  %v1647 = vadd.f32 %v1511, %v1610
  %v1648 = vadd.f32 %v1512, %v1610
  %v1649 = vadd.f32 %v1513, %v1610
  %v1650 = vadd.f32 %v1514, %v1610
  %v1651 = vadd.f32 %v1515, %v1610
  %v1652 = vadd.f32 %v1516, %v1610
  %v1653 = vadd.f32 %v1517, %v1610
  %v1654 = vadd.f32 %v1518, %v1610
  %v1655 = vadd.f32 %v1519, %v1610
  %v1656 = vadd.f32 %v1520, %v1610
  %v1657 = vadd.f32 %v1521, %v1610
  %v1658 = vadd.f32 %v1522, %v1610
  %v1659 = vadd.f32 %v1523, %v1610
  %v1660 = vadd.f32 %v1524, %v1610
  %v1661 = vadd.f32 %v1525, %v1610
  %v1662 = vadd.f32 %v1526, %v1610
  %v1663 = vadd.f32 %v1527, %v1610
  %v1664 = vadd.f32 %v1528, %v1610
  %v1665 = vadd.f32 %v1529, %v1610
  %v1666 = vadd.f32 %v1530, %v1610
  %v1667 = vadd.f32 %v1531, %v1610
  %v1668 = vadd.f32 %v1532, %v1610
  %v1669 = vadd.f32 %v1533, %v1610
  %v1670 = vadd.f32 %v1534, %v1610
  %v1671 = vadd.f32 %v1535, %v1610
  %v1672 = vadd.f32 %v1536, %v1610
  %v1673 = vadd.f32 %v1537, %v1610
  %v1674 = vadd.f32 %v1538, %v1610
  %v1675 = vadd.f32 %v1539, %v1610
  %v1676 = vxor.u32 %v1612, 2147483648
  %v1677 = vxor.u32 %v1613, 2147483648
  %v1678 = vxor.u32 %v1614, 2147483648
  %v1679 = vxor.u32 %v1615, 2147483648
  %v1680 = vxor.u32 %v1616, 2147483648
  %v1681 = vxor.u32 %v1617, 2147483648
  %v1682 = vxor.u32 %v1618, 2147483648
  %v1683 = vxor.u32 %v1619, 2147483648
  %v1684 = vxor.u32 %v1620, 2147483648
  %v1685 = vxor.u32 %v1621, 2147483648
  %v1686 = vxor.u32 %v1622, 2147483648
  %v1687 = vxor.u32 %v1623, 2147483648
  %v1688 = vxor.u32 %v1624, 2147483648
  %v1689 = vxor.u32 %v1625, 2147483648
  %v1690 = vxor.u32 %v1626, 2147483648
  %v1691 = vxor.u32 %v1627, 2147483648
  %v1692 = vxor.u32 %v1628, 2147483648
  %v1693 = vxor.u32 %v1629, 2147483648
  %v1694 = vxor.u32 %v1630, 2147483648
  %v1695 = vxor.u32 %v1631, 2147483648
  %v1696 = vxor.u32 %v1632, 2147483648
  %v1697 = vxor.u32 %v1633, 2147483648
  %v1698 = vxor.u32 %v1634, 2147483648
  %v1699 = vxor.u32 %v1635, 2147483648
  %v1700 = vxor.u32 %v1636, 2147483648
  %v1701 = vxor.u32 %v1637, 2147483648
  %v1702 = vxor.u32 %v1638, 2147483648
  %v1703 = vxor.u32 %v1639, 2147483648
  %v1704 = vxor.u32 %v1640, 2147483648
  %v1705 = vxor.u32 %v1641, 2147483648
  %v1706 = vxor.u32 %v1642, 2147483648
  %v1707 = vxor.u32 %v1643, 2147483648
  %v1708 = vxor.u32 %v1644, 2147483648
  %v1709 = vxor.u32 %v1645, 2147483648
  %v1710 = vxor.u32 %v1646, 2147483648
  %v1711 = vxor.u32 %v1647, 2147483648
  %v1712 = vxor.u32 %v1648, 2147483648
  %v1713 = vxor.u32 %v1649, 2147483648
  %v1714 = vxor.u32 %v1650, 2147483648
  %v1715 = vxor.u32 %v1651, 2147483648
  %v1716 = vxor.u32 %v1652, 2147483648
  %v1717 = vxor.u32 %v1653, 2147483648
  %v1718 = vxor.u32 %v1654, 2147483648
  %v1719 = vxor.u32 %v1655, 2147483648
  %v1720 = vxor.u32 %v1656, 2147483648
  %v1721 = vxor.u32 %v1657, 2147483648
  %v1722 = vxor.u32 %v1658, 2147483648
  %v1723 = vxor.u32 %v1659, 2147483648
  %v1724 = vxor.u32 %v1660, 2147483648
  %v1725 = vxor.u32 %v1661, 2147483648
  %v1726 = vxor.u32 %v1662, 2147483648
  %v1727 = vxor.u32 %v1663, 2147483648
  %v1728 = vxor.u32 %v1664, 2147483648
  %v1729 = vxor.u32 %v1665, 2147483648
  %v1730 = vxor.u32 %v1666, 2147483648
  %v1731 = vxor.u32 %v1667, 2147483648
  %v1732 = vxor.u32 %v1668, 2147483648
  %v1733 = vxor.u32 %v1669, 2147483648
  %v1734 = vxor.u32 %v1670, 2147483648
  %v1735 = vxor.u32 %v1671, 2147483648
  %v1736 = vxor.u32 %v1672, 2147483648
  %v1737 = vxor.u32 %v1673, 2147483648
  %v1738 = vxor.u32 %v1674, 2147483648
  %v1739 = vxor.u32 %v1675, 2147483648
  %v1740 = vmul.f32 %v1676, 1.442695
  %v1741 = vpow.pop %v1740
  %v1742 = vmul.f32 %v1677, 1.442695
  %v1743 = vpow.pop %v1742
  %v1744 = vmul.f32 %v1678, 1.442695
  %v1745 = vpow.pop %v1744
  %v1746 = vmul.f32 %v1679, 1.442695
  %v1747 = vpow.pop %v1746
  %v1748 = vmul.f32 %v1680, 1.442695
  %v1749 = vpow.pop %v1748
  %v1750 = vmul.f32 %v1681, 1.442695
  %v1751 = vpow.pop %v1750
  %v1752 = vmul.f32 %v1682, 1.442695
  %v1753 = vpow.pop %v1752
  %v1754 = vmul.f32 %v1683, 1.442695
  %v1755 = vpow.pop %v1754
  %v1756 = vmul.f32 %v1684, 1.442695
  %v1757 = vpow.pop %v1756
  %v1758 = vmul.f32 %v1685, 1.442695
  %v1759 = vpow.pop %v1758
  %v1760 = vmul.f32 %v1686, 1.442695
  %v1761 = vpow.pop %v1760
  %v1762 = vmul.f32 %v1687, 1.442695
  %v1763 = vpow.pop %v1762
  %v1764 = vmul.f32 %v1688, 1.442695
  %v1765 = vpow.pop %v1764
  %v1766 = vmul.f32 %v1689, 1.442695
  %v1767 = vpow.pop %v1766
  %v1768 = vmul.f32 %v1690, 1.442695
  %v1769 = vpow.pop %v1768
  %v1770 = vmul.f32 %v1691, 1.442695
  %v1771 = vpow.pop %v1770
  %v1772 = vmul.f32 %v1692, 1.442695
  %v1773 = vpow.pop %v1772
  %v1774 = vmul.f32 %v1693, 1.442695
  %v1775 = vpow.pop %v1774
  %v1776 = vmul.f32 %v1694, 1.442695
  %v1777 = vpow.pop %v1776
  %v1778 = vmul.f32 %v1695, 1.442695
  %v1779 = vpow.pop %v1778
  %v1780 = vmul.f32 %v1696, 1.442695
  %v1781 = vpow.pop %v1780
  %v1782 = vmul.f32 %v1697, 1.442695
  %v1783 = vpow.pop %v1782
  %v1784 = vmul.f32 %v1698, 1.442695
  %v1785 = vpow.pop %v1784
  %v1786 = vmul.f32 %v1699, 1.442695
  %v1787 = vpow.pop %v1786
  %v1788 = vmul.f32 %v1700, 1.442695
  %v1789 = vpow.pop %v1788
  %v1790 = vmul.f32 %v1701, 1.442695
  %v1791 = vpow.pop %v1790
  %v1792 = vmul.f32 %v1702, 1.442695
  %v1793 = vpow.pop %v1792
  %v1794 = vmul.f32 %v1703, 1.442695
  %v1795 = vpow.pop %v1794
  %v1796 = vmul.f32 %v1704, 1.442695
  %v1797 = vpow.pop %v1796
  %v1798 = vmul.f32 %v1705, 1.442695
  %v1799 = vpow.pop %v1798
  %v1800 = vmul.f32 %v1706, 1.442695
  %v1801 = vpow.pop %v1800
  %v1802 = vmul.f32 %v1707, 1.442695
  %v1803 = vpow.pop %v1802
  %v1804 = vmul.f32 %v1708, 1.442695
  %v1805 = vpow.pop %v1804
  %v1806 = vmul.f32 %v1709, 1.442695
  %v1807 = vpow.pop %v1806
  %v1808 = vmul.f32 %v1710, 1.442695
  %v1809 = vpow.pop %v1808
  %v1810 = vmul.f32 %v1711, 1.442695
  %v1811 = vpow.pop %v1810
  %v1812 = vmul.f32 %v1712, 1.442695
  %v1813 = vpow.pop %v1812
  %v1814 = vmul.f32 %v1713, 1.442695
  %v1815 = vpow.pop %v1814
  %v1816 = vmul.f32 %v1714, 1.442695
  %v1817 = vpow.pop %v1816
  %v1818 = vmul.f32 %v1715, 1.442695
  %v1819 = vpow.pop %v1818
  %v1820 = vmul.f32 %v1716, 1.442695
  %v1821 = vpow.pop %v1820
  %v1822 = vmul.f32 %v1717, 1.442695
  %v1823 = vpow.pop %v1822
  %v1824 = vmul.f32 %v1718, 1.442695
  %v1825 = vpow.pop %v1824
  %v1826 = vmul.f32 %v1719, 1.442695
  %v1827 = vpow.pop %v1826
  %v1828 = vmul.f32 %v1720, 1.442695
  %v1829 = vpow.pop %v1828
  %v1830 = vmul.f32 %v1721, 1.442695
  %v1831 = vpow.pop %v1830
  %v1832 = vmul.f32 %v1722, 1.442695
  %v1833 = vpow.pop %v1832
  %v1834 = vmul.f32 %v1723, 1.442695
  %v1835 = vpow.pop %v1834
  %v1836 = vmul.f32 %v1724, 1.442695
  %v1837 = vpow.pop %v1836
  %v1838 = vmul.f32 %v1725, 1.442695
  %v1839 = vpow.pop %v1838
  %v1840 = vmul.f32 %v1726, 1.442695
  %v1841 = vpow.pop %v1840
  %v1842 = vmul.f32 %v1727, 1.442695
  %v1843 = vpow.pop %v1842
  %v1844 = vmul.f32 %v1728, 1.442695
  %v1845 = vpow.pop %v1844
  %v1846 = vmul.f32 %v1729, 1.442695
  %v1847 = vpow.pop %v1846
  %v1848 = vmul.f32 %v1730, 1.442695
  %v1849 = vpow.pop %v1848
  %v1850 = vmul.f32 %v1731, 1.442695
  %v1851 = vpow.pop %v1850
  %v1852 = vmul.f32 %v1732, 1.442695
  %v1853 = vpow.pop %v1852
  %v1854 = vmul.f32 %v1733, 1.442695
  %v1855 = vpow.pop %v1854
  %v1856 = vmul.f32 %v1734, 1.442695
  %v1857 = vpow.pop %v1856
  %v1858 = vmul.f32 %v1735, 1.442695
  %v1859 = vpow.pop %v1858
  %v1860 = vmul.f32 %v1736, 1.442695
  %v1861 = vpow.pop %v1860
  %v1862 = vmul.f32 %v1737, 1.442695
  %v1863 = vpow.pop %v1862
  %v1864 = vmul.f32 %v1738, 1.442695
  %v1865 = vpow.pop %v1864
  %v1866 = vmul.f32 %v1739, 1.442695
  %v1867 = vpow.pop %v1866
  %v1868 = vadd.f32 %v1741, 1.0
  %v1869 = vadd.f32 %v1743, 1.0
  %v1870 = vadd.f32 %v1745, 1.0
  %v1871 = vadd.f32 %v1747, 1.0
  %v1872 = vadd.f32 %v1749, 1.0
  %v1873 = vadd.f32 %v1751, 1.0
  %v1874 = vadd.f32 %v1753, 1.0
  %v1875 = vadd.f32 %v1755, 1.0
  %v1876 = vadd.f32 %v1757, 1.0
  %v1877 = vadd.f32 %v1759, 1.0
  %v1878 = vadd.f32 %v1761, 1.0
  %v1879 = vadd.f32 %v1763, 1.0
  %v1880 = vadd.f32 %v1765, 1.0
  %v1881 = vadd.f32 %v1767, 1.0
  %v1882 = vadd.f32 %v1769, 1.0
  %v1883 = vadd.f32 %v1771, 1.0
  %v1884 = vadd.f32 %v1773, 1.0
  %v1885 = vadd.f32 %v1775, 1.0
  %v1886 = vadd.f32 %v1777, 1.0
  %v1887 = vadd.f32 %v1779, 1.0
  %v1888 = vadd.f32 %v1781, 1.0
  %v1889 = vadd.f32 %v1783, 1.0
  %v1890 = vadd.f32 %v1785, 1.0
  %v1891 = vadd.f32 %v1787, 1.0
  %v1892 = vadd.f32 %v1789, 1.0
  %v1893 = vadd.f32 %v1791, 1.0
  %v1894 = vadd.f32 %v1793, 1.0
  %v1895 = vadd.f32 %v1795, 1.0
  %v1896 = vadd.f32 %v1797, 1.0
  %v1897 = vadd.f32 %v1799, 1.0
  %v1898 = vadd.f32 %v1801, 1.0
  %v1899 = vadd.f32 %v1803, 1.0
  %v1900 = vadd.f32 %v1805, 1.0
  %v1901 = vadd.f32 %v1807, 1.0
  %v1902 = vadd.f32 %v1809, 1.0
  %v1903 = vadd.f32 %v1811, 1.0
  %v1904 = vadd.f32 %v1813, 1.0
  %v1905 = vadd.f32 %v1815, 1.0
  %v1906 = vadd.f32 %v1817, 1.0
  %v1907 = vadd.f32 %v1819, 1.0
  %v1908 = vadd.f32 %v1821, 1.0
  %v1909 = vadd.f32 %v1823, 1.0
  %v1910 = vadd.f32 %v1825, 1.0
  %v1911 = vadd.f32 %v1827, 1.0
  %v1912 = vadd.f32 %v1829, 1.0
  %v1913 = vadd.f32 %v1831, 1.0
  %v1914 = vadd.f32 %v1833, 1.0
  %v1915 = vadd.f32 %v1835, 1.0
  %v1916 = vadd.f32 %v1837, 1.0
  %v1917 = vadd.f32 %v1839, 1.0
  %v1918 = vadd.f32 %v1841, 1.0
  %v1919 = vadd.f32 %v1843, 1.0
  %v1920 = vadd.f32 %v1845, 1.0
  %v1921 = vadd.f32 %v1847, 1.0
  %v1922 = vadd.f32 %v1849, 1.0
  %v1923 = vadd.f32 %v1851, 1.0
  %v1924 = vadd.f32 %v1853, 1.0
  %v1925 = vadd.f32 %v1855, 1.0
  %v1926 = vadd.f32 %v1857, 1.0
  %v1927 = vadd.f32 %v1859, 1.0
  %v1928 = vadd.f32 %v1861, 1.0
  %v1929 = vadd.f32 %v1863, 1.0
  %v1930 = vadd.f32 %v1865, 1.0
  %v1931 = vadd.f32 %v1867, 1.0
  %v1932 = vrcp.pop %v1868
  %v1933 = vmul.f32 %v1868, %v1932
  %v1934 = vsub.f32 1.0, %v1933
  %v1935 = vmul.f32 %v1932, %v1934
  %v1936 = vadd.f32 %v1932, %v1935
  %vm1937 = vweird.f32 %v1868
  %vm1938 = vweird.f32 %v1932
  %vm1939 = vmor %vm1937, %vm1938
  %v1940 = vsel %vm1939, %v1932, %v1936
  %v1941 = vand.u32 2147483647, %v1868
  %vm1942 = vcmp.eq.f32.partialorder %v1941, 8.507059e+37
  %v1943 = vand.u32 %v1868, 2147483648
  %v1944 = vor.u32 1.1754944e-38, %v1943
  %v1945 = vsel %vm1942, %v1944, %v1940
  %v1946 = vmul.f32 1.0, %v1945
  %v1947 = vrcp.pop %v1869
  %v1948 = vmul.f32 %v1869, %v1947
  %v1949 = vsub.f32 1.0, %v1948
  %v1950 = vmul.f32 %v1947, %v1949
  %v1951 = vadd.f32 %v1947, %v1950
  %vm1952 = vweird.f32 %v1869
  %vm1953 = vweird.f32 %v1947
  %vm1954 = vmor %vm1952, %vm1953
  %v1955 = vsel %vm1954, %v1947, %v1951
  %v1956 = vand.u32 2147483647, %v1869
  %vm1957 = vcmp.eq.f32.partialorder %v1956, 8.507059e+37
  %v1958 = vand.u32 %v1869, 2147483648
  %v1959 = vor.u32 1.1754944e-38, %v1958
  %v1960 = vsel %vm1957, %v1959, %v1955
  %v1961 = vmul.f32 1.0, %v1960
  %v1962 = vrcp.pop %v1870
  %v1963 = vmul.f32 %v1870, %v1962
  %v1964 = vsub.f32 1.0, %v1963
  %v1965 = vmul.f32 %v1962, %v1964
  %v1966 = vadd.f32 %v1962, %v1965
  %vm1967 = vweird.f32 %v1870
  %vm1968 = vweird.f32 %v1962
  %vm1969 = vmor %vm1967, %vm1968
  %v1970 = vsel %vm1969, %v1962, %v1966
  %v1971 = vand.u32 2147483647, %v1870
  %vm1972 = vcmp.eq.f32.partialorder %v1971, 8.507059e+37
  %v1973 = vand.u32 %v1870, 2147483648
  %v1974 = vor.u32 1.1754944e-38, %v1973
  %v1975 = vsel %vm1972, %v1974, %v1970
  %v1976 = vmul.f32 1.0, %v1975
  %v1977 = vrcp.pop %v1871
  %v1978 = vmul.f32 %v1871, %v1977
  %v1979 = vsub.f32 1.0, %v1978
  %v1980 = vmul.f32 %v1977, %v1979
  %v1981 = vadd.f32 %v1977, %v1980
  %vm1982 = vweird.f32 %v1871
  %vm1983 = vweird.f32 %v1977
  %vm1984 = vmor %vm1982, %vm1983
  %v1985 = vsel %vm1984, %v1977, %v1981
  %v1986 = vand.u32 2147483647, %v1871
  %vm1987 = vcmp.eq.f32.partialorder %v1986, 8.507059e+37
  %v1988 = vand.u32 %v1871, 2147483648
  %v1989 = vor.u32 1.1754944e-38, %v1988
  %v1990 = vsel %vm1987, %v1989, %v1985
  %v1991 = vmul.f32 1.0, %v1990
  %v1992 = vrcp.pop %v1872
  %v1993 = vmul.f32 %v1872, %v1992
  %v1994 = vsub.f32 1.0, %v1993
  %v1995 = vmul.f32 %v1992, %v1994
  %v1996 = vadd.f32 %v1992, %v1995
  %vm1997 = vweird.f32 %v1872
  %vm1998 = vweird.f32 %v1992
  %vm1999 = vmor %vm1997, %vm1998
  %v2000 = vsel %vm1999, %v1992, %v1996
  %v2001 = vand.u32 2147483647, %v1872
  %vm2002 = vcmp.eq.f32.partialorder %v2001, 8.507059e+37
  %v2003 = vand.u32 %v1872, 2147483648
  %v2004 = vor.u32 1.1754944e-38, %v2003
  %v2005 = vsel %vm2002, %v2004, %v2000
  %v2006 = vmul.f32 1.0, %v2005
  %v2007 = vrcp.pop %v1873
  %v2008 = vmul.f32 %v1873, %v2007
  %v2009 = vsub.f32 1.0, %v2008
  %v2010 = vmul.f32 %v2007, %v2009
  %v2011 = vadd.f32 %v2007, %v2010
  %vm2012 = vweird.f32 %v1873
  %vm2013 = vweird.f32 %v2007
  %vm2014 = vmor %vm2012, %vm2013
  %v2015 = vsel %vm2014, %v2007, %v2011
  %v2016 = vand.u32 2147483647, %v1873
  %vm2017 = vcmp.eq.f32.partialorder %v2016, 8.507059e+37
  %v2018 = vand.u32 %v1873, 2147483648
  %v2019 = vor.u32 1.1754944e-38, %v2018
  %v2020 = vsel %vm2017, %v2019, %v2015
  %v2021 = vmul.f32 1.0, %v2020
  %v2022 = vrcp.pop %v1874
  %v2023 = vmul.f32 %v1874, %v2022
  %v2024 = vsub.f32 1.0, %v2023
  %v2025 = vmul.f32 %v2022, %v2024
  %v2026 = vadd.f32 %v2022, %v2025
  %vm2027 = vweird.f32 %v1874
  %vm2028 = vweird.f32 %v2022
  %vm2029 = vmor %vm2027, %vm2028
  %v2030 = vsel %vm2029, %v2022, %v2026
  %v2031 = vand.u32 2147483647, %v1874
  %vm2032 = vcmp.eq.f32.partialorder %v2031, 8.507059e+37
  %v2033 = vand.u32 %v1874, 2147483648
  %v2034 = vor.u32 1.1754944e-38, %v2033
  %v2035 = vsel %vm2032, %v2034, %v2030
  %v2036 = vmul.f32 1.0, %v2035
  %v2037 = vrcp.pop %v1875
  %v2038 = vmul.f32 %v1875, %v2037
  %v2039 = vsub.f32 1.0, %v2038
  %v2040 = vmul.f32 %v2037, %v2039
  %v2041 = vadd.f32 %v2037, %v2040
  %vm2042 = vweird.f32 %v1875
  %vm2043 = vweird.f32 %v2037
  %vm2044 = vmor %vm2042, %vm2043
  %v2045 = vsel %vm2044, %v2037, %v2041
  %v2046 = vand.u32 2147483647, %v1875
  %vm2047 = vcmp.eq.f32.partialorder %v2046, 8.507059e+37
  %v2048 = vand.u32 %v1875, 2147483648
  %v2049 = vor.u32 1.1754944e-38, %v2048
  %v2050 = vsel %vm2047, %v2049, %v2045
  %v2051 = vmul.f32 1.0, %v2050
  %v2052 = vrcp.pop %v1876
  %v2053 = vmul.f32 %v1876, %v2052
  %v2054 = vsub.f32 1.0, %v2053
  %v2055 = vmul.f32 %v2052, %v2054
  %v2056 = vadd.f32 %v2052, %v2055
  %vm2057 = vweird.f32 %v1876
  %vm2058 = vweird.f32 %v2052
  %vm2059 = vmor %vm2057, %vm2058
  %v2060 = vsel %vm2059, %v2052, %v2056
  %v2061 = vand.u32 2147483647, %v1876
  %vm2062 = vcmp.eq.f32.partialorder %v2061, 8.507059e+37
  %v2063 = vand.u32 %v1876, 2147483648
  %v2064 = vor.u32 1.1754944e-38, %v2063
  %v2065 = vsel %vm2062, %v2064, %v2060
  %v2066 = vmul.f32 1.0, %v2065
  %v2067 = vrcp.pop %v1877
  %v2068 = vmul.f32 %v1877, %v2067
  %v2069 = vsub.f32 1.0, %v2068
  %v2070 = vmul.f32 %v2067, %v2069
  %v2071 = vadd.f32 %v2067, %v2070
  %vm2072 = vweird.f32 %v1877
  %vm2073 = vweird.f32 %v2067
  %vm2074 = vmor %vm2072, %vm2073
  %v2075 = vsel %vm2074, %v2067, %v2071
  %v2076 = vand.u32 2147483647, %v1877
  %vm2077 = vcmp.eq.f32.partialorder %v2076, 8.507059e+37
  %v2078 = vand.u32 %v1877, 2147483648
  %v2079 = vor.u32 1.1754944e-38, %v2078
  %v2080 = vsel %vm2077, %v2079, %v2075
  %v2081 = vmul.f32 1.0, %v2080
  %v2082 = vrcp.pop %v1878
  %v2083 = vmul.f32 %v1878, %v2082
  %v2084 = vsub.f32 1.0, %v2083
  %v2085 = vmul.f32 %v2082, %v2084
  %v2086 = vadd.f32 %v2082, %v2085
  %vm2087 = vweird.f32 %v1878
  %vm2088 = vweird.f32 %v2082
  %vm2089 = vmor %vm2087, %vm2088
  %v2090 = vsel %vm2089, %v2082, %v2086
  %v2091 = vand.u32 2147483647, %v1878
  %vm2092 = vcmp.eq.f32.partialorder %v2091, 8.507059e+37
  %v2093 = vand.u32 %v1878, 2147483648
  %v2094 = vor.u32 1.1754944e-38, %v2093
  %v2095 = vsel %vm2092, %v2094, %v2090
  %v2096 = vmul.f32 1.0, %v2095
  %v2097 = vrcp.pop %v1879
  %v2098 = vmul.f32 %v1879, %v2097
  %v2099 = vsub.f32 1.0, %v2098
  %v2100 = vmul.f32 %v2097, %v2099
  %v2101 = vadd.f32 %v2097, %v2100
  %vm2102 = vweird.f32 %v1879
  %vm2103 = vweird.f32 %v2097
  %vm2104 = vmor %vm2102, %vm2103
  %v2105 = vsel %vm2104, %v2097, %v2101
  %v2106 = vand.u32 2147483647, %v1879
  %vm2107 = vcmp.eq.f32.partialorder %v2106, 8.507059e+37
  %v2108 = vand.u32 %v1879, 2147483648
  %v2109 = vor.u32 1.1754944e-38, %v2108
  %v2110 = vsel %vm2107, %v2109, %v2105
  %v2111 = vmul.f32 1.0, %v2110
  %v2112 = vrcp.pop %v1880
  %v2113 = vmul.f32 %v1880, %v2112
  %v2114 = vsub.f32 1.0, %v2113
  %v2115 = vmul.f32 %v2112, %v2114
  %v2116 = vadd.f32 %v2112, %v2115
  %vm2117 = vweird.f32 %v1880
  %vm2118 = vweird.f32 %v2112
  %vm2119 = vmor %vm2117, %vm2118
  %v2120 = vsel %vm2119, %v2112, %v2116
  %v2121 = vand.u32 2147483647, %v1880
  %vm2122 = vcmp.eq.f32.partialorder %v2121, 8.507059e+37
  %v2123 = vand.u32 %v1880, 2147483648
  %v2124 = vor.u32 1.1754944e-38, %v2123
  %v2125 = vsel %vm2122, %v2124, %v2120
  %v2126 = vmul.f32 1.0, %v2125
  %v2127 = vrcp.pop %v1881
  %v2128 = vmul.f32 %v1881, %v2127
  %v2129 = vsub.f32 1.0, %v2128
  %v2130 = vmul.f32 %v2127, %v2129
  %v2131 = vadd.f32 %v2127, %v2130
  %vm2132 = vweird.f32 %v1881
  %vm2133 = vweird.f32 %v2127
  %vm2134 = vmor %vm2132, %vm2133
  %v2135 = vsel %vm2134, %v2127, %v2131
  %v2136 = vand.u32 2147483647, %v1881
  %vm2137 = vcmp.eq.f32.partialorder %v2136, 8.507059e+37
  %v2138 = vand.u32 %v1881, 2147483648
  %v2139 = vor.u32 1.1754944e-38, %v2138
  %v2140 = vsel %vm2137, %v2139, %v2135
  %v2141 = vmul.f32 1.0, %v2140
  %v2142 = vrcp.pop %v1882
  %v2143 = vmul.f32 %v1882, %v2142
  %v2144 = vsub.f32 1.0, %v2143
  %v2145 = vmul.f32 %v2142, %v2144
  %v2146 = vadd.f32 %v2142, %v2145
  %vm2147 = vweird.f32 %v1882
  %vm2148 = vweird.f32 %v2142
  %vm2149 = vmor %vm2147, %vm2148
  %v2150 = vsel %vm2149, %v2142, %v2146
  %v2151 = vand.u32 2147483647, %v1882
  %vm2152 = vcmp.eq.f32.partialorder %v2151, 8.507059e+37
  %v2153 = vand.u32 %v1882, 2147483648
  %v2154 = vor.u32 1.1754944e-38, %v2153
  %v2155 = vsel %vm2152, %v2154, %v2150
  %v2156 = vmul.f32 1.0, %v2155
  %v2157 = vrcp.pop %v1883
  %v2158 = vmul.f32 %v1883, %v2157
  %v2159 = vsub.f32 1.0, %v2158
  %v2160 = vmul.f32 %v2157, %v2159
  %v2161 = vadd.f32 %v2157, %v2160
  %vm2162 = vweird.f32 %v1883
  %vm2163 = vweird.f32 %v2157
  %vm2164 = vmor %vm2162, %vm2163
  %v2165 = vsel %vm2164, %v2157, %v2161
  %v2166 = vand.u32 2147483647, %v1883
  %vm2167 = vcmp.eq.f32.partialorder %v2166, 8.507059e+37
  %v2168 = vand.u32 %v1883, 2147483648
  %v2169 = vor.u32 1.1754944e-38, %v2168
  %v2170 = vsel %vm2167, %v2169, %v2165
  %v2171 = vmul.f32 1.0, %v2170
  %v2172 = vrcp.pop %v1884
  %v2173 = vmul.f32 %v1884, %v2172
  %v2174 = vsub.f32 1.0, %v2173
  %v2175 = vmul.f32 %v2172, %v2174
  %v2176 = vadd.f32 %v2172, %v2175
  %vm2177 = vweird.f32 %v1884
  %vm2178 = vweird.f32 %v2172
  %vm2179 = vmor %vm2177, %vm2178
  %v2180 = vsel %vm2179, %v2172, %v2176
  %v2181 = vand.u32 2147483647, %v1884
  %vm2182 = vcmp.eq.f32.partialorder %v2181, 8.507059e+37
  %v2183 = vand.u32 %v1884, 2147483648
  %v2184 = vor.u32 1.1754944e-38, %v2183
  %v2185 = vsel %vm2182, %v2184, %v2180
  %v2186 = vmul.f32 1.0, %v2185
  %v2187 = vrcp.pop %v1885
  %v2188 = vmul.f32 %v1885, %v2187
  %v2189 = vsub.f32 1.0, %v2188
  %v2190 = vmul.f32 %v2187, %v2189
  %v2191 = vadd.f32 %v2187, %v2190
  %vm2192 = vweird.f32 %v1885
  %vm2193 = vweird.f32 %v2187
  %vm2194 = vmor %vm2192, %vm2193
  %v2195 = vsel %vm2194, %v2187, %v2191
  %v2196 = vand.u32 2147483647, %v1885
  %vm2197 = vcmp.eq.f32.partialorder %v2196, 8.507059e+37
  %v2198 = vand.u32 %v1885, 2147483648
  %v2199 = vor.u32 1.1754944e-38, %v2198
  %v2200 = vsel %vm2197, %v2199, %v2195
  %v2201 = vmul.f32 1.0, %v2200
  %v2202 = vrcp.pop %v1886
  %v2203 = vmul.f32 %v1886, %v2202
  %v2204 = vsub.f32 1.0, %v2203
  %v2205 = vmul.f32 %v2202, %v2204
  %v2206 = vadd.f32 %v2202, %v2205
  %vm2207 = vweird.f32 %v1886
  %vm2208 = vweird.f32 %v2202
  %vm2209 = vmor %vm2207, %vm2208
  %v2210 = vsel %vm2209, %v2202, %v2206
  %v2211 = vand.u32 2147483647, %v1886
  %vm2212 = vcmp.eq.f32.partialorder %v2211, 8.507059e+37
  %v2213 = vand.u32 %v1886, 2147483648
  %v2214 = vor.u32 1.1754944e-38, %v2213
  %v2215 = vsel %vm2212, %v2214, %v2210
  %v2216 = vmul.f32 1.0, %v2215
  %v2217 = vrcp.pop %v1887
  %v2218 = vmul.f32 %v1887, %v2217
  %v2219 = vsub.f32 1.0, %v2218
  %v2220 = vmul.f32 %v2217, %v2219
  %v2221 = vadd.f32 %v2217, %v2220
  %vm2222 = vweird.f32 %v1887
  %vm2223 = vweird.f32 %v2217
  %vm2224 = vmor %vm2222, %vm2223
  %v2225 = vsel %vm2224, %v2217, %v2221
  %v2226 = vand.u32 2147483647, %v1887
  %vm2227 = vcmp.eq.f32.partialorder %v2226, 8.507059e+37
  %v2228 = vand.u32 %v1887, 2147483648
  %v2229 = vor.u32 1.1754944e-38, %v2228
  %v2230 = vsel %vm2227, %v2229, %v2225
  %v2231 = vmul.f32 1.0, %v2230
  %v2232 = vrcp.pop %v1888
  %v2233 = vmul.f32 %v1888, %v2232
  %v2234 = vsub.f32 1.0, %v2233
  %v2235 = vmul.f32 %v2232, %v2234
  %v2236 = vadd.f32 %v2232, %v2235
  %vm2237 = vweird.f32 %v1888
  %vm2238 = vweird.f32 %v2232
  %vm2239 = vmor %vm2237, %vm2238
  %v2240 = vsel %vm2239, %v2232, %v2236
  %v2241 = vand.u32 2147483647, %v1888
  %vm2242 = vcmp.eq.f32.partialorder %v2241, 8.507059e+37
  %v2243 = vand.u32 %v1888, 2147483648
  %v2244 = vor.u32 1.1754944e-38, %v2243
  %v2245 = vsel %vm2242, %v2244, %v2240
  %v2246 = vmul.f32 1.0, %v2245
  %v2247 = vrcp.pop %v1889
  %v2248 = vmul.f32 %v1889, %v2247
  %v2249 = vsub.f32 1.0, %v2248
  %v2250 = vmul.f32 %v2247, %v2249
  %v2251 = vadd.f32 %v2247, %v2250
  %vm2252 = vweird.f32 %v1889
  %vm2253 = vweird.f32 %v2247
  %vm2254 = vmor %vm2252, %vm2253
  %v2255 = vsel %vm2254, %v2247, %v2251
  %v2256 = vand.u32 2147483647, %v1889
  %vm2257 = vcmp.eq.f32.partialorder %v2256, 8.507059e+37
  %v2258 = vand.u32 %v1889, 2147483648
  %v2259 = vor.u32 1.1754944e-38, %v2258
  %v2260 = vsel %vm2257, %v2259, %v2255
  %v2261 = vmul.f32 1.0, %v2260
  %v2262 = vrcp.pop %v1890
  %v2263 = vmul.f32 %v1890, %v2262
  %v2264 = vsub.f32 1.0, %v2263
  %v2265 = vmul.f32 %v2262, %v2264
  %v2266 = vadd.f32 %v2262, %v2265
  %vm2267 = vweird.f32 %v1890
  %vm2268 = vweird.f32 %v2262
  %vm2269 = vmor %vm2267, %vm2268
  %v2270 = vsel %vm2269, %v2262, %v2266
  %v2271 = vand.u32 2147483647, %v1890
  %vm2272 = vcmp.eq.f32.partialorder %v2271, 8.507059e+37
  %v2273 = vand.u32 %v1890, 2147483648
  %v2274 = vor.u32 1.1754944e-38, %v2273
  %v2275 = vsel %vm2272, %v2274, %v2270
  %v2276 = vmul.f32 1.0, %v2275
  %v2277 = vrcp.pop %v1891
  %v2278 = vmul.f32 %v1891, %v2277
  %v2279 = vsub.f32 1.0, %v2278
  %v2280 = vmul.f32 %v2277, %v2279
  %v2281 = vadd.f32 %v2277, %v2280
  %vm2282 = vweird.f32 %v1891
  %vm2283 = vweird.f32 %v2277
  %vm2284 = vmor %vm2282, %vm2283
  %v2285 = vsel %vm2284, %v2277, %v2281
  %v2286 = vand.u32 2147483647, %v1891
  %vm2287 = vcmp.eq.f32.partialorder %v2286, 8.507059e+37
  %v2288 = vand.u32 %v1891, 2147483648
  %v2289 = vor.u32 1.1754944e-38, %v2288
  %v2290 = vsel %vm2287, %v2289, %v2285
  %v2291 = vmul.f32 1.0, %v2290
  %v2292 = vrcp.pop %v1892
  %v2293 = vmul.f32 %v1892, %v2292
  %v2294 = vsub.f32 1.0, %v2293
  %v2295 = vmul.f32 %v2292, %v2294
  %v2296 = vadd.f32 %v2292, %v2295
  %vm2297 = vweird.f32 %v1892
  %vm2298 = vweird.f32 %v2292
  %vm2299 = vmor %vm2297, %vm2298
  %v2300 = vsel %vm2299, %v2292, %v2296
  %v2301 = vand.u32 2147483647, %v1892
  %vm2302 = vcmp.eq.f32.partialorder %v2301, 8.507059e+37
  %v2303 = vand.u32 %v1892, 2147483648
  %v2304 = vor.u32 1.1754944e-38, %v2303
  %v2305 = vsel %vm2302, %v2304, %v2300
  %v2306 = vmul.f32 1.0, %v2305
  %v2307 = vrcp.pop %v1893
  %v2308 = vmul.f32 %v1893, %v2307
  %v2309 = vsub.f32 1.0, %v2308
  %v2310 = vmul.f32 %v2307, %v2309
  %v2311 = vadd.f32 %v2307, %v2310
  %vm2312 = vweird.f32 %v1893
  %vm2313 = vweird.f32 %v2307
  %vm2314 = vmor %vm2312, %vm2313
  %v2315 = vsel %vm2314, %v2307, %v2311
  %v2316 = vand.u32 2147483647, %v1893
  %vm2317 = vcmp.eq.f32.partialorder %v2316, 8.507059e+37
  %v2318 = vand.u32 %v1893, 2147483648
  %v2319 = vor.u32 1.1754944e-38, %v2318
  %v2320 = vsel %vm2317, %v2319, %v2315
  %v2321 = vmul.f32 1.0, %v2320
  %v2322 = vrcp.pop %v1894
  %v2323 = vmul.f32 %v1894, %v2322
  %v2324 = vsub.f32 1.0, %v2323
  %v2325 = vmul.f32 %v2322, %v2324
  %v2326 = vadd.f32 %v2322, %v2325
  %vm2327 = vweird.f32 %v1894
  %vm2328 = vweird.f32 %v2322
  %vm2329 = vmor %vm2327, %vm2328
  %v2330 = vsel %vm2329, %v2322, %v2326
  %v2331 = vand.u32 2147483647, %v1894
  %vm2332 = vcmp.eq.f32.partialorder %v2331, 8.507059e+37
  %v2333 = vand.u32 %v1894, 2147483648
  %v2334 = vor.u32 1.1754944e-38, %v2333
  %v2335 = vsel %vm2332, %v2334, %v2330
  %v2336 = vmul.f32 1.0, %v2335
  %v2337 = vrcp.pop %v1895
  %v2338 = vmul.f32 %v1895, %v2337
  %v2339 = vsub.f32 1.0, %v2338
  %v2340 = vmul.f32 %v2337, %v2339
  %v2341 = vadd.f32 %v2337, %v2340
  %vm2342 = vweird.f32 %v1895
  %vm2343 = vweird.f32 %v2337
  %vm2344 = vmor %vm2342, %vm2343
  %v2345 = vsel %vm2344, %v2337, %v2341
  %v2346 = vand.u32 2147483647, %v1895
  %vm2347 = vcmp.eq.f32.partialorder %v2346, 8.507059e+37
  %v2348 = vand.u32 %v1895, 2147483648
  %v2349 = vor.u32 1.1754944e-38, %v2348
  %v2350 = vsel %vm2347, %v2349, %v2345
  %v2351 = vmul.f32 1.0, %v2350
  %v2352 = vrcp.pop %v1896
  %v2353 = vmul.f32 %v1896, %v2352
  %v2354 = vsub.f32 1.0, %v2353
  %v2355 = vmul.f32 %v2352, %v2354
  %v2356 = vadd.f32 %v2352, %v2355
  %vm2357 = vweird.f32 %v1896
  %vm2358 = vweird.f32 %v2352
  %vm2359 = vmor %vm2357, %vm2358
  %v2360 = vsel %vm2359, %v2352, %v2356
  %v2361 = vand.u32 2147483647, %v1896
  %vm2362 = vcmp.eq.f32.partialorder %v2361, 8.507059e+37
  %v2363 = vand.u32 %v1896, 2147483648
  %v2364 = vor.u32 1.1754944e-38, %v2363
  %v2365 = vsel %vm2362, %v2364, %v2360
  %v2366 = vmul.f32 1.0, %v2365
  %v2367 = vrcp.pop %v1897
  %v2368 = vmul.f32 %v1897, %v2367
  %v2369 = vsub.f32 1.0, %v2368
  %v2370 = vmul.f32 %v2367, %v2369
  %v2371 = vadd.f32 %v2367, %v2370
  %vm2372 = vweird.f32 %v1897
  %vm2373 = vweird.f32 %v2367
  %vm2374 = vmor %vm2372, %vm2373
  %v2375 = vsel %vm2374, %v2367, %v2371
  %v2376 = vand.u32 2147483647, %v1897
  %vm2377 = vcmp.eq.f32.partialorder %v2376, 8.507059e+37
  %v2378 = vand.u32 %v1897, 2147483648
  %v2379 = vor.u32 1.1754944e-38, %v2378
  %v2380 = vsel %vm2377, %v2379, %v2375
  %v2381 = vmul.f32 1.0, %v2380
  %v2382 = vrcp.pop %v1898
  %v2383 = vmul.f32 %v1898, %v2382
  %v2384 = vsub.f32 1.0, %v2383
  %v2385 = vmul.f32 %v2382, %v2384
  %v2386 = vadd.f32 %v2382, %v2385
  %vm2387 = vweird.f32 %v1898
  %vm2388 = vweird.f32 %v2382
  %vm2389 = vmor %vm2387, %vm2388
  %v2390 = vsel %vm2389, %v2382, %v2386
  %v2391 = vand.u32 2147483647, %v1898
  %vm2392 = vcmp.eq.f32.partialorder %v2391, 8.507059e+37
  %v2393 = vand.u32 %v1898, 2147483648
  %v2394 = vor.u32 1.1754944e-38, %v2393
  %v2395 = vsel %vm2392, %v2394, %v2390
  %v2396 = vmul.f32 1.0, %v2395
  %v2397 = vrcp.pop %v1899
  %v2398 = vmul.f32 %v1899, %v2397
  %v2399 = vsub.f32 1.0, %v2398
  %v2400 = vmul.f32 %v2397, %v2399
  %v2401 = vadd.f32 %v2397, %v2400
  %vm2402 = vweird.f32 %v1899
  %vm2403 = vweird.f32 %v2397
  %vm2404 = vmor %vm2402, %vm2403
  %v2405 = vsel %vm2404, %v2397, %v2401
  %v2406 = vand.u32 2147483647, %v1899
  %vm2407 = vcmp.eq.f32.partialorder %v2406, 8.507059e+37
  %v2408 = vand.u32 %v1899, 2147483648
  %v2409 = vor.u32 1.1754944e-38, %v2408
  %v2410 = vsel %vm2407, %v2409, %v2405
  %v2411 = vmul.f32 1.0, %v2410
  %v2412 = vrcp.pop %v1900
  %v2413 = vmul.f32 %v1900, %v2412
  %v2414 = vsub.f32 1.0, %v2413
  %v2415 = vmul.f32 %v2412, %v2414
  %v2416 = vadd.f32 %v2412, %v2415
  %vm2417 = vweird.f32 %v1900
  %vm2418 = vweird.f32 %v2412
  %vm2419 = vmor %vm2417, %vm2418
  %v2420 = vsel %vm2419, %v2412, %v2416
  %v2421 = vand.u32 2147483647, %v1900
  %vm2422 = vcmp.eq.f32.partialorder %v2421, 8.507059e+37
  %v2423 = vand.u32 %v1900, 2147483648
  %v2424 = vor.u32 1.1754944e-38, %v2423
  %v2425 = vsel %vm2422, %v2424, %v2420
  %v2426 = vmul.f32 1.0, %v2425
  %v2427 = vrcp.pop %v1901
  %v2428 = vmul.f32 %v1901, %v2427
  %v2429 = vsub.f32 1.0, %v2428
  %v2430 = vmul.f32 %v2427, %v2429
  %v2431 = vadd.f32 %v2427, %v2430
  %vm2432 = vweird.f32 %v1901
  %vm2433 = vweird.f32 %v2427
  %vm2434 = vmor %vm2432, %vm2433
  %v2435 = vsel %vm2434, %v2427, %v2431
  %v2436 = vand.u32 2147483647, %v1901
  %vm2437 = vcmp.eq.f32.partialorder %v2436, 8.507059e+37
  %v2438 = vand.u32 %v1901, 2147483648
  %v2439 = vor.u32 1.1754944e-38, %v2438
  %v2440 = vsel %vm2437, %v2439, %v2435
  %v2441 = vmul.f32 1.0, %v2440
  %v2442 = vrcp.pop %v1902
  %v2443 = vmul.f32 %v1902, %v2442
  %v2444 = vsub.f32 1.0, %v2443
  %v2445 = vmul.f32 %v2442, %v2444
  %v2446 = vadd.f32 %v2442, %v2445
  %vm2447 = vweird.f32 %v1902
  %vm2448 = vweird.f32 %v2442
  %vm2449 = vmor %vm2447, %vm2448
  %v2450 = vsel %vm2449, %v2442, %v2446
  %v2451 = vand.u32 2147483647, %v1902
  %vm2452 = vcmp.eq.f32.partialorder %v2451, 8.507059e+37
  %v2453 = vand.u32 %v1902, 2147483648
  %v2454 = vor.u32 1.1754944e-38, %v2453
  %v2455 = vsel %vm2452, %v2454, %v2450
  %v2456 = vmul.f32 1.0, %v2455
  %v2457 = vrcp.pop %v1903
  %v2458 = vmul.f32 %v1903, %v2457
  %v2459 = vsub.f32 1.0, %v2458
  %v2460 = vmul.f32 %v2457, %v2459
  %v2461 = vadd.f32 %v2457, %v2460
  %vm2462 = vweird.f32 %v1903
  %vm2463 = vweird.f32 %v2457
  %vm2464 = vmor %vm2462, %vm2463
  %v2465 = vsel %vm2464, %v2457, %v2461
  %v2466 = vand.u32 2147483647, %v1903
  %vm2467 = vcmp.eq.f32.partialorder %v2466, 8.507059e+37
  %v2468 = vand.u32 %v1903, 2147483648
  %v2469 = vor.u32 1.1754944e-38, %v2468
  %v2470 = vsel %vm2467, %v2469, %v2465
  %v2471 = vmul.f32 1.0, %v2470
  %v2472 = vrcp.pop %v1904
  %v2473 = vmul.f32 %v1904, %v2472
  %v2474 = vsub.f32 1.0, %v2473
  %v2475 = vmul.f32 %v2472, %v2474
  %v2476 = vadd.f32 %v2472, %v2475
  %vm2477 = vweird.f32 %v1904
  %vm2478 = vweird.f32 %v2472
  %vm2479 = vmor %vm2477, %vm2478
  %v2480 = vsel %vm2479, %v2472, %v2476
  %v2481 = vand.u32 2147483647, %v1904
  %vm2482 = vcmp.eq.f32.partialorder %v2481, 8.507059e+37
  %v2483 = vand.u32 %v1904, 2147483648
  %v2484 = vor.u32 1.1754944e-38, %v2483
  %v2485 = vsel %vm2482, %v2484, %v2480
  %v2486 = vmul.f32 1.0, %v2485
  %v2487 = vrcp.pop %v1905
  %v2488 = vmul.f32 %v1905, %v2487
  %v2489 = vsub.f32 1.0, %v2488
  %v2490 = vmul.f32 %v2487, %v2489
  %v2491 = vadd.f32 %v2487, %v2490
  %vm2492 = vweird.f32 %v1905
  %vm2493 = vweird.f32 %v2487
  %vm2494 = vmor %vm2492, %vm2493
  %v2495 = vsel %vm2494, %v2487, %v2491
  %v2496 = vand.u32 2147483647, %v1905
  %vm2497 = vcmp.eq.f32.partialorder %v2496, 8.507059e+37
  %v2498 = vand.u32 %v1905, 2147483648
  %v2499 = vor.u32 1.1754944e-38, %v2498
  %v2500 = vsel %vm2497, %v2499, %v2495
  %v2501 = vmul.f32 1.0, %v2500
  %v2502 = vrcp.pop %v1906
  %v2503 = vmul.f32 %v1906, %v2502
  %v2504 = vsub.f32 1.0, %v2503
  %v2505 = vmul.f32 %v2502, %v2504
  %v2506 = vadd.f32 %v2502, %v2505
  %vm2507 = vweird.f32 %v1906
  %vm2508 = vweird.f32 %v2502
  %vm2509 = vmor %vm2507, %vm2508
  %v2510 = vsel %vm2509, %v2502, %v2506
  %v2511 = vand.u32 2147483647, %v1906
  %vm2512 = vcmp.eq.f32.partialorder %v2511, 8.507059e+37
  %v2513 = vand.u32 %v1906, 2147483648
  %v2514 = vor.u32 1.1754944e-38, %v2513
  %v2515 = vsel %vm2512, %v2514, %v2510
  %v2516 = vmul.f32 1.0, %v2515
  %v2517 = vrcp.pop %v1907
  %v2518 = vmul.f32 %v1907, %v2517
  %v2519 = vsub.f32 1.0, %v2518
  %v2520 = vmul.f32 %v2517, %v2519
  %v2521 = vadd.f32 %v2517, %v2520
  %vm2522 = vweird.f32 %v1907
  %vm2523 = vweird.f32 %v2517
  %vm2524 = vmor %vm2522, %vm2523
  %v2525 = vsel %vm2524, %v2517, %v2521
  %v2526 = vand.u32 2147483647, %v1907
  %vm2527 = vcmp.eq.f32.partialorder %v2526, 8.507059e+37
  %v2528 = vand.u32 %v1907, 2147483648
  %v2529 = vor.u32 1.1754944e-38, %v2528
  %v2530 = vsel %vm2527, %v2529, %v2525
  %v2531 = vmul.f32 1.0, %v2530
  %v2532 = vrcp.pop %v1908
  %v2533 = vmul.f32 %v1908, %v2532
  %v2534 = vsub.f32 1.0, %v2533
  %v2535 = vmul.f32 %v2532, %v2534
  %v2536 = vadd.f32 %v2532, %v2535
  %vm2537 = vweird.f32 %v1908
  %vm2538 = vweird.f32 %v2532
  %vm2539 = vmor %vm2537, %vm2538
  %v2540 = vsel %vm2539, %v2532, %v2536
  %v2541 = vand.u32 2147483647, %v1908
  %vm2542 = vcmp.eq.f32.partialorder %v2541, 8.507059e+37
  %v2543 = vand.u32 %v1908, 2147483648
  %v2544 = vor.u32 1.1754944e-38, %v2543
  %v2545 = vsel %vm2542, %v2544, %v2540
  %v2546 = vmul.f32 1.0, %v2545
  %v2547 = vrcp.pop %v1909
  %v2548 = vmul.f32 %v1909, %v2547
  %v2549 = vsub.f32 1.0, %v2548
  %v2550 = vmul.f32 %v2547, %v2549
  %v2551 = vadd.f32 %v2547, %v2550
  %vm2552 = vweird.f32 %v1909
  %vm2553 = vweird.f32 %v2547
  %vm2554 = vmor %vm2552, %vm2553
  %v2555 = vsel %vm2554, %v2547, %v2551
  %v2556 = vand.u32 2147483647, %v1909
  %vm2557 = vcmp.eq.f32.partialorder %v2556, 8.507059e+37
  %v2558 = vand.u32 %v1909, 2147483648
  %v2559 = vor.u32 1.1754944e-38, %v2558
  %v2560 = vsel %vm2557, %v2559, %v2555
  %v2561 = vmul.f32 1.0, %v2560
  %v2562 = vrcp.pop %v1910
  %v2563 = vmul.f32 %v1910, %v2562
  %v2564 = vsub.f32 1.0, %v2563
  %v2565 = vmul.f32 %v2562, %v2564
  %v2566 = vadd.f32 %v2562, %v2565
  %vm2567 = vweird.f32 %v1910
  %vm2568 = vweird.f32 %v2562
  %vm2569 = vmor %vm2567, %vm2568
  %v2570 = vsel %vm2569, %v2562, %v2566
  %v2571 = vand.u32 2147483647, %v1910
  %vm2572 = vcmp.eq.f32.partialorder %v2571, 8.507059e+37
  %v2573 = vand.u32 %v1910, 2147483648
  %v2574 = vor.u32 1.1754944e-38, %v2573
  %v2575 = vsel %vm2572, %v2574, %v2570
  %v2576 = vmul.f32 1.0, %v2575
  %v2577 = vrcp.pop %v1911
  %v2578 = vmul.f32 %v1911, %v2577
  %v2579 = vsub.f32 1.0, %v2578
  %v2580 = vmul.f32 %v2577, %v2579
  %v2581 = vadd.f32 %v2577, %v2580
  %vm2582 = vweird.f32 %v1911
  %vm2583 = vweird.f32 %v2577
  %vm2584 = vmor %vm2582, %vm2583
  %v2585 = vsel %vm2584, %v2577, %v2581
  %v2586 = vand.u32 2147483647, %v1911
  %vm2587 = vcmp.eq.f32.partialorder %v2586, 8.507059e+37
  %v2588 = vand.u32 %v1911, 2147483648
  %v2589 = vor.u32 1.1754944e-38, %v2588
  %v2590 = vsel %vm2587, %v2589, %v2585
  %v2591 = vmul.f32 1.0, %v2590
  %v2592 = vrcp.pop %v1912
  %v2593 = vmul.f32 %v1912, %v2592
  %v2594 = vsub.f32 1.0, %v2593
  %v2595 = vmul.f32 %v2592, %v2594
  %v2596 = vadd.f32 %v2592, %v2595
  %vm2597 = vweird.f32 %v1912
  %vm2598 = vweird.f32 %v2592
  %vm2599 = vmor %vm2597, %vm2598
  %v2600 = vsel %vm2599, %v2592, %v2596
  %v2601 = vand.u32 2147483647, %v1912
  %vm2602 = vcmp.eq.f32.partialorder %v2601, 8.507059e+37
  %v2603 = vand.u32 %v1912, 2147483648
  %v2604 = vor.u32 1.1754944e-38, %v2603
  %v2605 = vsel %vm2602, %v2604, %v2600
  %v2606 = vmul.f32 1.0, %v2605
  %v2607 = vrcp.pop %v1913
  %v2608 = vmul.f32 %v1913, %v2607
  %v2609 = vsub.f32 1.0, %v2608
  %v2610 = vmul.f32 %v2607, %v2609
  %v2611 = vadd.f32 %v2607, %v2610
  %vm2612 = vweird.f32 %v1913
  %vm2613 = vweird.f32 %v2607
  %vm2614 = vmor %vm2612, %vm2613
  %v2615 = vsel %vm2614, %v2607, %v2611
  %v2616 = vand.u32 2147483647, %v1913
  %vm2617 = vcmp.eq.f32.partialorder %v2616, 8.507059e+37
  %v2618 = vand.u32 %v1913, 2147483648
  %v2619 = vor.u32 1.1754944e-38, %v2618
  %v2620 = vsel %vm2617, %v2619, %v2615
  %v2621 = vmul.f32 1.0, %v2620
  %v2622 = vrcp.pop %v1914
  %v2623 = vmul.f32 %v1914, %v2622
  %v2624 = vsub.f32 1.0, %v2623
  %v2625 = vmul.f32 %v2622, %v2624
  %v2626 = vadd.f32 %v2622, %v2625
  %vm2627 = vweird.f32 %v1914
  %vm2628 = vweird.f32 %v2622
  %vm2629 = vmor %vm2627, %vm2628
  %v2630 = vsel %vm2629, %v2622, %v2626
  %v2631 = vand.u32 2147483647, %v1914
  %vm2632 = vcmp.eq.f32.partialorder %v2631, 8.507059e+37
  %v2633 = vand.u32 %v1914, 2147483648
  %v2634 = vor.u32 1.1754944e-38, %v2633
  %v2635 = vsel %vm2632, %v2634, %v2630
  %v2636 = vmul.f32 1.0, %v2635
  %v2637 = vrcp.pop %v1915
  %v2638 = vmul.f32 %v1915, %v2637
  %v2639 = vsub.f32 1.0, %v2638
  %v2640 = vmul.f32 %v2637, %v2639
  %v2641 = vadd.f32 %v2637, %v2640
  %vm2642 = vweird.f32 %v1915
  %vm2643 = vweird.f32 %v2637
  %vm2644 = vmor %vm2642, %vm2643
  %v2645 = vsel %vm2644, %v2637, %v2641
  %v2646 = vand.u32 2147483647, %v1915
  %vm2647 = vcmp.eq.f32.partialorder %v2646, 8.507059e+37
  %v2648 = vand.u32 %v1915, 2147483648
  %v2649 = vor.u32 1.1754944e-38, %v2648
  %v2650 = vsel %vm2647, %v2649, %v2645
  %v2651 = vmul.f32 1.0, %v2650
  %v2652 = vrcp.pop %v1916
  %v2653 = vmul.f32 %v1916, %v2652
  %v2654 = vsub.f32 1.0, %v2653
  %v2655 = vmul.f32 %v2652, %v2654
  %v2656 = vadd.f32 %v2652, %v2655
  %vm2657 = vweird.f32 %v1916
  %vm2658 = vweird.f32 %v2652
  %vm2659 = vmor %vm2657, %vm2658
  %v2660 = vsel %vm2659, %v2652, %v2656
  %v2661 = vand.u32 2147483647, %v1916
  %vm2662 = vcmp.eq.f32.partialorder %v2661, 8.507059e+37
  %v2663 = vand.u32 %v1916, 2147483648
  %v2664 = vor.u32 1.1754944e-38, %v2663
  %v2665 = vsel %vm2662, %v2664, %v2660
  %v2666 = vmul.f32 1.0, %v2665
  %v2667 = vrcp.pop %v1917
  %v2668 = vmul.f32 %v1917, %v2667
  %v2669 = vsub.f32 1.0, %v2668
  %v2670 = vmul.f32 %v2667, %v2669
  %v2671 = vadd.f32 %v2667, %v2670
  %vm2672 = vweird.f32 %v1917
  %vm2673 = vweird.f32 %v2667
  %vm2674 = vmor %vm2672, %vm2673
  %v2675 = vsel %vm2674, %v2667, %v2671
  %v2676 = vand.u32 2147483647, %v1917
  %vm2677 = vcmp.eq.f32.partialorder %v2676, 8.507059e+37
  %v2678 = vand.u32 %v1917, 2147483648
  %v2679 = vor.u32 1.1754944e-38, %v2678
  %v2680 = vsel %vm2677, %v2679, %v2675
  %v2681 = vmul.f32 1.0, %v2680
  %v2682 = vrcp.pop %v1918
  %v2683 = vmul.f32 %v1918, %v2682
  %v2684 = vsub.f32 1.0, %v2683
  %v2685 = vmul.f32 %v2682, %v2684
  %v2686 = vadd.f32 %v2682, %v2685
  %vm2687 = vweird.f32 %v1918
  %vm2688 = vweird.f32 %v2682
  %vm2689 = vmor %vm2687, %vm2688
  %v2690 = vsel %vm2689, %v2682, %v2686
  %v2691 = vand.u32 2147483647, %v1918
  %vm2692 = vcmp.eq.f32.partialorder %v2691, 8.507059e+37
  %v2693 = vand.u32 %v1918, 2147483648
  %v2694 = vor.u32 1.1754944e-38, %v2693
  %v2695 = vsel %vm2692, %v2694, %v2690
  %v2696 = vmul.f32 1.0, %v2695
  %v2697 = vrcp.pop %v1919
  %v2698 = vmul.f32 %v1919, %v2697
  %v2699 = vsub.f32 1.0, %v2698
  %v2700 = vmul.f32 %v2697, %v2699
  %v2701 = vadd.f32 %v2697, %v2700
  %vm2702 = vweird.f32 %v1919
  %vm2703 = vweird.f32 %v2697
  %vm2704 = vmor %vm2702, %vm2703
  %v2705 = vsel %vm2704, %v2697, %v2701
  %v2706 = vand.u32 2147483647, %v1919
  %vm2707 = vcmp.eq.f32.partialorder %v2706, 8.507059e+37
  %v2708 = vand.u32 %v1919, 2147483648
  %v2709 = vor.u32 1.1754944e-38, %v2708
  %v2710 = vsel %vm2707, %v2709, %v2705
  %v2711 = vmul.f32 1.0, %v2710
  %v2712 = vrcp.pop %v1920
  %v2713 = vmul.f32 %v1920, %v2712
  %v2714 = vsub.f32 1.0, %v2713
  %v2715 = vmul.f32 %v2712, %v2714
  %v2716 = vadd.f32 %v2712, %v2715
  %vm2717 = vweird.f32 %v1920
  %vm2718 = vweird.f32 %v2712
  %vm2719 = vmor %vm2717, %vm2718
  %v2720 = vsel %vm2719, %v2712, %v2716
  %v2721 = vand.u32 2147483647, %v1920
  %vm2722 = vcmp.eq.f32.partialorder %v2721, 8.507059e+37
  %v2723 = vand.u32 %v1920, 2147483648
  %v2724 = vor.u32 1.1754944e-38, %v2723
  %v2725 = vsel %vm2722, %v2724, %v2720
  %v2726 = vmul.f32 1.0, %v2725
  %v2727 = vrcp.pop %v1921
  %v2728 = vmul.f32 %v1921, %v2727
  %v2729 = vsub.f32 1.0, %v2728
  %v2730 = vmul.f32 %v2727, %v2729
  %v2731 = vadd.f32 %v2727, %v2730
  %vm2732 = vweird.f32 %v1921
  %vm2733 = vweird.f32 %v2727
  %vm2734 = vmor %vm2732, %vm2733
  %v2735 = vsel %vm2734, %v2727, %v2731
  %v2736 = vand.u32 2147483647, %v1921
  %vm2737 = vcmp.eq.f32.partialorder %v2736, 8.507059e+37
  %v2738 = vand.u32 %v1921, 2147483648
  %v2739 = vor.u32 1.1754944e-38, %v2738
  %v2740 = vsel %vm2737, %v2739, %v2735
  %v2741 = vmul.f32 1.0, %v2740
  %v2742 = vrcp.pop %v1922
  %v2743 = vmul.f32 %v1922, %v2742
  %v2744 = vsub.f32 1.0, %v2743
  %v2745 = vmul.f32 %v2742, %v2744
  %v2746 = vadd.f32 %v2742, %v2745
  %vm2747 = vweird.f32 %v1922
  %vm2748 = vweird.f32 %v2742
  %vm2749 = vmor %vm2747, %vm2748
  %v2750 = vsel %vm2749, %v2742, %v2746
  %v2751 = vand.u32 2147483647, %v1922
  %vm2752 = vcmp.eq.f32.partialorder %v2751, 8.507059e+37
  %v2753 = vand.u32 %v1922, 2147483648
  %v2754 = vor.u32 1.1754944e-38, %v2753
  %v2755 = vsel %vm2752, %v2754, %v2750
  %v2756 = vmul.f32 1.0, %v2755
  %v2757 = vrcp.pop %v1923
  %v2758 = vmul.f32 %v1923, %v2757
  %v2759 = vsub.f32 1.0, %v2758
  %v2760 = vmul.f32 %v2757, %v2759
  %v2761 = vadd.f32 %v2757, %v2760
  %vm2762 = vweird.f32 %v1923
  %vm2763 = vweird.f32 %v2757
  %vm2764 = vmor %vm2762, %vm2763
  %v2765 = vsel %vm2764, %v2757, %v2761
  %v2766 = vand.u32 2147483647, %v1923
  %vm2767 = vcmp.eq.f32.partialorder %v2766, 8.507059e+37
  %v2768 = vand.u32 %v1923, 2147483648
  %v2769 = vor.u32 1.1754944e-38, %v2768
  %v2770 = vsel %vm2767, %v2769, %v2765
  %v2771 = vmul.f32 1.0, %v2770
  %v2772 = vrcp.pop %v1924
  %v2773 = vmul.f32 %v1924, %v2772
  %v2774 = vsub.f32 1.0, %v2773
  %v2775 = vmul.f32 %v2772, %v2774
  %v2776 = vadd.f32 %v2772, %v2775
  %vm2777 = vweird.f32 %v1924
  %vm2778 = vweird.f32 %v2772
  %vm2779 = vmor %vm2777, %vm2778
  %v2780 = vsel %vm2779, %v2772, %v2776
  %v2781 = vand.u32 2147483647, %v1924
  %vm2782 = vcmp.eq.f32.partialorder %v2781, 8.507059e+37
  %v2783 = vand.u32 %v1924, 2147483648
  %v2784 = vor.u32 1.1754944e-38, %v2783
  %v2785 = vsel %vm2782, %v2784, %v2780
  %v2786 = vmul.f32 1.0, %v2785
  %v2787 = vrcp.pop %v1925
  %v2788 = vmul.f32 %v1925, %v2787
  %v2789 = vsub.f32 1.0, %v2788
  %v2790 = vmul.f32 %v2787, %v2789
  %v2791 = vadd.f32 %v2787, %v2790
  %vm2792 = vweird.f32 %v1925
  %vm2793 = vweird.f32 %v2787
  %vm2794 = vmor %vm2792, %vm2793
  %v2795 = vsel %vm2794, %v2787, %v2791
  %v2796 = vand.u32 2147483647, %v1925
  %vm2797 = vcmp.eq.f32.partialorder %v2796, 8.507059e+37
  %v2798 = vand.u32 %v1925, 2147483648
  %v2799 = vor.u32 1.1754944e-38, %v2798
  %v2800 = vsel %vm2797, %v2799, %v2795
  %v2801 = vmul.f32 1.0, %v2800
  %v2802 = vrcp.pop %v1926
  %v2803 = vmul.f32 %v1926, %v2802
  %v2804 = vsub.f32 1.0, %v2803
  %v2805 = vmul.f32 %v2802, %v2804
  %v2806 = vadd.f32 %v2802, %v2805
  %vm2807 = vweird.f32 %v1926
  %vm2808 = vweird.f32 %v2802
  %vm2809 = vmor %vm2807, %vm2808
  %v2810 = vsel %vm2809, %v2802, %v2806
  %v2811 = vand.u32 2147483647, %v1926
  %vm2812 = vcmp.eq.f32.partialorder %v2811, 8.507059e+37
  %v2813 = vand.u32 %v1926, 2147483648
  %v2814 = vor.u32 1.1754944e-38, %v2813
  %v2815 = vsel %vm2812, %v2814, %v2810
  %v2816 = vmul.f32 1.0, %v2815
  %v2817 = vrcp.pop %v1927
  %v2818 = vmul.f32 %v1927, %v2817
  %v2819 = vsub.f32 1.0, %v2818
  %v2820 = vmul.f32 %v2817, %v2819
  %v2821 = vadd.f32 %v2817, %v2820
  %vm2822 = vweird.f32 %v1927
  %vm2823 = vweird.f32 %v2817
  %vm2824 = vmor %vm2822, %vm2823
  %v2825 = vsel %vm2824, %v2817, %v2821
  %v2826 = vand.u32 2147483647, %v1927
  %vm2827 = vcmp.eq.f32.partialorder %v2826, 8.507059e+37
  %v2828 = vand.u32 %v1927, 2147483648
  %v2829 = vor.u32 1.1754944e-38, %v2828
  %v2830 = vsel %vm2827, %v2829, %v2825
  %v2831 = vmul.f32 1.0, %v2830
  %v2832 = vrcp.pop %v1928
  %v2833 = vmul.f32 %v1928, %v2832
  %v2834 = vsub.f32 1.0, %v2833
  %v2835 = vmul.f32 %v2832, %v2834
  %v2836 = vadd.f32 %v2832, %v2835
  %vm2837 = vweird.f32 %v1928
  %vm2838 = vweird.f32 %v2832
  %vm2839 = vmor %vm2837, %vm2838
  %v2840 = vsel %vm2839, %v2832, %v2836
  %v2841 = vand.u32 2147483647, %v1928
  %vm2842 = vcmp.eq.f32.partialorder %v2841, 8.507059e+37
  %v2843 = vand.u32 %v1928, 2147483648
  %v2844 = vor.u32 1.1754944e-38, %v2843
  %v2845 = vsel %vm2842, %v2844, %v2840
  %v2846 = vmul.f32 1.0, %v2845
  %v2847 = vrcp.pop %v1929
  %v2848 = vmul.f32 %v1929, %v2847
  %v2849 = vsub.f32 1.0, %v2848
  %v2850 = vmul.f32 %v2847, %v2849
  %v2851 = vadd.f32 %v2847, %v2850
  %vm2852 = vweird.f32 %v1929
  %vm2853 = vweird.f32 %v2847
  %vm2854 = vmor %vm2852, %vm2853
  %v2855 = vsel %vm2854, %v2847, %v2851
  %v2856 = vand.u32 2147483647, %v1929
  %vm2857 = vcmp.eq.f32.partialorder %v2856, 8.507059e+37
  %v2858 = vand.u32 %v1929, 2147483648
  %v2859 = vor.u32 1.1754944e-38, %v2858
  %v2860 = vsel %vm2857, %v2859, %v2855
  %v2861 = vmul.f32 1.0, %v2860
  %v2862 = vrcp.pop %v1930
  %v2863 = vmul.f32 %v1930, %v2862
  %v2864 = vsub.f32 1.0, %v2863
  %v2865 = vmul.f32 %v2862, %v2864
  %v2866 = vadd.f32 %v2862, %v2865
  %vm2867 = vweird.f32 %v1930
  %vm2868 = vweird.f32 %v2862
  %vm2869 = vmor %vm2867, %vm2868
  %v2870 = vsel %vm2869, %v2862, %v2866
  %v2871 = vand.u32 2147483647, %v1930
  %vm2872 = vcmp.eq.f32.partialorder %v2871, 8.507059e+37
  %v2873 = vand.u32 %v1930, 2147483648
  %v2874 = vor.u32 1.1754944e-38, %v2873
  %v2875 = vsel %vm2872, %v2874, %v2870
  %v2876 = vmul.f32 1.0, %v2875
  %v2877 = vrcp.pop %v1931
  %v2878 = vmul.f32 %v1931, %v2877
  %v2879 = vsub.f32 1.0, %v2878
  %v2880 = vmul.f32 %v2877, %v2879
  %v2881 = vadd.f32 %v2877, %v2880
  %vm2882 = vweird.f32 %v1931
  %vm2883 = vweird.f32 %v2877
  %vm2884 = vmor %vm2882, %vm2883
  %v2885 = vsel %vm2884, %v2877, %v2881
  %v2886 = vand.u32 2147483647, %v1931
  %vm2887 = vcmp.eq.f32.partialorder %v2886, 8.507059e+37
  %v2888 = vand.u32 %v1931, 2147483648
  %v2889 = vor.u32 1.1754944e-38, %v2888
  %v2890 = vsel %vm2887, %v2889, %v2885
  %v2891 = vmul.f32 1.0, %v2890
  %v2892 = vmul.f32 %v1544, %v1946
  %v2893 = vmul.f32 %v1545, %v1961
  %v2894 = vmul.f32 %v1546, %v1976
  %v2895 = vmul.f32 %v1547, %v1991
  %v2896 = vmul.f32 %v1548, %v2006
  %v2897 = vmul.f32 %v1549, %v2021
  %v2898 = vmul.f32 %v1550, %v2036
  %v2899 = vmul.f32 %v1551, %v2051
  %v2900 = vmul.f32 %v1552, %v2066
  %v2901 = vmul.f32 %v1553, %v2081
  %v2902 = vmul.f32 %v1554, %v2096
  %v2903 = vmul.f32 %v1555, %v2111
  %v2904 = vmul.f32 %v1556, %v2126
  %v2905 = vmul.f32 %v1557, %v2141
  %v2906 = vmul.f32 %v1558, %v2156
  %v2907 = vmul.f32 %v1559, %v2171
  %v2908 = vmul.f32 %v1560, %v2186
  %v2909 = vmul.f32 %v1561, %v2201
  %v2910 = vmul.f32 %v1562, %v2216
  %v2911 = vmul.f32 %v1563, %v2231
  %v2912 = vmul.f32 %v1564, %v2246
  %v2913 = vmul.f32 %v1565, %v2261
  %v2914 = vmul.f32 %v1566, %v2276
  %v2915 = vmul.f32 %v1567, %v2291
  %v2916 = vmul.f32 %v1568, %v2306
  %v2917 = vmul.f32 %v1569, %v2321
  %v2918 = vmul.f32 %v1570, %v2336
  %v2919 = vmul.f32 %v1571, %v2351
  %v2920 = vmul.f32 %v1572, %v2366
  %v2921 = vmul.f32 %v1573, %v2381
  %v2922 = vmul.f32 %v1574, %v2396
  %v2923 = vmul.f32 %v1575, %v2411
  %v2924 = vmul.f32 %v1576, %v2426
  %v2925 = vmul.f32 %v1577, %v2441
  %v2926 = vmul.f32 %v1578, %v2456
  %v2927 = vmul.f32 %v1579, %v2471
  %v2928 = vmul.f32 %v1580, %v2486
  %v2929 = vmul.f32 %v1581, %v2501
  %v2930 = vmul.f32 %v1582, %v2516
  %v2931 = vmul.f32 %v1583, %v2531
  %v2932 = vmul.f32 %v1584, %v2546
  %v2933 = vmul.f32 %v1585, %v2561
  %v2934 = vmul.f32 %v1586, %v2576
  %v2935 = vmul.f32 %v1587, %v2591
  %v2936 = vmul.f32 %v1588, %v2606
  %v2937 = vmul.f32 %v1589, %v2621
  %v2938 = vmul.f32 %v1590, %v2636
  %v2939 = vmul.f32 %v1591, %v2651
  %v2940 = vmul.f32 %v1592, %v2666
  %v2941 = vmul.f32 %v1593, %v2681
  %v2942 = vmul.f32 %v1594, %v2696
  %v2943 = vmul.f32 %v1595, %v2711
  %v2944 = vmul.f32 %v1596, %v2726
  %v2945 = vmul.f32 %v1597, %v2741
  %v2946 = vmul.f32 %v1598, %v2756
  %v2947 = vmul.f32 %v1599, %v2771
  %v2948 = vmul.f32 %v1600, %v2786
  %v2949 = vmul.f32 %v1601, %v2801
  %v2950 = vmul.f32 %v1602, %v2816
  %v2951 = vmul.f32 %v1603, %v2831
  %v2952 = vmul.f32 %v1604, %v2846
  %v2953 = vmul.f32 %v1605, %v2861
  %v2954 = vmul.f32 %v1606, %v2876
  %v2955 = vmul.f32 %v1607, %v2891
  %v2956 = vpack.c.bf16 %v2893, %v2892
  %v2957 = vpack.c.bf16 %v2895, %v2894
  %v2958 = vpack.c.bf16 %v2897, %v2896
  %v2959 = vpack.c.bf16 %v2899, %v2898
  %v2960 = vpack.c.bf16 %v2901, %v2900
  %v2961 = vpack.c.bf16 %v2903, %v2902
  %v2962 = vpack.c.bf16 %v2905, %v2904
  %v2963 = vpack.c.bf16 %v2907, %v2906
  %v2964 = vpack.c.bf16 %v2909, %v2908
  %v2965 = vpack.c.bf16 %v2911, %v2910
  %v2966 = vpack.c.bf16 %v2913, %v2912
  %v2967 = vpack.c.bf16 %v2915, %v2914
  %v2968 = vpack.c.bf16 %v2917, %v2916
  %v2969 = vpack.c.bf16 %v2919, %v2918
  %v2970 = vpack.c.bf16 %v2921, %v2920
  %v2971 = vpack.c.bf16 %v2923, %v2922
  %v2972 = vpack.c.bf16 %v2925, %v2924
  %v2973 = vpack.c.bf16 %v2927, %v2926
  %v2974 = vpack.c.bf16 %v2929, %v2928
  %v2975 = vpack.c.bf16 %v2931, %v2930
  %v2976 = vpack.c.bf16 %v2933, %v2932
  %v2977 = vpack.c.bf16 %v2935, %v2934
  %v2978 = vpack.c.bf16 %v2937, %v2936
  %v2979 = vpack.c.bf16 %v2939, %v2938
  %v2980 = vpack.c.bf16 %v2941, %v2940
  %v2981 = vpack.c.bf16 %v2943, %v2942
  %v2982 = vpack.c.bf16 %v2945, %v2944
  %v2983 = vpack.c.bf16 %v2947, %v2946
  %v2984 = vpack.c.bf16 %v2949, %v2948
  %v2985 = vpack.c.bf16 %v2951, %v2950
  %v2986 = vpack.c.bf16 %v2953, %v2952
  %v2987 = vpack.c.bf16 %v2955, %v2954
  %v2988 = vld [vmem:[%s5] sm:$0xf]
  %v2989 = vld [vmem:[%s5 + $0x4] sm:$0xf]
  %v2990 = vld [vmem:[%s5 + $0x8] sm:$0xf]
  %v2991 = vld [vmem:[%s5 + $0xc] sm:$0xf]
  %v2996 = vunpack.c.l.b16 %v2988
  %v2997 = vunpack.c.l.b16 %v2989
  %v2998 = vunpack.c.l.b16 %v2990
  %v2999 = vunpack.c.l.b16 %v2991
  %v3000 = vpack.c.b16 %v2997, %v2996
  %v3001 = vpack.c.b16 %v2999, %v2998
  %vm3004 = vcmask 261120
  %v3006 = vsel %vm3004, %v2956, 0
  %v3009 = vsel %vm3004, %v2957, 0
  %v3012 = vsel %vm3004, %v2958, 0
  %v3015 = vsel %vm3004, %v2959, 0
  %v3018 = vsel %vm3004, %v2960, 0
  %v3021 = vsel %vm3004, %v2961, 0
  %v3024 = vsel %vm3004, %v2962, 0
  %v3027 = vsel %vm3004, %v2963, 0
  %v3030 = vsel %vm3004, %v2964, 0
  %v3033 = vsel %vm3004, %v2965, 0
  %v3036 = vsel %vm3004, %v2966, 0
  %v3039 = vsel %vm3004, %v2967, 0
  %v3042 = vsel %vm3004, %v2968, 0
  %v3045 = vsel %vm3004, %v2969, 0
  %v3048 = vsel %vm3004, %v2970, 0
  %v3051 = vsel %vm3004, %v2971, 0
  %v3054 = vsel %vm3004, %v2972, 0
  %v3057 = vsel %vm3004, %v2973, 0
  %v3060 = vsel %vm3004, %v2974, 0
  %v3063 = vsel %vm3004, %v2975, 0
  %v3066 = vsel %vm3004, %v2976, 0
  %v3069 = vsel %vm3004, %v2977, 0
  %v3072 = vsel %vm3004, %v2978, 0
  %v3075 = vsel %vm3004, %v2979, 0
  %v3078 = vsel %vm3004, %v2980, 0
  %v3081 = vsel %vm3004, %v2981, 0
  %v3084 = vsel %vm3004, %v2982, 0
  %v3087 = vsel %vm3004, %v2983, 0
  %v3090 = vsel %vm3004, %v2984, 0
  %v3093 = vsel %vm3004, %v2985, 0
  %v3096 = vsel %vm3004, %v2986, 0
  %v3099 = vsel %vm3004, %v2987, 0
  %3101 = vmatpush.bf16.msra.mxu0 0
  %3102 = vmatpush.bf16.msra.mxu0 0
  %3103 = vmatpush.bf16.msra.mxu0 0
  %3104 = vmatpush.bf16.msra.mxu0 0
  %3105 = vmatpush.bf16.msra.mxu0 0
  %3106 = vmatpush.bf16.msra.mxu0 0
  %3107 = vmatpush.bf16.msra.mxu0 %v3001
  %3108 = vmatpush.bf16.msra.mxu0 %v3000
  %3109 = vmatmul.bf16.gmra.mxu0 %v3006
  %v3110 = vpop.f32.mrf.mxu0
  %v3111 = vadd.f32 0.0, %v3110
  %v3112 = vpop.f32.mrf.mxu0
  %v3113 = vadd.f32 0.0, %v3112
  %3114 = vmatmul.bf16.gmra.mxu0 %v3009
  %v3115 = vpop.f32.mrf.mxu0
  %v3116 = vadd.f32 0.0, %v3115
  %v3117 = vpop.f32.mrf.mxu0
  %v3118 = vadd.f32 0.0, %v3117
  %3119 = vmatmul.bf16.gmra.mxu0 %v3012
  %v3120 = vpop.f32.mrf.mxu0
  %v3121 = vadd.f32 0.0, %v3120
  %v3122 = vpop.f32.mrf.mxu0
  %v3123 = vadd.f32 0.0, %v3122
  %3124 = vmatmul.bf16.gmra.mxu0 %v3015
  %v3125 = vpop.f32.mrf.mxu0
  %v3126 = vadd.f32 0.0, %v3125
  %v3127 = vpop.f32.mrf.mxu0
  %v3128 = vadd.f32 0.0, %v3127
  %3129 = vmatmul.bf16.gmra.mxu0 %v3018
  %v3130 = vpop.f32.mrf.mxu0
  %v3131 = vadd.f32 0.0, %v3130
  %v3132 = vpop.f32.mrf.mxu0
  %v3133 = vadd.f32 0.0, %v3132
  %3134 = vmatmul.bf16.gmra.mxu0 %v3021
  %v3135 = vpop.f32.mrf.mxu0
  %v3136 = vadd.f32 0.0, %v3135
  %v3137 = vpop.f32.mrf.mxu0
  %v3138 = vadd.f32 0.0, %v3137
  %3139 = vmatmul.bf16.gmra.mxu0 %v3024
  %v3140 = vpop.f32.mrf.mxu0
  %v3141 = vadd.f32 0.0, %v3140
  %v3142 = vpop.f32.mrf.mxu0
  %v3143 = vadd.f32 0.0, %v3142
  %3144 = vmatmul.bf16.gmra.mxu0 %v3027
  %v3145 = vpop.f32.mrf.mxu0
  %v3146 = vadd.f32 0.0, %v3145
  %v3147 = vpop.f32.mrf.mxu0
  %v3148 = vadd.f32 0.0, %v3147
  %3149 = vmatmul.bf16.gmra.mxu0 %v3030
  %v3150 = vpop.f32.mrf.mxu0
  %v3151 = vadd.f32 0.0, %v3150
  %v3152 = vpop.f32.mrf.mxu0
  %v3153 = vadd.f32 0.0, %v3152
  %3154 = vmatmul.bf16.gmra.mxu0 %v3033
  %v3155 = vpop.f32.mrf.mxu0
  %v3156 = vadd.f32 0.0, %v3155
  %v3157 = vpop.f32.mrf.mxu0
  %v3158 = vadd.f32 0.0, %v3157
  %3159 = vmatmul.bf16.gmra.mxu0 %v3036
  %v3160 = vpop.f32.mrf.mxu0
  %v3161 = vadd.f32 0.0, %v3160
  %v3162 = vpop.f32.mrf.mxu0
  %v3163 = vadd.f32 0.0, %v3162
  %3164 = vmatmul.bf16.gmra.mxu0 %v3039
  %v3165 = vpop.f32.mrf.mxu0
  %v3166 = vadd.f32 0.0, %v3165
  %v3167 = vpop.f32.mrf.mxu0
  %v3168 = vadd.f32 0.0, %v3167
  %3169 = vmatmul.bf16.gmra.mxu0 %v3042
  %v3170 = vpop.f32.mrf.mxu0
  %v3171 = vadd.f32 0.0, %v3170
  %v3172 = vpop.f32.mrf.mxu0
  %v3173 = vadd.f32 0.0, %v3172
  %3174 = vmatmul.bf16.gmra.mxu0 %v3045
  %v3175 = vpop.f32.mrf.mxu0
  %v3176 = vadd.f32 0.0, %v3175
  %v3177 = vpop.f32.mrf.mxu0
  %v3178 = vadd.f32 0.0, %v3177
  %3179 = vmatmul.bf16.gmra.mxu0 %v3048
  %v3180 = vpop.f32.mrf.mxu0
  %v3181 = vadd.f32 0.0, %v3180
  %v3182 = vpop.f32.mrf.mxu0
  %v3183 = vadd.f32 0.0, %v3182
  %3184 = vmatmul.bf16.gmra.mxu0 %v3051
  %v3185 = vpop.f32.mrf.mxu0
  %v3186 = vadd.f32 0.0, %v3185
  %v3187 = vpop.f32.mrf.mxu0
  %v3188 = vadd.f32 0.0, %v3187
  %3189 = vmatmul.bf16.gmra.mxu0 %v3054
  %v3190 = vpop.f32.mrf.mxu0
  %v3191 = vadd.f32 0.0, %v3190
  %v3192 = vpop.f32.mrf.mxu0
  %v3193 = vadd.f32 0.0, %v3192
  %3194 = vmatmul.bf16.gmra.mxu0 %v3057
  %v3195 = vpop.f32.mrf.mxu0
  %v3196 = vadd.f32 0.0, %v3195
  %v3197 = vpop.f32.mrf.mxu0
  %v3198 = vadd.f32 0.0, %v3197
  %3199 = vmatmul.bf16.gmra.mxu0 %v3060
  %v3200 = vpop.f32.mrf.mxu0
  %v3201 = vadd.f32 0.0, %v3200
  %v3202 = vpop.f32.mrf.mxu0
  %v3203 = vadd.f32 0.0, %v3202
  %3204 = vmatmul.bf16.gmra.mxu0 %v3063
  %v3205 = vpop.f32.mrf.mxu0
  %v3206 = vadd.f32 0.0, %v3205
  %v3207 = vpop.f32.mrf.mxu0
  %v3208 = vadd.f32 0.0, %v3207
  %3209 = vmatmul.bf16.gmra.mxu0 %v3066
  %v3210 = vpop.f32.mrf.mxu0
  %v3211 = vadd.f32 0.0, %v3210
  %v3212 = vpop.f32.mrf.mxu0
  %v3213 = vadd.f32 0.0, %v3212
  %3214 = vmatmul.bf16.gmra.mxu0 %v3069
  %v3215 = vpop.f32.mrf.mxu0
  %v3216 = vadd.f32 0.0, %v3215
  %v3217 = vpop.f32.mrf.mxu0
  %v3218 = vadd.f32 0.0, %v3217
  %3219 = vmatmul.bf16.gmra.mxu0 %v3072
  %v3220 = vpop.f32.mrf.mxu0
  %v3221 = vadd.f32 0.0, %v3220
  %v3222 = vpop.f32.mrf.mxu0
  %v3223 = vadd.f32 0.0, %v3222
  %3224 = vmatmul.bf16.gmra.mxu0 %v3075
  %v3225 = vpop.f32.mrf.mxu0
  %v3226 = vadd.f32 0.0, %v3225
  %v3227 = vpop.f32.mrf.mxu0
  %v3228 = vadd.f32 0.0, %v3227
  %3229 = vmatmul.bf16.gmra.mxu0 %v3078
  %v3230 = vpop.f32.mrf.mxu0
  %v3231 = vadd.f32 0.0, %v3230
  %v3232 = vpop.f32.mrf.mxu0
  %v3233 = vadd.f32 0.0, %v3232
  %3234 = vmatmul.bf16.gmra.mxu0 %v3081
  %v3235 = vpop.f32.mrf.mxu0
  %v3236 = vadd.f32 0.0, %v3235
  %v3237 = vpop.f32.mrf.mxu0
  %v3238 = vadd.f32 0.0, %v3237
  %3239 = vmatmul.bf16.gmra.mxu0 %v3084
  %v3240 = vpop.f32.mrf.mxu0
  %v3241 = vadd.f32 0.0, %v3240
  %v3242 = vpop.f32.mrf.mxu0
  %v3243 = vadd.f32 0.0, %v3242
  %3244 = vmatmul.bf16.gmra.mxu0 %v3087
  %v3245 = vpop.f32.mrf.mxu0
  %v3246 = vadd.f32 0.0, %v3245
  %v3247 = vpop.f32.mrf.mxu0
  %v3248 = vadd.f32 0.0, %v3247
  %3249 = vmatmul.bf16.gmra.mxu0 %v3090
  %v3250 = vpop.f32.mrf.mxu0
  %v3251 = vadd.f32 0.0, %v3250
  %v3252 = vpop.f32.mrf.mxu0
  %v3253 = vadd.f32 0.0, %v3252
  %3254 = vmatmul.bf16.gmra.mxu0 %v3093
  %v3255 = vpop.f32.mrf.mxu0
  %v3256 = vadd.f32 0.0, %v3255
  %v3257 = vpop.f32.mrf.mxu0
  %v3258 = vadd.f32 0.0, %v3257
  %3259 = vmatmul.bf16.gmra.mxu0 %v3096
  %v3260 = vpop.f32.mrf.mxu0
  %v3261 = vadd.f32 0.0, %v3260
  %v3262 = vpop.f32.mrf.mxu0
  %v3263 = vadd.f32 0.0, %v3262
  %3264 = vmatmul.bf16.gmra.mxu0 %v3099
  %v3265 = vpop.f32.mrf.mxu0
  %v3266 = vadd.f32 0.0, %v3265
  %v3267 = vpop.f32.mrf.mxu0
  %v3268 = vadd.f32 0.0, %v3267
  %3269 = vdwg.mxu0
  %v3270 = vpack.c.bf16 %v3111, %v3111
  %v3271 = vpack.c.bf16 %v3113, %v3113
  %v3272 = vpack.c.bf16 %v3116, %v3116
  %v3273 = vpack.c.bf16 %v3118, %v3118
  %v3274 = vpack.c.bf16 %v3121, %v3121
  %v3275 = vpack.c.bf16 %v3123, %v3123
  %v3276 = vpack.c.bf16 %v3126, %v3126
  %v3277 = vpack.c.bf16 %v3128, %v3128
  %v3278 = vpack.c.bf16 %v3131, %v3131
  %v3279 = vpack.c.bf16 %v3133, %v3133
  %v3280 = vpack.c.bf16 %v3136, %v3136
  %v3281 = vpack.c.bf16 %v3138, %v3138
  %v3282 = vpack.c.bf16 %v3141, %v3141
  %v3283 = vpack.c.bf16 %v3143, %v3143
  %v3284 = vpack.c.bf16 %v3146, %v3146
  %v3285 = vpack.c.bf16 %v3148, %v3148
  %v3286 = vpack.c.bf16 %v3151, %v3151
  %v3287 = vpack.c.bf16 %v3153, %v3153
  %v3288 = vpack.c.bf16 %v3156, %v3156
  %v3289 = vpack.c.bf16 %v3158, %v3158
  %v3290 = vpack.c.bf16 %v3161, %v3161
  %v3291 = vpack.c.bf16 %v3163, %v3163
  %v3292 = vpack.c.bf16 %v3166, %v3166
  %v3293 = vpack.c.bf16 %v3168, %v3168
  %v3294 = vpack.c.bf16 %v3171, %v3171
  %v3295 = vpack.c.bf16 %v3173, %v3173
  %v3296 = vpack.c.bf16 %v3176, %v3176
  %v3297 = vpack.c.bf16 %v3178, %v3178
  %v3298 = vpack.c.bf16 %v3181, %v3181
  %v3299 = vpack.c.bf16 %v3183, %v3183
  %v3300 = vpack.c.bf16 %v3186, %v3186
  %v3301 = vpack.c.bf16 %v3188, %v3188
  %v3302 = vpack.c.bf16 %v3191, %v3191
  %v3303 = vpack.c.bf16 %v3193, %v3193
  %v3304 = vpack.c.bf16 %v3196, %v3196
  %v3305 = vpack.c.bf16 %v3198, %v3198
  %v3306 = vpack.c.bf16 %v3201, %v3201
  %v3307 = vpack.c.bf16 %v3203, %v3203
  %v3308 = vpack.c.bf16 %v3206, %v3206
  %v3309 = vpack.c.bf16 %v3208, %v3208
  %v3310 = vpack.c.bf16 %v3211, %v3211
  %v3311 = vpack.c.bf16 %v3213, %v3213
  %v3312 = vpack.c.bf16 %v3216, %v3216
  %v3313 = vpack.c.bf16 %v3218, %v3218
  %v3314 = vpack.c.bf16 %v3221, %v3221
  %v3315 = vpack.c.bf16 %v3223, %v3223
  %v3316 = vpack.c.bf16 %v3226, %v3226
  %v3317 = vpack.c.bf16 %v3228, %v3228
  %v3318 = vpack.c.bf16 %v3231, %v3231
  %v3319 = vpack.c.bf16 %v3233, %v3233
  %v3320 = vpack.c.bf16 %v3236, %v3236
  %v3321 = vpack.c.bf16 %v3238, %v3238
  %v3322 = vpack.c.bf16 %v3241, %v3241
  %v3323 = vpack.c.bf16 %v3243, %v3243
  %v3324 = vpack.c.bf16 %v3246, %v3246
  %v3325 = vpack.c.bf16 %v3248, %v3248
  %v3326 = vpack.c.bf16 %v3251, %v3251
  %v3327 = vpack.c.bf16 %v3253, %v3253
  %v3328 = vpack.c.bf16 %v3256, %v3256
  %v3329 = vpack.c.bf16 %v3258, %v3258
  %v3330 = vpack.c.bf16 %v3261, %v3261
  %v3331 = vpack.c.bf16 %v3263, %v3263
  %v3332 = vpack.c.bf16 %v3266, %v3266
  %v3333 = vpack.c.bf16 %v3268, %v3268
  %v3334 = vld [vmem:[%s6] sm:$0xf]
  %v3335 = vld [vmem:[%s6 + $0x4] sm:$0xf]
  %v3336 = vld [vmem:[%s6 + $0x8] sm:$0xf]
  %v3337 = vld [vmem:[%s6 + $0xc] sm:$0xf]
  %v3338 = vld [vmem:[%s6 + $0x10] sm:$0xf]
  %v3339 = vld [vmem:[%s6 + $0x14] sm:$0xf]
  %v3340 = vld [vmem:[%s6 + $0x18] sm:$0xf]
  %v3341 = vld [vmem:[%s6 + $0x1c] sm:$0xf]
  %v3342 = vld [vmem:[%s6 + $0x20] sm:$0xf]
  %v3343 = vld [vmem:[%s6 + $0x24] sm:$0xf]
  %v3344 = vld [vmem:[%s6 + $0x28] sm:$0xf]
  %v3345 = vld [vmem:[%s6 + $0x2c] sm:$0xf]
  %v3346 = vld [vmem:[%s6 + $0x30] sm:$0xf]
  %v3347 = vld [vmem:[%s6 + $0x34] sm:$0xf]
  %v3348 = vld [vmem:[%s6 + $0x38] sm:$0xf]
  %v3349 = vld [vmem:[%s6 + $0x3c] sm:$0xf]
  %v3350 = vld [vmem:[%s6 + $0x40] sm:$0xf]
  %v3351 = vld [vmem:[%s6 + $0x44] sm:$0xf]
  %v3352 = vld [vmem:[%s6 + $0x48] sm:$0xf]
  %v3353 = vld [vmem:[%s6 + $0x4c] sm:$0xf]
  %v3354 = vld [vmem:[%s6 + $0x50] sm:$0xf]
  %v3355 = vld [vmem:[%s6 + $0x54] sm:$0xf]
  %v3356 = vld [vmem:[%s6 + $0x58] sm:$0xf]
  %v3357 = vld [vmem:[%s6 + $0x5c] sm:$0xf]
  %v3358 = vld [vmem:[%s6 + $0x60] sm:$0xf]
  %v3359 = vld [vmem:[%s6 + $0x64] sm:$0xf]
  %v3360 = vld [vmem:[%s6 + $0x68] sm:$0xf]
  %v3361 = vld [vmem:[%s6 + $0x6c] sm:$0xf]
  %v3362 = vld [vmem:[%s6 + $0x70] sm:$0xf]
  %v3363 = vld [vmem:[%s6 + $0x74] sm:$0xf]
  %v3364 = vld [vmem:[%s6 + $0x78] sm:$0xf]
  %v3365 = vld [vmem:[%s6 + $0x7c] sm:$0xf]
  %v3366 = vld [vmem:[%s6 + $0x80] sm:$0xf]
  %v3367 = vld [vmem:[%s6 + $0x84] sm:$0xf]
  %v3368 = vld [vmem:[%s6 + $0x88] sm:$0xf]
  %v3369 = vld [vmem:[%s6 + $0x8c] sm:$0xf]
  %v3370 = vld [vmem:[%s6 + $0x90] sm:$0xf]
  %v3371 = vld [vmem:[%s6 + $0x94] sm:$0xf]
  %v3372 = vld [vmem:[%s6 + $0x98] sm:$0xf]
  %v3373 = vld [vmem:[%s6 + $0x9c] sm:$0xf]
  %v3374 = vld [vmem:[%s6 + $0xa0] sm:$0xf]
  %v3375 = vld [vmem:[%s6 + $0xa4] sm:$0xf]
  %v3376 = vld [vmem:[%s6 + $0xa8] sm:$0xf]
  %v3377 = vld [vmem:[%s6 + $0xac] sm:$0xf]
  %v3378 = vld [vmem:[%s6 + $0xb0] sm:$0xf]
  %v3379 = vld [vmem:[%s6 + $0xb4] sm:$0xf]
  %v3380 = vld [vmem:[%s6 + $0xb8] sm:$0xf]
  %v3381 = vld [vmem:[%s6 + $0xbc] sm:$0xf]
  %v3382 = vld [vmem:[%s6 + $0xc0] sm:$0xf]
  %v3383 = vld [vmem:[%s6 + $0xc4] sm:$0xf]
  %v3384 = vld [vmem:[%s6 + $0xc8] sm:$0xf]
  %v3385 = vld [vmem:[%s6 + $0xcc] sm:$0xf]
  %v3386 = vld [vmem:[%s6 + $0xd0] sm:$0xf]
  %v3387 = vld [vmem:[%s6 + $0xd4] sm:$0xf]
  %v3388 = vld [vmem:[%s6 + $0xd8] sm:$0xf]
  %v3389 = vld [vmem:[%s6 + $0xdc] sm:$0xf]
  %v3390 = vld [vmem:[%s6 + $0xe0] sm:$0xf]
  %v3391 = vld [vmem:[%s6 + $0xe4] sm:$0xf]
  %v3392 = vld [vmem:[%s6 + $0xe8] sm:$0xf]
  %v3393 = vld [vmem:[%s6 + $0xec] sm:$0xf]
  %v3394 = vld [vmem:[%s6 + $0xf0] sm:$0xf]
  %v3395 = vld [vmem:[%s6 + $0xf4] sm:$0xf]
  %v3396 = vld [vmem:[%s6 + $0xf8] sm:$0xf]
  %v3397 = vld [vmem:[%s6 + $0xfc] sm:$0xf]
  %v3400 = vunpack.c.l.b16 %v3334
  %v3401 = vunpack.c.l.b16 %v3335
  %v3402 = vpack.c.b16 %v3401, %v3400
  %v3405 = vunpack.c.l.b16 %v3270
  %v3406 = vunpack.c.l.b16 %v3271
  %v3407 = vpack.c.b16 %v3406, %v3405
  %vm3409 = vcmask 130048
  %v3411 = vsel %vm3409, %v3402, 0
  %3413 = vmatpush.bf16.msra.mxu0 0
  %3414 = vmatpush.bf16.msra.mxu0 0
  %3415 = vmatpush.bf16.msra.mxu0 0
  %3416 = vmatpush.bf16.msra.mxu0 0
  %3417 = vmatpush.bf16.msra.mxu0 0
  %3418 = vmatpush.bf16.msra.mxu0 0
  %3419 = vmatpush.bf16.msra.mxu0 0
  %3420 = vmatpush.bf16.msra.mxu0 %v3407
  %3421 = vmatmul.bf16.gmra.mxu0 %v3411
  %v3422 = vpop.f32.mrf.mxu0
  %v3423 = vadd.f32 0.0, %v3422
  %v3424 = vpop.f32.mrf.mxu0
  %v3425 = vadd.f32 0.0, %v3424
  %3426 = vdwg.mxu0
  %v3429 = vunpack.c.l.b16 %v3336
  %v3430 = vunpack.c.l.b16 %v3337
  %v3431 = vpack.c.b16 %v3430, %v3429
  %v3434 = vunpack.c.l.b16 %v3272
  %v3435 = vunpack.c.l.b16 %v3273
  %v3436 = vpack.c.b16 %v3435, %v3434
  %v3439 = vsel %vm3409, %v3431, 0
  %3441 = vmatpush.bf16.msra.mxu0 0
  %3442 = vmatpush.bf16.msra.mxu0 0
  %3443 = vmatpush.bf16.msra.mxu0 0
  %3444 = vmatpush.bf16.msra.mxu0 0
  %3445 = vmatpush.bf16.msra.mxu0 0
  %3446 = vmatpush.bf16.msra.mxu0 0
  %3447 = vmatpush.bf16.msra.mxu0 0
  %3448 = vmatpush.bf16.msra.mxu0 %v3436
  %3449 = vmatmul.bf16.gmra.mxu0 %v3439
  %v3450 = vpop.f32.mrf.mxu0
  %v3451 = vadd.f32 0.0, %v3450
  %v3452 = vpop.f32.mrf.mxu0
  %v3453 = vadd.f32 0.0, %v3452
  %3454 = vdwg.mxu0
  %v3457 = vunpack.c.l.b16 %v3338
  %v3458 = vunpack.c.l.b16 %v3339
  %v3459 = vpack.c.b16 %v3458, %v3457
  %v3462 = vunpack.c.l.b16 %v3274
  %v3463 = vunpack.c.l.b16 %v3275
  %v3464 = vpack.c.b16 %v3463, %v3462
  %v3467 = vsel %vm3409, %v3459, 0
  %3469 = vmatpush.bf16.msra.mxu0 0
  %3470 = vmatpush.bf16.msra.mxu0 0
  %3471 = vmatpush.bf16.msra.mxu0 0
  %3472 = vmatpush.bf16.msra.mxu0 0
  %3473 = vmatpush.bf16.msra.mxu0 0
  %3474 = vmatpush.bf16.msra.mxu0 0
  %3475 = vmatpush.bf16.msra.mxu0 0
  %3476 = vmatpush.bf16.msra.mxu0 %v3464
  %3477 = vmatmul.bf16.gmra.mxu0 %v3467
  %v3478 = vpop.f32.mrf.mxu0
  %v3479 = vadd.f32 0.0, %v3478
  %v3480 = vpop.f32.mrf.mxu0
  %v3481 = vadd.f32 0.0, %v3480
  %3482 = vdwg.mxu0
  %v3485 = vunpack.c.l.b16 %v3340
  %v3486 = vunpack.c.l.b16 %v3341
  %v3487 = vpack.c.b16 %v3486, %v3485
  %v3490 = vunpack.c.l.b16 %v3276
  %v3491 = vunpack.c.l.b16 %v3277
  %v3492 = vpack.c.b16 %v3491, %v3490
  %v3495 = vsel %vm3409, %v3487, 0
  %3497 = vmatpush.bf16.msra.mxu0 0
  %3498 = vmatpush.bf16.msra.mxu0 0
  %3499 = vmatpush.bf16.msra.mxu0 0
  %3500 = vmatpush.bf16.msra.mxu0 0
  %3501 = vmatpush.bf16.msra.mxu0 0
  %3502 = vmatpush.bf16.msra.mxu0 0
  %3503 = vmatpush.bf16.msra.mxu0 0
  %3504 = vmatpush.bf16.msra.mxu0 %v3492
  %3505 = vmatmul.bf16.gmra.mxu0 %v3495
  %v3506 = vpop.f32.mrf.mxu0
  %v3507 = vadd.f32 0.0, %v3506
  %v3508 = vpop.f32.mrf.mxu0
  %v3509 = vadd.f32 0.0, %v3508
  %3510 = vdwg.mxu0
  %v3513 = vunpack.c.l.b16 %v3342
  %v3514 = vunpack.c.l.b16 %v3343
  %v3515 = vpack.c.b16 %v3514, %v3513
  %v3518 = vunpack.c.l.b16 %v3278
  %v3519 = vunpack.c.l.b16 %v3279
  %v3520 = vpack.c.b16 %v3519, %v3518
  %v3523 = vsel %vm3409, %v3515, 0
  %3525 = vmatpush.bf16.msra.mxu0 0
  %3526 = vmatpush.bf16.msra.mxu0 0
  %3527 = vmatpush.bf16.msra.mxu0 0
  %3528 = vmatpush.bf16.msra.mxu0 0
  %3529 = vmatpush.bf16.msra.mxu0 0
  %3530 = vmatpush.bf16.msra.mxu0 0
  %3531 = vmatpush.bf16.msra.mxu0 0
  %3532 = vmatpush.bf16.msra.mxu0 %v3520
  %3533 = vmatmul.bf16.gmra.mxu0 %v3523
  %v3534 = vpop.f32.mrf.mxu0
  %v3535 = vadd.f32 0.0, %v3534
  %v3536 = vpop.f32.mrf.mxu0
  %v3537 = vadd.f32 0.0, %v3536
  %3538 = vdwg.mxu0
  %v3541 = vunpack.c.l.b16 %v3344
  %v3542 = vunpack.c.l.b16 %v3345
  %v3543 = vpack.c.b16 %v3542, %v3541
  %v3546 = vunpack.c.l.b16 %v3280
  %v3547 = vunpack.c.l.b16 %v3281
  %v3548 = vpack.c.b16 %v3547, %v3546
  %v3551 = vsel %vm3409, %v3543, 0
  %3553 = vmatpush.bf16.msra.mxu0 0
  %3554 = vmatpush.bf16.msra.mxu0 0
  %3555 = vmatpush.bf16.msra.mxu0 0
  %3556 = vmatpush.bf16.msra.mxu0 0
  %3557 = vmatpush.bf16.msra.mxu0 0
  %3558 = vmatpush.bf16.msra.mxu0 0
  %3559 = vmatpush.bf16.msra.mxu0 0
  %3560 = vmatpush.bf16.msra.mxu0 %v3548
  %3561 = vmatmul.bf16.gmra.mxu0 %v3551
  %v3562 = vpop.f32.mrf.mxu0
  %v3563 = vadd.f32 0.0, %v3562
  %v3564 = vpop.f32.mrf.mxu0
  %v3565 = vadd.f32 0.0, %v3564
  %3566 = vdwg.mxu0
  %v3569 = vunpack.c.l.b16 %v3346
  %v3570 = vunpack.c.l.b16 %v3347
  %v3571 = vpack.c.b16 %v3570, %v3569
  %v3574 = vunpack.c.l.b16 %v3282
  %v3575 = vunpack.c.l.b16 %v3283
  %v3576 = vpack.c.b16 %v3575, %v3574
  %v3579 = vsel %vm3409, %v3571, 0
  %3581 = vmatpush.bf16.msra.mxu0 0
  %3582 = vmatpush.bf16.msra.mxu0 0
  %3583 = vmatpush.bf16.msra.mxu0 0
  %3584 = vmatpush.bf16.msra.mxu0 0
  %3585 = vmatpush.bf16.msra.mxu0 0
  %3586 = vmatpush.bf16.msra.mxu0 0
  %3587 = vmatpush.bf16.msra.mxu0 0
  %3588 = vmatpush.bf16.msra.mxu0 %v3576
  %3589 = vmatmul.bf16.gmra.mxu0 %v3579
  %v3590 = vpop.f32.mrf.mxu0
  %v3591 = vadd.f32 0.0, %v3590
  %v3592 = vpop.f32.mrf.mxu0
  %v3593 = vadd.f32 0.0, %v3592
  %3594 = vdwg.mxu0
  %v3597 = vunpack.c.l.b16 %v3348
  %v3598 = vunpack.c.l.b16 %v3349
  %v3599 = vpack.c.b16 %v3598, %v3597
  %v3602 = vunpack.c.l.b16 %v3284
  %v3603 = vunpack.c.l.b16 %v3285
  %v3604 = vpack.c.b16 %v3603, %v3602
  %v3607 = vsel %vm3409, %v3599, 0
  %3609 = vmatpush.bf16.msra.mxu0 0
  %3610 = vmatpush.bf16.msra.mxu0 0
  %3611 = vmatpush.bf16.msra.mxu0 0
  %3612 = vmatpush.bf16.msra.mxu0 0
  %3613 = vmatpush.bf16.msra.mxu0 0
  %3614 = vmatpush.bf16.msra.mxu0 0
  %3615 = vmatpush.bf16.msra.mxu0 0
  %3616 = vmatpush.bf16.msra.mxu0 %v3604
  %3617 = vmatmul.bf16.gmra.mxu0 %v3607
  %v3618 = vpop.f32.mrf.mxu0
  %v3619 = vadd.f32 0.0, %v3618
  %v3620 = vpop.f32.mrf.mxu0
  %v3621 = vadd.f32 0.0, %v3620
  %3622 = vdwg.mxu0
  %v3625 = vunpack.c.l.b16 %v3350
  %v3626 = vunpack.c.l.b16 %v3351
  %v3627 = vpack.c.b16 %v3626, %v3625
  %v3630 = vunpack.c.l.b16 %v3286
  %v3631 = vunpack.c.l.b16 %v3287
  %v3632 = vpack.c.b16 %v3631, %v3630
  %v3635 = vsel %vm3409, %v3627, 0
  %3637 = vmatpush.bf16.msra.mxu0 0
  %3638 = vmatpush.bf16.msra.mxu0 0
  %3639 = vmatpush.bf16.msra.mxu0 0
  %3640 = vmatpush.bf16.msra.mxu0 0
  %3641 = vmatpush.bf16.msra.mxu0 0
  %3642 = vmatpush.bf16.msra.mxu0 0
  %3643 = vmatpush.bf16.msra.mxu0 0
  %3644 = vmatpush.bf16.msra.mxu0 %v3632
  %3645 = vmatmul.bf16.gmra.mxu0 %v3635
  %v3646 = vpop.f32.mrf.mxu0
  %v3647 = vadd.f32 0.0, %v3646
  %v3648 = vpop.f32.mrf.mxu0
  %v3649 = vadd.f32 0.0, %v3648
  %3650 = vdwg.mxu0
  %v3653 = vunpack.c.l.b16 %v3352
  %v3654 = vunpack.c.l.b16 %v3353
  %v3655 = vpack.c.b16 %v3654, %v3653
  %v3658 = vunpack.c.l.b16 %v3288
  %v3659 = vunpack.c.l.b16 %v3289
  %v3660 = vpack.c.b16 %v3659, %v3658
  %v3663 = vsel %vm3409, %v3655, 0
  %3665 = vmatpush.bf16.msra.mxu0 0
  %3666 = vmatpush.bf16.msra.mxu0 0
  %3667 = vmatpush.bf16.msra.mxu0 0
  %3668 = vmatpush.bf16.msra.mxu0 0
  %3669 = vmatpush.bf16.msra.mxu0 0
  %3670 = vmatpush.bf16.msra.mxu0 0
  %3671 = vmatpush.bf16.msra.mxu0 0
  %3672 = vmatpush.bf16.msra.mxu0 %v3660
  %3673 = vmatmul.bf16.gmra.mxu0 %v3663
  %v3674 = vpop.f32.mrf.mxu0
  %v3675 = vadd.f32 0.0, %v3674
  %v3676 = vpop.f32.mrf.mxu0
  %v3677 = vadd.f32 0.0, %v3676
  %3678 = vdwg.mxu0
  %v3681 = vunpack.c.l.b16 %v3354
  %v3682 = vunpack.c.l.b16 %v3355
  %v3683 = vpack.c.b16 %v3682, %v3681
  %v3686 = vunpack.c.l.b16 %v3290
  %v3687 = vunpack.c.l.b16 %v3291
  %v3688 = vpack.c.b16 %v3687, %v3686
  %v3691 = vsel %vm3409, %v3683, 0
  %3693 = vmatpush.bf16.msra.mxu0 0
  %3694 = vmatpush.bf16.msra.mxu0 0
  %3695 = vmatpush.bf16.msra.mxu0 0
  %3696 = vmatpush.bf16.msra.mxu0 0
  %3697 = vmatpush.bf16.msra.mxu0 0
  %3698 = vmatpush.bf16.msra.mxu0 0
  %3699 = vmatpush.bf16.msra.mxu0 0
  %3700 = vmatpush.bf16.msra.mxu0 %v3688
  %3701 = vmatmul.bf16.gmra.mxu0 %v3691
  %v3702 = vpop.f32.mrf.mxu0
  %v3703 = vadd.f32 0.0, %v3702
  %v3704 = vpop.f32.mrf.mxu0
  %v3705 = vadd.f32 0.0, %v3704
  %3706 = vdwg.mxu0
  %v3709 = vunpack.c.l.b16 %v3356
  %v3710 = vunpack.c.l.b16 %v3357
  %v3711 = vpack.c.b16 %v3710, %v3709
  %v3714 = vunpack.c.l.b16 %v3292
  %v3715 = vunpack.c.l.b16 %v3293
  %v3716 = vpack.c.b16 %v3715, %v3714
  %v3719 = vsel %vm3409, %v3711, 0
  %3721 = vmatpush.bf16.msra.mxu0 0
  %3722 = vmatpush.bf16.msra.mxu0 0
  %3723 = vmatpush.bf16.msra.mxu0 0
  %3724 = vmatpush.bf16.msra.mxu0 0
  %3725 = vmatpush.bf16.msra.mxu0 0
  %3726 = vmatpush.bf16.msra.mxu0 0
  %3727 = vmatpush.bf16.msra.mxu0 0
  %3728 = vmatpush.bf16.msra.mxu0 %v3716
  %3729 = vmatmul.bf16.gmra.mxu0 %v3719
  %v3730 = vpop.f32.mrf.mxu0
  %v3731 = vadd.f32 0.0, %v3730
  %v3732 = vpop.f32.mrf.mxu0
  %v3733 = vadd.f32 0.0, %v3732
  %3734 = vdwg.mxu0
  %v3737 = vunpack.c.l.b16 %v3358
  %v3738 = vunpack.c.l.b16 %v3359
  %v3739 = vpack.c.b16 %v3738, %v3737
  %v3742 = vunpack.c.l.b16 %v3294
  %v3743 = vunpack.c.l.b16 %v3295
  %v3744 = vpack.c.b16 %v3743, %v3742
  %v3747 = vsel %vm3409, %v3739, 0
  %3749 = vmatpush.bf16.msra.mxu0 0
  %3750 = vmatpush.bf16.msra.mxu0 0
  %3751 = vmatpush.bf16.msra.mxu0 0
  %3752 = vmatpush.bf16.msra.mxu0 0
  %3753 = vmatpush.bf16.msra.mxu0 0
  %3754 = vmatpush.bf16.msra.mxu0 0
  %3755 = vmatpush.bf16.msra.mxu0 0
  %3756 = vmatpush.bf16.msra.mxu0 %v3744
  %3757 = vmatmul.bf16.gmra.mxu0 %v3747
  %v3758 = vpop.f32.mrf.mxu0
  %v3759 = vadd.f32 0.0, %v3758
  %v3760 = vpop.f32.mrf.mxu0
  %v3761 = vadd.f32 0.0, %v3760
  %3762 = vdwg.mxu0
  %v3765 = vunpack.c.l.b16 %v3360
  %v3766 = vunpack.c.l.b16 %v3361
  %v3767 = vpack.c.b16 %v3766, %v3765
  %v3770 = vunpack.c.l.b16 %v3296
  %v3771 = vunpack.c.l.b16 %v3297
  %v3772 = vpack.c.b16 %v3771, %v3770
  %v3775 = vsel %vm3409, %v3767, 0
  %3777 = vmatpush.bf16.msra.mxu0 0
  %3778 = vmatpush.bf16.msra.mxu0 0
  %3779 = vmatpush.bf16.msra.mxu0 0
  %3780 = vmatpush.bf16.msra.mxu0 0
  %3781 = vmatpush.bf16.msra.mxu0 0
  %3782 = vmatpush.bf16.msra.mxu0 0
  %3783 = vmatpush.bf16.msra.mxu0 0
  %3784 = vmatpush.bf16.msra.mxu0 %v3772
  %3785 = vmatmul.bf16.gmra.mxu0 %v3775
  %v3786 = vpop.f32.mrf.mxu0
  %v3787 = vadd.f32 0.0, %v3786
  %v3788 = vpop.f32.mrf.mxu0
  %v3789 = vadd.f32 0.0, %v3788
  %3790 = vdwg.mxu0
  %v3793 = vunpack.c.l.b16 %v3362
  %v3794 = vunpack.c.l.b16 %v3363
  %v3795 = vpack.c.b16 %v3794, %v3793
  %v3798 = vunpack.c.l.b16 %v3298
  %v3799 = vunpack.c.l.b16 %v3299
  %v3800 = vpack.c.b16 %v3799, %v3798
  %v3803 = vsel %vm3409, %v3795, 0
  %3805 = vmatpush.bf16.msra.mxu0 0
  %3806 = vmatpush.bf16.msra.mxu0 0
  %3807 = vmatpush.bf16.msra.mxu0 0
  %3808 = vmatpush.bf16.msra.mxu0 0
  %3809 = vmatpush.bf16.msra.mxu0 0
  %3810 = vmatpush.bf16.msra.mxu0 0
  %3811 = vmatpush.bf16.msra.mxu0 0
  %3812 = vmatpush.bf16.msra.mxu0 %v3800
  %3813 = vmatmul.bf16.gmra.mxu0 %v3803
  %v3814 = vpop.f32.mrf.mxu0
  %v3815 = vadd.f32 0.0, %v3814
  %v3816 = vpop.f32.mrf.mxu0
  %v3817 = vadd.f32 0.0, %v3816
  %3818 = vdwg.mxu0
  %v3821 = vunpack.c.l.b16 %v3364
  %v3822 = vunpack.c.l.b16 %v3365
  %v3823 = vpack.c.b16 %v3822, %v3821
  %v3826 = vunpack.c.l.b16 %v3300
  %v3827 = vunpack.c.l.b16 %v3301
  %v3828 = vpack.c.b16 %v3827, %v3826
  %v3831 = vsel %vm3409, %v3823, 0
  %3833 = vmatpush.bf16.msra.mxu0 0
  %3834 = vmatpush.bf16.msra.mxu0 0
  %3835 = vmatpush.bf16.msra.mxu0 0
  %3836 = vmatpush.bf16.msra.mxu0 0
  %3837 = vmatpush.bf16.msra.mxu0 0
  %3838 = vmatpush.bf16.msra.mxu0 0
  %3839 = vmatpush.bf16.msra.mxu0 0
  %3840 = vmatpush.bf16.msra.mxu0 %v3828
  %3841 = vmatmul.bf16.gmra.mxu0 %v3831
  %v3842 = vpop.f32.mrf.mxu0
  %v3843 = vadd.f32 0.0, %v3842
  %v3844 = vpop.f32.mrf.mxu0
  %v3845 = vadd.f32 0.0, %v3844
  %3846 = vdwg.mxu0
  %v3849 = vunpack.c.l.b16 %v3366
  %v3850 = vunpack.c.l.b16 %v3367
  %v3851 = vpack.c.b16 %v3850, %v3849
  %v3854 = vunpack.c.l.b16 %v3302
  %v3855 = vunpack.c.l.b16 %v3303
  %v3856 = vpack.c.b16 %v3855, %v3854
  %v3859 = vsel %vm3409, %v3851, 0
  %3861 = vmatpush.bf16.msra.mxu0 0
  %3862 = vmatpush.bf16.msra.mxu0 0
  %3863 = vmatpush.bf16.msra.mxu0 0
  %3864 = vmatpush.bf16.msra.mxu0 0
  %3865 = vmatpush.bf16.msra.mxu0 0
  %3866 = vmatpush.bf16.msra.mxu0 0
  %3867 = vmatpush.bf16.msra.mxu0 0
  %3868 = vmatpush.bf16.msra.mxu0 %v3856
  %3869 = vmatmul.bf16.gmra.mxu0 %v3859
  %v3870 = vpop.f32.mrf.mxu0
  %v3871 = vadd.f32 0.0, %v3870
  %v3872 = vpop.f32.mrf.mxu0
  %v3873 = vadd.f32 0.0, %v3872
  %3874 = vdwg.mxu0
  %v3877 = vunpack.c.l.b16 %v3368
  %v3878 = vunpack.c.l.b16 %v3369
  %v3879 = vpack.c.b16 %v3878, %v3877
  %v3882 = vunpack.c.l.b16 %v3304
  %v3883 = vunpack.c.l.b16 %v3305
  %v3884 = vpack.c.b16 %v3883, %v3882
  %v3887 = vsel %vm3409, %v3879, 0
  %3889 = vmatpush.bf16.msra.mxu0 0
  %3890 = vmatpush.bf16.msra.mxu0 0
  %3891 = vmatpush.bf16.msra.mxu0 0
  %3892 = vmatpush.bf16.msra.mxu0 0
  %3893 = vmatpush.bf16.msra.mxu0 0
  %3894 = vmatpush.bf16.msra.mxu0 0
  %3895 = vmatpush.bf16.msra.mxu0 0
  %3896 = vmatpush.bf16.msra.mxu0 %v3884
  %3897 = vmatmul.bf16.gmra.mxu0 %v3887
  %v3898 = vpop.f32.mrf.mxu0
  %v3899 = vadd.f32 0.0, %v3898
  %v3900 = vpop.f32.mrf.mxu0
  %v3901 = vadd.f32 0.0, %v3900
  %3902 = vdwg.mxu0
  %v3905 = vunpack.c.l.b16 %v3370
  %v3906 = vunpack.c.l.b16 %v3371
  %v3907 = vpack.c.b16 %v3906, %v3905
  %v3910 = vunpack.c.l.b16 %v3306
  %v3911 = vunpack.c.l.b16 %v3307
  %v3912 = vpack.c.b16 %v3911, %v3910
  %v3915 = vsel %vm3409, %v3907, 0
  %3917 = vmatpush.bf16.msra.mxu0 0
  %3918 = vmatpush.bf16.msra.mxu0 0
  %3919 = vmatpush.bf16.msra.mxu0 0
  %3920 = vmatpush.bf16.msra.mxu0 0
  %3921 = vmatpush.bf16.msra.mxu0 0
  %3922 = vmatpush.bf16.msra.mxu0 0
  %3923 = vmatpush.bf16.msra.mxu0 0
  %3924 = vmatpush.bf16.msra.mxu0 %v3912
  %3925 = vmatmul.bf16.gmra.mxu0 %v3915
  %v3926 = vpop.f32.mrf.mxu0
  %v3927 = vadd.f32 0.0, %v3926
  %v3928 = vpop.f32.mrf.mxu0
  %v3929 = vadd.f32 0.0, %v3928
  %3930 = vdwg.mxu0
  %v3933 = vunpack.c.l.b16 %v3372
  %v3934 = vunpack.c.l.b16 %v3373
  %v3935 = vpack.c.b16 %v3934, %v3933
  %v3938 = vunpack.c.l.b16 %v3308
  %v3939 = vunpack.c.l.b16 %v3309
  %v3940 = vpack.c.b16 %v3939, %v3938
  %v3943 = vsel %vm3409, %v3935, 0
  %3945 = vmatpush.bf16.msra.mxu0 0
  %3946 = vmatpush.bf16.msra.mxu0 0
  %3947 = vmatpush.bf16.msra.mxu0 0
  %3948 = vmatpush.bf16.msra.mxu0 0
  %3949 = vmatpush.bf16.msra.mxu0 0
  %3950 = vmatpush.bf16.msra.mxu0 0
  %3951 = vmatpush.bf16.msra.mxu0 0
  %3952 = vmatpush.bf16.msra.mxu0 %v3940
  %3953 = vmatmul.bf16.gmra.mxu0 %v3943
  %v3954 = vpop.f32.mrf.mxu0
  %v3955 = vadd.f32 0.0, %v3954
  %v3956 = vpop.f32.mrf.mxu0
  %v3957 = vadd.f32 0.0, %v3956
  %3958 = vdwg.mxu0
  %v3961 = vunpack.c.l.b16 %v3374
  %v3962 = vunpack.c.l.b16 %v3375
  %v3963 = vpack.c.b16 %v3962, %v3961
  %v3966 = vunpack.c.l.b16 %v3310
  %v3967 = vunpack.c.l.b16 %v3311
  %v3968 = vpack.c.b16 %v3967, %v3966
  %v3971 = vsel %vm3409, %v3963, 0
  %3973 = vmatpush.bf16.msra.mxu0 0
  %3974 = vmatpush.bf16.msra.mxu0 0
  %3975 = vmatpush.bf16.msra.mxu0 0
  %3976 = vmatpush.bf16.msra.mxu0 0
  %3977 = vmatpush.bf16.msra.mxu0 0
  %3978 = vmatpush.bf16.msra.mxu0 0
  %3979 = vmatpush.bf16.msra.mxu0 0
  %3980 = vmatpush.bf16.msra.mxu0 %v3968
  %3981 = vmatmul.bf16.gmra.mxu0 %v3971
  %v3982 = vpop.f32.mrf.mxu0
  %v3983 = vadd.f32 0.0, %v3982
  %v3984 = vpop.f32.mrf.mxu0
  %v3985 = vadd.f32 0.0, %v3984
  %3986 = vdwg.mxu0
  %v3989 = vunpack.c.l.b16 %v3376
  %v3990 = vunpack.c.l.b16 %v3377
  %v3991 = vpack.c.b16 %v3990, %v3989
  %v3994 = vunpack.c.l.b16 %v3312
  %v3995 = vunpack.c.l.b16 %v3313
  %v3996 = vpack.c.b16 %v3995, %v3994
  %v3999 = vsel %vm3409, %v3991, 0
  %4001 = vmatpush.bf16.msra.mxu0 0
  %4002 = vmatpush.bf16.msra.mxu0 0
  %4003 = vmatpush.bf16.msra.mxu0 0
  %4004 = vmatpush.bf16.msra.mxu0 0
  %4005 = vmatpush.bf16.msra.mxu0 0
  %4006 = vmatpush.bf16.msra.mxu0 0
  %4007 = vmatpush.bf16.msra.mxu0 0
  %4008 = vmatpush.bf16.msra.mxu0 %v3996
  %4009 = vmatmul.bf16.gmra.mxu0 %v3999
  %v4010 = vpop.f32.mrf.mxu0
  %v4011 = vadd.f32 0.0, %v4010
  %v4012 = vpop.f32.mrf.mxu0
  %v4013 = vadd.f32 0.0, %v4012
  %4014 = vdwg.mxu0
  %v4017 = vunpack.c.l.b16 %v3378
  %v4018 = vunpack.c.l.b16 %v3379
  %v4019 = vpack.c.b16 %v4018, %v4017
  %v4022 = vunpack.c.l.b16 %v3314
  %v4023 = vunpack.c.l.b16 %v3315
  %v4024 = vpack.c.b16 %v4023, %v4022
  %v4027 = vsel %vm3409, %v4019, 0
  %4029 = vmatpush.bf16.msra.mxu0 0
  %4030 = vmatpush.bf16.msra.mxu0 0
  %4031 = vmatpush.bf16.msra.mxu0 0
  %4032 = vmatpush.bf16.msra.mxu0 0
  %4033 = vmatpush.bf16.msra.mxu0 0
  %4034 = vmatpush.bf16.msra.mxu0 0
  %4035 = vmatpush.bf16.msra.mxu0 0
  %4036 = vmatpush.bf16.msra.mxu0 %v4024
  %4037 = vmatmul.bf16.gmra.mxu0 %v4027
  %v4038 = vpop.f32.mrf.mxu0
  %v4039 = vadd.f32 0.0, %v4038
  %v4040 = vpop.f32.mrf.mxu0
  %v4041 = vadd.f32 0.0, %v4040
  %4042 = vdwg.mxu0
  %v4045 = vunpack.c.l.b16 %v3380
  %v4046 = vunpack.c.l.b16 %v3381
  %v4047 = vpack.c.b16 %v4046, %v4045
  %v4050 = vunpack.c.l.b16 %v3316
  %v4051 = vunpack.c.l.b16 %v3317
  %v4052 = vpack.c.b16 %v4051, %v4050
  %v4055 = vsel %vm3409, %v4047, 0
  %4057 = vmatpush.bf16.msra.mxu0 0
  %4058 = vmatpush.bf16.msra.mxu0 0
  %4059 = vmatpush.bf16.msra.mxu0 0
  %4060 = vmatpush.bf16.msra.mxu0 0
  %4061 = vmatpush.bf16.msra.mxu0 0
  %4062 = vmatpush.bf16.msra.mxu0 0
  %4063 = vmatpush.bf16.msra.mxu0 0
  %4064 = vmatpush.bf16.msra.mxu0 %v4052
  %4065 = vmatmul.bf16.gmra.mxu0 %v4055
  %v4066 = vpop.f32.mrf.mxu0
  %v4067 = vadd.f32 0.0, %v4066
  %v4068 = vpop.f32.mrf.mxu0
  %v4069 = vadd.f32 0.0, %v4068
  %4070 = vdwg.mxu0
  %v4073 = vunpack.c.l.b16 %v3382
  %v4074 = vunpack.c.l.b16 %v3383
  %v4075 = vpack.c.b16 %v4074, %v4073
  %v4078 = vunpack.c.l.b16 %v3318
  %v4079 = vunpack.c.l.b16 %v3319
  %v4080 = vpack.c.b16 %v4079, %v4078
  %v4083 = vsel %vm3409, %v4075, 0
  %4085 = vmatpush.bf16.msra.mxu0 0
  %4086 = vmatpush.bf16.msra.mxu0 0
  %4087 = vmatpush.bf16.msra.mxu0 0
  %4088 = vmatpush.bf16.msra.mxu0 0
  %4089 = vmatpush.bf16.msra.mxu0 0
  %4090 = vmatpush.bf16.msra.mxu0 0
  %4091 = vmatpush.bf16.msra.mxu0 0
  %4092 = vmatpush.bf16.msra.mxu0 %v4080
  %4093 = vmatmul.bf16.gmra.mxu0 %v4083
  %v4094 = vpop.f32.mrf.mxu0
  %v4095 = vadd.f32 0.0, %v4094
  %v4096 = vpop.f32.mrf.mxu0
  %v4097 = vadd.f32 0.0, %v4096
  %4098 = vdwg.mxu0
  %v4101 = vunpack.c.l.b16 %v3384
  %v4102 = vunpack.c.l.b16 %v3385
  %v4103 = vpack.c.b16 %v4102, %v4101
  %v4106 = vunpack.c.l.b16 %v3320
  %v4107 = vunpack.c.l.b16 %v3321
  %v4108 = vpack.c.b16 %v4107, %v4106
  %v4111 = vsel %vm3409, %v4103, 0
  %4113 = vmatpush.bf16.msra.mxu0 0
  %4114 = vmatpush.bf16.msra.mxu0 0
  %4115 = vmatpush.bf16.msra.mxu0 0
  %4116 = vmatpush.bf16.msra.mxu0 0
  %4117 = vmatpush.bf16.msra.mxu0 0
  %4118 = vmatpush.bf16.msra.mxu0 0
  %4119 = vmatpush.bf16.msra.mxu0 0
  %4120 = vmatpush.bf16.msra.mxu0 %v4108
  %4121 = vmatmul.bf16.gmra.mxu0 %v4111
  %v4122 = vpop.f32.mrf.mxu0
  %v4123 = vadd.f32 0.0, %v4122
  %v4124 = vpop.f32.mrf.mxu0
  %v4125 = vadd.f32 0.0, %v4124
  %4126 = vdwg.mxu0
  %v4129 = vunpack.c.l.b16 %v3386
  %v4130 = vunpack.c.l.b16 %v3387
  %v4131 = vpack.c.b16 %v4130, %v4129
  %v4134 = vunpack.c.l.b16 %v3322
  %v4135 = vunpack.c.l.b16 %v3323
  %v4136 = vpack.c.b16 %v4135, %v4134
  %v4139 = vsel %vm3409, %v4131, 0
  %4141 = vmatpush.bf16.msra.mxu0 0
  %4142 = vmatpush.bf16.msra.mxu0 0
  %4143 = vmatpush.bf16.msra.mxu0 0
  %4144 = vmatpush.bf16.msra.mxu0 0
  %4145 = vmatpush.bf16.msra.mxu0 0
  %4146 = vmatpush.bf16.msra.mxu0 0
  %4147 = vmatpush.bf16.msra.mxu0 0
  %4148 = vmatpush.bf16.msra.mxu0 %v4136
  %4149 = vmatmul.bf16.gmra.mxu0 %v4139
  %v4150 = vpop.f32.mrf.mxu0
  %v4151 = vadd.f32 0.0, %v4150
  %v4152 = vpop.f32.mrf.mxu0
  %v4153 = vadd.f32 0.0, %v4152
  %4154 = vdwg.mxu0
  %v4157 = vunpack.c.l.b16 %v3388
  %v4158 = vunpack.c.l.b16 %v3389
  %v4159 = vpack.c.b16 %v4158, %v4157
  %v4162 = vunpack.c.l.b16 %v3324
  %v4163 = vunpack.c.l.b16 %v3325
  %v4164 = vpack.c.b16 %v4163, %v4162
  %v4167 = vsel %vm3409, %v4159, 0
  %4169 = vmatpush.bf16.msra.mxu0 0
  %4170 = vmatpush.bf16.msra.mxu0 0
  %4171 = vmatpush.bf16.msra.mxu0 0
  %4172 = vmatpush.bf16.msra.mxu0 0
  %4173 = vmatpush.bf16.msra.mxu0 0
  %4174 = vmatpush.bf16.msra.mxu0 0
  %4175 = vmatpush.bf16.msra.mxu0 0
  %4176 = vmatpush.bf16.msra.mxu0 %v4164
  %4177 = vmatmul.bf16.gmra.mxu0 %v4167
  %v4178 = vpop.f32.mrf.mxu0
  %v4179 = vadd.f32 0.0, %v4178
  %v4180 = vpop.f32.mrf.mxu0
  %v4181 = vadd.f32 0.0, %v4180
  %4182 = vdwg.mxu0
  %v4185 = vunpack.c.l.b16 %v3390
  %v4186 = vunpack.c.l.b16 %v3391
  %v4187 = vpack.c.b16 %v4186, %v4185
  %v4190 = vunpack.c.l.b16 %v3326
  %v4191 = vunpack.c.l.b16 %v3327
  %v4192 = vpack.c.b16 %v4191, %v4190
  %v4195 = vsel %vm3409, %v4187, 0
  %4197 = vmatpush.bf16.msra.mxu0 0
  %4198 = vmatpush.bf16.msra.mxu0 0
  %4199 = vmatpush.bf16.msra.mxu0 0
  %4200 = vmatpush.bf16.msra.mxu0 0
  %4201 = vmatpush.bf16.msra.mxu0 0
  %4202 = vmatpush.bf16.msra.mxu0 0
  %4203 = vmatpush.bf16.msra.mxu0 0
  %4204 = vmatpush.bf16.msra.mxu0 %v4192
  %4205 = vmatmul.bf16.gmra.mxu0 %v4195
  %v4206 = vpop.f32.mrf.mxu0
  %v4207 = vadd.f32 0.0, %v4206
  %v4208 = vpop.f32.mrf.mxu0
  %v4209 = vadd.f32 0.0, %v4208
  %4210 = vdwg.mxu0
  %v4213 = vunpack.c.l.b16 %v3392
  %v4214 = vunpack.c.l.b16 %v3393
  %v4215 = vpack.c.b16 %v4214, %v4213
  %v4218 = vunpack.c.l.b16 %v3328
  %v4219 = vunpack.c.l.b16 %v3329
  %v4220 = vpack.c.b16 %v4219, %v4218
  %v4223 = vsel %vm3409, %v4215, 0
  %4225 = vmatpush.bf16.msra.mxu0 0
  %4226 = vmatpush.bf16.msra.mxu0 0
  %4227 = vmatpush.bf16.msra.mxu0 0
  %4228 = vmatpush.bf16.msra.mxu0 0
  %4229 = vmatpush.bf16.msra.mxu0 0
  %4230 = vmatpush.bf16.msra.mxu0 0
  %4231 = vmatpush.bf16.msra.mxu0 0
  %4232 = vmatpush.bf16.msra.mxu0 %v4220
  %4233 = vmatmul.bf16.gmra.mxu0 %v4223
  %v4234 = vpop.f32.mrf.mxu0
  %v4235 = vadd.f32 0.0, %v4234
  %v4236 = vpop.f32.mrf.mxu0
  %v4237 = vadd.f32 0.0, %v4236
  %4238 = vdwg.mxu0
  %v4241 = vunpack.c.l.b16 %v3394
  %v4242 = vunpack.c.l.b16 %v3395
  %v4243 = vpack.c.b16 %v4242, %v4241
  %v4246 = vunpack.c.l.b16 %v3330
  %v4247 = vunpack.c.l.b16 %v3331
  %v4248 = vpack.c.b16 %v4247, %v4246
  %v4251 = vsel %vm3409, %v4243, 0
  %4253 = vmatpush.bf16.msra.mxu0 0
  %4254 = vmatpush.bf16.msra.mxu0 0
  %4255 = vmatpush.bf16.msra.mxu0 0
  %4256 = vmatpush.bf16.msra.mxu0 0
  %4257 = vmatpush.bf16.msra.mxu0 0
  %4258 = vmatpush.bf16.msra.mxu0 0
  %4259 = vmatpush.bf16.msra.mxu0 0
  %4260 = vmatpush.bf16.msra.mxu0 %v4248
  %4261 = vmatmul.bf16.gmra.mxu0 %v4251
  %v4262 = vpop.f32.mrf.mxu0
  %v4263 = vadd.f32 0.0, %v4262
  %v4264 = vpop.f32.mrf.mxu0
  %v4265 = vadd.f32 0.0, %v4264
  %4266 = vdwg.mxu0
  %v4269 = vunpack.c.l.b16 %v3396
  %v4270 = vunpack.c.l.b16 %v3397
  %v4271 = vpack.c.b16 %v4270, %v4269
  %v4274 = vunpack.c.l.b16 %v3332
  %v4275 = vunpack.c.l.b16 %v3333
  %v4276 = vpack.c.b16 %v4275, %v4274
  %v4279 = vsel %vm3409, %v4271, 0
  %4281 = vmatpush.bf16.msra.mxu0 0
  %4282 = vmatpush.bf16.msra.mxu0 0
  %4283 = vmatpush.bf16.msra.mxu0 0
  %4284 = vmatpush.bf16.msra.mxu0 0
  %4285 = vmatpush.bf16.msra.mxu0 0
  %4286 = vmatpush.bf16.msra.mxu0 0
  %4287 = vmatpush.bf16.msra.mxu0 0
  %4288 = vmatpush.bf16.msra.mxu0 %v4276
  %4289 = vmatmul.bf16.gmra.mxu0 %v4279
  %v4290 = vpop.f32.mrf.mxu0
  %v4291 = vadd.f32 0.0, %v4290
  %v4292 = vpop.f32.mrf.mxu0
  %v4293 = vadd.f32 0.0, %v4292
  %4294 = vdwg.mxu0
  %v4295 = vmax.f32 %v3423, 0.0
  %v4296 = vmax.f32 %v3425, 0.0
  %v4297 = vmax.f32 %v3451, 0.0
  %v4298 = vmax.f32 %v3453, 0.0
  %v4299 = vmax.f32 %v3479, 0.0
  %v4300 = vmax.f32 %v3481, 0.0
  %v4301 = vmax.f32 %v3507, 0.0
  %v4302 = vmax.f32 %v3509, 0.0
  %v4303 = vmax.f32 %v3535, 0.0
  %v4304 = vmax.f32 %v3537, 0.0
  %v4305 = vmax.f32 %v3563, 0.0
  %v4306 = vmax.f32 %v3565, 0.0
  %v4307 = vmax.f32 %v3591, 0.0
  %v4308 = vmax.f32 %v3593, 0.0
  %v4309 = vmax.f32 %v3619, 0.0
  %v4310 = vmax.f32 %v3621, 0.0
  %v4311 = vmax.f32 %v3647, 0.0
  %v4312 = vmax.f32 %v3649, 0.0
  %v4313 = vmax.f32 %v3675, 0.0
  %v4314 = vmax.f32 %v3677, 0.0
  %v4315 = vmax.f32 %v3703, 0.0
  %v4316 = vmax.f32 %v3705, 0.0
  %v4317 = vmax.f32 %v3731, 0.0
  %v4318 = vmax.f32 %v3733, 0.0
  %v4319 = vmax.f32 %v3759, 0.0
  %v4320 = vmax.f32 %v3761, 0.0
  %v4321 = vmax.f32 %v3787, 0.0
  %v4322 = vmax.f32 %v3789, 0.0
  %v4323 = vmax.f32 %v3815, 0.0
  %v4324 = vmax.f32 %v3817, 0.0
  %v4325 = vmax.f32 %v3843, 0.0
  %v4326 = vmax.f32 %v3845, 0.0
  %v4327 = vmax.f32 %v3871, 0.0
  %v4328 = vmax.f32 %v3873, 0.0
  %v4329 = vmax.f32 %v3899, 0.0
  %v4330 = vmax.f32 %v3901, 0.0
  %v4331 = vmax.f32 %v3927, 0.0
  %v4332 = vmax.f32 %v3929, 0.0
  %v4333 = vmax.f32 %v3955, 0.0
  %v4334 = vmax.f32 %v3957, 0.0
  %v4335 = vmax.f32 %v3983, 0.0
  %v4336 = vmax.f32 %v3985, 0.0
  %v4337 = vmax.f32 %v4011, 0.0
  %v4338 = vmax.f32 %v4013, 0.0
  %v4339 = vmax.f32 %v4039, 0.0
  %v4340 = vmax.f32 %v4041, 0.0
  %v4341 = vmax.f32 %v4067, 0.0
  %v4342 = vmax.f32 %v4069, 0.0
  %v4343 = vmax.f32 %v4095, 0.0
  %v4344 = vmax.f32 %v4097, 0.0
  %v4345 = vmax.f32 %v4123, 0.0
  %v4346 = vmax.f32 %v4125, 0.0
  %v4347 = vmax.f32 %v4151, 0.0
  %v4348 = vmax.f32 %v4153, 0.0
  %v4349 = vmax.f32 %v4179, 0.0
  %v4350 = vmax.f32 %v4181, 0.0
  %v4351 = vmax.f32 %v4207, 0.0
  %v4352 = vmax.f32 %v4209, 0.0
  %v4353 = vmax.f32 %v4235, 0.0
  %v4354 = vmax.f32 %v4237, 0.0
  %v4355 = vmax.f32 %v4263, 0.0
  %v4356 = vmax.f32 %v4265, 0.0
  %v4357 = vmax.f32 %v4291, 0.0
  %v4358 = vmax.f32 %v4293, 0.0
  %v4359 = vpack.c.bf16 %v4295, %v4295
  %v4360 = vpack.c.bf16 %v4296, %v4296
  %v4361 = vpack.c.bf16 %v4297, %v4297
  %v4362 = vpack.c.bf16 %v4298, %v4298
  %v4363 = vpack.c.bf16 %v4299, %v4299
  %v4364 = vpack.c.bf16 %v4300, %v4300
  %v4365 = vpack.c.bf16 %v4301, %v4301
  %v4366 = vpack.c.bf16 %v4302, %v4302
  %v4367 = vpack.c.bf16 %v4303, %v4303
  %v4368 = vpack.c.bf16 %v4304, %v4304
  %v4369 = vpack.c.bf16 %v4305, %v4305
  %v4370 = vpack.c.bf16 %v4306, %v4306
  %v4371 = vpack.c.bf16 %v4307, %v4307
  %v4372 = vpack.c.bf16 %v4308, %v4308
  %v4373 = vpack.c.bf16 %v4309, %v4309
  %v4374 = vpack.c.bf16 %v4310, %v4310
  %v4375 = vpack.c.bf16 %v4311, %v4311
  %v4376 = vpack.c.bf16 %v4312, %v4312
  %v4377 = vpack.c.bf16 %v4313, %v4313
  %v4378 = vpack.c.bf16 %v4314, %v4314
  %v4379 = vpack.c.bf16 %v4315, %v4315
  %v4380 = vpack.c.bf16 %v4316, %v4316
  %v4381 = vpack.c.bf16 %v4317, %v4317
  %v4382 = vpack.c.bf16 %v4318, %v4318
  %v4383 = vpack.c.bf16 %v4319, %v4319
  %v4384 = vpack.c.bf16 %v4320, %v4320
  %v4385 = vpack.c.bf16 %v4321, %v4321
  %v4386 = vpack.c.bf16 %v4322, %v4322
  %v4387 = vpack.c.bf16 %v4323, %v4323
  %v4388 = vpack.c.bf16 %v4324, %v4324
  %v4389 = vpack.c.bf16 %v4325, %v4325
  %v4390 = vpack.c.bf16 %v4326, %v4326
  %v4391 = vpack.c.bf16 %v4327, %v4327
  %v4392 = vpack.c.bf16 %v4328, %v4328
  %v4393 = vpack.c.bf16 %v4329, %v4329
  %v4394 = vpack.c.bf16 %v4330, %v4330
  %v4395 = vpack.c.bf16 %v4331, %v4331
  %v4396 = vpack.c.bf16 %v4332, %v4332
  %v4397 = vpack.c.bf16 %v4333, %v4333
  %v4398 = vpack.c.bf16 %v4334, %v4334
  %v4399 = vpack.c.bf16 %v4335, %v4335
  %v4400 = vpack.c.bf16 %v4336, %v4336
  %v4401 = vpack.c.bf16 %v4337, %v4337
  %v4402 = vpack.c.bf16 %v4338, %v4338
  %v4403 = vpack.c.bf16 %v4339, %v4339
  %v4404 = vpack.c.bf16 %v4340, %v4340
  %v4405 = vpack.c.bf16 %v4341, %v4341
  %v4406 = vpack.c.bf16 %v4342, %v4342
  %v4407 = vpack.c.bf16 %v4343, %v4343
  %v4408 = vpack.c.bf16 %v4344, %v4344
  %v4409 = vpack.c.bf16 %v4345, %v4345
  %v4410 = vpack.c.bf16 %v4346, %v4346
  %v4411 = vpack.c.bf16 %v4347, %v4347
  %v4412 = vpack.c.bf16 %v4348, %v4348
  %v4413 = vpack.c.bf16 %v4349, %v4349
  %v4414 = vpack.c.bf16 %v4350, %v4350
  %v4415 = vpack.c.bf16 %v4351, %v4351
  %v4416 = vpack.c.bf16 %v4352, %v4352
  %v4417 = vpack.c.bf16 %v4353, %v4353
  %v4418 = vpack.c.bf16 %v4354, %v4354
  %v4419 = vpack.c.bf16 %v4355, %v4355
  %v4420 = vpack.c.bf16 %v4356, %v4356
  %v4421 = vpack.c.bf16 %v4357, %v4357
  %v4422 = vpack.c.bf16 %v4358, %v4358
  %v4487 = vunpack.c.l.b16 %v4359
  %v4488 = vunpack.c.l.b16 %v4360
  %v4489 = vunpack.c.l.b16 %v4361
  %v4490 = vunpack.c.l.b16 %v4362
  %v4491 = vunpack.c.l.b16 %v4363
  %v4492 = vunpack.c.l.b16 %v4364
  %v4493 = vunpack.c.l.b16 %v4365
  %v4494 = vunpack.c.l.b16 %v4366
  %v4495 = vunpack.c.l.b16 %v4367
  %v4496 = vunpack.c.l.b16 %v4368
  %v4497 = vunpack.c.l.b16 %v4369
  %v4498 = vunpack.c.l.b16 %v4370
  %v4499 = vunpack.c.l.b16 %v4371
  %v4500 = vunpack.c.l.b16 %v4372
  %v4501 = vunpack.c.l.b16 %v4373
  %v4502 = vunpack.c.l.b16 %v4374
  %v4503 = vunpack.c.l.b16 %v4375
  %v4504 = vunpack.c.l.b16 %v4376
  %v4505 = vunpack.c.l.b16 %v4377
  %v4506 = vunpack.c.l.b16 %v4378
  %v4507 = vunpack.c.l.b16 %v4379
  %v4508 = vunpack.c.l.b16 %v4380
  %v4509 = vunpack.c.l.b16 %v4381
  %v4510 = vunpack.c.l.b16 %v4382
  %v4511 = vunpack.c.l.b16 %v4383
  %v4512 = vunpack.c.l.b16 %v4384
  %v4513 = vunpack.c.l.b16 %v4385
  %v4514 = vunpack.c.l.b16 %v4386
  %v4515 = vunpack.c.l.b16 %v4387
  %v4516 = vunpack.c.l.b16 %v4388
  %v4517 = vunpack.c.l.b16 %v4389
  %v4518 = vunpack.c.l.b16 %v4390
  %v4519 = vunpack.c.l.b16 %v4391
  %v4520 = vunpack.c.l.b16 %v4392
  %v4521 = vunpack.c.l.b16 %v4393
  %v4522 = vunpack.c.l.b16 %v4394
  %v4523 = vunpack.c.l.b16 %v4395
  %v4524 = vunpack.c.l.b16 %v4396
  %v4525 = vunpack.c.l.b16 %v4397
  %v4526 = vunpack.c.l.b16 %v4398
  %v4527 = vunpack.c.l.b16 %v4399
  %v4528 = vunpack.c.l.b16 %v4400
  %v4529 = vunpack.c.l.b16 %v4401
  %v4530 = vunpack.c.l.b16 %v4402
  %v4531 = vunpack.c.l.b16 %v4403
  %v4532 = vunpack.c.l.b16 %v4404
  %v4533 = vunpack.c.l.b16 %v4405
  %v4534 = vunpack.c.l.b16 %v4406
  %v4535 = vunpack.c.l.b16 %v4407
  %v4536 = vunpack.c.l.b16 %v4408
  %v4537 = vunpack.c.l.b16 %v4409
  %v4538 = vunpack.c.l.b16 %v4410
  %v4539 = vunpack.c.l.b16 %v4411
  %v4540 = vunpack.c.l.b16 %v4412
  %v4541 = vunpack.c.l.b16 %v4413
  %v4542 = vunpack.c.l.b16 %v4414
  %v4543 = vunpack.c.l.b16 %v4415
  %v4544 = vunpack.c.l.b16 %v4416
  %v4545 = vunpack.c.l.b16 %v4417
  %v4546 = vunpack.c.l.b16 %v4418
  %v4547 = vunpack.c.l.b16 %v4419
  %v4548 = vunpack.c.l.b16 %v4420
  %v4549 = vunpack.c.l.b16 %v4421
  %v4550 = vunpack.c.l.b16 %v4422
  %v4551 = vpack.c.b16 %v4488, %v4487
  %v4552 = vpack.c.b16 %v4490, %v4489
  %v4553 = vpack.c.b16 %v4492, %v4491
  %v4554 = vpack.c.b16 %v4494, %v4493
  %v4555 = vpack.c.b16 %v4496, %v4495
  %v4556 = vpack.c.b16 %v4498, %v4497
  %v4557 = vpack.c.b16 %v4500, %v4499
  %v4558 = vpack.c.b16 %v4502, %v4501
  %v4559 = vpack.c.b16 %v4504, %v4503
  %v4560 = vpack.c.b16 %v4506, %v4505
  %v4561 = vpack.c.b16 %v4508, %v4507
  %v4562 = vpack.c.b16 %v4510, %v4509
  %v4563 = vpack.c.b16 %v4512, %v4511
  %v4564 = vpack.c.b16 %v4514, %v4513
  %v4565 = vpack.c.b16 %v4516, %v4515
  %v4566 = vpack.c.b16 %v4518, %v4517
  %v4567 = vpack.c.b16 %v4520, %v4519
  %v4568 = vpack.c.b16 %v4522, %v4521
  %v4569 = vpack.c.b16 %v4524, %v4523
  %v4570 = vpack.c.b16 %v4526, %v4525
  %v4571 = vpack.c.b16 %v4528, %v4527
  %v4572 = vpack.c.b16 %v4530, %v4529
  %v4573 = vpack.c.b16 %v4532, %v4531
  %v4574 = vpack.c.b16 %v4534, %v4533
  %v4575 = vpack.c.b16 %v4536, %v4535
  %v4576 = vpack.c.b16 %v4538, %v4537
  %v4577 = vpack.c.b16 %v4540, %v4539
  %v4578 = vpack.c.b16 %v4542, %v4541
  %v4579 = vpack.c.b16 %v4544, %v4543
  %v4580 = vpack.c.b16 %v4546, %v4545
  %v4581 = vpack.c.b16 %v4548, %v4547
  %v4582 = vpack.c.b16 %v4550, %v4549
  %v4583 = vld [vmem:[%s7] sm:$0xf]
  %v4584 = vld [vmem:[%s7 + $0x4] sm:$0xf]
  %v4585 = vld [vmem:[%s7 + $0x8] sm:$0xf]
  %v4586 = vld [vmem:[%s7 + $0xc] sm:$0xf]
  %v4587 = vld [vmem:[%s8] sm:$0xf]
  %v4588 = vld [vmem:[%s8 + $0x4] sm:$0xf]
  %v4589 = vld [vmem:[%s8 + $0x8] sm:$0xf]
  %v4590 = vld [vmem:[%s8 + $0xc] sm:$0xf]
  %s4591 = scalar_lea.vmem %s7, 16
  %v4592 = vld [vmem:[%s4591] sm:$0xf]
  %v4593 = vld [vmem:[%s4591 + $0x4] sm:$0xf]
  %v4594 = vld [vmem:[%s4591 + $0x8] sm:$0xf]
  %v4595 = vld [vmem:[%s4591 + $0xc] sm:$0xf]
  %v4600 = vunpack.c.l.b16 %v4592
  %v4601 = vunpack.c.l.b16 %v4593
  %v4602 = vunpack.c.l.b16 %v4594
  %v4603 = vunpack.c.l.b16 %v4595
  %v4604 = vpack.c.b16 %v4601, %v4600
  %v4605 = vpack.c.b16 %v4603, %v4602
  %v4609 = vsel %vm3004, %v4551, 0
  %v4612 = vsel %vm3004, %v4552, 0
  %v4615 = vsel %vm3004, %v4553, 0
  %v4618 = vsel %vm3004, %v4554, 0
  %v4621 = vsel %vm3004, %v4555, 0
  %v4624 = vsel %vm3004, %v4556, 0
  %v4627 = vsel %vm3004, %v4557, 0
  %v4630 = vsel %vm3004, %v4558, 0
  %v4633 = vsel %vm3004, %v4559, 0
  %v4636 = vsel %vm3004, %v4560, 0
  %v4639 = vsel %vm3004, %v4561, 0
  %v4642 = vsel %vm3004, %v4562, 0
  %v4645 = vsel %vm3004, %v4563, 0
  %v4648 = vsel %vm3004, %v4564, 0
  %v4651 = vsel %vm3004, %v4565, 0
  %v4654 = vsel %vm3004, %v4566, 0
  %v4657 = vsel %vm3004, %v4567, 0
  %v4660 = vsel %vm3004, %v4568, 0
  %v4663 = vsel %vm3004, %v4569, 0
  %v4666 = vsel %vm3004, %v4570, 0
  %v4669 = vsel %vm3004, %v4571, 0
  %v4672 = vsel %vm3004, %v4572, 0
  %v4675 = vsel %vm3004, %v4573, 0
  %v4678 = vsel %vm3004, %v4574, 0
  %v4681 = vsel %vm3004, %v4575, 0
  %v4684 = vsel %vm3004, %v4576, 0
  %v4687 = vsel %vm3004, %v4577, 0
  %v4690 = vsel %vm3004, %v4578, 0
  %v4693 = vsel %vm3004, %v4579, 0
  %v4696 = vsel %vm3004, %v4580, 0
  %v4699 = vsel %vm3004, %v4581, 0
  %v4702 = vsel %vm3004, %v4582, 0
  %4704 = vmatpush.bf16.msra.mxu0 0
  %4705 = vmatpush.bf16.msra.mxu0 0
  %4706 = vmatpush.bf16.msra.mxu0 0
  %4707 = vmatpush.bf16.msra.mxu0 0
  %4708 = vmatpush.bf16.msra.mxu0 0
  %4709 = vmatpush.bf16.msra.mxu0 0
  %4710 = vmatpush.bf16.msra.mxu0 %v4605
  %4711 = vmatpush.bf16.msra.mxu0 %v4604
  %4712 = vmatmul.bf16.gmra.mxu0 %v4609
  %v4713 = vpop.f32.mrf.mxu0
  %v4714 = vadd.f32 0.0, %v4713
  %v4715 = vpop.f32.mrf.mxu0
  %v4716 = vadd.f32 0.0, %v4715
  %4717 = vmatmul.bf16.gmra.mxu0 %v4612
  %v4718 = vpop.f32.mrf.mxu0
  %v4719 = vadd.f32 0.0, %v4718
  %v4720 = vpop.f32.mrf.mxu0
  %v4721 = vadd.f32 0.0, %v4720
  %4722 = vmatmul.bf16.gmra.mxu0 %v4615
  %v4723 = vpop.f32.mrf.mxu0
  %v4724 = vadd.f32 0.0, %v4723
  %v4725 = vpop.f32.mrf.mxu0
  %v4726 = vadd.f32 0.0, %v4725
  %4727 = vmatmul.bf16.gmra.mxu0 %v4618
  %v4728 = vpop.f32.mrf.mxu0
  %v4729 = vadd.f32 0.0, %v4728
  %v4730 = vpop.f32.mrf.mxu0
  %v4731 = vadd.f32 0.0, %v4730
  %4732 = vmatmul.bf16.gmra.mxu0 %v4621
  %v4733 = vpop.f32.mrf.mxu0
  %v4734 = vadd.f32 0.0, %v4733
  %v4735 = vpop.f32.mrf.mxu0
  %v4736 = vadd.f32 0.0, %v4735
  %4737 = vmatmul.bf16.gmra.mxu0 %v4624
  %v4738 = vpop.f32.mrf.mxu0
  %v4739 = vadd.f32 0.0, %v4738
  %v4740 = vpop.f32.mrf.mxu0
  %v4741 = vadd.f32 0.0, %v4740
  %4742 = vmatmul.bf16.gmra.mxu0 %v4627
  %v4743 = vpop.f32.mrf.mxu0
  %v4744 = vadd.f32 0.0, %v4743
  %v4745 = vpop.f32.mrf.mxu0
  %v4746 = vadd.f32 0.0, %v4745
  %4747 = vmatmul.bf16.gmra.mxu0 %v4630
  %v4748 = vpop.f32.mrf.mxu0
  %v4749 = vadd.f32 0.0, %v4748
  %v4750 = vpop.f32.mrf.mxu0
  %v4751 = vadd.f32 0.0, %v4750
  %4752 = vmatmul.bf16.gmra.mxu0 %v4633
  %v4753 = vpop.f32.mrf.mxu0
  %v4754 = vadd.f32 0.0, %v4753
  %v4755 = vpop.f32.mrf.mxu0
  %v4756 = vadd.f32 0.0, %v4755
  %4757 = vmatmul.bf16.gmra.mxu0 %v4636
  %v4758 = vpop.f32.mrf.mxu0
  %v4759 = vadd.f32 0.0, %v4758
  %v4760 = vpop.f32.mrf.mxu0
  %v4761 = vadd.f32 0.0, %v4760
  %4762 = vmatmul.bf16.gmra.mxu0 %v4639
  %v4763 = vpop.f32.mrf.mxu0
  %v4764 = vadd.f32 0.0, %v4763
  %v4765 = vpop.f32.mrf.mxu0
  %v4766 = vadd.f32 0.0, %v4765
  %4767 = vmatmul.bf16.gmra.mxu0 %v4642
  %v4768 = vpop.f32.mrf.mxu0
  %v4769 = vadd.f32 0.0, %v4768
  %v4770 = vpop.f32.mrf.mxu0
  %v4771 = vadd.f32 0.0, %v4770
  %4772 = vmatmul.bf16.gmra.mxu0 %v4645
  %v4773 = vpop.f32.mrf.mxu0
  %v4774 = vadd.f32 0.0, %v4773
  %v4775 = vpop.f32.mrf.mxu0
  %v4776 = vadd.f32 0.0, %v4775
  %4777 = vmatmul.bf16.gmra.mxu0 %v4648
  %v4778 = vpop.f32.mrf.mxu0
  %v4779 = vadd.f32 0.0, %v4778
  %v4780 = vpop.f32.mrf.mxu0
  %v4781 = vadd.f32 0.0, %v4780
  %4782 = vmatmul.bf16.gmra.mxu0 %v4651
  %v4783 = vpop.f32.mrf.mxu0
  %v4784 = vadd.f32 0.0, %v4783
  %v4785 = vpop.f32.mrf.mxu0
  %v4786 = vadd.f32 0.0, %v4785
  %4787 = vmatmul.bf16.gmra.mxu0 %v4654
  %v4788 = vpop.f32.mrf.mxu0
  %v4789 = vadd.f32 0.0, %v4788
  %v4790 = vpop.f32.mrf.mxu0
  %v4791 = vadd.f32 0.0, %v4790
  %4792 = vmatmul.bf16.gmra.mxu0 %v4657
  %v4793 = vpop.f32.mrf.mxu0
  %v4794 = vadd.f32 0.0, %v4793
  %v4795 = vpop.f32.mrf.mxu0
  %v4796 = vadd.f32 0.0, %v4795
  %4797 = vmatmul.bf16.gmra.mxu0 %v4660
  %v4798 = vpop.f32.mrf.mxu0
  %v4799 = vadd.f32 0.0, %v4798
  %v4800 = vpop.f32.mrf.mxu0
  %v4801 = vadd.f32 0.0, %v4800
  %4802 = vmatmul.bf16.gmra.mxu0 %v4663
  %v4803 = vpop.f32.mrf.mxu0
  %v4804 = vadd.f32 0.0, %v4803
  %v4805 = vpop.f32.mrf.mxu0
  %v4806 = vadd.f32 0.0, %v4805
  %4807 = vmatmul.bf16.gmra.mxu0 %v4666
  %v4808 = vpop.f32.mrf.mxu0
  %v4809 = vadd.f32 0.0, %v4808
  %v4810 = vpop.f32.mrf.mxu0
  %v4811 = vadd.f32 0.0, %v4810
  %4812 = vmatmul.bf16.gmra.mxu0 %v4669
  %v4813 = vpop.f32.mrf.mxu0
  %v4814 = vadd.f32 0.0, %v4813
  %v4815 = vpop.f32.mrf.mxu0
  %v4816 = vadd.f32 0.0, %v4815
  %4817 = vmatmul.bf16.gmra.mxu0 %v4672
  %v4818 = vpop.f32.mrf.mxu0
  %v4819 = vadd.f32 0.0, %v4818
  %v4820 = vpop.f32.mrf.mxu0
  %v4821 = vadd.f32 0.0, %v4820
  %4822 = vmatmul.bf16.gmra.mxu0 %v4675
  %v4823 = vpop.f32.mrf.mxu0
  %v4824 = vadd.f32 0.0, %v4823
  %v4825 = vpop.f32.mrf.mxu0
  %v4826 = vadd.f32 0.0, %v4825
  %4827 = vmatmul.bf16.gmra.mxu0 %v4678
  %v4828 = vpop.f32.mrf.mxu0
  %v4829 = vadd.f32 0.0, %v4828
  %v4830 = vpop.f32.mrf.mxu0
  %v4831 = vadd.f32 0.0, %v4830
  %4832 = vmatmul.bf16.gmra.mxu0 %v4681
  %v4833 = vpop.f32.mrf.mxu0
  %v4834 = vadd.f32 0.0, %v4833
  %v4835 = vpop.f32.mrf.mxu0
  %v4836 = vadd.f32 0.0, %v4835
  %4837 = vmatmul.bf16.gmra.mxu0 %v4684
  %v4838 = vpop.f32.mrf.mxu0
  %v4839 = vadd.f32 0.0, %v4838
  %v4840 = vpop.f32.mrf.mxu0
  %v4841 = vadd.f32 0.0, %v4840
  %4842 = vmatmul.bf16.gmra.mxu0 %v4687
  %v4843 = vpop.f32.mrf.mxu0
  %v4844 = vadd.f32 0.0, %v4843
  %v4845 = vpop.f32.mrf.mxu0
  %v4846 = vadd.f32 0.0, %v4845
  %4847 = vmatmul.bf16.gmra.mxu0 %v4690
  %v4848 = vpop.f32.mrf.mxu0
  %v4849 = vadd.f32 0.0, %v4848
  %v4850 = vpop.f32.mrf.mxu0
  %v4851 = vadd.f32 0.0, %v4850
  %4852 = vmatmul.bf16.gmra.mxu0 %v4693
  %v4853 = vpop.f32.mrf.mxu0
  %v4854 = vadd.f32 0.0, %v4853
  %v4855 = vpop.f32.mrf.mxu0
  %v4856 = vadd.f32 0.0, %v4855
  %4857 = vmatmul.bf16.gmra.mxu0 %v4696
  %v4858 = vpop.f32.mrf.mxu0
  %v4859 = vadd.f32 0.0, %v4858
  %v4860 = vpop.f32.mrf.mxu0
  %v4861 = vadd.f32 0.0, %v4860
  %4862 = vmatmul.bf16.gmra.mxu0 %v4699
  %v4863 = vpop.f32.mrf.mxu0
  %v4864 = vadd.f32 0.0, %v4863
  %v4865 = vpop.f32.mrf.mxu0
  %v4866 = vadd.f32 0.0, %v4865
  %4867 = vmatmul.bf16.gmra.mxu0 %v4702
  %v4868 = vpop.f32.mrf.mxu0
  %v4869 = vadd.f32 0.0, %v4868
  %v4870 = vpop.f32.mrf.mxu0
  %v4871 = vadd.f32 0.0, %v4870
  %4872 = vdwg.mxu0
  %v4877 = vunpack.c.l.b16 %v4583
  %v4878 = vunpack.c.l.b16 %v4584
  %v4879 = vunpack.c.l.b16 %v4585
  %v4880 = vunpack.c.l.b16 %v4586
  %v4881 = vpack.c.b16 %v4878, %v4877
  %v4882 = vpack.c.b16 %v4880, %v4879
  %v4885 = vsel %vm3004, 0, 0
  %4887 = vmatpush.bf16.msra.mxu0 0
  %4888 = vmatpush.bf16.msra.mxu0 0
  %4889 = vmatpush.bf16.msra.mxu0 0
  %4890 = vmatpush.bf16.msra.mxu0 0
  %4891 = vmatpush.bf16.msra.mxu0 0
  %4892 = vmatpush.bf16.msra.mxu0 0
  %4893 = vmatpush.bf16.msra.mxu0 %v4882
  %4894 = vmatpush.bf16.msra.mxu0 %v4881
  %4895 = vmatmul.bf16.gmra.mxu0 %v4885
  %v4896 = vpop.f32.mrf.mxu0
  %v4897 = vadd.f32 %v4714, %v4896
  %v4898 = vpop.f32.mrf.mxu0
  %v4899 = vadd.f32 %v4716, %v4898
  %4900 = vmatmul.bf16.gmra.mxu0 %v4609
  %v4901 = vpop.f32.mrf.mxu0
  %v4902 = vadd.f32 %v4719, %v4901
  %v4903 = vpop.f32.mrf.mxu0
  %v4904 = vadd.f32 %v4721, %v4903
  %4905 = vmatmul.bf16.gmra.mxu0 %v4612
  %v4906 = vpop.f32.mrf.mxu0
  %v4907 = vadd.f32 %v4724, %v4906
  %v4908 = vpop.f32.mrf.mxu0
  %v4909 = vadd.f32 %v4726, %v4908
  %4910 = vmatmul.bf16.gmra.mxu0 %v4615
  %v4911 = vpop.f32.mrf.mxu0
  %v4912 = vadd.f32 %v4729, %v4911
  %v4913 = vpop.f32.mrf.mxu0
  %v4914 = vadd.f32 %v4731, %v4913
  %4915 = vmatmul.bf16.gmra.mxu0 %v4618
  %v4916 = vpop.f32.mrf.mxu0
  %v4917 = vadd.f32 %v4734, %v4916
  %v4918 = vpop.f32.mrf.mxu0
  %v4919 = vadd.f32 %v4736, %v4918
  %4920 = vmatmul.bf16.gmra.mxu0 %v4621
  %v4921 = vpop.f32.mrf.mxu0
  %v4922 = vadd.f32 %v4739, %v4921
  %v4923 = vpop.f32.mrf.mxu0
  %v4924 = vadd.f32 %v4741, %v4923
  %4925 = vmatmul.bf16.gmra.mxu0 %v4624
  %v4926 = vpop.f32.mrf.mxu0
  %v4927 = vadd.f32 %v4744, %v4926
  %v4928 = vpop.f32.mrf.mxu0
  %v4929 = vadd.f32 %v4746, %v4928
  %4930 = vmatmul.bf16.gmra.mxu0 %v4627
  %v4931 = vpop.f32.mrf.mxu0
  %v4932 = vadd.f32 %v4749, %v4931
  %v4933 = vpop.f32.mrf.mxu0
  %v4934 = vadd.f32 %v4751, %v4933
  %4935 = vmatmul.bf16.gmra.mxu0 %v4630
  %v4936 = vpop.f32.mrf.mxu0
  %v4937 = vadd.f32 %v4754, %v4936
  %v4938 = vpop.f32.mrf.mxu0
  %v4939 = vadd.f32 %v4756, %v4938
  %4940 = vmatmul.bf16.gmra.mxu0 %v4633
  %v4941 = vpop.f32.mrf.mxu0
  %v4942 = vadd.f32 %v4759, %v4941
  %v4943 = vpop.f32.mrf.mxu0
  %v4944 = vadd.f32 %v4761, %v4943
  %4945 = vmatmul.bf16.gmra.mxu0 %v4636
  %v4946 = vpop.f32.mrf.mxu0
  %v4947 = vadd.f32 %v4764, %v4946
  %v4948 = vpop.f32.mrf.mxu0
  %v4949 = vadd.f32 %v4766, %v4948
  %4950 = vmatmul.bf16.gmra.mxu0 %v4639
  %v4951 = vpop.f32.mrf.mxu0
  %v4952 = vadd.f32 %v4769, %v4951
  %v4953 = vpop.f32.mrf.mxu0
  %v4954 = vadd.f32 %v4771, %v4953
  %4955 = vmatmul.bf16.gmra.mxu0 %v4642
  %v4956 = vpop.f32.mrf.mxu0
  %v4957 = vadd.f32 %v4774, %v4956
  %v4958 = vpop.f32.mrf.mxu0
  %v4959 = vadd.f32 %v4776, %v4958
  %4960 = vmatmul.bf16.gmra.mxu0 %v4645
  %v4961 = vpop.f32.mrf.mxu0
  %v4962 = vadd.f32 %v4779, %v4961
  %v4963 = vpop.f32.mrf.mxu0
  %v4964 = vadd.f32 %v4781, %v4963
  %4965 = vmatmul.bf16.gmra.mxu0 %v4648
  %v4966 = vpop.f32.mrf.mxu0
  %v4967 = vadd.f32 %v4784, %v4966
  %v4968 = vpop.f32.mrf.mxu0
  %v4969 = vadd.f32 %v4786, %v4968
  %4970 = vmatmul.bf16.gmra.mxu0 %v4651
  %v4971 = vpop.f32.mrf.mxu0
  %v4972 = vadd.f32 %v4789, %v4971
  %v4973 = vpop.f32.mrf.mxu0
  %v4974 = vadd.f32 %v4791, %v4973
  %4975 = vmatmul.bf16.gmra.mxu0 %v4885
  %v4976 = vpop.f32.mrf.mxu0
  %v4977 = vadd.f32 %v4794, %v4976
  %v4978 = vpop.f32.mrf.mxu0
  %v4979 = vadd.f32 %v4796, %v4978
  %4980 = vmatmul.bf16.gmra.mxu0 %v4657
  %v4981 = vpop.f32.mrf.mxu0
  %v4982 = vadd.f32 %v4799, %v4981
  %v4983 = vpop.f32.mrf.mxu0
  %v4984 = vadd.f32 %v4801, %v4983
  %4985 = vmatmul.bf16.gmra.mxu0 %v4660
  %v4986 = vpop.f32.mrf.mxu0
  %v4987 = vadd.f32 %v4804, %v4986
  %v4988 = vpop.f32.mrf.mxu0
  %v4989 = vadd.f32 %v4806, %v4988
  %4990 = vmatmul.bf16.gmra.mxu0 %v4663
  %v4991 = vpop.f32.mrf.mxu0
  %v4992 = vadd.f32 %v4809, %v4991
  %v4993 = vpop.f32.mrf.mxu0
  %v4994 = vadd.f32 %v4811, %v4993
  %4995 = vmatmul.bf16.gmra.mxu0 %v4666
  %v4996 = vpop.f32.mrf.mxu0
  %v4997 = vadd.f32 %v4814, %v4996
  %v4998 = vpop.f32.mrf.mxu0
  %v4999 = vadd.f32 %v4816, %v4998
  %5000 = vmatmul.bf16.gmra.mxu0 %v4669
  %v5001 = vpop.f32.mrf.mxu0
  %v5002 = vadd.f32 %v4819, %v5001
  %v5003 = vpop.f32.mrf.mxu0
  %v5004 = vadd.f32 %v4821, %v5003
  %5005 = vmatmul.bf16.gmra.mxu0 %v4672
  %v5006 = vpop.f32.mrf.mxu0
  %v5007 = vadd.f32 %v4824, %v5006
  %v5008 = vpop.f32.mrf.mxu0
  %v5009 = vadd.f32 %v4826, %v5008
  %5010 = vmatmul.bf16.gmra.mxu0 %v4675
  %v5011 = vpop.f32.mrf.mxu0
  %v5012 = vadd.f32 %v4829, %v5011
  %v5013 = vpop.f32.mrf.mxu0
  %v5014 = vadd.f32 %v4831, %v5013
  %5015 = vmatmul.bf16.gmra.mxu0 %v4678
  %v5016 = vpop.f32.mrf.mxu0
  %v5017 = vadd.f32 %v4834, %v5016
  %v5018 = vpop.f32.mrf.mxu0
  %v5019 = vadd.f32 %v4836, %v5018
  %5020 = vmatmul.bf16.gmra.mxu0 %v4681
  %v5021 = vpop.f32.mrf.mxu0
  %v5022 = vadd.f32 %v4839, %v5021
  %v5023 = vpop.f32.mrf.mxu0
  %v5024 = vadd.f32 %v4841, %v5023
  %5025 = vmatmul.bf16.gmra.mxu0 %v4684
  %v5026 = vpop.f32.mrf.mxu0
  %v5027 = vadd.f32 %v4844, %v5026
  %v5028 = vpop.f32.mrf.mxu0
  %v5029 = vadd.f32 %v4846, %v5028
  %5030 = vmatmul.bf16.gmra.mxu0 %v4687
  %v5031 = vpop.f32.mrf.mxu0
  %v5032 = vadd.f32 %v4849, %v5031
  %v5033 = vpop.f32.mrf.mxu0
  %v5034 = vadd.f32 %v4851, %v5033
  %5035 = vmatmul.bf16.gmra.mxu0 %v4690
  %v5036 = vpop.f32.mrf.mxu0
  %v5037 = vadd.f32 %v4854, %v5036
  %v5038 = vpop.f32.mrf.mxu0
  %v5039 = vadd.f32 %v4856, %v5038
  %5040 = vmatmul.bf16.gmra.mxu0 %v4693
  %v5041 = vpop.f32.mrf.mxu0
  %v5042 = vadd.f32 %v4859, %v5041
  %v5043 = vpop.f32.mrf.mxu0
  %v5044 = vadd.f32 %v4861, %v5043
  %5045 = vmatmul.bf16.gmra.mxu0 %v4696
  %v5046 = vpop.f32.mrf.mxu0
  %v5047 = vadd.f32 %v4864, %v5046
  %v5048 = vpop.f32.mrf.mxu0
  %v5049 = vadd.f32 %v4866, %v5048
  %5050 = vmatmul.bf16.gmra.mxu0 %v4699
  %v5051 = vpop.f32.mrf.mxu0
  %v5052 = vadd.f32 %v4869, %v5051
  %v5053 = vpop.f32.mrf.mxu0
  %v5054 = vadd.f32 %v4871, %v5053
  %5055 = vdwg.mxu0
  %s5056 = scalar_lea.vmem %s8, 16
  %v5057 = vld [vmem:[%s5056] sm:$0xf]
  %v5058 = vld [vmem:[%s5056 + $0x4] sm:$0xf]
  %v5059 = vld [vmem:[%s5056 + $0x8] sm:$0xf]
  %v5060 = vld [vmem:[%s5056 + $0xc] sm:$0xf]
  %v5065 = vunpack.c.l.b16 %v5057
  %v5066 = vunpack.c.l.b16 %v5058
  %v5067 = vunpack.c.l.b16 %v5059
  %v5068 = vunpack.c.l.b16 %v5060
  %v5069 = vpack.c.b16 %v5066, %v5065
  %v5070 = vpack.c.b16 %v5068, %v5067
  %5073 = vmatpush.bf16.msra.mxu0 0
  %5074 = vmatpush.bf16.msra.mxu0 0
  %5075 = vmatpush.bf16.msra.mxu0 0
  %5076 = vmatpush.bf16.msra.mxu0 0
  %5077 = vmatpush.bf16.msra.mxu0 0
  %5078 = vmatpush.bf16.msra.mxu0 0
  %5079 = vmatpush.bf16.msra.mxu0 %v5070
  %5080 = vmatpush.bf16.msra.mxu0 %v5069
  %5081 = vmatmul.bf16.gmra.mxu0 %v4609
  %v5082 = vpop.f32.mrf.mxu0
  %v5083 = vadd.f32 0.0, %v5082
  %v5084 = vpop.f32.mrf.mxu0
  %v5085 = vadd.f32 0.0, %v5084
  %5086 = vmatmul.bf16.gmra.mxu0 %v4612
  %v5087 = vpop.f32.mrf.mxu0
  %v5088 = vadd.f32 0.0, %v5087
  %v5089 = vpop.f32.mrf.mxu0
  %v5090 = vadd.f32 0.0, %v5089
  %5091 = vmatmul.bf16.gmra.mxu0 %v4615
  %v5092 = vpop.f32.mrf.mxu0
  %v5093 = vadd.f32 0.0, %v5092
  %v5094 = vpop.f32.mrf.mxu0
  %v5095 = vadd.f32 0.0, %v5094
  %5096 = vmatmul.bf16.gmra.mxu0 %v4618
  %v5097 = vpop.f32.mrf.mxu0
  %v5098 = vadd.f32 0.0, %v5097
  %v5099 = vpop.f32.mrf.mxu0
  %v5100 = vadd.f32 0.0, %v5099
  %5101 = vmatmul.bf16.gmra.mxu0 %v4621
  %v5102 = vpop.f32.mrf.mxu0
  %v5103 = vadd.f32 0.0, %v5102
  %v5104 = vpop.f32.mrf.mxu0
  %v5105 = vadd.f32 0.0, %v5104
  %5106 = vmatmul.bf16.gmra.mxu0 %v4624
  %v5107 = vpop.f32.mrf.mxu0
  %v5108 = vadd.f32 0.0, %v5107
  %v5109 = vpop.f32.mrf.mxu0
  %v5110 = vadd.f32 0.0, %v5109
  %5111 = vmatmul.bf16.gmra.mxu0 %v4627
  %v5112 = vpop.f32.mrf.mxu0
  %v5113 = vadd.f32 0.0, %v5112
  %v5114 = vpop.f32.mrf.mxu0
  %v5115 = vadd.f32 0.0, %v5114
  %5116 = vmatmul.bf16.gmra.mxu0 %v4630
  %v5117 = vpop.f32.mrf.mxu0
  %v5118 = vadd.f32 0.0, %v5117
  %v5119 = vpop.f32.mrf.mxu0
  %v5120 = vadd.f32 0.0, %v5119
  %5121 = vmatmul.bf16.gmra.mxu0 %v4633
  %v5122 = vpop.f32.mrf.mxu0
  %v5123 = vadd.f32 0.0, %v5122
  %v5124 = vpop.f32.mrf.mxu0
  %v5125 = vadd.f32 0.0, %v5124
  %5126 = vmatmul.bf16.gmra.mxu0 %v4636
  %v5127 = vpop.f32.mrf.mxu0
  %v5128 = vadd.f32 0.0, %v5127
  %v5129 = vpop.f32.mrf.mxu0
  %v5130 = vadd.f32 0.0, %v5129
  %5131 = vmatmul.bf16.gmra.mxu0 %v4639
  %v5132 = vpop.f32.mrf.mxu0
  %v5133 = vadd.f32 0.0, %v5132
  %v5134 = vpop.f32.mrf.mxu0
  %v5135 = vadd.f32 0.0, %v5134
  %5136 = vmatmul.bf16.gmra.mxu0 %v4642
  %v5137 = vpop.f32.mrf.mxu0
  %v5138 = vadd.f32 0.0, %v5137
  %v5139 = vpop.f32.mrf.mxu0
  %v5140 = vadd.f32 0.0, %v5139
  %5141 = vmatmul.bf16.gmra.mxu0 %v4645
  %v5142 = vpop.f32.mrf.mxu0
  %v5143 = vadd.f32 0.0, %v5142
  %v5144 = vpop.f32.mrf.mxu0
  %v5145 = vadd.f32 0.0, %v5144
  %5146 = vmatmul.bf16.gmra.mxu0 %v4648
  %v5147 = vpop.f32.mrf.mxu0
  %v5148 = vadd.f32 0.0, %v5147
  %v5149 = vpop.f32.mrf.mxu0
  %v5150 = vadd.f32 0.0, %v5149
  %5151 = vmatmul.bf16.gmra.mxu0 %v4651
  %v5152 = vpop.f32.mrf.mxu0
  %v5153 = vadd.f32 0.0, %v5152
  %v5154 = vpop.f32.mrf.mxu0
  %v5155 = vadd.f32 0.0, %v5154
  %5156 = vmatmul.bf16.gmra.mxu0 %v4654
  %v5157 = vpop.f32.mrf.mxu0
  %v5158 = vadd.f32 0.0, %v5157
  %v5159 = vpop.f32.mrf.mxu0
  %v5160 = vadd.f32 0.0, %v5159
  %5161 = vmatmul.bf16.gmra.mxu0 %v4657
  %v5162 = vpop.f32.mrf.mxu0
  %v5163 = vadd.f32 0.0, %v5162
  %v5164 = vpop.f32.mrf.mxu0
  %v5165 = vadd.f32 0.0, %v5164
  %5166 = vmatmul.bf16.gmra.mxu0 %v4660
  %v5167 = vpop.f32.mrf.mxu0
  %v5168 = vadd.f32 0.0, %v5167
  %v5169 = vpop.f32.mrf.mxu0
  %v5170 = vadd.f32 0.0, %v5169
  %5171 = vmatmul.bf16.gmra.mxu0 %v4663
  %v5172 = vpop.f32.mrf.mxu0
  %v5173 = vadd.f32 0.0, %v5172
  %v5174 = vpop.f32.mrf.mxu0
  %v5175 = vadd.f32 0.0, %v5174
  %5176 = vmatmul.bf16.gmra.mxu0 %v4666
  %v5177 = vpop.f32.mrf.mxu0
  %v5178 = vadd.f32 0.0, %v5177
  %v5179 = vpop.f32.mrf.mxu0
  %v5180 = vadd.f32 0.0, %v5179
  %5181 = vmatmul.bf16.gmra.mxu0 %v4669
  %v5182 = vpop.f32.mrf.mxu0
  %v5183 = vadd.f32 0.0, %v5182
  %v5184 = vpop.f32.mrf.mxu0
  %v5185 = vadd.f32 0.0, %v5184
  %5186 = vmatmul.bf16.gmra.mxu0 %v4672
  %v5187 = vpop.f32.mrf.mxu0
  %v5188 = vadd.f32 0.0, %v5187
  %v5189 = vpop.f32.mrf.mxu0
  %v5190 = vadd.f32 0.0, %v5189
  %5191 = vmatmul.bf16.gmra.mxu0 %v4675
  %v5192 = vpop.f32.mrf.mxu0
  %v5193 = vadd.f32 0.0, %v5192
  %v5194 = vpop.f32.mrf.mxu0
  %v5195 = vadd.f32 0.0, %v5194
  %5196 = vmatmul.bf16.gmra.mxu0 %v4678
  %v5197 = vpop.f32.mrf.mxu0
  %v5198 = vadd.f32 0.0, %v5197
  %v5199 = vpop.f32.mrf.mxu0
  %v5200 = vadd.f32 0.0, %v5199
  %5201 = vmatmul.bf16.gmra.mxu0 %v4681
  %v5202 = vpop.f32.mrf.mxu0
  %v5203 = vadd.f32 0.0, %v5202
  %v5204 = vpop.f32.mrf.mxu0
  %v5205 = vadd.f32 0.0, %v5204
  %5206 = vmatmul.bf16.gmra.mxu0 %v4684
  %v5207 = vpop.f32.mrf.mxu0
  %v5208 = vadd.f32 0.0, %v5207
  %v5209 = vpop.f32.mrf.mxu0
  %v5210 = vadd.f32 0.0, %v5209
  %5211 = vmatmul.bf16.gmra.mxu0 %v4687
  %v5212 = vpop.f32.mrf.mxu0
  %v5213 = vadd.f32 0.0, %v5212
  %v5214 = vpop.f32.mrf.mxu0
  %v5215 = vadd.f32 0.0, %v5214
  %5216 = vmatmul.bf16.gmra.mxu0 %v4690
  %v5217 = vpop.f32.mrf.mxu0
  %v5218 = vadd.f32 0.0, %v5217
  %v5219 = vpop.f32.mrf.mxu0
  %v5220 = vadd.f32 0.0, %v5219
  %5221 = vmatmul.bf16.gmra.mxu0 %v4693
  %v5222 = vpop.f32.mrf.mxu0
  %v5223 = vadd.f32 0.0, %v5222
  %v5224 = vpop.f32.mrf.mxu0
  %v5225 = vadd.f32 0.0, %v5224
  %5226 = vmatmul.bf16.gmra.mxu0 %v4696
  %v5227 = vpop.f32.mrf.mxu0
  %v5228 = vadd.f32 0.0, %v5227
  %v5229 = vpop.f32.mrf.mxu0
  %v5230 = vadd.f32 0.0, %v5229
  %5231 = vmatmul.bf16.gmra.mxu0 %v4699
  %v5232 = vpop.f32.mrf.mxu0
  %v5233 = vadd.f32 0.0, %v5232
  %v5234 = vpop.f32.mrf.mxu0
  %v5235 = vadd.f32 0.0, %v5234
  %5236 = vmatmul.bf16.gmra.mxu0 %v4702
  %v5237 = vpop.f32.mrf.mxu0
  %v5238 = vadd.f32 0.0, %v5237
  %v5239 = vpop.f32.mrf.mxu0
  %v5240 = vadd.f32 0.0, %v5239
  %5241 = vdwg.mxu0
  %v5246 = vunpack.c.l.b16 %v4587
  %v5247 = vunpack.c.l.b16 %v4588
  %v5248 = vunpack.c.l.b16 %v4589
  %v5249 = vunpack.c.l.b16 %v4590
  %v5250 = vpack.c.b16 %v5247, %v5246
  %v5251 = vpack.c.b16 %v5249, %v5248
  %5254 = vmatpush.bf16.msra.mxu0 0
  %5255 = vmatpush.bf16.msra.mxu0 0
  %5256 = vmatpush.bf16.msra.mxu0 0
  %5257 = vmatpush.bf16.msra.mxu0 0
  %5258 = vmatpush.bf16.msra.mxu0 0
  %5259 = vmatpush.bf16.msra.mxu0 0
  %5260 = vmatpush.bf16.msra.mxu0 %v5251
  %5261 = vmatpush.bf16.msra.mxu0 %v5250
  %5262 = vmatmul.bf16.gmra.mxu0 %v4885
  %v5263 = vpop.f32.mrf.mxu0
  %v5264 = vadd.f32 %v5083, %v5263
  %v5265 = vpop.f32.mrf.mxu0
  %v5266 = vadd.f32 %v5085, %v5265
  %5267 = vmatmul.bf16.gmra.mxu0 %v4609
  %v5268 = vpop.f32.mrf.mxu0
  %v5269 = vadd.f32 %v5088, %v5268
  %v5270 = vpop.f32.mrf.mxu0
  %v5271 = vadd.f32 %v5090, %v5270
  %5272 = vmatmul.bf16.gmra.mxu0 %v4612
  %v5273 = vpop.f32.mrf.mxu0
  %v5274 = vadd.f32 %v5093, %v5273
  %v5275 = vpop.f32.mrf.mxu0
  %v5276 = vadd.f32 %v5095, %v5275
  %5277 = vmatmul.bf16.gmra.mxu0 %v4615
  %v5278 = vpop.f32.mrf.mxu0
  %v5279 = vadd.f32 %v5098, %v5278
  %v5280 = vpop.f32.mrf.mxu0
  %v5281 = vadd.f32 %v5100, %v5280
  %5282 = vmatmul.bf16.gmra.mxu0 %v4618
  %v5283 = vpop.f32.mrf.mxu0
  %v5284 = vadd.f32 %v5103, %v5283
  %v5285 = vpop.f32.mrf.mxu0
  %v5286 = vadd.f32 %v5105, %v5285
  %5287 = vmatmul.bf16.gmra.mxu0 %v4621
  %v5288 = vpop.f32.mrf.mxu0
  %v5289 = vadd.f32 %v5108, %v5288
  %v5290 = vpop.f32.mrf.mxu0
  %v5291 = vadd.f32 %v5110, %v5290
  %5292 = vmatmul.bf16.gmra.mxu0 %v4624
  %v5293 = vpop.f32.mrf.mxu0
  %v5294 = vadd.f32 %v5113, %v5293
  %v5295 = vpop.f32.mrf.mxu0
  %v5296 = vadd.f32 %v5115, %v5295
  %5297 = vmatmul.bf16.gmra.mxu0 %v4627
  %v5298 = vpop.f32.mrf.mxu0
  %v5299 = vadd.f32 %v5118, %v5298
  %v5300 = vpop.f32.mrf.mxu0
  %v5301 = vadd.f32 %v5120, %v5300
  %5302 = vmatmul.bf16.gmra.mxu0 %v4630
  %v5303 = vpop.f32.mrf.mxu0
  %v5304 = vadd.f32 %v5123, %v5303
  %v5305 = vpop.f32.mrf.mxu0
  %v5306 = vadd.f32 %v5125, %v5305
  %5307 = vmatmul.bf16.gmra.mxu0 %v4633
  %v5308 = vpop.f32.mrf.mxu0
  %v5309 = vadd.f32 %v5128, %v5308
  %v5310 = vpop.f32.mrf.mxu0
  %v5311 = vadd.f32 %v5130, %v5310
  %5312 = vmatmul.bf16.gmra.mxu0 %v4636
  %v5313 = vpop.f32.mrf.mxu0
  %v5314 = vadd.f32 %v5133, %v5313
  %v5315 = vpop.f32.mrf.mxu0
  %v5316 = vadd.f32 %v5135, %v5315
  %5317 = vmatmul.bf16.gmra.mxu0 %v4639
  %v5318 = vpop.f32.mrf.mxu0
  %v5319 = vadd.f32 %v5138, %v5318
  %v5320 = vpop.f32.mrf.mxu0
  %v5321 = vadd.f32 %v5140, %v5320
  %5322 = vmatmul.bf16.gmra.mxu0 %v4642
  %v5323 = vpop.f32.mrf.mxu0
  %v5324 = vadd.f32 %v5143, %v5323
  %v5325 = vpop.f32.mrf.mxu0
  %v5326 = vadd.f32 %v5145, %v5325
  %5327 = vmatmul.bf16.gmra.mxu0 %v4645
  %v5328 = vpop.f32.mrf.mxu0
  %v5329 = vadd.f32 %v5148, %v5328
  %v5330 = vpop.f32.mrf.mxu0
  %v5331 = vadd.f32 %v5150, %v5330
  %5332 = vmatmul.bf16.gmra.mxu0 %v4648
  %v5333 = vpop.f32.mrf.mxu0
  %v5334 = vadd.f32 %v5153, %v5333
  %v5335 = vpop.f32.mrf.mxu0
  %v5336 = vadd.f32 %v5155, %v5335
  %5337 = vmatmul.bf16.gmra.mxu0 %v4651
  %v5338 = vpop.f32.mrf.mxu0
  %v5339 = vadd.f32 %v5158, %v5338
  %v5340 = vpop.f32.mrf.mxu0
  %v5341 = vadd.f32 %v5160, %v5340
  %5342 = vmatmul.bf16.gmra.mxu0 %v4885
  %v5343 = vpop.f32.mrf.mxu0
  %v5344 = vadd.f32 %v5163, %v5343
  %v5345 = vpop.f32.mrf.mxu0
  %v5346 = vadd.f32 %v5165, %v5345
  %5347 = vmatmul.bf16.gmra.mxu0 %v4657
  %v5348 = vpop.f32.mrf.mxu0
  %v5349 = vadd.f32 %v5168, %v5348
  %v5350 = vpop.f32.mrf.mxu0
  %v5351 = vadd.f32 %v5170, %v5350
  %5352 = vmatmul.bf16.gmra.mxu0 %v4660
  %v5353 = vpop.f32.mrf.mxu0
  %v5354 = vadd.f32 %v5173, %v5353
  %v5355 = vpop.f32.mrf.mxu0
  %v5356 = vadd.f32 %v5175, %v5355
  %5357 = vmatmul.bf16.gmra.mxu0 %v4663
  %v5358 = vpop.f32.mrf.mxu0
  %v5359 = vadd.f32 %v5178, %v5358
  %v5360 = vpop.f32.mrf.mxu0
  %v5361 = vadd.f32 %v5180, %v5360
  %5362 = vmatmul.bf16.gmra.mxu0 %v4666
  %v5363 = vpop.f32.mrf.mxu0
  %v5364 = vadd.f32 %v5183, %v5363
  %v5365 = vpop.f32.mrf.mxu0
  %v5366 = vadd.f32 %v5185, %v5365
  %5367 = vmatmul.bf16.gmra.mxu0 %v4669
  %v5368 = vpop.f32.mrf.mxu0
  %v5369 = vadd.f32 %v5188, %v5368
  %v5370 = vpop.f32.mrf.mxu0
  %v5371 = vadd.f32 %v5190, %v5370
  %5372 = vmatmul.bf16.gmra.mxu0 %v4672
  %v5373 = vpop.f32.mrf.mxu0
  %v5374 = vadd.f32 %v5193, %v5373
  %v5375 = vpop.f32.mrf.mxu0
  %v5376 = vadd.f32 %v5195, %v5375
  %5377 = vmatmul.bf16.gmra.mxu0 %v4675
  %v5378 = vpop.f32.mrf.mxu0
  %v5379 = vadd.f32 %v5198, %v5378
  %v5380 = vpop.f32.mrf.mxu0
  %v5381 = vadd.f32 %v5200, %v5380
  %5382 = vmatmul.bf16.gmra.mxu0 %v4678
  %v5383 = vpop.f32.mrf.mxu0
  %v5384 = vadd.f32 %v5203, %v5383
  %v5385 = vpop.f32.mrf.mxu0
  %v5386 = vadd.f32 %v5205, %v5385
  %5387 = vmatmul.bf16.gmra.mxu0 %v4681
  %v5388 = vpop.f32.mrf.mxu0
  %v5389 = vadd.f32 %v5208, %v5388
  %v5390 = vpop.f32.mrf.mxu0
  %v5391 = vadd.f32 %v5210, %v5390
  %5392 = vmatmul.bf16.gmra.mxu0 %v4684
  %v5393 = vpop.f32.mrf.mxu0
  %v5394 = vadd.f32 %v5213, %v5393
  %v5395 = vpop.f32.mrf.mxu0
  %v5396 = vadd.f32 %v5215, %v5395
  %5397 = vmatmul.bf16.gmra.mxu0 %v4687
  %v5398 = vpop.f32.mrf.mxu0
  %v5399 = vadd.f32 %v5218, %v5398
  %v5400 = vpop.f32.mrf.mxu0
  %v5401 = vadd.f32 %v5220, %v5400
  %5402 = vmatmul.bf16.gmra.mxu0 %v4690
  %v5403 = vpop.f32.mrf.mxu0
  %v5404 = vadd.f32 %v5223, %v5403
  %v5405 = vpop.f32.mrf.mxu0
  %v5406 = vadd.f32 %v5225, %v5405
  %5407 = vmatmul.bf16.gmra.mxu0 %v4693
  %v5408 = vpop.f32.mrf.mxu0
  %v5409 = vadd.f32 %v5228, %v5408
  %v5410 = vpop.f32.mrf.mxu0
  %v5411 = vadd.f32 %v5230, %v5410
  %5412 = vmatmul.bf16.gmra.mxu0 %v4696
  %v5413 = vpop.f32.mrf.mxu0
  %v5414 = vadd.f32 %v5233, %v5413
  %v5415 = vpop.f32.mrf.mxu0
  %v5416 = vadd.f32 %v5235, %v5415
  %5417 = vmatmul.bf16.gmra.mxu0 %v4699
  %v5418 = vpop.f32.mrf.mxu0
  %v5419 = vadd.f32 %v5238, %v5418
  %v5420 = vpop.f32.mrf.mxu0
  %v5421 = vadd.f32 %v5240, %v5420
  %5422 = vdwg.mxu0
  %s5423 = scalar_lea.vmem %s7, 32
  %v5424 = vld [vmem:[%s5423] sm:$0xf]
  %v5425 = vld [vmem:[%s5423 + $0x4] sm:$0xf]
  %v5426 = vld [vmem:[%s5423 + $0x8] sm:$0xf]
  %v5427 = vld [vmem:[%s5423 + $0xc] sm:$0xf]
  %v5432 = vunpack.c.l.b16 %v5424
  %v5433 = vunpack.c.l.b16 %v5425
  %v5434 = vunpack.c.l.b16 %v5426
  %v5435 = vunpack.c.l.b16 %v5427
  %v5436 = vpack.c.b16 %v5433, %v5432
  %v5437 = vpack.c.b16 %v5435, %v5434
  %5440 = vmatpush.bf16.msra.mxu0 0
  %5441 = vmatpush.bf16.msra.mxu0 0
  %5442 = vmatpush.bf16.msra.mxu0 0
  %5443 = vmatpush.bf16.msra.mxu0 0
  %5444 = vmatpush.bf16.msra.mxu0 0
  %5445 = vmatpush.bf16.msra.mxu0 0
  %5446 = vmatpush.bf16.msra.mxu0 %v5437
  %5447 = vmatpush.bf16.msra.mxu0 %v5436
  %5448 = vmatmul.bf16.gmra.mxu0 %v4612
  %v5449 = vpop.f32.mrf.mxu0
  %v5450 = vadd.f32 0.0, %v5449
  %v5451 = vpop.f32.mrf.mxu0
  %v5452 = vadd.f32 0.0, %v5451
  %5453 = vmatmul.bf16.gmra.mxu0 %v4615
  %v5454 = vpop.f32.mrf.mxu0
  %v5455 = vadd.f32 0.0, %v5454
  %v5456 = vpop.f32.mrf.mxu0
  %v5457 = vadd.f32 0.0, %v5456
  %5458 = vmatmul.bf16.gmra.mxu0 %v4618
  %v5459 = vpop.f32.mrf.mxu0
  %v5460 = vadd.f32 0.0, %v5459
  %v5461 = vpop.f32.mrf.mxu0
  %v5462 = vadd.f32 0.0, %v5461
  %5463 = vmatmul.bf16.gmra.mxu0 %v4621
  %v5464 = vpop.f32.mrf.mxu0
  %v5465 = vadd.f32 0.0, %v5464
  %v5466 = vpop.f32.mrf.mxu0
  %v5467 = vadd.f32 0.0, %v5466
  %5468 = vmatmul.bf16.gmra.mxu0 %v4624
  %v5469 = vpop.f32.mrf.mxu0
  %v5470 = vadd.f32 0.0, %v5469
  %v5471 = vpop.f32.mrf.mxu0
  %v5472 = vadd.f32 0.0, %v5471
  %5473 = vmatmul.bf16.gmra.mxu0 %v4627
  %v5474 = vpop.f32.mrf.mxu0
  %v5475 = vadd.f32 0.0, %v5474
  %v5476 = vpop.f32.mrf.mxu0
  %v5477 = vadd.f32 0.0, %v5476
  %5478 = vmatmul.bf16.gmra.mxu0 %v4630
  %v5479 = vpop.f32.mrf.mxu0
  %v5480 = vadd.f32 0.0, %v5479
  %v5481 = vpop.f32.mrf.mxu0
  %v5482 = vadd.f32 0.0, %v5481
  %5483 = vmatmul.bf16.gmra.mxu0 %v4633
  %v5484 = vpop.f32.mrf.mxu0
  %v5485 = vadd.f32 0.0, %v5484
  %v5486 = vpop.f32.mrf.mxu0
  %v5487 = vadd.f32 0.0, %v5486
  %5488 = vmatmul.bf16.gmra.mxu0 %v4636
  %v5489 = vpop.f32.mrf.mxu0
  %v5490 = vadd.f32 0.0, %v5489
  %v5491 = vpop.f32.mrf.mxu0
  %v5492 = vadd.f32 0.0, %v5491
  %5493 = vmatmul.bf16.gmra.mxu0 %v4639
  %v5494 = vpop.f32.mrf.mxu0
  %v5495 = vadd.f32 0.0, %v5494
  %v5496 = vpop.f32.mrf.mxu0
  %v5497 = vadd.f32 0.0, %v5496
  %5498 = vmatmul.bf16.gmra.mxu0 %v4642
  %v5499 = vpop.f32.mrf.mxu0
  %v5500 = vadd.f32 0.0, %v5499
  %v5501 = vpop.f32.mrf.mxu0
  %v5502 = vadd.f32 0.0, %v5501
  %5503 = vmatmul.bf16.gmra.mxu0 %v4645
  %v5504 = vpop.f32.mrf.mxu0
  %v5505 = vadd.f32 0.0, %v5504
  %v5506 = vpop.f32.mrf.mxu0
  %v5507 = vadd.f32 0.0, %v5506
  %5508 = vmatmul.bf16.gmra.mxu0 %v4648
  %v5509 = vpop.f32.mrf.mxu0
  %v5510 = vadd.f32 0.0, %v5509
  %v5511 = vpop.f32.mrf.mxu0
  %v5512 = vadd.f32 0.0, %v5511
  %5513 = vmatmul.bf16.gmra.mxu0 %v4651
  %v5514 = vpop.f32.mrf.mxu0
  %v5515 = vadd.f32 0.0, %v5514
  %v5516 = vpop.f32.mrf.mxu0
  %v5517 = vadd.f32 0.0, %v5516
  %5518 = vmatmul.bf16.gmra.mxu0 %v4654
  %v5519 = vpop.f32.mrf.mxu0
  %v5520 = vadd.f32 0.0, %v5519
  %v5521 = vpop.f32.mrf.mxu0
  %v5522 = vadd.f32 0.0, %v5521
  %5523 = vmatmul.bf16.gmra.mxu0 %v4885
  %v5524 = vpop.f32.mrf.mxu0
  %v5525 = vadd.f32 0.0, %v5524
  %v5526 = vpop.f32.mrf.mxu0
  %v5527 = vadd.f32 0.0, %v5526
  %5528 = vmatmul.bf16.gmra.mxu0 %v4660
  %v5529 = vpop.f32.mrf.mxu0
  %v5530 = vadd.f32 0.0, %v5529
  %v5531 = vpop.f32.mrf.mxu0
  %v5532 = vadd.f32 0.0, %v5531
  %5533 = vmatmul.bf16.gmra.mxu0 %v4663
  %v5534 = vpop.f32.mrf.mxu0
  %v5535 = vadd.f32 0.0, %v5534
  %v5536 = vpop.f32.mrf.mxu0
  %v5537 = vadd.f32 0.0, %v5536
  %5538 = vmatmul.bf16.gmra.mxu0 %v4666
  %v5539 = vpop.f32.mrf.mxu0
  %v5540 = vadd.f32 0.0, %v5539
  %v5541 = vpop.f32.mrf.mxu0
  %v5542 = vadd.f32 0.0, %v5541
  %5543 = vmatmul.bf16.gmra.mxu0 %v4669
  %v5544 = vpop.f32.mrf.mxu0
  %v5545 = vadd.f32 0.0, %v5544
  %v5546 = vpop.f32.mrf.mxu0
  %v5547 = vadd.f32 0.0, %v5546
  %5548 = vmatmul.bf16.gmra.mxu0 %v4672
  %v5549 = vpop.f32.mrf.mxu0
  %v5550 = vadd.f32 0.0, %v5549
  %v5551 = vpop.f32.mrf.mxu0
  %v5552 = vadd.f32 0.0, %v5551
  %5553 = vmatmul.bf16.gmra.mxu0 %v4675
  %v5554 = vpop.f32.mrf.mxu0
  %v5555 = vadd.f32 0.0, %v5554
  %v5556 = vpop.f32.mrf.mxu0
  %v5557 = vadd.f32 0.0, %v5556
  %5558 = vmatmul.bf16.gmra.mxu0 %v4678
  %v5559 = vpop.f32.mrf.mxu0
  %v5560 = vadd.f32 0.0, %v5559
  %v5561 = vpop.f32.mrf.mxu0
  %v5562 = vadd.f32 0.0, %v5561
  %5563 = vmatmul.bf16.gmra.mxu0 %v4681
  %v5564 = vpop.f32.mrf.mxu0
  %v5565 = vadd.f32 0.0, %v5564
  %v5566 = vpop.f32.mrf.mxu0
  %v5567 = vadd.f32 0.0, %v5566
  %5568 = vmatmul.bf16.gmra.mxu0 %v4684
  %v5569 = vpop.f32.mrf.mxu0
  %v5570 = vadd.f32 0.0, %v5569
  %v5571 = vpop.f32.mrf.mxu0
  %v5572 = vadd.f32 0.0, %v5571
  %5573 = vmatmul.bf16.gmra.mxu0 %v4687
  %v5574 = vpop.f32.mrf.mxu0
  %v5575 = vadd.f32 0.0, %v5574
  %v5576 = vpop.f32.mrf.mxu0
  %v5577 = vadd.f32 0.0, %v5576
  %5578 = vmatmul.bf16.gmra.mxu0 %v4690
  %v5579 = vpop.f32.mrf.mxu0
  %v5580 = vadd.f32 0.0, %v5579
  %v5581 = vpop.f32.mrf.mxu0
  %v5582 = vadd.f32 0.0, %v5581
  %5583 = vmatmul.bf16.gmra.mxu0 %v4693
  %v5584 = vpop.f32.mrf.mxu0
  %v5585 = vadd.f32 0.0, %v5584
  %v5586 = vpop.f32.mrf.mxu0
  %v5587 = vadd.f32 0.0, %v5586
  %5588 = vmatmul.bf16.gmra.mxu0 %v4696
  %v5589 = vpop.f32.mrf.mxu0
  %v5590 = vadd.f32 0.0, %v5589
  %v5591 = vpop.f32.mrf.mxu0
  %v5592 = vadd.f32 0.0, %v5591
  %5593 = vmatmul.bf16.gmra.mxu0 %v4699
  %v5594 = vpop.f32.mrf.mxu0
  %v5595 = vadd.f32 0.0, %v5594
  %v5596 = vpop.f32.mrf.mxu0
  %v5597 = vadd.f32 0.0, %v5596
  %5598 = vmatmul.bf16.gmra.mxu0 %v4702
  %v5599 = vpop.f32.mrf.mxu0
  %v5600 = vadd.f32 0.0, %v5599
  %v5601 = vpop.f32.mrf.mxu0
  %v5602 = vadd.f32 0.0, %v5601
  %5603 = vmatmul.bf16.gmra.mxu0 %v4885
  %v5604 = vpop.f32.mrf.mxu0
  %v5605 = vadd.f32 0.0, %v5604
  %v5606 = vpop.f32.mrf.mxu0
  %v5607 = vadd.f32 0.0, %v5606
  %5608 = vdwg.mxu0
  %v5609 = vadd.f32 %v4897, %v5450
  %v5610 = vadd.f32 %v4899, %v5452
  %v5611 = vadd.f32 %v4902, %v5455
  %v5612 = vadd.f32 %v4904, %v5457
  %v5613 = vadd.f32 %v4907, %v5460
  %v5614 = vadd.f32 %v4909, %v5462
  %v5615 = vadd.f32 %v4912, %v5465
  %v5616 = vadd.f32 %v4914, %v5467
  %v5617 = vadd.f32 %v4917, %v5470
  %v5618 = vadd.f32 %v4919, %v5472
  %v5619 = vadd.f32 %v4922, %v5475
  %v5620 = vadd.f32 %v4924, %v5477
  %v5621 = vadd.f32 %v4927, %v5480
  %v5622 = vadd.f32 %v4929, %v5482
  %v5623 = vadd.f32 %v4932, %v5485
  %v5624 = vadd.f32 %v4934, %v5487
  %v5625 = vadd.f32 %v4937, %v5490
  %v5626 = vadd.f32 %v4939, %v5492
  %v5627 = vadd.f32 %v4942, %v5495
  %v5628 = vadd.f32 %v4944, %v5497
  %v5629 = vadd.f32 %v4947, %v5500
  %v5630 = vadd.f32 %v4949, %v5502
  %v5631 = vadd.f32 %v4952, %v5505
  %v5632 = vadd.f32 %v4954, %v5507
  %v5633 = vadd.f32 %v4957, %v5510
  %v5634 = vadd.f32 %v4959, %v5512
  %v5635 = vadd.f32 %v4962, %v5515
  %v5636 = vadd.f32 %v4964, %v5517
  %v5637 = vadd.f32 %v4967, %v5520
  %v5638 = vadd.f32 %v4969, %v5522
  %v5639 = vadd.f32 %v4972, %v5525
  %v5640 = vadd.f32 %v4974, %v5527
  %v5641 = vadd.f32 %v4977, %v5530
  %v5642 = vadd.f32 %v4979, %v5532
  %v5643 = vadd.f32 %v4982, %v5535
  %v5644 = vadd.f32 %v4984, %v5537
  %v5645 = vadd.f32 %v4987, %v5540
  %v5646 = vadd.f32 %v4989, %v5542
  %v5647 = vadd.f32 %v4992, %v5545
  %v5648 = vadd.f32 %v4994, %v5547
  %v5649 = vadd.f32 %v4997, %v5550
  %v5650 = vadd.f32 %v4999, %v5552
  %v5651 = vadd.f32 %v5002, %v5555
  %v5652 = vadd.f32 %v5004, %v5557
  %v5653 = vadd.f32 %v5007, %v5560
  %v5654 = vadd.f32 %v5009, %v5562
  %v5655 = vadd.f32 %v5012, %v5565
  %v5656 = vadd.f32 %v5014, %v5567
  %v5657 = vadd.f32 %v5017, %v5570
  %v5658 = vadd.f32 %v5019, %v5572
  %v5659 = vadd.f32 %v5022, %v5575
  %v5660 = vadd.f32 %v5024, %v5577
  %v5661 = vadd.f32 %v5027, %v5580
  %v5662 = vadd.f32 %v5029, %v5582
  %v5663 = vadd.f32 %v5032, %v5585
  %v5664 = vadd.f32 %v5034, %v5587
  %v5665 = vadd.f32 %v5037, %v5590
  %v5666 = vadd.f32 %v5039, %v5592
  %v5667 = vadd.f32 %v5042, %v5595
  %v5668 = vadd.f32 %v5044, %v5597
  %v5669 = vadd.f32 %v5047, %v5600
  %v5670 = vadd.f32 %v5049, %v5602
  %v5671 = vadd.f32 %v5052, %v5605
  %v5672 = vadd.f32 %v5054, %v5607
  %s5673 = scalar_lea.vmem %s8, 32
  %v5674 = vld [vmem:[%s5673] sm:$0xf]
  %v5675 = vld [vmem:[%s5673 + $0x4] sm:$0xf]
  %v5676 = vld [vmem:[%s5673 + $0x8] sm:$0xf]
  %v5677 = vld [vmem:[%s5673 + $0xc] sm:$0xf]
  %v5682 = vunpack.c.l.b16 %v5674
  %v5683 = vunpack.c.l.b16 %v5675
  %v5684 = vunpack.c.l.b16 %v5676
  %v5685 = vunpack.c.l.b16 %v5677
  %v5686 = vpack.c.b16 %v5683, %v5682
  %v5687 = vpack.c.b16 %v5685, %v5684
  %5690 = vmatpush.bf16.msra.mxu0 0
  %5691 = vmatpush.bf16.msra.mxu0 0
  %5692 = vmatpush.bf16.msra.mxu0 0
  %5693 = vmatpush.bf16.msra.mxu0 0
  %5694 = vmatpush.bf16.msra.mxu0 0
  %5695 = vmatpush.bf16.msra.mxu0 0
  %5696 = vmatpush.bf16.msra.mxu0 %v5687
  %5697 = vmatpush.bf16.msra.mxu0 %v5686
  %5698 = vmatmul.bf16.gmra.mxu0 %v4612
  %v5699 = vpop.f32.mrf.mxu0
  %v5700 = vadd.f32 0.0, %v5699
  %v5701 = vpop.f32.mrf.mxu0
  %v5702 = vadd.f32 0.0, %v5701
  %5703 = vmatmul.bf16.gmra.mxu0 %v4615
  %v5704 = vpop.f32.mrf.mxu0
  %v5705 = vadd.f32 0.0, %v5704
  %v5706 = vpop.f32.mrf.mxu0
  %v5707 = vadd.f32 0.0, %v5706
  %5708 = vmatmul.bf16.gmra.mxu0 %v4618
  %v5709 = vpop.f32.mrf.mxu0
  %v5710 = vadd.f32 0.0, %v5709
  %v5711 = vpop.f32.mrf.mxu0
  %v5712 = vadd.f32 0.0, %v5711
  %5713 = vmatmul.bf16.gmra.mxu0 %v4621
  %v5714 = vpop.f32.mrf.mxu0
  %v5715 = vadd.f32 0.0, %v5714
  %v5716 = vpop.f32.mrf.mxu0
  %v5717 = vadd.f32 0.0, %v5716
  %5718 = vmatmul.bf16.gmra.mxu0 %v4624
  %v5719 = vpop.f32.mrf.mxu0
  %v5720 = vadd.f32 0.0, %v5719
  %v5721 = vpop.f32.mrf.mxu0
  %v5722 = vadd.f32 0.0, %v5721
  %5723 = vmatmul.bf16.gmra.mxu0 %v4627
  %v5724 = vpop.f32.mrf.mxu0
  %v5725 = vadd.f32 0.0, %v5724
  %v5726 = vpop.f32.mrf.mxu0
  %v5727 = vadd.f32 0.0, %v5726
  %5728 = vmatmul.bf16.gmra.mxu0 %v4630
  %v5729 = vpop.f32.mrf.mxu0
  %v5730 = vadd.f32 0.0, %v5729
  %v5731 = vpop.f32.mrf.mxu0
  %v5732 = vadd.f32 0.0, %v5731
  %5733 = vmatmul.bf16.gmra.mxu0 %v4633
  %v5734 = vpop.f32.mrf.mxu0
  %v5735 = vadd.f32 0.0, %v5734
  %v5736 = vpop.f32.mrf.mxu0
  %v5737 = vadd.f32 0.0, %v5736
  %5738 = vmatmul.bf16.gmra.mxu0 %v4636
  %v5739 = vpop.f32.mrf.mxu0
  %v5740 = vadd.f32 0.0, %v5739
  %v5741 = vpop.f32.mrf.mxu0
  %v5742 = vadd.f32 0.0, %v5741
  %5743 = vmatmul.bf16.gmra.mxu0 %v4639
  %v5744 = vpop.f32.mrf.mxu0
  %v5745 = vadd.f32 0.0, %v5744
  %v5746 = vpop.f32.mrf.mxu0
  %v5747 = vadd.f32 0.0, %v5746
  %5748 = vmatmul.bf16.gmra.mxu0 %v4642
  %v5749 = vpop.f32.mrf.mxu0
  %v5750 = vadd.f32 0.0, %v5749
  %v5751 = vpop.f32.mrf.mxu0
  %v5752 = vadd.f32 0.0, %v5751
  %5753 = vmatmul.bf16.gmra.mxu0 %v4645
  %v5754 = vpop.f32.mrf.mxu0
  %v5755 = vadd.f32 0.0, %v5754
  %v5756 = vpop.f32.mrf.mxu0
  %v5757 = vadd.f32 0.0, %v5756
  %5758 = vmatmul.bf16.gmra.mxu0 %v4648
  %v5759 = vpop.f32.mrf.mxu0
  %v5760 = vadd.f32 0.0, %v5759
  %v5761 = vpop.f32.mrf.mxu0
  %v5762 = vadd.f32 0.0, %v5761
  %5763 = vmatmul.bf16.gmra.mxu0 %v4651
  %v5764 = vpop.f32.mrf.mxu0
  %v5765 = vadd.f32 0.0, %v5764
  %v5766 = vpop.f32.mrf.mxu0
  %v5767 = vadd.f32 0.0, %v5766
  %5768 = vmatmul.bf16.gmra.mxu0 %v4654
  %v5769 = vpop.f32.mrf.mxu0
  %v5770 = vadd.f32 0.0, %v5769
  %v5771 = vpop.f32.mrf.mxu0
  %v5772 = vadd.f32 0.0, %v5771
  %5773 = vmatmul.bf16.gmra.mxu0 %v4885
  %v5774 = vpop.f32.mrf.mxu0
  %v5775 = vadd.f32 0.0, %v5774
  %v5776 = vpop.f32.mrf.mxu0
  %v5777 = vadd.f32 0.0, %v5776
  %5778 = vmatmul.bf16.gmra.mxu0 %v4660
  %v5779 = vpop.f32.mrf.mxu0
  %v5780 = vadd.f32 0.0, %v5779
  %v5781 = vpop.f32.mrf.mxu0
  %v5782 = vadd.f32 0.0, %v5781
  %5783 = vmatmul.bf16.gmra.mxu0 %v4663
  %v5784 = vpop.f32.mrf.mxu0
  %v5785 = vadd.f32 0.0, %v5784
  %v5786 = vpop.f32.mrf.mxu0
  %v5787 = vadd.f32 0.0, %v5786
  %5788 = vmatmul.bf16.gmra.mxu0 %v4666
  %v5789 = vpop.f32.mrf.mxu0
  %v5790 = vadd.f32 0.0, %v5789
  %v5791 = vpop.f32.mrf.mxu0
  %v5792 = vadd.f32 0.0, %v5791
  %5793 = vmatmul.bf16.gmra.mxu0 %v4669
  %v5794 = vpop.f32.mrf.mxu0
  %v5795 = vadd.f32 0.0, %v5794
  %v5796 = vpop.f32.mrf.mxu0
  %v5797 = vadd.f32 0.0, %v5796
  %5798 = vmatmul.bf16.gmra.mxu0 %v4672
  %v5799 = vpop.f32.mrf.mxu0
  %v5800 = vadd.f32 0.0, %v5799
  %v5801 = vpop.f32.mrf.mxu0
  %v5802 = vadd.f32 0.0, %v5801
  %5803 = vmatmul.bf16.gmra.mxu0 %v4675
  %v5804 = vpop.f32.mrf.mxu0
  %v5805 = vadd.f32 0.0, %v5804
  %v5806 = vpop.f32.mrf.mxu0
  %v5807 = vadd.f32 0.0, %v5806
  %5808 = vmatmul.bf16.gmra.mxu0 %v4678
  %v5809 = vpop.f32.mrf.mxu0
  %v5810 = vadd.f32 0.0, %v5809
  %v5811 = vpop.f32.mrf.mxu0
  %v5812 = vadd.f32 0.0, %v5811
  %5813 = vmatmul.bf16.gmra.mxu0 %v4681
  %v5814 = vpop.f32.mrf.mxu0
  %v5815 = vadd.f32 0.0, %v5814
  %v5816 = vpop.f32.mrf.mxu0
  %v5817 = vadd.f32 0.0, %v5816
  %5818 = vmatmul.bf16.gmra.mxu0 %v4684
  %v5819 = vpop.f32.mrf.mxu0
  %v5820 = vadd.f32 0.0, %v5819
  %v5821 = vpop.f32.mrf.mxu0
  %v5822 = vadd.f32 0.0, %v5821
  %5823 = vmatmul.bf16.gmra.mxu0 %v4687
  %v5824 = vpop.f32.mrf.mxu0
  %v5825 = vadd.f32 0.0, %v5824
  %v5826 = vpop.f32.mrf.mxu0
  %v5827 = vadd.f32 0.0, %v5826
  %5828 = vmatmul.bf16.gmra.mxu0 %v4690
  %v5829 = vpop.f32.mrf.mxu0
  %v5830 = vadd.f32 0.0, %v5829
  %v5831 = vpop.f32.mrf.mxu0
  %v5832 = vadd.f32 0.0, %v5831
  %5833 = vmatmul.bf16.gmra.mxu0 %v4693
  %v5834 = vpop.f32.mrf.mxu0
  %v5835 = vadd.f32 0.0, %v5834
  %v5836 = vpop.f32.mrf.mxu0
  %v5837 = vadd.f32 0.0, %v5836
  %5838 = vmatmul.bf16.gmra.mxu0 %v4696
  %v5839 = vpop.f32.mrf.mxu0
  %v5840 = vadd.f32 0.0, %v5839
  %v5841 = vpop.f32.mrf.mxu0
  %v5842 = vadd.f32 0.0, %v5841
  %5843 = vmatmul.bf16.gmra.mxu0 %v4699
  %v5844 = vpop.f32.mrf.mxu0
  %v5845 = vadd.f32 0.0, %v5844
  %v5846 = vpop.f32.mrf.mxu0
  %v5847 = vadd.f32 0.0, %v5846
  %5848 = vmatmul.bf16.gmra.mxu0 %v4702
  %v5849 = vpop.f32.mrf.mxu0
  %v5850 = vadd.f32 0.0, %v5849
  %v5851 = vpop.f32.mrf.mxu0
  %v5852 = vadd.f32 0.0, %v5851
  %5853 = vmatmul.bf16.gmra.mxu0 %v4885
  %v5854 = vpop.f32.mrf.mxu0
  %v5855 = vadd.f32 0.0, %v5854
  %v5856 = vpop.f32.mrf.mxu0
  %v5857 = vadd.f32 0.0, %v5856
  %5858 = vdwg.mxu0
  %v5859 = vadd.f32 %v5264, %v5700
  %v5860 = vadd.f32 %v5266, %v5702
  %v5861 = vadd.f32 %v5269, %v5705
  %v5862 = vadd.f32 %v5271, %v5707
  %v5863 = vadd.f32 %v5274, %v5710
  %v5864 = vadd.f32 %v5276, %v5712
  %v5865 = vadd.f32 %v5279, %v5715
  %v5866 = vadd.f32 %v5281, %v5717
  %v5867 = vadd.f32 %v5284, %v5720
  %v5868 = vadd.f32 %v5286, %v5722
  %v5869 = vadd.f32 %v5289, %v5725
  %v5870 = vadd.f32 %v5291, %v5727
  %v5871 = vadd.f32 %v5294, %v5730
  %v5872 = vadd.f32 %v5296, %v5732
  %v5873 = vadd.f32 %v5299, %v5735
  %v5874 = vadd.f32 %v5301, %v5737
  %v5875 = vadd.f32 %v5304, %v5740
  %v5876 = vadd.f32 %v5306, %v5742
  %v5877 = vadd.f32 %v5309, %v5745
  %v5878 = vadd.f32 %v5311, %v5747
  %v5879 = vadd.f32 %v5314, %v5750
  %v5880 = vadd.f32 %v5316, %v5752
  %v5881 = vadd.f32 %v5319, %v5755
  %v5882 = vadd.f32 %v5321, %v5757
  %v5883 = vadd.f32 %v5324, %v5760
  %v5884 = vadd.f32 %v5326, %v5762
  %v5885 = vadd.f32 %v5329, %v5765
  %v5886 = vadd.f32 %v5331, %v5767
  %v5887 = vadd.f32 %v5334, %v5770
  %v5888 = vadd.f32 %v5336, %v5772
  %v5889 = vadd.f32 %v5339, %v5775
  %v5890 = vadd.f32 %v5341, %v5777
  %v5891 = vadd.f32 %v5344, %v5780
  %v5892 = vadd.f32 %v5346, %v5782
  %v5893 = vadd.f32 %v5349, %v5785
  %v5894 = vadd.f32 %v5351, %v5787
  %v5895 = vadd.f32 %v5354, %v5790
  %v5896 = vadd.f32 %v5356, %v5792
  %v5897 = vadd.f32 %v5359, %v5795
  %v5898 = vadd.f32 %v5361, %v5797
  %v5899 = vadd.f32 %v5364, %v5800
  %v5900 = vadd.f32 %v5366, %v5802
  %v5901 = vadd.f32 %v5369, %v5805
  %v5902 = vadd.f32 %v5371, %v5807
  %v5903 = vadd.f32 %v5374, %v5810
  %v5904 = vadd.f32 %v5376, %v5812
  %v5905 = vadd.f32 %v5379, %v5815
  %v5906 = vadd.f32 %v5381, %v5817
  %v5907 = vadd.f32 %v5384, %v5820
  %v5908 = vadd.f32 %v5386, %v5822
  %v5909 = vadd.f32 %v5389, %v5825
  %v5910 = vadd.f32 %v5391, %v5827
  %v5911 = vadd.f32 %v5394, %v5830
  %v5912 = vadd.f32 %v5396, %v5832
  %v5913 = vadd.f32 %v5399, %v5835
  %v5914 = vadd.f32 %v5401, %v5837
  %v5915 = vadd.f32 %v5404, %v5840
  %v5916 = vadd.f32 %v5406, %v5842
  %v5917 = vadd.f32 %v5409, %v5845
  %v5918 = vadd.f32 %v5411, %v5847
  %v5919 = vadd.f32 %v5414, %v5850
  %v5920 = vadd.f32 %v5416, %v5852
  %v5921 = vadd.f32 %v5419, %v5855
  %v5922 = vadd.f32 %v5421, %v5857
  %v5923 = vld [vmem:[%s9] sm:$0x1]
  %v5925 = vperm.slane %v5923, 0
  %v5927 = vadd.f32 %v5609, %v5925
  %v5928 = vadd.f32 %v5610, %v5925
  %v5929 = vadd.f32 %v5611, %v5925
  %v5930 = vadd.f32 %v5612, %v5925
  %v5931 = vadd.f32 %v5613, %v5925
  %v5932 = vadd.f32 %v5614, %v5925
  %v5933 = vadd.f32 %v5615, %v5925
  %v5934 = vadd.f32 %v5616, %v5925
  %v5935 = vadd.f32 %v5617, %v5925
  %v5936 = vadd.f32 %v5618, %v5925
  %v5937 = vadd.f32 %v5619, %v5925
  %v5938 = vadd.f32 %v5620, %v5925
  %v5939 = vadd.f32 %v5621, %v5925
  %v5940 = vadd.f32 %v5622, %v5925
  %v5941 = vadd.f32 %v5623, %v5925
  %v5942 = vadd.f32 %v5624, %v5925
  %v5943 = vadd.f32 %v5625, %v5925
  %v5944 = vadd.f32 %v5626, %v5925
  %v5945 = vadd.f32 %v5627, %v5925
  %v5946 = vadd.f32 %v5628, %v5925
  %v5947 = vadd.f32 %v5629, %v5925
  %v5948 = vadd.f32 %v5630, %v5925
  %v5949 = vadd.f32 %v5631, %v5925
  %v5950 = vadd.f32 %v5632, %v5925
  %v5951 = vadd.f32 %v5633, %v5925
  %v5952 = vadd.f32 %v5634, %v5925
  %v5953 = vadd.f32 %v5635, %v5925
  %v5954 = vadd.f32 %v5636, %v5925
  %v5955 = vadd.f32 %v5637, %v5925
  %v5956 = vadd.f32 %v5638, %v5925
  %v5957 = vadd.f32 %v5639, %v5925
  %v5958 = vadd.f32 %v5640, %v5925
  %v5959 = vadd.f32 %v5641, %v5925
  %v5960 = vadd.f32 %v5642, %v5925
  %v5961 = vadd.f32 %v5643, %v5925
  %v5962 = vadd.f32 %v5644, %v5925
  %v5963 = vadd.f32 %v5645, %v5925
  %v5964 = vadd.f32 %v5646, %v5925
  %v5965 = vadd.f32 %v5647, %v5925
  %v5966 = vadd.f32 %v5648, %v5925
  %v5967 = vadd.f32 %v5649, %v5925
  %v5968 = vadd.f32 %v5650, %v5925
  %v5969 = vadd.f32 %v5651, %v5925
  %v5970 = vadd.f32 %v5652, %v5925
  %v5971 = vadd.f32 %v5653, %v5925
  %v5972 = vadd.f32 %v5654, %v5925
  %v5973 = vadd.f32 %v5655, %v5925
  %v5974 = vadd.f32 %v5656, %v5925
  %v5975 = vadd.f32 %v5657, %v5925
  %v5976 = vadd.f32 %v5658, %v5925
  %v5977 = vadd.f32 %v5659, %v5925
  %v5978 = vadd.f32 %v5660, %v5925
  %v5979 = vadd.f32 %v5661, %v5925
  %v5980 = vadd.f32 %v5662, %v5925
  %v5981 = vadd.f32 %v5663, %v5925
  %v5982 = vadd.f32 %v5664, %v5925
  %v5983 = vadd.f32 %v5665, %v5925
  %v5984 = vadd.f32 %v5666, %v5925
  %v5985 = vadd.f32 %v5667, %v5925
  %v5986 = vadd.f32 %v5668, %v5925
  %v5987 = vadd.f32 %v5669, %v5925
  %v5988 = vadd.f32 %v5670, %v5925
  %v5989 = vadd.f32 %v5671, %v5925
  %v5990 = vadd.f32 %v5672, %v5925
  %v5991 = vld [vmem:[%s10] sm:$0x1]
  %v5993 = vperm.slane %v5991, 0
  %v5995 = vadd.f32 %v5859, %v5993
  %v5996 = vadd.f32 %v5860, %v5993
  %v5997 = vadd.f32 %v5861, %v5993
  %v5998 = vadd.f32 %v5862, %v5993
  %v5999 = vadd.f32 %v5863, %v5993
  %v6000 = vadd.f32 %v5864, %v5993
  %v6001 = vadd.f32 %v5865, %v5993
  %v6002 = vadd.f32 %v5866, %v5993
  %v6003 = vadd.f32 %v5867, %v5993
  %v6004 = vadd.f32 %v5868, %v5993
  %v6005 = vadd.f32 %v5869, %v5993
  %v6006 = vadd.f32 %v5870, %v5993
  %v6007 = vadd.f32 %v5871, %v5993
  %v6008 = vadd.f32 %v5872, %v5993
  %v6009 = vadd.f32 %v5873, %v5993
  %v6010 = vadd.f32 %v5874, %v5993
  %v6011 = vadd.f32 %v5875, %v5993
  %v6012 = vadd.f32 %v5876, %v5993
  %v6013 = vadd.f32 %v5877, %v5993
  %v6014 = vadd.f32 %v5878, %v5993
  %v6015 = vadd.f32 %v5879, %v5993
  %v6016 = vadd.f32 %v5880, %v5993
  %v6017 = vadd.f32 %v5881, %v5993
  %v6018 = vadd.f32 %v5882, %v5993
  %v6019 = vadd.f32 %v5883, %v5993
  %v6020 = vadd.f32 %v5884, %v5993
  %v6021 = vadd.f32 %v5885, %v5993
  %v6022 = vadd.f32 %v5886, %v5993
  %v6023 = vadd.f32 %v5887, %v5993
  %v6024 = vadd.f32 %v5888, %v5993
  %v6025 = vadd.f32 %v5889, %v5993
  %v6026 = vadd.f32 %v5890, %v5993
  %v6027 = vadd.f32 %v5891, %v5993
  %v6028 = vadd.f32 %v5892, %v5993
  %v6029 = vadd.f32 %v5893, %v5993
  %v6030 = vadd.f32 %v5894, %v5993
  %v6031 = vadd.f32 %v5895, %v5993
  %v6032 = vadd.f32 %v5896, %v5993
  %v6033 = vadd.f32 %v5897, %v5993
  %v6034 = vadd.f32 %v5898, %v5993
  %v6035 = vadd.f32 %v5899, %v5993
  %v6036 = vadd.f32 %v5900, %v5993
  %v6037 = vadd.f32 %v5901, %v5993
  %v6038 = vadd.f32 %v5902, %v5993
  %v6039 = vadd.f32 %v5903, %v5993
  %v6040 = vadd.f32 %v5904, %v5993
  %v6041 = vadd.f32 %v5905, %v5993
  %v6042 = vadd.f32 %v5906, %v5993
  %v6043 = vadd.f32 %v5907, %v5993
  %v6044 = vadd.f32 %v5908, %v5993
  %v6045 = vadd.f32 %v5909, %v5993
  %v6046 = vadd.f32 %v5910, %v5993
  %v6047 = vadd.f32 %v5911, %v5993
  %v6048 = vadd.f32 %v5912, %v5993
  %v6049 = vadd.f32 %v5913, %v5993
  %v6050 = vadd.f32 %v5914, %v5993
  %v6051 = vadd.f32 %v5915, %v5993
  %v6052 = vadd.f32 %v5916, %v5993
  %v6053 = vadd.f32 %v5917, %v5993
  %v6054 = vadd.f32 %v5918, %v5993
  %v6055 = vadd.f32 %v5919, %v5993
  %v6056 = vadd.f32 %v5920, %v5993
  %v6057 = vadd.f32 %v5921, %v5993
  %v6058 = vadd.f32 %v5922, %v5993
  %v6059 = vxor.u32 %v5995, 2147483648
  %v6060 = vxor.u32 %v5996, 2147483648
  %v6061 = vxor.u32 %v5997, 2147483648
  %v6062 = vxor.u32 %v5998, 2147483648
  %v6063 = vxor.u32 %v5999, 2147483648
  %v6064 = vxor.u32 %v6000, 2147483648
  %v6065 = vxor.u32 %v6001, 2147483648
  %v6066 = vxor.u32 %v6002, 2147483648
  %v6067 = vxor.u32 %v6003, 2147483648
  %v6068 = vxor.u32 %v6004, 2147483648
  %v6069 = vxor.u32 %v6005, 2147483648
  %v6070 = vxor.u32 %v6006, 2147483648
  %v6071 = vxor.u32 %v6007, 2147483648
  %v6072 = vxor.u32 %v6008, 2147483648
  %v6073 = vxor.u32 %v6009, 2147483648
  %v6074 = vxor.u32 %v6010, 2147483648
  %v6075 = vxor.u32 %v6011, 2147483648
  %v6076 = vxor.u32 %v6012, 2147483648
  %v6077 = vxor.u32 %v6013, 2147483648
  %v6078 = vxor.u32 %v6014, 2147483648
  %v6079 = vxor.u32 %v6015, 2147483648
  %v6080 = vxor.u32 %v6016, 2147483648
  %v6081 = vxor.u32 %v6017, 2147483648
  %v6082 = vxor.u32 %v6018, 2147483648
  %v6083 = vxor.u32 %v6019, 2147483648
  %v6084 = vxor.u32 %v6020, 2147483648
  %v6085 = vxor.u32 %v6021, 2147483648
  %v6086 = vxor.u32 %v6022, 2147483648
  %v6087 = vxor.u32 %v6023, 2147483648
  %v6088 = vxor.u32 %v6024, 2147483648
  %v6089 = vxor.u32 %v6025, 2147483648
  %v6090 = vxor.u32 %v6026, 2147483648
  %v6091 = vxor.u32 %v6027, 2147483648
  %v6092 = vxor.u32 %v6028, 2147483648
  %v6093 = vxor.u32 %v6029, 2147483648
  %v6094 = vxor.u32 %v6030, 2147483648
  %v6095 = vxor.u32 %v6031, 2147483648
  %v6096 = vxor.u32 %v6032, 2147483648
  %v6097 = vxor.u32 %v6033, 2147483648
  %v6098 = vxor.u32 %v6034, 2147483648
  %v6099 = vxor.u32 %v6035, 2147483648
  %v6100 = vxor.u32 %v6036, 2147483648
  %v6101 = vxor.u32 %v6037, 2147483648
  %v6102 = vxor.u32 %v6038, 2147483648
  %v6103 = vxor.u32 %v6039, 2147483648
  %v6104 = vxor.u32 %v6040, 2147483648
  %v6105 = vxor.u32 %v6041, 2147483648
  %v6106 = vxor.u32 %v6042, 2147483648
  %v6107 = vxor.u32 %v6043, 2147483648
  %v6108 = vxor.u32 %v6044, 2147483648
  %v6109 = vxor.u32 %v6045, 2147483648
  %v6110 = vxor.u32 %v6046, 2147483648
  %v6111 = vxor.u32 %v6047, 2147483648
  %v6112 = vxor.u32 %v6048, 2147483648
  %v6113 = vxor.u32 %v6049, 2147483648
  %v6114 = vxor.u32 %v6050, 2147483648
  %v6115 = vxor.u32 %v6051, 2147483648
  %v6116 = vxor.u32 %v6052, 2147483648
  %v6117 = vxor.u32 %v6053, 2147483648
  %v6118 = vxor.u32 %v6054, 2147483648
  %v6119 = vxor.u32 %v6055, 2147483648
  %v6120 = vxor.u32 %v6056, 2147483648
  %v6121 = vxor.u32 %v6057, 2147483648
  %v6122 = vxor.u32 %v6058, 2147483648
  %v6123 = vmul.f32 %v6059, 1.442695
  %v6124 = vpow.pop %v6123
  %v6125 = vmul.f32 %v6060, 1.442695
  %v6126 = vpow.pop %v6125
  %v6127 = vmul.f32 %v6061, 1.442695
  %v6128 = vpow.pop %v6127
  %v6129 = vmul.f32 %v6062, 1.442695
  %v6130 = vpow.pop %v6129
  %v6131 = vmul.f32 %v6063, 1.442695
  %v6132 = vpow.pop %v6131
  %v6133 = vmul.f32 %v6064, 1.442695
  %v6134 = vpow.pop %v6133
  %v6135 = vmul.f32 %v6065, 1.442695
  %v6136 = vpow.pop %v6135
  %v6137 = vmul.f32 %v6066, 1.442695
  %v6138 = vpow.pop %v6137
  %v6139 = vmul.f32 %v6067, 1.442695
  %v6140 = vpow.pop %v6139
  %v6141 = vmul.f32 %v6068, 1.442695
  %v6142 = vpow.pop %v6141
  %v6143 = vmul.f32 %v6069, 1.442695
  %v6144 = vpow.pop %v6143
  %v6145 = vmul.f32 %v6070, 1.442695
  %v6146 = vpow.pop %v6145
  %v6147 = vmul.f32 %v6071, 1.442695
  %v6148 = vpow.pop %v6147
  %v6149 = vmul.f32 %v6072, 1.442695
  %v6150 = vpow.pop %v6149
  %v6151 = vmul.f32 %v6073, 1.442695
  %v6152 = vpow.pop %v6151
  %v6153 = vmul.f32 %v6074, 1.442695
  %v6154 = vpow.pop %v6153
  %v6155 = vmul.f32 %v6075, 1.442695
  %v6156 = vpow.pop %v6155
  %v6157 = vmul.f32 %v6076, 1.442695
  %v6158 = vpow.pop %v6157
  %v6159 = vmul.f32 %v6077, 1.442695
  %v6160 = vpow.pop %v6159
  %v6161 = vmul.f32 %v6078, 1.442695
  %v6162 = vpow.pop %v6161
  %v6163 = vmul.f32 %v6079, 1.442695
  %v6164 = vpow.pop %v6163
  %v6165 = vmul.f32 %v6080, 1.442695
  %v6166 = vpow.pop %v6165
  %v6167 = vmul.f32 %v6081, 1.442695
  %v6168 = vpow.pop %v6167
  %v6169 = vmul.f32 %v6082, 1.442695
  %v6170 = vpow.pop %v6169
  %v6171 = vmul.f32 %v6083, 1.442695
  %v6172 = vpow.pop %v6171
  %v6173 = vmul.f32 %v6084, 1.442695
  %v6174 = vpow.pop %v6173
  %v6175 = vmul.f32 %v6085, 1.442695
  %v6176 = vpow.pop %v6175
  %v6177 = vmul.f32 %v6086, 1.442695
  %v6178 = vpow.pop %v6177
  %v6179 = vmul.f32 %v6087, 1.442695
  %v6180 = vpow.pop %v6179
  %v6181 = vmul.f32 %v6088, 1.442695
  %v6182 = vpow.pop %v6181
  %v6183 = vmul.f32 %v6089, 1.442695
  %v6184 = vpow.pop %v6183
  %v6185 = vmul.f32 %v6090, 1.442695
  %v6186 = vpow.pop %v6185
  %v6187 = vmul.f32 %v6091, 1.442695
  %v6188 = vpow.pop %v6187
  %v6189 = vmul.f32 %v6092, 1.442695
  %v6190 = vpow.pop %v6189
  %v6191 = vmul.f32 %v6093, 1.442695
  %v6192 = vpow.pop %v6191
  %v6193 = vmul.f32 %v6094, 1.442695
  %v6194 = vpow.pop %v6193
  %v6195 = vmul.f32 %v6095, 1.442695
  %v6196 = vpow.pop %v6195
  %v6197 = vmul.f32 %v6096, 1.442695
  %v6198 = vpow.pop %v6197
  %v6199 = vmul.f32 %v6097, 1.442695
  %v6200 = vpow.pop %v6199
  %v6201 = vmul.f32 %v6098, 1.442695
  %v6202 = vpow.pop %v6201
  %v6203 = vmul.f32 %v6099, 1.442695
  %v6204 = vpow.pop %v6203
  %v6205 = vmul.f32 %v6100, 1.442695
  %v6206 = vpow.pop %v6205
  %v6207 = vmul.f32 %v6101, 1.442695
  %v6208 = vpow.pop %v6207
  %v6209 = vmul.f32 %v6102, 1.442695
  %v6210 = vpow.pop %v6209
  %v6211 = vmul.f32 %v6103, 1.442695
  %v6212 = vpow.pop %v6211
  %v6213 = vmul.f32 %v6104, 1.442695
  %v6214 = vpow.pop %v6213
  %v6215 = vmul.f32 %v6105, 1.442695
  %v6216 = vpow.pop %v6215
  %v6217 = vmul.f32 %v6106, 1.442695
  %v6218 = vpow.pop %v6217
  %v6219 = vmul.f32 %v6107, 1.442695
  %v6220 = vpow.pop %v6219
  %v6221 = vmul.f32 %v6108, 1.442695
  %v6222 = vpow.pop %v6221
  %v6223 = vmul.f32 %v6109, 1.442695
  %v6224 = vpow.pop %v6223
  %v6225 = vmul.f32 %v6110, 1.442695
  %v6226 = vpow.pop %v6225
  %v6227 = vmul.f32 %v6111, 1.442695
  %v6228 = vpow.pop %v6227
  %v6229 = vmul.f32 %v6112, 1.442695
  %v6230 = vpow.pop %v6229
  %v6231 = vmul.f32 %v6113, 1.442695
  %v6232 = vpow.pop %v6231
  %v6233 = vmul.f32 %v6114, 1.442695
  %v6234 = vpow.pop %v6233
  %v6235 = vmul.f32 %v6115, 1.442695
  %v6236 = vpow.pop %v6235
  %v6237 = vmul.f32 %v6116, 1.442695
  %v6238 = vpow.pop %v6237
  %v6239 = vmul.f32 %v6117, 1.442695
  %v6240 = vpow.pop %v6239
  %v6241 = vmul.f32 %v6118, 1.442695
  %v6242 = vpow.pop %v6241
  %v6243 = vmul.f32 %v6119, 1.442695
  %v6244 = vpow.pop %v6243
  %v6245 = vmul.f32 %v6120, 1.442695
  %v6246 = vpow.pop %v6245
  %v6247 = vmul.f32 %v6121, 1.442695
  %v6248 = vpow.pop %v6247
  %v6249 = vmul.f32 %v6122, 1.442695
  %v6250 = vpow.pop %v6249
  %v6251 = vadd.f32 %v6124, 1.0
  %v6252 = vadd.f32 %v6126, 1.0
  %v6253 = vadd.f32 %v6128, 1.0
  %v6254 = vadd.f32 %v6130, 1.0
  %v6255 = vadd.f32 %v6132, 1.0
  %v6256 = vadd.f32 %v6134, 1.0
  %v6257 = vadd.f32 %v6136, 1.0
  %v6258 = vadd.f32 %v6138, 1.0
  %v6259 = vadd.f32 %v6140, 1.0
  %v6260 = vadd.f32 %v6142, 1.0
  %v6261 = vadd.f32 %v6144, 1.0
  %v6262 = vadd.f32 %v6146, 1.0
  %v6263 = vadd.f32 %v6148, 1.0
  %v6264 = vadd.f32 %v6150, 1.0
  %v6265 = vadd.f32 %v6152, 1.0
  %v6266 = vadd.f32 %v6154, 1.0
  %v6267 = vadd.f32 %v6156, 1.0
  %v6268 = vadd.f32 %v6158, 1.0
  %v6269 = vadd.f32 %v6160, 1.0
  %v6270 = vadd.f32 %v6162, 1.0
  %v6271 = vadd.f32 %v6164, 1.0
  %v6272 = vadd.f32 %v6166, 1.0
  %v6273 = vadd.f32 %v6168, 1.0
  %v6274 = vadd.f32 %v6170, 1.0
  %v6275 = vadd.f32 %v6172, 1.0
  %v6276 = vadd.f32 %v6174, 1.0
  %v6277 = vadd.f32 %v6176, 1.0
  %v6278 = vadd.f32 %v6178, 1.0
  %v6279 = vadd.f32 %v6180, 1.0
  %v6280 = vadd.f32 %v6182, 1.0
  %v6281 = vadd.f32 %v6184, 1.0
  %v6282 = vadd.f32 %v6186, 1.0
  %v6283 = vadd.f32 %v6188, 1.0
  %v6284 = vadd.f32 %v6190, 1.0
  %v6285 = vadd.f32 %v6192, 1.0
  %v6286 = vadd.f32 %v6194, 1.0
  %v6287 = vadd.f32 %v6196, 1.0
  %v6288 = vadd.f32 %v6198, 1.0
  %v6289 = vadd.f32 %v6200, 1.0
  %v6290 = vadd.f32 %v6202, 1.0
  %v6291 = vadd.f32 %v6204, 1.0
  %v6292 = vadd.f32 %v6206, 1.0
  %v6293 = vadd.f32 %v6208, 1.0
  %v6294 = vadd.f32 %v6210, 1.0
  %v6295 = vadd.f32 %v6212, 1.0
  %v6296 = vadd.f32 %v6214, 1.0
  %v6297 = vadd.f32 %v6216, 1.0
  %v6298 = vadd.f32 %v6218, 1.0
  %v6299 = vadd.f32 %v6220, 1.0
  %v6300 = vadd.f32 %v6222, 1.0
  %v6301 = vadd.f32 %v6224, 1.0
  %v6302 = vadd.f32 %v6226, 1.0
  %v6303 = vadd.f32 %v6228, 1.0
  %v6304 = vadd.f32 %v6230, 1.0
  %v6305 = vadd.f32 %v6232, 1.0
  %v6306 = vadd.f32 %v6234, 1.0
  %v6307 = vadd.f32 %v6236, 1.0
  %v6308 = vadd.f32 %v6238, 1.0
  %v6309 = vadd.f32 %v6240, 1.0
  %v6310 = vadd.f32 %v6242, 1.0
  %v6311 = vadd.f32 %v6244, 1.0
  %v6312 = vadd.f32 %v6246, 1.0
  %v6313 = vadd.f32 %v6248, 1.0
  %v6314 = vadd.f32 %v6250, 1.0
  %v6315 = vrcp.pop %v6251
  %v6316 = vmul.f32 %v6251, %v6315
  %v6317 = vsub.f32 1.0, %v6316
  %v6318 = vmul.f32 %v6315, %v6317
  %v6319 = vadd.f32 %v6315, %v6318
  %vm6320 = vweird.f32 %v6251
  %vm6321 = vweird.f32 %v6315
  %vm6322 = vmor %vm6320, %vm6321
  %v6323 = vsel %vm6322, %v6315, %v6319
  %v6324 = vand.u32 2147483647, %v6251
  %vm6325 = vcmp.eq.f32.partialorder %v6324, 8.507059e+37
  %v6326 = vand.u32 %v6251, 2147483648
  %v6327 = vor.u32 1.1754944e-38, %v6326
  %v6328 = vsel %vm6325, %v6327, %v6323
  %v6329 = vmul.f32 1.0, %v6328
  %v6330 = vrcp.pop %v6252
  %v6331 = vmul.f32 %v6252, %v6330
  %v6332 = vsub.f32 1.0, %v6331
  %v6333 = vmul.f32 %v6330, %v6332
  %v6334 = vadd.f32 %v6330, %v6333
  %vm6335 = vweird.f32 %v6252
  %vm6336 = vweird.f32 %v6330
  %vm6337 = vmor %vm6335, %vm6336
  %v6338 = vsel %vm6337, %v6330, %v6334
  %v6339 = vand.u32 2147483647, %v6252
  %vm6340 = vcmp.eq.f32.partialorder %v6339, 8.507059e+37
  %v6341 = vand.u32 %v6252, 2147483648
  %v6342 = vor.u32 1.1754944e-38, %v6341
  %v6343 = vsel %vm6340, %v6342, %v6338
  %v6344 = vmul.f32 1.0, %v6343
  %v6345 = vrcp.pop %v6253
  %v6346 = vmul.f32 %v6253, %v6345
  %v6347 = vsub.f32 1.0, %v6346
  %v6348 = vmul.f32 %v6345, %v6347
  %v6349 = vadd.f32 %v6345, %v6348
  %vm6350 = vweird.f32 %v6253
  %vm6351 = vweird.f32 %v6345
  %vm6352 = vmor %vm6350, %vm6351
  %v6353 = vsel %vm6352, %v6345, %v6349
  %v6354 = vand.u32 2147483647, %v6253
  %vm6355 = vcmp.eq.f32.partialorder %v6354, 8.507059e+37
  %v6356 = vand.u32 %v6253, 2147483648
  %v6357 = vor.u32 1.1754944e-38, %v6356
  %v6358 = vsel %vm6355, %v6357, %v6353
  %v6359 = vmul.f32 1.0, %v6358
  %v6360 = vrcp.pop %v6254
  %v6361 = vmul.f32 %v6254, %v6360
  %v6362 = vsub.f32 1.0, %v6361
  %v6363 = vmul.f32 %v6360, %v6362
  %v6364 = vadd.f32 %v6360, %v6363
  %vm6365 = vweird.f32 %v6254
  %vm6366 = vweird.f32 %v6360
  %vm6367 = vmor %vm6365, %vm6366
  %v6368 = vsel %vm6367, %v6360, %v6364
  %v6369 = vand.u32 2147483647, %v6254
  %vm6370 = vcmp.eq.f32.partialorder %v6369, 8.507059e+37
  %v6371 = vand.u32 %v6254, 2147483648
  %v6372 = vor.u32 1.1754944e-38, %v6371
  %v6373 = vsel %vm6370, %v6372, %v6368
  %v6374 = vmul.f32 1.0, %v6373
  %v6375 = vrcp.pop %v6255
  %v6376 = vmul.f32 %v6255, %v6375
  %v6377 = vsub.f32 1.0, %v6376
  %v6378 = vmul.f32 %v6375, %v6377
  %v6379 = vadd.f32 %v6375, %v6378
  %vm6380 = vweird.f32 %v6255
  %vm6381 = vweird.f32 %v6375
  %vm6382 = vmor %vm6380, %vm6381
  %v6383 = vsel %vm6382, %v6375, %v6379
  %v6384 = vand.u32 2147483647, %v6255
  %vm6385 = vcmp.eq.f32.partialorder %v6384, 8.507059e+37
  %v6386 = vand.u32 %v6255, 2147483648
  %v6387 = vor.u32 1.1754944e-38, %v6386
  %v6388 = vsel %vm6385, %v6387, %v6383
  %v6389 = vmul.f32 1.0, %v6388
  %v6390 = vrcp.pop %v6256
  %v6391 = vmul.f32 %v6256, %v6390
  %v6392 = vsub.f32 1.0, %v6391
  %v6393 = vmul.f32 %v6390, %v6392
  %v6394 = vadd.f32 %v6390, %v6393
  %vm6395 = vweird.f32 %v6256
  %vm6396 = vweird.f32 %v6390
  %vm6397 = vmor %vm6395, %vm6396
  %v6398 = vsel %vm6397, %v6390, %v6394
  %v6399 = vand.u32 2147483647, %v6256
  %vm6400 = vcmp.eq.f32.partialorder %v6399, 8.507059e+37
  %v6401 = vand.u32 %v6256, 2147483648
  %v6402 = vor.u32 1.1754944e-38, %v6401
  %v6403 = vsel %vm6400, %v6402, %v6398
  %v6404 = vmul.f32 1.0, %v6403
  %v6405 = vrcp.pop %v6257
  %v6406 = vmul.f32 %v6257, %v6405
  %v6407 = vsub.f32 1.0, %v6406
  %v6408 = vmul.f32 %v6405, %v6407
  %v6409 = vadd.f32 %v6405, %v6408
  %vm6410 = vweird.f32 %v6257
  %vm6411 = vweird.f32 %v6405
  %vm6412 = vmor %vm6410, %vm6411
  %v6413 = vsel %vm6412, %v6405, %v6409
  %v6414 = vand.u32 2147483647, %v6257
  %vm6415 = vcmp.eq.f32.partialorder %v6414, 8.507059e+37
  %v6416 = vand.u32 %v6257, 2147483648
  %v6417 = vor.u32 1.1754944e-38, %v6416
  %v6418 = vsel %vm6415, %v6417, %v6413
  %v6419 = vmul.f32 1.0, %v6418
  %v6420 = vrcp.pop %v6258
  %v6421 = vmul.f32 %v6258, %v6420
  %v6422 = vsub.f32 1.0, %v6421
  %v6423 = vmul.f32 %v6420, %v6422
  %v6424 = vadd.f32 %v6420, %v6423
  %vm6425 = vweird.f32 %v6258
  %vm6426 = vweird.f32 %v6420
  %vm6427 = vmor %vm6425, %vm6426
  %v6428 = vsel %vm6427, %v6420, %v6424
  %v6429 = vand.u32 2147483647, %v6258
  %vm6430 = vcmp.eq.f32.partialorder %v6429, 8.507059e+37
  %v6431 = vand.u32 %v6258, 2147483648
  %v6432 = vor.u32 1.1754944e-38, %v6431
  %v6433 = vsel %vm6430, %v6432, %v6428
  %v6434 = vmul.f32 1.0, %v6433
  %v6435 = vrcp.pop %v6259
  %v6436 = vmul.f32 %v6259, %v6435
  %v6437 = vsub.f32 1.0, %v6436
  %v6438 = vmul.f32 %v6435, %v6437
  %v6439 = vadd.f32 %v6435, %v6438
  %vm6440 = vweird.f32 %v6259
  %vm6441 = vweird.f32 %v6435
  %vm6442 = vmor %vm6440, %vm6441
  %v6443 = vsel %vm6442, %v6435, %v6439
  %v6444 = vand.u32 2147483647, %v6259
  %vm6445 = vcmp.eq.f32.partialorder %v6444, 8.507059e+37
  %v6446 = vand.u32 %v6259, 2147483648
  %v6447 = vor.u32 1.1754944e-38, %v6446
  %v6448 = vsel %vm6445, %v6447, %v6443
  %v6449 = vmul.f32 1.0, %v6448
  %v6450 = vrcp.pop %v6260
  %v6451 = vmul.f32 %v6260, %v6450
  %v6452 = vsub.f32 1.0, %v6451
  %v6453 = vmul.f32 %v6450, %v6452
  %v6454 = vadd.f32 %v6450, %v6453
  %vm6455 = vweird.f32 %v6260
  %vm6456 = vweird.f32 %v6450
  %vm6457 = vmor %vm6455, %vm6456
  %v6458 = vsel %vm6457, %v6450, %v6454
  %v6459 = vand.u32 2147483647, %v6260
  %vm6460 = vcmp.eq.f32.partialorder %v6459, 8.507059e+37
  %v6461 = vand.u32 %v6260, 2147483648
  %v6462 = vor.u32 1.1754944e-38, %v6461
  %v6463 = vsel %vm6460, %v6462, %v6458
  %v6464 = vmul.f32 1.0, %v6463
  %v6465 = vrcp.pop %v6261
  %v6466 = vmul.f32 %v6261, %v6465
  %v6467 = vsub.f32 1.0, %v6466
  %v6468 = vmul.f32 %v6465, %v6467
  %v6469 = vadd.f32 %v6465, %v6468
  %vm6470 = vweird.f32 %v6261
  %vm6471 = vweird.f32 %v6465
  %vm6472 = vmor %vm6470, %vm6471
  %v6473 = vsel %vm6472, %v6465, %v6469
  %v6474 = vand.u32 2147483647, %v6261
  %vm6475 = vcmp.eq.f32.partialorder %v6474, 8.507059e+37
  %v6476 = vand.u32 %v6261, 2147483648
  %v6477 = vor.u32 1.1754944e-38, %v6476
  %v6478 = vsel %vm6475, %v6477, %v6473
  %v6479 = vmul.f32 1.0, %v6478
  %v6480 = vrcp.pop %v6262
  %v6481 = vmul.f32 %v6262, %v6480
  %v6482 = vsub.f32 1.0, %v6481
  %v6483 = vmul.f32 %v6480, %v6482
  %v6484 = vadd.f32 %v6480, %v6483
  %vm6485 = vweird.f32 %v6262
  %vm6486 = vweird.f32 %v6480
  %vm6487 = vmor %vm6485, %vm6486
  %v6488 = vsel %vm6487, %v6480, %v6484
  %v6489 = vand.u32 2147483647, %v6262
  %vm6490 = vcmp.eq.f32.partialorder %v6489, 8.507059e+37
  %v6491 = vand.u32 %v6262, 2147483648
  %v6492 = vor.u32 1.1754944e-38, %v6491
  %v6493 = vsel %vm6490, %v6492, %v6488
  %v6494 = vmul.f32 1.0, %v6493
  %v6495 = vrcp.pop %v6263
  %v6496 = vmul.f32 %v6263, %v6495
  %v6497 = vsub.f32 1.0, %v6496
  %v6498 = vmul.f32 %v6495, %v6497
  %v6499 = vadd.f32 %v6495, %v6498
  %vm6500 = vweird.f32 %v6263
  %vm6501 = vweird.f32 %v6495
  %vm6502 = vmor %vm6500, %vm6501
  %v6503 = vsel %vm6502, %v6495, %v6499
  %v6504 = vand.u32 2147483647, %v6263
  %vm6505 = vcmp.eq.f32.partialorder %v6504, 8.507059e+37
  %v6506 = vand.u32 %v6263, 2147483648
  %v6507 = vor.u32 1.1754944e-38, %v6506
  %v6508 = vsel %vm6505, %v6507, %v6503
  %v6509 = vmul.f32 1.0, %v6508
  %v6510 = vrcp.pop %v6264
  %v6511 = vmul.f32 %v6264, %v6510
  %v6512 = vsub.f32 1.0, %v6511
  %v6513 = vmul.f32 %v6510, %v6512
  %v6514 = vadd.f32 %v6510, %v6513
  %vm6515 = vweird.f32 %v6264
  %vm6516 = vweird.f32 %v6510
  %vm6517 = vmor %vm6515, %vm6516
  %v6518 = vsel %vm6517, %v6510, %v6514
  %v6519 = vand.u32 2147483647, %v6264
  %vm6520 = vcmp.eq.f32.partialorder %v6519, 8.507059e+37
  %v6521 = vand.u32 %v6264, 2147483648
  %v6522 = vor.u32 1.1754944e-38, %v6521
  %v6523 = vsel %vm6520, %v6522, %v6518
  %v6524 = vmul.f32 1.0, %v6523
  %v6525 = vrcp.pop %v6265
  %v6526 = vmul.f32 %v6265, %v6525
  %v6527 = vsub.f32 1.0, %v6526
  %v6528 = vmul.f32 %v6525, %v6527
  %v6529 = vadd.f32 %v6525, %v6528
  %vm6530 = vweird.f32 %v6265
  %vm6531 = vweird.f32 %v6525
  %vm6532 = vmor %vm6530, %vm6531
  %v6533 = vsel %vm6532, %v6525, %v6529
  %v6534 = vand.u32 2147483647, %v6265
  %vm6535 = vcmp.eq.f32.partialorder %v6534, 8.507059e+37
  %v6536 = vand.u32 %v6265, 2147483648
  %v6537 = vor.u32 1.1754944e-38, %v6536
  %v6538 = vsel %vm6535, %v6537, %v6533
  %v6539 = vmul.f32 1.0, %v6538
  %v6540 = vrcp.pop %v6266
  %v6541 = vmul.f32 %v6266, %v6540
  %v6542 = vsub.f32 1.0, %v6541
  %v6543 = vmul.f32 %v6540, %v6542
  %v6544 = vadd.f32 %v6540, %v6543
  %vm6545 = vweird.f32 %v6266
  %vm6546 = vweird.f32 %v6540
  %vm6547 = vmor %vm6545, %vm6546
  %v6548 = vsel %vm6547, %v6540, %v6544
  %v6549 = vand.u32 2147483647, %v6266
  %vm6550 = vcmp.eq.f32.partialorder %v6549, 8.507059e+37
  %v6551 = vand.u32 %v6266, 2147483648
  %v6552 = vor.u32 1.1754944e-38, %v6551
  %v6553 = vsel %vm6550, %v6552, %v6548
  %v6554 = vmul.f32 1.0, %v6553
  %v6555 = vrcp.pop %v6267
  %v6556 = vmul.f32 %v6267, %v6555
  %v6557 = vsub.f32 1.0, %v6556
  %v6558 = vmul.f32 %v6555, %v6557
  %v6559 = vadd.f32 %v6555, %v6558
  %vm6560 = vweird.f32 %v6267
  %vm6561 = vweird.f32 %v6555
  %vm6562 = vmor %vm6560, %vm6561
  %v6563 = vsel %vm6562, %v6555, %v6559
  %v6564 = vand.u32 2147483647, %v6267
  %vm6565 = vcmp.eq.f32.partialorder %v6564, 8.507059e+37
  %v6566 = vand.u32 %v6267, 2147483648
  %v6567 = vor.u32 1.1754944e-38, %v6566
  %v6568 = vsel %vm6565, %v6567, %v6563
  %v6569 = vmul.f32 1.0, %v6568
  %v6570 = vrcp.pop %v6268
  %v6571 = vmul.f32 %v6268, %v6570
  %v6572 = vsub.f32 1.0, %v6571
  %v6573 = vmul.f32 %v6570, %v6572
  %v6574 = vadd.f32 %v6570, %v6573
  %vm6575 = vweird.f32 %v6268
  %vm6576 = vweird.f32 %v6570
  %vm6577 = vmor %vm6575, %vm6576
  %v6578 = vsel %vm6577, %v6570, %v6574
  %v6579 = vand.u32 2147483647, %v6268
  %vm6580 = vcmp.eq.f32.partialorder %v6579, 8.507059e+37
  %v6581 = vand.u32 %v6268, 2147483648
  %v6582 = vor.u32 1.1754944e-38, %v6581
  %v6583 = vsel %vm6580, %v6582, %v6578
  %v6584 = vmul.f32 1.0, %v6583
  %v6585 = vrcp.pop %v6269
  %v6586 = vmul.f32 %v6269, %v6585
  %v6587 = vsub.f32 1.0, %v6586
  %v6588 = vmul.f32 %v6585, %v6587
  %v6589 = vadd.f32 %v6585, %v6588
  %vm6590 = vweird.f32 %v6269
  %vm6591 = vweird.f32 %v6585
  %vm6592 = vmor %vm6590, %vm6591
  %v6593 = vsel %vm6592, %v6585, %v6589
  %v6594 = vand.u32 2147483647, %v6269
  %vm6595 = vcmp.eq.f32.partialorder %v6594, 8.507059e+37
  %v6596 = vand.u32 %v6269, 2147483648
  %v6597 = vor.u32 1.1754944e-38, %v6596
  %v6598 = vsel %vm6595, %v6597, %v6593
  %v6599 = vmul.f32 1.0, %v6598
  %v6600 = vrcp.pop %v6270
  %v6601 = vmul.f32 %v6270, %v6600
  %v6602 = vsub.f32 1.0, %v6601
  %v6603 = vmul.f32 %v6600, %v6602
  %v6604 = vadd.f32 %v6600, %v6603
  %vm6605 = vweird.f32 %v6270
  %vm6606 = vweird.f32 %v6600
  %vm6607 = vmor %vm6605, %vm6606
  %v6608 = vsel %vm6607, %v6600, %v6604
  %v6609 = vand.u32 2147483647, %v6270
  %vm6610 = vcmp.eq.f32.partialorder %v6609, 8.507059e+37
  %v6611 = vand.u32 %v6270, 2147483648
  %v6612 = vor.u32 1.1754944e-38, %v6611
  %v6613 = vsel %vm6610, %v6612, %v6608
  %v6614 = vmul.f32 1.0, %v6613
  %v6615 = vrcp.pop %v6271
  %v6616 = vmul.f32 %v6271, %v6615
  %v6617 = vsub.f32 1.0, %v6616
  %v6618 = vmul.f32 %v6615, %v6617
  %v6619 = vadd.f32 %v6615, %v6618
  %vm6620 = vweird.f32 %v6271
  %vm6621 = vweird.f32 %v6615
  %vm6622 = vmor %vm6620, %vm6621
  %v6623 = vsel %vm6622, %v6615, %v6619
  %v6624 = vand.u32 2147483647, %v6271
  %vm6625 = vcmp.eq.f32.partialorder %v6624, 8.507059e+37
  %v6626 = vand.u32 %v6271, 2147483648
  %v6627 = vor.u32 1.1754944e-38, %v6626
  %v6628 = vsel %vm6625, %v6627, %v6623
  %v6629 = vmul.f32 1.0, %v6628
  %v6630 = vrcp.pop %v6272
  %v6631 = vmul.f32 %v6272, %v6630
  %v6632 = vsub.f32 1.0, %v6631
  %v6633 = vmul.f32 %v6630, %v6632
  %v6634 = vadd.f32 %v6630, %v6633
  %vm6635 = vweird.f32 %v6272
  %vm6636 = vweird.f32 %v6630
  %vm6637 = vmor %vm6635, %vm6636
  %v6638 = vsel %vm6637, %v6630, %v6634
  %v6639 = vand.u32 2147483647, %v6272
  %vm6640 = vcmp.eq.f32.partialorder %v6639, 8.507059e+37
  %v6641 = vand.u32 %v6272, 2147483648
  %v6642 = vor.u32 1.1754944e-38, %v6641
  %v6643 = vsel %vm6640, %v6642, %v6638
  %v6644 = vmul.f32 1.0, %v6643
  %v6645 = vrcp.pop %v6273
  %v6646 = vmul.f32 %v6273, %v6645
  %v6647 = vsub.f32 1.0, %v6646
  %v6648 = vmul.f32 %v6645, %v6647
  %v6649 = vadd.f32 %v6645, %v6648
  %vm6650 = vweird.f32 %v6273
  %vm6651 = vweird.f32 %v6645
  %vm6652 = vmor %vm6650, %vm6651
  %v6653 = vsel %vm6652, %v6645, %v6649
  %v6654 = vand.u32 2147483647, %v6273
  %vm6655 = vcmp.eq.f32.partialorder %v6654, 8.507059e+37
  %v6656 = vand.u32 %v6273, 2147483648
  %v6657 = vor.u32 1.1754944e-38, %v6656
  %v6658 = vsel %vm6655, %v6657, %v6653
  %v6659 = vmul.f32 1.0, %v6658
  %v6660 = vrcp.pop %v6274
  %v6661 = vmul.f32 %v6274, %v6660
  %v6662 = vsub.f32 1.0, %v6661
  %v6663 = vmul.f32 %v6660, %v6662
  %v6664 = vadd.f32 %v6660, %v6663
  %vm6665 = vweird.f32 %v6274
  %vm6666 = vweird.f32 %v6660
  %vm6667 = vmor %vm6665, %vm6666
  %v6668 = vsel %vm6667, %v6660, %v6664
  %v6669 = vand.u32 2147483647, %v6274
  %vm6670 = vcmp.eq.f32.partialorder %v6669, 8.507059e+37
  %v6671 = vand.u32 %v6274, 2147483648
  %v6672 = vor.u32 1.1754944e-38, %v6671
  %v6673 = vsel %vm6670, %v6672, %v6668
  %v6674 = vmul.f32 1.0, %v6673
  %v6675 = vrcp.pop %v6275
  %v6676 = vmul.f32 %v6275, %v6675
  %v6677 = vsub.f32 1.0, %v6676
  %v6678 = vmul.f32 %v6675, %v6677
  %v6679 = vadd.f32 %v6675, %v6678
  %vm6680 = vweird.f32 %v6275
  %vm6681 = vweird.f32 %v6675
  %vm6682 = vmor %vm6680, %vm6681
  %v6683 = vsel %vm6682, %v6675, %v6679
  %v6684 = vand.u32 2147483647, %v6275
  %vm6685 = vcmp.eq.f32.partialorder %v6684, 8.507059e+37
  %v6686 = vand.u32 %v6275, 2147483648
  %v6687 = vor.u32 1.1754944e-38, %v6686
  %v6688 = vsel %vm6685, %v6687, %v6683
  %v6689 = vmul.f32 1.0, %v6688
  %v6690 = vrcp.pop %v6276
  %v6691 = vmul.f32 %v6276, %v6690
  %v6692 = vsub.f32 1.0, %v6691
  %v6693 = vmul.f32 %v6690, %v6692
  %v6694 = vadd.f32 %v6690, %v6693
  %vm6695 = vweird.f32 %v6276
  %vm6696 = vweird.f32 %v6690
  %vm6697 = vmor %vm6695, %vm6696
  %v6698 = vsel %vm6697, %v6690, %v6694
  %v6699 = vand.u32 2147483647, %v6276
  %vm6700 = vcmp.eq.f32.partialorder %v6699, 8.507059e+37
  %v6701 = vand.u32 %v6276, 2147483648
  %v6702 = vor.u32 1.1754944e-38, %v6701
  %v6703 = vsel %vm6700, %v6702, %v6698
  %v6704 = vmul.f32 1.0, %v6703
  %v6705 = vrcp.pop %v6277
  %v6706 = vmul.f32 %v6277, %v6705
  %v6707 = vsub.f32 1.0, %v6706
  %v6708 = vmul.f32 %v6705, %v6707
  %v6709 = vadd.f32 %v6705, %v6708
  %vm6710 = vweird.f32 %v6277
  %vm6711 = vweird.f32 %v6705
  %vm6712 = vmor %vm6710, %vm6711
  %v6713 = vsel %vm6712, %v6705, %v6709
  %v6714 = vand.u32 2147483647, %v6277
  %vm6715 = vcmp.eq.f32.partialorder %v6714, 8.507059e+37
  %v6716 = vand.u32 %v6277, 2147483648
  %v6717 = vor.u32 1.1754944e-38, %v6716
  %v6718 = vsel %vm6715, %v6717, %v6713
  %v6719 = vmul.f32 1.0, %v6718
  %v6720 = vrcp.pop %v6278
  %v6721 = vmul.f32 %v6278, %v6720
  %v6722 = vsub.f32 1.0, %v6721
  %v6723 = vmul.f32 %v6720, %v6722
  %v6724 = vadd.f32 %v6720, %v6723
  %vm6725 = vweird.f32 %v6278
  %vm6726 = vweird.f32 %v6720
  %vm6727 = vmor %vm6725, %vm6726
  %v6728 = vsel %vm6727, %v6720, %v6724
  %v6729 = vand.u32 2147483647, %v6278
  %vm6730 = vcmp.eq.f32.partialorder %v6729, 8.507059e+37
  %v6731 = vand.u32 %v6278, 2147483648
  %v6732 = vor.u32 1.1754944e-38, %v6731
  %v6733 = vsel %vm6730, %v6732, %v6728
  %v6734 = vmul.f32 1.0, %v6733
  %v6735 = vrcp.pop %v6279
  %v6736 = vmul.f32 %v6279, %v6735
  %v6737 = vsub.f32 1.0, %v6736
  %v6738 = vmul.f32 %v6735, %v6737
  %v6739 = vadd.f32 %v6735, %v6738
  %vm6740 = vweird.f32 %v6279
  %vm6741 = vweird.f32 %v6735
  %vm6742 = vmor %vm6740, %vm6741
  %v6743 = vsel %vm6742, %v6735, %v6739
  %v6744 = vand.u32 2147483647, %v6279
  %vm6745 = vcmp.eq.f32.partialorder %v6744, 8.507059e+37
  %v6746 = vand.u32 %v6279, 2147483648
  %v6747 = vor.u32 1.1754944e-38, %v6746
  %v6748 = vsel %vm6745, %v6747, %v6743
  %v6749 = vmul.f32 1.0, %v6748
  %v6750 = vrcp.pop %v6280
  %v6751 = vmul.f32 %v6280, %v6750
  %v6752 = vsub.f32 1.0, %v6751
  %v6753 = vmul.f32 %v6750, %v6752
  %v6754 = vadd.f32 %v6750, %v6753
  %vm6755 = vweird.f32 %v6280
  %vm6756 = vweird.f32 %v6750
  %vm6757 = vmor %vm6755, %vm6756
  %v6758 = vsel %vm6757, %v6750, %v6754
  %v6759 = vand.u32 2147483647, %v6280
  %vm6760 = vcmp.eq.f32.partialorder %v6759, 8.507059e+37
  %v6761 = vand.u32 %v6280, 2147483648
  %v6762 = vor.u32 1.1754944e-38, %v6761
  %v6763 = vsel %vm6760, %v6762, %v6758
  %v6764 = vmul.f32 1.0, %v6763
  %v6765 = vrcp.pop %v6281
  %v6766 = vmul.f32 %v6281, %v6765
  %v6767 = vsub.f32 1.0, %v6766
  %v6768 = vmul.f32 %v6765, %v6767
  %v6769 = vadd.f32 %v6765, %v6768
  %vm6770 = vweird.f32 %v6281
  %vm6771 = vweird.f32 %v6765
  %vm6772 = vmor %vm6770, %vm6771
  %v6773 = vsel %vm6772, %v6765, %v6769
  %v6774 = vand.u32 2147483647, %v6281
  %vm6775 = vcmp.eq.f32.partialorder %v6774, 8.507059e+37
  %v6776 = vand.u32 %v6281, 2147483648
  %v6777 = vor.u32 1.1754944e-38, %v6776
  %v6778 = vsel %vm6775, %v6777, %v6773
  %v6779 = vmul.f32 1.0, %v6778
  %v6780 = vrcp.pop %v6282
  %v6781 = vmul.f32 %v6282, %v6780
  %v6782 = vsub.f32 1.0, %v6781
  %v6783 = vmul.f32 %v6780, %v6782
  %v6784 = vadd.f32 %v6780, %v6783
  %vm6785 = vweird.f32 %v6282
  %vm6786 = vweird.f32 %v6780
  %vm6787 = vmor %vm6785, %vm6786
  %v6788 = vsel %vm6787, %v6780, %v6784
  %v6789 = vand.u32 2147483647, %v6282
  %vm6790 = vcmp.eq.f32.partialorder %v6789, 8.507059e+37
  %v6791 = vand.u32 %v6282, 2147483648
  %v6792 = vor.u32 1.1754944e-38, %v6791
  %v6793 = vsel %vm6790, %v6792, %v6788
  %v6794 = vmul.f32 1.0, %v6793
  %v6795 = vrcp.pop %v6283
  %v6796 = vmul.f32 %v6283, %v6795
  %v6797 = vsub.f32 1.0, %v6796
  %v6798 = vmul.f32 %v6795, %v6797
  %v6799 = vadd.f32 %v6795, %v6798
  %vm6800 = vweird.f32 %v6283
  %vm6801 = vweird.f32 %v6795
  %vm6802 = vmor %vm6800, %vm6801
  %v6803 = vsel %vm6802, %v6795, %v6799
  %v6804 = vand.u32 2147483647, %v6283
  %vm6805 = vcmp.eq.f32.partialorder %v6804, 8.507059e+37
  %v6806 = vand.u32 %v6283, 2147483648
  %v6807 = vor.u32 1.1754944e-38, %v6806
  %v6808 = vsel %vm6805, %v6807, %v6803
  %v6809 = vmul.f32 1.0, %v6808
  %v6810 = vrcp.pop %v6284
  %v6811 = vmul.f32 %v6284, %v6810
  %v6812 = vsub.f32 1.0, %v6811
  %v6813 = vmul.f32 %v6810, %v6812
  %v6814 = vadd.f32 %v6810, %v6813
  %vm6815 = vweird.f32 %v6284
  %vm6816 = vweird.f32 %v6810
  %vm6817 = vmor %vm6815, %vm6816
  %v6818 = vsel %vm6817, %v6810, %v6814
  %v6819 = vand.u32 2147483647, %v6284
  %vm6820 = vcmp.eq.f32.partialorder %v6819, 8.507059e+37
  %v6821 = vand.u32 %v6284, 2147483648
  %v6822 = vor.u32 1.1754944e-38, %v6821
  %v6823 = vsel %vm6820, %v6822, %v6818
  %v6824 = vmul.f32 1.0, %v6823
  %v6825 = vrcp.pop %v6285
  %v6826 = vmul.f32 %v6285, %v6825
  %v6827 = vsub.f32 1.0, %v6826
  %v6828 = vmul.f32 %v6825, %v6827
  %v6829 = vadd.f32 %v6825, %v6828
  %vm6830 = vweird.f32 %v6285
  %vm6831 = vweird.f32 %v6825
  %vm6832 = vmor %vm6830, %vm6831
  %v6833 = vsel %vm6832, %v6825, %v6829
  %v6834 = vand.u32 2147483647, %v6285
  %vm6835 = vcmp.eq.f32.partialorder %v6834, 8.507059e+37
  %v6836 = vand.u32 %v6285, 2147483648
  %v6837 = vor.u32 1.1754944e-38, %v6836
  %v6838 = vsel %vm6835, %v6837, %v6833
  %v6839 = vmul.f32 1.0, %v6838
  %v6840 = vrcp.pop %v6286
  %v6841 = vmul.f32 %v6286, %v6840
  %v6842 = vsub.f32 1.0, %v6841
  %v6843 = vmul.f32 %v6840, %v6842
  %v6844 = vadd.f32 %v6840, %v6843
  %vm6845 = vweird.f32 %v6286
  %vm6846 = vweird.f32 %v6840
  %vm6847 = vmor %vm6845, %vm6846
  %v6848 = vsel %vm6847, %v6840, %v6844
  %v6849 = vand.u32 2147483647, %v6286
  %vm6850 = vcmp.eq.f32.partialorder %v6849, 8.507059e+37
  %v6851 = vand.u32 %v6286, 2147483648
  %v6852 = vor.u32 1.1754944e-38, %v6851
  %v6853 = vsel %vm6850, %v6852, %v6848
  %v6854 = vmul.f32 1.0, %v6853
  %v6855 = vrcp.pop %v6287
  %v6856 = vmul.f32 %v6287, %v6855
  %v6857 = vsub.f32 1.0, %v6856
  %v6858 = vmul.f32 %v6855, %v6857
  %v6859 = vadd.f32 %v6855, %v6858
  %vm6860 = vweird.f32 %v6287
  %vm6861 = vweird.f32 %v6855
  %vm6862 = vmor %vm6860, %vm6861
  %v6863 = vsel %vm6862, %v6855, %v6859
  %v6864 = vand.u32 2147483647, %v6287
  %vm6865 = vcmp.eq.f32.partialorder %v6864, 8.507059e+37
  %v6866 = vand.u32 %v6287, 2147483648
  %v6867 = vor.u32 1.1754944e-38, %v6866
  %v6868 = vsel %vm6865, %v6867, %v6863
  %v6869 = vmul.f32 1.0, %v6868
  %v6870 = vrcp.pop %v6288
  %v6871 = vmul.f32 %v6288, %v6870
  %v6872 = vsub.f32 1.0, %v6871
  %v6873 = vmul.f32 %v6870, %v6872
  %v6874 = vadd.f32 %v6870, %v6873
  %vm6875 = vweird.f32 %v6288
  %vm6876 = vweird.f32 %v6870
  %vm6877 = vmor %vm6875, %vm6876
  %v6878 = vsel %vm6877, %v6870, %v6874
  %v6879 = vand.u32 2147483647, %v6288
  %vm6880 = vcmp.eq.f32.partialorder %v6879, 8.507059e+37
  %v6881 = vand.u32 %v6288, 2147483648
  %v6882 = vor.u32 1.1754944e-38, %v6881
  %v6883 = vsel %vm6880, %v6882, %v6878
  %v6884 = vmul.f32 1.0, %v6883
  %v6885 = vrcp.pop %v6289
  %v6886 = vmul.f32 %v6289, %v6885
  %v6887 = vsub.f32 1.0, %v6886
  %v6888 = vmul.f32 %v6885, %v6887
  %v6889 = vadd.f32 %v6885, %v6888
  %vm6890 = vweird.f32 %v6289
  %vm6891 = vweird.f32 %v6885
  %vm6892 = vmor %vm6890, %vm6891
  %v6893 = vsel %vm6892, %v6885, %v6889
  %v6894 = vand.u32 2147483647, %v6289
  %vm6895 = vcmp.eq.f32.partialorder %v6894, 8.507059e+37
  %v6896 = vand.u32 %v6289, 2147483648
  %v6897 = vor.u32 1.1754944e-38, %v6896
  %v6898 = vsel %vm6895, %v6897, %v6893
  %v6899 = vmul.f32 1.0, %v6898
  %v6900 = vrcp.pop %v6290
  %v6901 = vmul.f32 %v6290, %v6900
  %v6902 = vsub.f32 1.0, %v6901
  %v6903 = vmul.f32 %v6900, %v6902
  %v6904 = vadd.f32 %v6900, %v6903
  %vm6905 = vweird.f32 %v6290
  %vm6906 = vweird.f32 %v6900
  %vm6907 = vmor %vm6905, %vm6906
  %v6908 = vsel %vm6907, %v6900, %v6904
  %v6909 = vand.u32 2147483647, %v6290
  %vm6910 = vcmp.eq.f32.partialorder %v6909, 8.507059e+37
  %v6911 = vand.u32 %v6290, 2147483648
  %v6912 = vor.u32 1.1754944e-38, %v6911
  %v6913 = vsel %vm6910, %v6912, %v6908
  %v6914 = vmul.f32 1.0, %v6913
  %v6915 = vrcp.pop %v6291
  %v6916 = vmul.f32 %v6291, %v6915
  %v6917 = vsub.f32 1.0, %v6916
  %v6918 = vmul.f32 %v6915, %v6917
  %v6919 = vadd.f32 %v6915, %v6918
  %vm6920 = vweird.f32 %v6291
  %vm6921 = vweird.f32 %v6915
  %vm6922 = vmor %vm6920, %vm6921
  %v6923 = vsel %vm6922, %v6915, %v6919
  %v6924 = vand.u32 2147483647, %v6291
  %vm6925 = vcmp.eq.f32.partialorder %v6924, 8.507059e+37
  %v6926 = vand.u32 %v6291, 2147483648
  %v6927 = vor.u32 1.1754944e-38, %v6926
  %v6928 = vsel %vm6925, %v6927, %v6923
  %v6929 = vmul.f32 1.0, %v6928
  %v6930 = vrcp.pop %v6292
  %v6931 = vmul.f32 %v6292, %v6930
  %v6932 = vsub.f32 1.0, %v6931
  %v6933 = vmul.f32 %v6930, %v6932
  %v6934 = vadd.f32 %v6930, %v6933
  %vm6935 = vweird.f32 %v6292
  %vm6936 = vweird.f32 %v6930
  %vm6937 = vmor %vm6935, %vm6936
  %v6938 = vsel %vm6937, %v6930, %v6934
  %v6939 = vand.u32 2147483647, %v6292
  %vm6940 = vcmp.eq.f32.partialorder %v6939, 8.507059e+37
  %v6941 = vand.u32 %v6292, 2147483648
  %v6942 = vor.u32 1.1754944e-38, %v6941
  %v6943 = vsel %vm6940, %v6942, %v6938
  %v6944 = vmul.f32 1.0, %v6943
  %v6945 = vrcp.pop %v6293
  %v6946 = vmul.f32 %v6293, %v6945
  %v6947 = vsub.f32 1.0, %v6946
  %v6948 = vmul.f32 %v6945, %v6947
  %v6949 = vadd.f32 %v6945, %v6948
  %vm6950 = vweird.f32 %v6293
  %vm6951 = vweird.f32 %v6945
  %vm6952 = vmor %vm6950, %vm6951
  %v6953 = vsel %vm6952, %v6945, %v6949
  %v6954 = vand.u32 2147483647, %v6293
  %vm6955 = vcmp.eq.f32.partialorder %v6954, 8.507059e+37
  %v6956 = vand.u32 %v6293, 2147483648
  %v6957 = vor.u32 1.1754944e-38, %v6956
  %v6958 = vsel %vm6955, %v6957, %v6953
  %v6959 = vmul.f32 1.0, %v6958
  %v6960 = vrcp.pop %v6294
  %v6961 = vmul.f32 %v6294, %v6960
  %v6962 = vsub.f32 1.0, %v6961
  %v6963 = vmul.f32 %v6960, %v6962
  %v6964 = vadd.f32 %v6960, %v6963
  %vm6965 = vweird.f32 %v6294
  %vm6966 = vweird.f32 %v6960
  %vm6967 = vmor %vm6965, %vm6966
  %v6968 = vsel %vm6967, %v6960, %v6964
  %v6969 = vand.u32 2147483647, %v6294
  %vm6970 = vcmp.eq.f32.partialorder %v6969, 8.507059e+37
  %v6971 = vand.u32 %v6294, 2147483648
  %v6972 = vor.u32 1.1754944e-38, %v6971
  %v6973 = vsel %vm6970, %v6972, %v6968
  %v6974 = vmul.f32 1.0, %v6973
  %v6975 = vrcp.pop %v6295
  %v6976 = vmul.f32 %v6295, %v6975
  %v6977 = vsub.f32 1.0, %v6976
  %v6978 = vmul.f32 %v6975, %v6977
  %v6979 = vadd.f32 %v6975, %v6978
  %vm6980 = vweird.f32 %v6295
  %vm6981 = vweird.f32 %v6975
  %vm6982 = vmor %vm6980, %vm6981
  %v6983 = vsel %vm6982, %v6975, %v6979
  %v6984 = vand.u32 2147483647, %v6295
  %vm6985 = vcmp.eq.f32.partialorder %v6984, 8.507059e+37
  %v6986 = vand.u32 %v6295, 2147483648
  %v6987 = vor.u32 1.1754944e-38, %v6986
  %v6988 = vsel %vm6985, %v6987, %v6983
  %v6989 = vmul.f32 1.0, %v6988
  %v6990 = vrcp.pop %v6296
  %v6991 = vmul.f32 %v6296, %v6990
  %v6992 = vsub.f32 1.0, %v6991
  %v6993 = vmul.f32 %v6990, %v6992
  %v6994 = vadd.f32 %v6990, %v6993
  %vm6995 = vweird.f32 %v6296
  %vm6996 = vweird.f32 %v6990
  %vm6997 = vmor %vm6995, %vm6996
  %v6998 = vsel %vm6997, %v6990, %v6994
  %v6999 = vand.u32 2147483647, %v6296
  %vm7000 = vcmp.eq.f32.partialorder %v6999, 8.507059e+37
  %v7001 = vand.u32 %v6296, 2147483648
  %v7002 = vor.u32 1.1754944e-38, %v7001
  %v7003 = vsel %vm7000, %v7002, %v6998
  %v7004 = vmul.f32 1.0, %v7003
  %v7005 = vrcp.pop %v6297
  %v7006 = vmul.f32 %v6297, %v7005
  %v7007 = vsub.f32 1.0, %v7006
  %v7008 = vmul.f32 %v7005, %v7007
  %v7009 = vadd.f32 %v7005, %v7008
  %vm7010 = vweird.f32 %v6297
  %vm7011 = vweird.f32 %v7005
  %vm7012 = vmor %vm7010, %vm7011
  %v7013 = vsel %vm7012, %v7005, %v7009
  %v7014 = vand.u32 2147483647, %v6297
  %vm7015 = vcmp.eq.f32.partialorder %v7014, 8.507059e+37
  %v7016 = vand.u32 %v6297, 2147483648
  %v7017 = vor.u32 1.1754944e-38, %v7016
  %v7018 = vsel %vm7015, %v7017, %v7013
  %v7019 = vmul.f32 1.0, %v7018
  %v7020 = vrcp.pop %v6298
  %v7021 = vmul.f32 %v6298, %v7020
  %v7022 = vsub.f32 1.0, %v7021
  %v7023 = vmul.f32 %v7020, %v7022
  %v7024 = vadd.f32 %v7020, %v7023
  %vm7025 = vweird.f32 %v6298
  %vm7026 = vweird.f32 %v7020
  %vm7027 = vmor %vm7025, %vm7026
  %v7028 = vsel %vm7027, %v7020, %v7024
  %v7029 = vand.u32 2147483647, %v6298
  %vm7030 = vcmp.eq.f32.partialorder %v7029, 8.507059e+37
  %v7031 = vand.u32 %v6298, 2147483648
  %v7032 = vor.u32 1.1754944e-38, %v7031
  %v7033 = vsel %vm7030, %v7032, %v7028
  %v7034 = vmul.f32 1.0, %v7033
  %v7035 = vrcp.pop %v6299
  %v7036 = vmul.f32 %v6299, %v7035
  %v7037 = vsub.f32 1.0, %v7036
  %v7038 = vmul.f32 %v7035, %v7037
  %v7039 = vadd.f32 %v7035, %v7038
  %vm7040 = vweird.f32 %v6299
  %vm7041 = vweird.f32 %v7035
  %vm7042 = vmor %vm7040, %vm7041
  %v7043 = vsel %vm7042, %v7035, %v7039
  %v7044 = vand.u32 2147483647, %v6299
  %vm7045 = vcmp.eq.f32.partialorder %v7044, 8.507059e+37
  %v7046 = vand.u32 %v6299, 2147483648
  %v7047 = vor.u32 1.1754944e-38, %v7046
  %v7048 = vsel %vm7045, %v7047, %v7043
  %v7049 = vmul.f32 1.0, %v7048
  %v7050 = vrcp.pop %v6300
  %v7051 = vmul.f32 %v6300, %v7050
  %v7052 = vsub.f32 1.0, %v7051
  %v7053 = vmul.f32 %v7050, %v7052
  %v7054 = vadd.f32 %v7050, %v7053
  %vm7055 = vweird.f32 %v6300
  %vm7056 = vweird.f32 %v7050
  %vm7057 = vmor %vm7055, %vm7056
  %v7058 = vsel %vm7057, %v7050, %v7054
  %v7059 = vand.u32 2147483647, %v6300
  %vm7060 = vcmp.eq.f32.partialorder %v7059, 8.507059e+37
  %v7061 = vand.u32 %v6300, 2147483648
  %v7062 = vor.u32 1.1754944e-38, %v7061
  %v7063 = vsel %vm7060, %v7062, %v7058
  %v7064 = vmul.f32 1.0, %v7063
  %v7065 = vrcp.pop %v6301
  %v7066 = vmul.f32 %v6301, %v7065
  %v7067 = vsub.f32 1.0, %v7066
  %v7068 = vmul.f32 %v7065, %v7067
  %v7069 = vadd.f32 %v7065, %v7068
  %vm7070 = vweird.f32 %v6301
  %vm7071 = vweird.f32 %v7065
  %vm7072 = vmor %vm7070, %vm7071
  %v7073 = vsel %vm7072, %v7065, %v7069
  %v7074 = vand.u32 2147483647, %v6301
  %vm7075 = vcmp.eq.f32.partialorder %v7074, 8.507059e+37
  %v7076 = vand.u32 %v6301, 2147483648
  %v7077 = vor.u32 1.1754944e-38, %v7076
  %v7078 = vsel %vm7075, %v7077, %v7073
  %v7079 = vmul.f32 1.0, %v7078
  %v7080 = vrcp.pop %v6302
  %v7081 = vmul.f32 %v6302, %v7080
  %v7082 = vsub.f32 1.0, %v7081
  %v7083 = vmul.f32 %v7080, %v7082
  %v7084 = vadd.f32 %v7080, %v7083
  %vm7085 = vweird.f32 %v6302
  %vm7086 = vweird.f32 %v7080
  %vm7087 = vmor %vm7085, %vm7086
  %v7088 = vsel %vm7087, %v7080, %v7084
  %v7089 = vand.u32 2147483647, %v6302
  %vm7090 = vcmp.eq.f32.partialorder %v7089, 8.507059e+37
  %v7091 = vand.u32 %v6302, 2147483648
  %v7092 = vor.u32 1.1754944e-38, %v7091
  %v7093 = vsel %vm7090, %v7092, %v7088
  %v7094 = vmul.f32 1.0, %v7093
  %v7095 = vrcp.pop %v6303
  %v7096 = vmul.f32 %v6303, %v7095
  %v7097 = vsub.f32 1.0, %v7096
  %v7098 = vmul.f32 %v7095, %v7097
  %v7099 = vadd.f32 %v7095, %v7098
  %vm7100 = vweird.f32 %v6303
  %vm7101 = vweird.f32 %v7095
  %vm7102 = vmor %vm7100, %vm7101
  %v7103 = vsel %vm7102, %v7095, %v7099
  %v7104 = vand.u32 2147483647, %v6303
  %vm7105 = vcmp.eq.f32.partialorder %v7104, 8.507059e+37
  %v7106 = vand.u32 %v6303, 2147483648
  %v7107 = vor.u32 1.1754944e-38, %v7106
  %v7108 = vsel %vm7105, %v7107, %v7103
  %v7109 = vmul.f32 1.0, %v7108
  %v7110 = vrcp.pop %v6304
  %v7111 = vmul.f32 %v6304, %v7110
  %v7112 = vsub.f32 1.0, %v7111
  %v7113 = vmul.f32 %v7110, %v7112
  %v7114 = vadd.f32 %v7110, %v7113
  %vm7115 = vweird.f32 %v6304
  %vm7116 = vweird.f32 %v7110
  %vm7117 = vmor %vm7115, %vm7116
  %v7118 = vsel %vm7117, %v7110, %v7114
  %v7119 = vand.u32 2147483647, %v6304
  %vm7120 = vcmp.eq.f32.partialorder %v7119, 8.507059e+37
  %v7121 = vand.u32 %v6304, 2147483648
  %v7122 = vor.u32 1.1754944e-38, %v7121
  %v7123 = vsel %vm7120, %v7122, %v7118
  %v7124 = vmul.f32 1.0, %v7123
  %v7125 = vrcp.pop %v6305
  %v7126 = vmul.f32 %v6305, %v7125
  %v7127 = vsub.f32 1.0, %v7126
  %v7128 = vmul.f32 %v7125, %v7127
  %v7129 = vadd.f32 %v7125, %v7128
  %vm7130 = vweird.f32 %v6305
  %vm7131 = vweird.f32 %v7125
  %vm7132 = vmor %vm7130, %vm7131
  %v7133 = vsel %vm7132, %v7125, %v7129
  %v7134 = vand.u32 2147483647, %v6305
  %vm7135 = vcmp.eq.f32.partialorder %v7134, 8.507059e+37
  %v7136 = vand.u32 %v6305, 2147483648
  %v7137 = vor.u32 1.1754944e-38, %v7136
  %v7138 = vsel %vm7135, %v7137, %v7133
  %v7139 = vmul.f32 1.0, %v7138
  %v7140 = vrcp.pop %v6306
  %v7141 = vmul.f32 %v6306, %v7140
  %v7142 = vsub.f32 1.0, %v7141
  %v7143 = vmul.f32 %v7140, %v7142
  %v7144 = vadd.f32 %v7140, %v7143
  %vm7145 = vweird.f32 %v6306
  %vm7146 = vweird.f32 %v7140
  %vm7147 = vmor %vm7145, %vm7146
  %v7148 = vsel %vm7147, %v7140, %v7144
  %v7149 = vand.u32 2147483647, %v6306
  %vm7150 = vcmp.eq.f32.partialorder %v7149, 8.507059e+37
  %v7151 = vand.u32 %v6306, 2147483648
  %v7152 = vor.u32 1.1754944e-38, %v7151
  %v7153 = vsel %vm7150, %v7152, %v7148
  %v7154 = vmul.f32 1.0, %v7153
  %v7155 = vrcp.pop %v6307
  %v7156 = vmul.f32 %v6307, %v7155
  %v7157 = vsub.f32 1.0, %v7156
  %v7158 = vmul.f32 %v7155, %v7157
  %v7159 = vadd.f32 %v7155, %v7158
  %vm7160 = vweird.f32 %v6307
  %vm7161 = vweird.f32 %v7155
  %vm7162 = vmor %vm7160, %vm7161
  %v7163 = vsel %vm7162, %v7155, %v7159
  %v7164 = vand.u32 2147483647, %v6307
  %vm7165 = vcmp.eq.f32.partialorder %v7164, 8.507059e+37
  %v7166 = vand.u32 %v6307, 2147483648
  %v7167 = vor.u32 1.1754944e-38, %v7166
  %v7168 = vsel %vm7165, %v7167, %v7163
  %v7169 = vmul.f32 1.0, %v7168
  %v7170 = vrcp.pop %v6308
  %v7171 = vmul.f32 %v6308, %v7170
  %v7172 = vsub.f32 1.0, %v7171
  %v7173 = vmul.f32 %v7170, %v7172
  %v7174 = vadd.f32 %v7170, %v7173
  %vm7175 = vweird.f32 %v6308
  %vm7176 = vweird.f32 %v7170
  %vm7177 = vmor %vm7175, %vm7176
  %v7178 = vsel %vm7177, %v7170, %v7174
  %v7179 = vand.u32 2147483647, %v6308
  %vm7180 = vcmp.eq.f32.partialorder %v7179, 8.507059e+37
  %v7181 = vand.u32 %v6308, 2147483648
  %v7182 = vor.u32 1.1754944e-38, %v7181
  %v7183 = vsel %vm7180, %v7182, %v7178
  %v7184 = vmul.f32 1.0, %v7183
  %v7185 = vrcp.pop %v6309
  %v7186 = vmul.f32 %v6309, %v7185
  %v7187 = vsub.f32 1.0, %v7186
  %v7188 = vmul.f32 %v7185, %v7187
  %v7189 = vadd.f32 %v7185, %v7188
  %vm7190 = vweird.f32 %v6309
  %vm7191 = vweird.f32 %v7185
  %vm7192 = vmor %vm7190, %vm7191
  %v7193 = vsel %vm7192, %v7185, %v7189
  %v7194 = vand.u32 2147483647, %v6309
  %vm7195 = vcmp.eq.f32.partialorder %v7194, 8.507059e+37
  %v7196 = vand.u32 %v6309, 2147483648
  %v7197 = vor.u32 1.1754944e-38, %v7196
  %v7198 = vsel %vm7195, %v7197, %v7193
  %v7199 = vmul.f32 1.0, %v7198
  %v7200 = vrcp.pop %v6310
  %v7201 = vmul.f32 %v6310, %v7200
  %v7202 = vsub.f32 1.0, %v7201
  %v7203 = vmul.f32 %v7200, %v7202
  %v7204 = vadd.f32 %v7200, %v7203
  %vm7205 = vweird.f32 %v6310
  %vm7206 = vweird.f32 %v7200
  %vm7207 = vmor %vm7205, %vm7206
  %v7208 = vsel %vm7207, %v7200, %v7204
  %v7209 = vand.u32 2147483647, %v6310
  %vm7210 = vcmp.eq.f32.partialorder %v7209, 8.507059e+37
  %v7211 = vand.u32 %v6310, 2147483648
  %v7212 = vor.u32 1.1754944e-38, %v7211
  %v7213 = vsel %vm7210, %v7212, %v7208
  %v7214 = vmul.f32 1.0, %v7213
  %v7215 = vrcp.pop %v6311
  %v7216 = vmul.f32 %v6311, %v7215
  %v7217 = vsub.f32 1.0, %v7216
  %v7218 = vmul.f32 %v7215, %v7217
  %v7219 = vadd.f32 %v7215, %v7218
  %vm7220 = vweird.f32 %v6311
  %vm7221 = vweird.f32 %v7215
  %vm7222 = vmor %vm7220, %vm7221
  %v7223 = vsel %vm7222, %v7215, %v7219
  %v7224 = vand.u32 2147483647, %v6311
  %vm7225 = vcmp.eq.f32.partialorder %v7224, 8.507059e+37
  %v7226 = vand.u32 %v6311, 2147483648
  %v7227 = vor.u32 1.1754944e-38, %v7226
  %v7228 = vsel %vm7225, %v7227, %v7223
  %v7229 = vmul.f32 1.0, %v7228
  %v7230 = vrcp.pop %v6312
  %v7231 = vmul.f32 %v6312, %v7230
  %v7232 = vsub.f32 1.0, %v7231
  %v7233 = vmul.f32 %v7230, %v7232
  %v7234 = vadd.f32 %v7230, %v7233
  %vm7235 = vweird.f32 %v6312
  %vm7236 = vweird.f32 %v7230
  %vm7237 = vmor %vm7235, %vm7236
  %v7238 = vsel %vm7237, %v7230, %v7234
  %v7239 = vand.u32 2147483647, %v6312
  %vm7240 = vcmp.eq.f32.partialorder %v7239, 8.507059e+37
  %v7241 = vand.u32 %v6312, 2147483648
  %v7242 = vor.u32 1.1754944e-38, %v7241
  %v7243 = vsel %vm7240, %v7242, %v7238
  %v7244 = vmul.f32 1.0, %v7243
  %v7245 = vrcp.pop %v6313
  %v7246 = vmul.f32 %v6313, %v7245
  %v7247 = vsub.f32 1.0, %v7246
  %v7248 = vmul.f32 %v7245, %v7247
  %v7249 = vadd.f32 %v7245, %v7248
  %vm7250 = vweird.f32 %v6313
  %vm7251 = vweird.f32 %v7245
  %vm7252 = vmor %vm7250, %vm7251
  %v7253 = vsel %vm7252, %v7245, %v7249
  %v7254 = vand.u32 2147483647, %v6313
  %vm7255 = vcmp.eq.f32.partialorder %v7254, 8.507059e+37
  %v7256 = vand.u32 %v6313, 2147483648
  %v7257 = vor.u32 1.1754944e-38, %v7256
  %v7258 = vsel %vm7255, %v7257, %v7253
  %v7259 = vmul.f32 1.0, %v7258
  %v7260 = vrcp.pop %v6314
  %v7261 = vmul.f32 %v6314, %v7260
  %v7262 = vsub.f32 1.0, %v7261
  %v7263 = vmul.f32 %v7260, %v7262
  %v7264 = vadd.f32 %v7260, %v7263
  %vm7265 = vweird.f32 %v6314
  %vm7266 = vweird.f32 %v7260
  %vm7267 = vmor %vm7265, %vm7266
  %v7268 = vsel %vm7267, %v7260, %v7264
  %v7269 = vand.u32 2147483647, %v6314
  %vm7270 = vcmp.eq.f32.partialorder %v7269, 8.507059e+37
  %v7271 = vand.u32 %v6314, 2147483648
  %v7272 = vor.u32 1.1754944e-38, %v7271
  %v7273 = vsel %vm7270, %v7272, %v7268
  %v7274 = vmul.f32 1.0, %v7273
  %v7275 = vmul.f32 %v5927, %v6329
  %v7276 = vmul.f32 %v5928, %v6344
  %v7277 = vmul.f32 %v5929, %v6359
  %v7278 = vmul.f32 %v5930, %v6374
  %v7279 = vmul.f32 %v5931, %v6389
  %v7280 = vmul.f32 %v5932, %v6404
  %v7281 = vmul.f32 %v5933, %v6419
  %v7282 = vmul.f32 %v5934, %v6434
  %v7283 = vmul.f32 %v5935, %v6449
  %v7284 = vmul.f32 %v5936, %v6464
  %v7285 = vmul.f32 %v5937, %v6479
  %v7286 = vmul.f32 %v5938, %v6494
  %v7287 = vmul.f32 %v5939, %v6509
  %v7288 = vmul.f32 %v5940, %v6524
  %v7289 = vmul.f32 %v5941, %v6539
  %v7290 = vmul.f32 %v5942, %v6554
  %v7291 = vmul.f32 %v5943, %v6569
  %v7292 = vmul.f32 %v5944, %v6584
  %v7293 = vmul.f32 %v5945, %v6599
  %v7294 = vmul.f32 %v5946, %v6614
  %v7295 = vmul.f32 %v5947, %v6629
  %v7296 = vmul.f32 %v5948, %v6644
  %v7297 = vmul.f32 %v5949, %v6659
  %v7298 = vmul.f32 %v5950, %v6674
  %v7299 = vmul.f32 %v5951, %v6689
  %v7300 = vmul.f32 %v5952, %v6704
  %v7301 = vmul.f32 %v5953, %v6719
  %v7302 = vmul.f32 %v5954, %v6734
  %v7303 = vmul.f32 %v5955, %v6749
  %v7304 = vmul.f32 %v5956, %v6764
  %v7305 = vmul.f32 %v5957, %v6779
  %v7306 = vmul.f32 %v5958, %v6794
  %v7307 = vmul.f32 %v5959, %v6809
  %v7308 = vmul.f32 %v5960, %v6824
  %v7309 = vmul.f32 %v5961, %v6839
  %v7310 = vmul.f32 %v5962, %v6854
  %v7311 = vmul.f32 %v5963, %v6869
  %v7312 = vmul.f32 %v5964, %v6884
  %v7313 = vmul.f32 %v5965, %v6899
  %v7314 = vmul.f32 %v5966, %v6914
  %v7315 = vmul.f32 %v5967, %v6929
  %v7316 = vmul.f32 %v5968, %v6944
  %v7317 = vmul.f32 %v5969, %v6959
  %v7318 = vmul.f32 %v5970, %v6974
  %v7319 = vmul.f32 %v5971, %v6989
  %v7320 = vmul.f32 %v5972, %v7004
  %v7321 = vmul.f32 %v5973, %v7019
  %v7322 = vmul.f32 %v5974, %v7034
  %v7323 = vmul.f32 %v5975, %v7049
  %v7324 = vmul.f32 %v5976, %v7064
  %v7325 = vmul.f32 %v5977, %v7079
  %v7326 = vmul.f32 %v5978, %v7094
  %v7327 = vmul.f32 %v5979, %v7109
  %v7328 = vmul.f32 %v5980, %v7124
  %v7329 = vmul.f32 %v5981, %v7139
  %v7330 = vmul.f32 %v5982, %v7154
  %v7331 = vmul.f32 %v5983, %v7169
  %v7332 = vmul.f32 %v5984, %v7184
  %v7333 = vmul.f32 %v5985, %v7199
  %v7334 = vmul.f32 %v5986, %v7214
  %v7335 = vmul.f32 %v5987, %v7229
  %v7336 = vmul.f32 %v5988, %v7244
  %v7337 = vmul.f32 %v5989, %v7259
  %v7338 = vmul.f32 %v5990, %v7274
  %v7339 = vsel %vm3004, %v7275, 0.0
  %v7340 = vsel %vm3004, %v7276, 0.0
  %v7341 = vadd.f32 %v7339, %v7340
  %v7342 = vsel %vm3004, %v7277, 0.0
  %v7343 = vadd.f32 %v7341, %v7342
  %v7344 = vsel %vm3004, %v7278, 0.0
  %v7345 = vadd.f32 %v7343, %v7344
  %v7346 = vsel %vm3004, %v7279, 0.0
  %v7347 = vadd.f32 %v7345, %v7346
  %v7348 = vsel %vm3004, %v7280, 0.0
  %v7349 = vadd.f32 %v7347, %v7348
  %v7350 = vsel %vm3004, %v7281, 0.0
  %v7351 = vadd.f32 %v7349, %v7350
  %v7352 = vsel %vm3004, %v7282, 0.0
  %v7353 = vadd.f32 %v7351, %v7352
  %v7354 = vsel %vm3004, %v7283, 0.0
  %v7355 = vadd.f32 %v7353, %v7354
  %v7356 = vsel %vm3004, %v7284, 0.0
  %v7357 = vadd.f32 %v7355, %v7356
  %v7358 = vsel %vm3004, %v7285, 0.0
  %v7359 = vadd.f32 %v7357, %v7358
  %v7360 = vsel %vm3004, %v7286, 0.0
  %v7361 = vadd.f32 %v7359, %v7360
  %v7362 = vsel %vm3004, %v7287, 0.0
  %v7363 = vadd.f32 %v7361, %v7362
  %v7364 = vsel %vm3004, %v7288, 0.0
  %v7365 = vadd.f32 %v7363, %v7364
  %v7366 = vsel %vm3004, %v7289, 0.0
  %v7367 = vadd.f32 %v7365, %v7366
  %v7368 = vsel %vm3004, %v7290, 0.0
  %v7369 = vadd.f32 %v7367, %v7368
  %v7370 = vsel %vm3004, %v7291, 0.0
  %v7371 = vadd.f32 %v7369, %v7370
  %v7372 = vsel %vm3004, %v7292, 0.0
  %v7373 = vadd.f32 %v7371, %v7372
  %v7374 = vsel %vm3004, %v7293, 0.0
  %v7375 = vadd.f32 %v7373, %v7374
  %v7376 = vsel %vm3004, %v7294, 0.0
  %v7377 = vadd.f32 %v7375, %v7376
  %v7378 = vsel %vm3004, %v7295, 0.0
  %v7379 = vadd.f32 %v7377, %v7378
  %v7380 = vsel %vm3004, %v7296, 0.0
  %v7381 = vadd.f32 %v7379, %v7380
  %v7382 = vsel %vm3004, %v7297, 0.0
  %v7383 = vadd.f32 %v7381, %v7382
  %v7384 = vsel %vm3004, %v7298, 0.0
  %v7385 = vadd.f32 %v7383, %v7384
  %v7386 = vsel %vm3004, %v7299, 0.0
  %v7387 = vadd.f32 %v7385, %v7386
  %v7388 = vsel %vm3004, %v7300, 0.0
  %v7389 = vadd.f32 %v7387, %v7388
  %v7390 = vsel %vm3004, %v7301, 0.0
  %v7391 = vadd.f32 %v7389, %v7390
  %v7392 = vsel %vm3004, %v7302, 0.0
  %v7393 = vadd.f32 %v7391, %v7392
  %v7394 = vsel %vm3004, %v7303, 0.0
  %v7395 = vadd.f32 %v7393, %v7394
  %v7396 = vsel %vm3004, %v7304, 0.0
  %v7397 = vadd.f32 %v7395, %v7396
  %v7398 = vsel %vm3004, %v7305, 0.0
  %v7399 = vadd.f32 %v7397, %v7398
  %v7400 = vsel %vm3004, %v7306, 0.0
  %v7401 = vadd.f32 %v7399, %v7400
  %v7402 = vsel %vm3004, %v7307, 0.0
  %v7403 = vadd.f32 %v7401, %v7402
  %v7404 = vsel %vm3004, %v7308, 0.0
  %v7405 = vadd.f32 %v7403, %v7404
  %v7406 = vsel %vm3004, %v7309, 0.0
  %v7407 = vadd.f32 %v7405, %v7406
  %v7408 = vsel %vm3004, %v7310, 0.0
  %v7409 = vadd.f32 %v7407, %v7408
  %v7410 = vsel %vm3004, %v7311, 0.0
  %v7411 = vadd.f32 %v7409, %v7410
  %v7412 = vsel %vm3004, %v7312, 0.0
  %v7413 = vadd.f32 %v7411, %v7412
  %v7414 = vsel %vm3004, %v7313, 0.0
  %v7415 = vadd.f32 %v7413, %v7414
  %v7416 = vsel %vm3004, %v7314, 0.0
  %v7417 = vadd.f32 %v7415, %v7416
  %v7418 = vsel %vm3004, %v7315, 0.0
  %v7419 = vadd.f32 %v7417, %v7418
  %v7420 = vsel %vm3004, %v7316, 0.0
  %v7421 = vadd.f32 %v7419, %v7420
  %v7422 = vsel %vm3004, %v7317, 0.0
  %v7423 = vadd.f32 %v7421, %v7422
  %v7424 = vsel %vm3004, %v7318, 0.0
  %v7425 = vadd.f32 %v7423, %v7424
  %v7426 = vsel %vm3004, %v7319, 0.0
  %v7427 = vadd.f32 %v7425, %v7426
  %v7428 = vsel %vm3004, %v7320, 0.0
  %v7429 = vadd.f32 %v7427, %v7428
  %v7430 = vsel %vm3004, %v7321, 0.0
  %v7431 = vadd.f32 %v7429, %v7430
  %v7432 = vsel %vm3004, %v7322, 0.0
  %v7433 = vadd.f32 %v7431, %v7432
  %v7434 = vsel %vm3004, %v7323, 0.0
  %v7435 = vadd.f32 %v7433, %v7434
  %v7436 = vsel %vm3004, %v7324, 0.0
  %v7437 = vadd.f32 %v7435, %v7436
  %v7438 = vsel %vm3004, %v7325, 0.0
  %v7439 = vadd.f32 %v7437, %v7438
  %v7440 = vsel %vm3004, %v7326, 0.0
  %v7441 = vadd.f32 %v7439, %v7440
  %v7442 = vsel %vm3004, %v7327, 0.0
  %v7443 = vadd.f32 %v7441, %v7442
  %v7444 = vsel %vm3004, %v7328, 0.0
  %v7445 = vadd.f32 %v7443, %v7444
  %v7446 = vsel %vm3004, %v7329, 0.0
  %v7447 = vadd.f32 %v7445, %v7446
  %v7448 = vsel %vm3004, %v7330, 0.0
  %v7449 = vadd.f32 %v7447, %v7448
  %v7450 = vsel %vm3004, %v7331, 0.0
  %v7451 = vadd.f32 %v7449, %v7450
  %v7452 = vsel %vm3004, %v7332, 0.0
  %v7453 = vadd.f32 %v7451, %v7452
  %v7454 = vsel %vm3004, %v7333, 0.0
  %v7455 = vadd.f32 %v7453, %v7454
  %v7456 = vsel %vm3004, %v7334, 0.0
  %v7457 = vadd.f32 %v7455, %v7456
  %v7458 = vsel %vm3004, %v7335, 0.0
  %v7459 = vadd.f32 %v7457, %v7458
  %v7460 = vsel %vm3004, %v7336, 0.0
  %v7461 = vadd.f32 %v7459, %v7460
  %v7462 = vsel %vm3004, %v7337, 0.0
  %v7463 = vadd.f32 %v7461, %v7462
  %v7464 = vsel %vm3004, %v7338, 0.0
  %v7465 = vadd.f32 %v7463, %v7464
  %v7466 = vrot.slane %v7465, 4
  %v7467 = vadd.f32 %v7465, %v7466
  %v7468 = vrot.slane %v7467, 2
  %v7469 = vadd.f32 %v7467, %v7468
  %v7470 = vrot.slane %v7469, 1
  %v7471 = vadd.f32 %v7469, %v7470
  %v7472 = vrcp.pop 512.0
  %v7473 = vmul.f32 512.0, %v7472
  %v7474 = vsub.f32 1.0, %v7473
  %v7475 = vmul.f32 %v7472, %v7474
  %v7476 = vadd.f32 %v7472, %v7475
  %vm7477 = vweird.f32 %v7472
  %v7478 = vsel %vm7477, %v7472, %v7476
  %v7479 = vmul.f32 %v7471, %v7478
  %v7480 = vsub.f32 %v7275, %v7479
  %v7481 = vsub.f32 %v7276, %v7479
  %v7482 = vsub.f32 %v7277, %v7479
  %v7483 = vsub.f32 %v7278, %v7479
  %v7484 = vsub.f32 %v7279, %v7479
  %v7485 = vsub.f32 %v7280, %v7479
  %v7486 = vsub.f32 %v7281, %v7479
  %v7487 = vsub.f32 %v7282, %v7479
  %v7488 = vsub.f32 %v7283, %v7479
  %v7489 = vsub.f32 %v7284, %v7479
  %v7490 = vsub.f32 %v7285, %v7479
  %v7491 = vsub.f32 %v7286, %v7479
  %v7492 = vsub.f32 %v7287, %v7479
  %v7493 = vsub.f32 %v7288, %v7479
  %v7494 = vsub.f32 %v7289, %v7479
  %v7495 = vsub.f32 %v7290, %v7479
  %v7496 = vsub.f32 %v7291, %v7479
  %v7497 = vsub.f32 %v7292, %v7479
  %v7498 = vsub.f32 %v7293, %v7479
  %v7499 = vsub.f32 %v7294, %v7479
  %v7500 = vsub.f32 %v7295, %v7479
  %v7501 = vsub.f32 %v7296, %v7479
  %v7502 = vsub.f32 %v7297, %v7479
  %v7503 = vsub.f32 %v7298, %v7479
  %v7504 = vsub.f32 %v7299, %v7479
  %v7505 = vsub.f32 %v7300, %v7479
  %v7506 = vsub.f32 %v7301, %v7479
  %v7507 = vsub.f32 %v7302, %v7479
  %v7508 = vsub.f32 %v7303, %v7479
  %v7509 = vsub.f32 %v7304, %v7479
  %v7510 = vsub.f32 %v7305, %v7479
  %v7511 = vsub.f32 %v7306, %v7479
  %v7512 = vsub.f32 %v7307, %v7479
  %v7513 = vsub.f32 %v7308, %v7479
  %v7514 = vsub.f32 %v7309, %v7479
  %v7515 = vsub.f32 %v7310, %v7479
  %v7516 = vsub.f32 %v7311, %v7479
  %v7517 = vsub.f32 %v7312, %v7479
  %v7518 = vsub.f32 %v7313, %v7479
  %v7519 = vsub.f32 %v7314, %v7479
  %v7520 = vsub.f32 %v7315, %v7479
  %v7521 = vsub.f32 %v7316, %v7479
  %v7522 = vsub.f32 %v7317, %v7479
  %v7523 = vsub.f32 %v7318, %v7479
  %v7524 = vsub.f32 %v7319, %v7479
  %v7525 = vsub.f32 %v7320, %v7479
  %v7526 = vsub.f32 %v7321, %v7479
  %v7527 = vsub.f32 %v7322, %v7479
  %v7528 = vsub.f32 %v7323, %v7479
  %v7529 = vsub.f32 %v7324, %v7479
  %v7530 = vsub.f32 %v7325, %v7479
  %v7531 = vsub.f32 %v7326, %v7479
  %v7532 = vsub.f32 %v7327, %v7479
  %v7533 = vsub.f32 %v7328, %v7479
  %v7534 = vsub.f32 %v7329, %v7479
  %v7535 = vsub.f32 %v7330, %v7479
  %v7536 = vsub.f32 %v7331, %v7479
  %v7537 = vsub.f32 %v7332, %v7479
  %v7538 = vsub.f32 %v7333, %v7479
  %v7539 = vsub.f32 %v7334, %v7479
  %v7540 = vsub.f32 %v7335, %v7479
  %v7541 = vsub.f32 %v7336, %v7479
  %v7542 = vsub.f32 %v7337, %v7479
  %v7543 = vsub.f32 %v7338, %v7479
  %v7544 = vmul.f32 %v7480, %v7480
  %v7545 = vmul.f32 %v7481, %v7481
  %v7546 = vmul.f32 %v7482, %v7482
  %v7547 = vmul.f32 %v7483, %v7483
  %v7548 = vmul.f32 %v7484, %v7484
  %v7549 = vmul.f32 %v7485, %v7485
  %v7550 = vmul.f32 %v7486, %v7486
  %v7551 = vmul.f32 %v7487, %v7487
  %v7552 = vmul.f32 %v7488, %v7488
  %v7553 = vmul.f32 %v7489, %v7489
  %v7554 = vmul.f32 %v7490, %v7490
  %v7555 = vmul.f32 %v7491, %v7491
  %v7556 = vmul.f32 %v7492, %v7492
  %v7557 = vmul.f32 %v7493, %v7493
  %v7558 = vmul.f32 %v7494, %v7494
  %v7559 = vmul.f32 %v7495, %v7495
  %v7560 = vmul.f32 %v7496, %v7496
  %v7561 = vmul.f32 %v7497, %v7497
  %v7562 = vmul.f32 %v7498, %v7498
  %v7563 = vmul.f32 %v7499, %v7499
  %v7564 = vmul.f32 %v7500, %v7500
  %v7565 = vmul.f32 %v7501, %v7501
  %v7566 = vmul.f32 %v7502, %v7502
  %v7567 = vmul.f32 %v7503, %v7503
  %v7568 = vmul.f32 %v7504, %v7504
  %v7569 = vmul.f32 %v7505, %v7505
  %v7570 = vmul.f32 %v7506, %v7506
  %v7571 = vmul.f32 %v7507, %v7507
  %v7572 = vmul.f32 %v7508, %v7508
  %v7573 = vmul.f32 %v7509, %v7509
  %v7574 = vmul.f32 %v7510, %v7510
  %v7575 = vmul.f32 %v7511, %v7511
  %v7576 = vmul.f32 %v7512, %v7512
  %v7577 = vmul.f32 %v7513, %v7513
  %v7578 = vmul.f32 %v7514, %v7514
  %v7579 = vmul.f32 %v7515, %v7515
  %v7580 = vmul.f32 %v7516, %v7516
  %v7581 = vmul.f32 %v7517, %v7517
  %v7582 = vmul.f32 %v7518, %v7518
  %v7583 = vmul.f32 %v7519, %v7519
  %v7584 = vmul.f32 %v7520, %v7520
  %v7585 = vmul.f32 %v7521, %v7521
  %v7586 = vmul.f32 %v7522, %v7522
  %v7587 = vmul.f32 %v7523, %v7523
  %v7588 = vmul.f32 %v7524, %v7524
  %v7589 = vmul.f32 %v7525, %v7525
  %v7590 = vmul.f32 %v7526, %v7526
  %v7591 = vmul.f32 %v7527, %v7527
  %v7592 = vmul.f32 %v7528, %v7528
  %v7593 = vmul.f32 %v7529, %v7529
  %v7594 = vmul.f32 %v7530, %v7530
  %v7595 = vmul.f32 %v7531, %v7531
  %v7596 = vmul.f32 %v7532, %v7532
  %v7597 = vmul.f32 %v7533, %v7533
  %v7598 = vmul.f32 %v7534, %v7534
  %v7599 = vmul.f32 %v7535, %v7535
  %v7600 = vmul.f32 %v7536, %v7536
  %v7601 = vmul.f32 %v7537, %v7537
  %v7602 = vmul.f32 %v7538, %v7538
  %v7603 = vmul.f32 %v7539, %v7539
  %v7604 = vmul.f32 %v7540, %v7540
  %v7605 = vmul.f32 %v7541, %v7541
  %v7606 = vmul.f32 %v7542, %v7542
  %v7607 = vmul.f32 %v7543, %v7543
  %v7608 = vsel %vm3004, %v7544, 0.0
  %v7609 = vsel %vm3004, %v7545, 0.0
  %v7610 = vadd.f32 %v7608, %v7609
  %v7611 = vsel %vm3004, %v7546, 0.0
  %v7612 = vadd.f32 %v7610, %v7611
  %v7613 = vsel %vm3004, %v7547, 0.0
  %v7614 = vadd.f32 %v7612, %v7613
  %v7615 = vsel %vm3004, %v7548, 0.0
  %v7616 = vadd.f32 %v7614, %v7615
  %v7617 = vsel %vm3004, %v7549, 0.0
  %v7618 = vadd.f32 %v7616, %v7617
  %v7619 = vsel %vm3004, %v7550, 0.0
  %v7620 = vadd.f32 %v7618, %v7619
  %v7621 = vsel %vm3004, %v7551, 0.0
  %v7622 = vadd.f32 %v7620, %v7621
  %v7623 = vsel %vm3004, %v7552, 0.0
  %v7624 = vadd.f32 %v7622, %v7623
  %v7625 = vsel %vm3004, %v7553, 0.0
  %v7626 = vadd.f32 %v7624, %v7625
  %v7627 = vsel %vm3004, %v7554, 0.0
  %v7628 = vadd.f32 %v7626, %v7627
  %v7629 = vsel %vm3004, %v7555, 0.0
  %v7630 = vadd.f32 %v7628, %v7629
  %v7631 = vsel %vm3004, %v7556, 0.0
  %v7632 = vadd.f32 %v7630, %v7631
  %v7633 = vsel %vm3004, %v7557, 0.0
  %v7634 = vadd.f32 %v7632, %v7633
  %v7635 = vsel %vm3004, %v7558, 0.0
  %v7636 = vadd.f32 %v7634, %v7635
  %v7637 = vsel %vm3004, %v7559, 0.0
  %v7638 = vadd.f32 %v7636, %v7637
  %v7639 = vsel %vm3004, %v7560, 0.0
  %v7640 = vadd.f32 %v7638, %v7639
  %v7641 = vsel %vm3004, %v7561, 0.0
  %v7642 = vadd.f32 %v7640, %v7641
  %v7643 = vsel %vm3004, %v7562, 0.0
  %v7644 = vadd.f32 %v7642, %v7643
  %v7645 = vsel %vm3004, %v7563, 0.0
  %v7646 = vadd.f32 %v7644, %v7645
  %v7647 = vsel %vm3004, %v7564, 0.0
  %v7648 = vadd.f32 %v7646, %v7647
  %v7649 = vsel %vm3004, %v7565, 0.0
  %v7650 = vadd.f32 %v7648, %v7649
  %v7651 = vsel %vm3004, %v7566, 0.0
  %v7652 = vadd.f32 %v7650, %v7651
  %v7653 = vsel %vm3004, %v7567, 0.0
  %v7654 = vadd.f32 %v7652, %v7653
  %v7655 = vsel %vm3004, %v7568, 0.0
  %v7656 = vadd.f32 %v7654, %v7655
  %v7657 = vsel %vm3004, %v7569, 0.0
  %v7658 = vadd.f32 %v7656, %v7657
  %v7659 = vsel %vm3004, %v7570, 0.0
  %v7660 = vadd.f32 %v7658, %v7659
  %v7661 = vsel %vm3004, %v7571, 0.0
  %v7662 = vadd.f32 %v7660, %v7661
  %v7663 = vsel %vm3004, %v7572, 0.0
  %v7664 = vadd.f32 %v7662, %v7663
  %v7665 = vsel %vm3004, %v7573, 0.0
  %v7666 = vadd.f32 %v7664, %v7665
  %v7667 = vsel %vm3004, %v7574, 0.0
  %v7668 = vadd.f32 %v7666, %v7667
  %v7669 = vsel %vm3004, %v7575, 0.0
  %v7670 = vadd.f32 %v7668, %v7669
  %v7671 = vsel %vm3004, %v7576, 0.0
  %v7672 = vadd.f32 %v7670, %v7671
  %v7673 = vsel %vm3004, %v7577, 0.0
  %v7674 = vadd.f32 %v7672, %v7673
  %v7675 = vsel %vm3004, %v7578, 0.0
  %v7676 = vadd.f32 %v7674, %v7675
  %v7677 = vsel %vm3004, %v7579, 0.0
  %v7678 = vadd.f32 %v7676, %v7677
  %v7679 = vsel %vm3004, %v7580, 0.0
  %v7680 = vadd.f32 %v7678, %v7679
  %v7681 = vsel %vm3004, %v7581, 0.0
  %v7682 = vadd.f32 %v7680, %v7681
  %v7683 = vsel %vm3004, %v7582, 0.0
  %v7684 = vadd.f32 %v7682, %v7683
  %v7685 = vsel %vm3004, %v7583, 0.0
  %v7686 = vadd.f32 %v7684, %v7685
  %v7687 = vsel %vm3004, %v7584, 0.0
  %v7688 = vadd.f32 %v7686, %v7687
  %v7689 = vsel %vm3004, %v7585, 0.0
  %v7690 = vadd.f32 %v7688, %v7689
  %v7691 = vsel %vm3004, %v7586, 0.0
  %v7692 = vadd.f32 %v7690, %v7691
  %v7693 = vsel %vm3004, %v7587, 0.0
  %v7694 = vadd.f32 %v7692, %v7693
  %v7695 = vsel %vm3004, %v7588, 0.0
  %v7696 = vadd.f32 %v7694, %v7695
  %v7697 = vsel %vm3004, %v7589, 0.0
  %v7698 = vadd.f32 %v7696, %v7697
  %v7699 = vsel %vm3004, %v7590, 0.0
  %v7700 = vadd.f32 %v7698, %v7699
  %v7701 = vsel %vm3004, %v7591, 0.0
  %v7702 = vadd.f32 %v7700, %v7701
  %v7703 = vsel %vm3004, %v7592, 0.0
  %v7704 = vadd.f32 %v7702, %v7703
  %v7705 = vsel %vm3004, %v7593, 0.0
  %v7706 = vadd.f32 %v7704, %v7705
  %v7707 = vsel %vm3004, %v7594, 0.0
  %v7708 = vadd.f32 %v7706, %v7707
  %v7709 = vsel %vm3004, %v7595, 0.0
  %v7710 = vadd.f32 %v7708, %v7709
  %v7711 = vsel %vm3004, %v7596, 0.0
  %v7712 = vadd.f32 %v7710, %v7711
  %v7713 = vsel %vm3004, %v7597, 0.0
  %v7714 = vadd.f32 %v7712, %v7713
  %v7715 = vsel %vm3004, %v7598, 0.0
  %v7716 = vadd.f32 %v7714, %v7715
  %v7717 = vsel %vm3004, %v7599, 0.0
  %v7718 = vadd.f32 %v7716, %v7717
  %v7719 = vsel %vm3004, %v7600, 0.0
  %v7720 = vadd.f32 %v7718, %v7719
  %v7721 = vsel %vm3004, %v7601, 0.0
  %v7722 = vadd.f32 %v7720, %v7721
  %v7723 = vsel %vm3004, %v7602, 0.0
  %v7724 = vadd.f32 %v7722, %v7723
  %v7725 = vsel %vm3004, %v7603, 0.0
  %v7726 = vadd.f32 %v7724, %v7725
  %v7727 = vsel %vm3004, %v7604, 0.0
  %v7728 = vadd.f32 %v7726, %v7727
  %v7729 = vsel %vm3004, %v7605, 0.0
  %v7730 = vadd.f32 %v7728, %v7729
  %v7731 = vsel %vm3004, %v7606, 0.0
  %v7732 = vadd.f32 %v7730, %v7731
  %v7733 = vsel %vm3004, %v7607, 0.0
  %v7734 = vadd.f32 %v7732, %v7733
  %v7735 = vrot.slane %v7734, 4
  %v7736 = vadd.f32 %v7734, %v7735
  %v7737 = vrot.slane %v7736, 2
  %v7738 = vadd.f32 %v7736, %v7737
  %v7739 = vrot.slane %v7738, 1
  %v7740 = vadd.f32 %v7738, %v7739
  %v7741 = vmul.f32 %v7740, %v7478
  %v7742 = vld [vmem:[%s11] sm:$0x1]
  %v7743 = vadd.f32 %v7741, 1e-05
  %v7744 = vrsqrt.pop %v7743
  %v7745 = vmul.f32 %v7744, %v7743
  %v7746 = vmul.f32 %v7745, %v7744
  %v7747 = vmul.f32 0.5, %v7746
  %v7748 = vsub.f32 1.5, %v7747
  %v7749 = vmul.f32 %v7744, %v7748
  %vm7750 = vweird.f32 %v7743
  %vm7751 = vweird.f32 %v7744
  %vm7752 = vmor %vm7750, %vm7751
  %v7753 = vsel %vm7752, %v7744, %v7749
  %v7754 = vmul.f32 %v7742, %v7753
  %v7756 = vperm.slane %v7754, 0
  %v7758 = vmul.f32 %v7480, %v7756
  %v7759 = vmul.f32 %v7481, %v7756
  %v7760 = vmul.f32 %v7482, %v7756
  %v7761 = vmul.f32 %v7483, %v7756
  %v7762 = vmul.f32 %v7484, %v7756
  %v7763 = vmul.f32 %v7485, %v7756
  %v7764 = vmul.f32 %v7486, %v7756
  %v7765 = vmul.f32 %v7487, %v7756
  %v7766 = vmul.f32 %v7488, %v7756
  %v7767 = vmul.f32 %v7489, %v7756
  %v7768 = vmul.f32 %v7490, %v7756
  %v7769 = vmul.f32 %v7491, %v7756
  %v7770 = vmul.f32 %v7492, %v7756
  %v7771 = vmul.f32 %v7493, %v7756
  %v7772 = vmul.f32 %v7494, %v7756
  %v7773 = vmul.f32 %v7495, %v7756
  %v7774 = vmul.f32 %v7496, %v7756
  %v7775 = vmul.f32 %v7497, %v7756
  %v7776 = vmul.f32 %v7498, %v7756
  %v7777 = vmul.f32 %v7499, %v7756
  %v7778 = vmul.f32 %v7500, %v7756
  %v7779 = vmul.f32 %v7501, %v7756
  %v7780 = vmul.f32 %v7502, %v7756
  %v7781 = vmul.f32 %v7503, %v7756
  %v7782 = vmul.f32 %v7504, %v7756
  %v7783 = vmul.f32 %v7505, %v7756
  %v7784 = vmul.f32 %v7506, %v7756
  %v7785 = vmul.f32 %v7507, %v7756
  %v7786 = vmul.f32 %v7508, %v7756
  %v7787 = vmul.f32 %v7509, %v7756
  %v7788 = vmul.f32 %v7510, %v7756
  %v7789 = vmul.f32 %v7511, %v7756
  %v7790 = vmul.f32 %v7512, %v7756
  %v7791 = vmul.f32 %v7513, %v7756
  %v7792 = vmul.f32 %v7514, %v7756
  %v7793 = vmul.f32 %v7515, %v7756
  %v7794 = vmul.f32 %v7516, %v7756
  %v7795 = vmul.f32 %v7517, %v7756
  %v7796 = vmul.f32 %v7518, %v7756
  %v7797 = vmul.f32 %v7519, %v7756
  %v7798 = vmul.f32 %v7520, %v7756
  %v7799 = vmul.f32 %v7521, %v7756
  %v7800 = vmul.f32 %v7522, %v7756
  %v7801 = vmul.f32 %v7523, %v7756
  %v7802 = vmul.f32 %v7524, %v7756
  %v7803 = vmul.f32 %v7525, %v7756
  %v7804 = vmul.f32 %v7526, %v7756
  %v7805 = vmul.f32 %v7527, %v7756
  %v7806 = vmul.f32 %v7528, %v7756
  %v7807 = vmul.f32 %v7529, %v7756
  %v7808 = vmul.f32 %v7530, %v7756
  %v7809 = vmul.f32 %v7531, %v7756
  %v7810 = vmul.f32 %v7532, %v7756
  %v7811 = vmul.f32 %v7533, %v7756
  %v7812 = vmul.f32 %v7534, %v7756
  %v7813 = vmul.f32 %v7535, %v7756
  %v7814 = vmul.f32 %v7536, %v7756
  %v7815 = vmul.f32 %v7537, %v7756
  %v7816 = vmul.f32 %v7538, %v7756
  %v7817 = vmul.f32 %v7539, %v7756
  %v7818 = vmul.f32 %v7540, %v7756
  %v7819 = vmul.f32 %v7541, %v7756
  %v7820 = vmul.f32 %v7542, %v7756
  %v7821 = vmul.f32 %v7543, %v7756
  %v7822 = vld [vmem:[%s12] sm:$0x1]
  %v7824 = vperm.slane %v7822, 0
  %v7826 = vadd.f32 %v7758, %v7824
  %v7827 = vadd.f32 %v7759, %v7824
  %v7828 = vadd.f32 %v7760, %v7824
  %v7829 = vadd.f32 %v7761, %v7824
  %v7830 = vadd.f32 %v7762, %v7824
  %v7831 = vadd.f32 %v7763, %v7824
  %v7832 = vadd.f32 %v7764, %v7824
  %v7833 = vadd.f32 %v7765, %v7824
  %v7834 = vadd.f32 %v7766, %v7824
  %v7835 = vadd.f32 %v7767, %v7824
  %v7836 = vadd.f32 %v7768, %v7824
  %v7837 = vadd.f32 %v7769, %v7824
  %v7838 = vadd.f32 %v7770, %v7824
  %v7839 = vadd.f32 %v7771, %v7824
  %v7840 = vadd.f32 %v7772, %v7824
  %v7841 = vadd.f32 %v7773, %v7824
  %v7842 = vadd.f32 %v7774, %v7824
  %v7843 = vadd.f32 %v7775, %v7824
  %v7844 = vadd.f32 %v7776, %v7824
  %v7845 = vadd.f32 %v7777, %v7824
  %v7846 = vadd.f32 %v7778, %v7824
  %v7847 = vadd.f32 %v7779, %v7824
  %v7848 = vadd.f32 %v7780, %v7824
  %v7849 = vadd.f32 %v7781, %v7824
  %v7850 = vadd.f32 %v7782, %v7824
  %v7851 = vadd.f32 %v7783, %v7824
  %v7852 = vadd.f32 %v7784, %v7824
  %v7853 = vadd.f32 %v7785, %v7824
  %v7854 = vadd.f32 %v7786, %v7824
  %v7855 = vadd.f32 %v7787, %v7824
  %v7856 = vadd.f32 %v7788, %v7824
  %v7857 = vadd.f32 %v7789, %v7824
  %v7858 = vadd.f32 %v7790, %v7824
  %v7859 = vadd.f32 %v7791, %v7824
  %v7860 = vadd.f32 %v7792, %v7824
  %v7861 = vadd.f32 %v7793, %v7824
  %v7862 = vadd.f32 %v7794, %v7824
  %v7863 = vadd.f32 %v7795, %v7824
  %v7864 = vadd.f32 %v7796, %v7824
  %v7865 = vadd.f32 %v7797, %v7824
  %v7866 = vadd.f32 %v7798, %v7824
  %v7867 = vadd.f32 %v7799, %v7824
  %v7868 = vadd.f32 %v7800, %v7824
  %v7869 = vadd.f32 %v7801, %v7824
  %v7870 = vadd.f32 %v7802, %v7824
  %v7871 = vadd.f32 %v7803, %v7824
  %v7872 = vadd.f32 %v7804, %v7824
  %v7873 = vadd.f32 %v7805, %v7824
  %v7874 = vadd.f32 %v7806, %v7824
  %v7875 = vadd.f32 %v7807, %v7824
  %v7876 = vadd.f32 %v7808, %v7824
  %v7877 = vadd.f32 %v7809, %v7824
  %v7878 = vadd.f32 %v7810, %v7824
  %v7879 = vadd.f32 %v7811, %v7824
  %v7880 = vadd.f32 %v7812, %v7824
  %v7881 = vadd.f32 %v7813, %v7824
  %v7882 = vadd.f32 %v7814, %v7824
  %v7883 = vadd.f32 %v7815, %v7824
  %v7884 = vadd.f32 %v7816, %v7824
  %v7885 = vadd.f32 %v7817, %v7824
  %v7886 = vadd.f32 %v7818, %v7824
  %v7887 = vadd.f32 %v7819, %v7824
  %v7888 = vadd.f32 %v7820, %v7824
  %v7889 = vadd.f32 %v7821, %v7824
  %7890 = vst.msk [vmem:[%s13] sm:$0xff] %vm3004, %v7826
  %7891 = vst.msk [vmem:[%s13 + $0x8] sm:$0xff] %vm3004, %v7827
  %7892 = vst.msk [vmem:[%s13 + $0x10] sm:$0xff] %vm3004, %v7828
  %7893 = vst.msk [vmem:[%s13 + $0x18] sm:$0xff] %vm3004, %v7829
  %7894 = vst.msk [vmem:[%s13 + $0x20] sm:$0xff] %vm3004, %v7830
  %7895 = vst.msk [vmem:[%s13 + $0x28] sm:$0xff] %vm3004, %v7831
  %7896 = vst.msk [vmem:[%s13 + $0x30] sm:$0xff] %vm3004, %v7832
  %7897 = vst.msk [vmem:[%s13 + $0x38] sm:$0xff] %vm3004, %v7833
  %7898 = vst.msk [vmem:[%s13 + $0x40] sm:$0xff] %vm3004, %v7834
  %7899 = vst.msk [vmem:[%s13 + $0x48] sm:$0xff] %vm3004, %v7835
  %7900 = vst.msk [vmem:[%s13 + $0x50] sm:$0xff] %vm3004, %v7836
  %7901 = vst.msk [vmem:[%s13 + $0x58] sm:$0xff] %vm3004, %v7837
  %7902 = vst.msk [vmem:[%s13 + $0x60] sm:$0xff] %vm3004, %v7838
  %7903 = vst.msk [vmem:[%s13 + $0x68] sm:$0xff] %vm3004, %v7839
  %7904 = vst.msk [vmem:[%s13 + $0x70] sm:$0xff] %vm3004, %v7840
  %7905 = vst.msk [vmem:[%s13 + $0x78] sm:$0xff] %vm3004, %v7841
  %7906 = vst.msk [vmem:[%s13 + $0x80] sm:$0xff] %vm3004, %v7842
  %7907 = vst.msk [vmem:[%s13 + $0x88] sm:$0xff] %vm3004, %v7843
  %7908 = vst.msk [vmem:[%s13 + $0x90] sm:$0xff] %vm3004, %v7844
  %7909 = vst.msk [vmem:[%s13 + $0x98] sm:$0xff] %vm3004, %v7845
  %7910 = vst.msk [vmem:[%s13 + $0xa0] sm:$0xff] %vm3004, %v7846
  %7911 = vst.msk [vmem:[%s13 + $0xa8] sm:$0xff] %vm3004, %v7847
  %7912 = vst.msk [vmem:[%s13 + $0xb0] sm:$0xff] %vm3004, %v7848
  %7913 = vst.msk [vmem:[%s13 + $0xb8] sm:$0xff] %vm3004, %v7849
  %7914 = vst.msk [vmem:[%s13 + $0xc0] sm:$0xff] %vm3004, %v7850
  %7915 = vst.msk [vmem:[%s13 + $0xc8] sm:$0xff] %vm3004, %v7851
  %7916 = vst.msk [vmem:[%s13 + $0xd0] sm:$0xff] %vm3004, %v7852
  %7917 = vst.msk [vmem:[%s13 + $0xd8] sm:$0xff] %vm3004, %v7853
  %7918 = vst.msk [vmem:[%s13 + $0xe0] sm:$0xff] %vm3004, %v7854
  %7919 = vst.msk [vmem:[%s13 + $0xe8] sm:$0xff] %vm3004, %v7855
  %7920 = vst.msk [vmem:[%s13 + $0xf0] sm:$0xff] %vm3004, %v7856
  %7921 = vst.msk [vmem:[%s13 + $0xf8] sm:$0xff] %vm3004, %v7857
  %7922 = vst.msk [vmem:[%s13 + $0x100] sm:$0xff] %vm3004, %v7858
  %7923 = vst.msk [vmem:[%s13 + $0x108] sm:$0xff] %vm3004, %v7859
  %7924 = vst.msk [vmem:[%s13 + $0x110] sm:$0xff] %vm3004, %v7860
  %7925 = vst.msk [vmem:[%s13 + $0x118] sm:$0xff] %vm3004, %v7861
  %7926 = vst.msk [vmem:[%s13 + $0x120] sm:$0xff] %vm3004, %v7862
  %7927 = vst.msk [vmem:[%s13 + $0x128] sm:$0xff] %vm3004, %v7863
  %7928 = vst.msk [vmem:[%s13 + $0x130] sm:$0xff] %vm3004, %v7864
  %7929 = vst.msk [vmem:[%s13 + $0x138] sm:$0xff] %vm3004, %v7865
  %7930 = vst.msk [vmem:[%s13 + $0x140] sm:$0xff] %vm3004, %v7866
  %7931 = vst.msk [vmem:[%s13 + $0x148] sm:$0xff] %vm3004, %v7867
  %7932 = vst.msk [vmem:[%s13 + $0x150] sm:$0xff] %vm3004, %v7868
  %7933 = vst.msk [vmem:[%s13 + $0x158] sm:$0xff] %vm3004, %v7869
  %7934 = vst.msk [vmem:[%s13 + $0x160] sm:$0xff] %vm3004, %v7870
  %7935 = vst.msk [vmem:[%s13 + $0x168] sm:$0xff] %vm3004, %v7871
  %7936 = vst.msk [vmem:[%s13 + $0x170] sm:$0xff] %vm3004, %v7872
  %7937 = vst.msk [vmem:[%s13 + $0x178] sm:$0xff] %vm3004, %v7873
  %7938 = vst.msk [vmem:[%s13 + $0x180] sm:$0xff] %vm3004, %v7874
  %7939 = vst.msk [vmem:[%s13 + $0x188] sm:$0xff] %vm3004, %v7875
  %7940 = vst.msk [vmem:[%s13 + $0x190] sm:$0xff] %vm3004, %v7876
  %7941 = vst.msk [vmem:[%s13 + $0x198] sm:$0xff] %vm3004, %v7877
  %7942 = vst.msk [vmem:[%s13 + $0x1a0] sm:$0xff] %vm3004, %v7878
  %7943 = vst.msk [vmem:[%s13 + $0x1a8] sm:$0xff] %vm3004, %v7879
  %7944 = vst.msk [vmem:[%s13 + $0x1b0] sm:$0xff] %vm3004, %v7880
  %7945 = vst.msk [vmem:[%s13 + $0x1b8] sm:$0xff] %vm3004, %v7881
  %7946 = vst.msk [vmem:[%s13 + $0x1c0] sm:$0xff] %vm3004, %v7882
  %7947 = vst.msk [vmem:[%s13 + $0x1c8] sm:$0xff] %vm3004, %v7883
  %7948 = vst.msk [vmem:[%s13 + $0x1d0] sm:$0xff] %vm3004, %v7884
  %7949 = vst.msk [vmem:[%s13 + $0x1d8] sm:$0xff] %vm3004, %v7885
  %7950 = vst.msk [vmem:[%s13 + $0x1e0] sm:$0xff] %vm3004, %v7886
  %7951 = vst.msk [vmem:[%s13 + $0x1e8] sm:$0xff] %vm3004, %v7887
  %7952 = vst.msk [vmem:[%s13 + $0x1f0] sm:$0xff] %vm3004, %v7888
  %7953 = vst.msk [vmem:[%s13 + $0x1f8] sm:$0xff] %vm3004, %v7889
  // Predicated region
  $region54: #{st_conv_block_forward.1} parent=0 // pred_check
    _
  $region55: #{st_conv_block_forward.1} parent=0 // pred_check_branch
    %7955 = sbr.rel (0) target = $region57
  $region56: #{st_conv_block_forward.1} parent=0 // pred_region
    _
  $region57: #{st_conv_block_forward.1} parent=0 // pred_fallthru
    _
  // Predicated region
  $region58: #{st_conv_block_forward.1} parent=0 // pred_check
    _
  $region59: #{st_conv_block_forward.1} parent=0 // pred_check_branch
    %7957 = sbr.rel (0) target = $region61
  $region60: #{st_conv_block_forward.1} parent=0 // pred_region
    _
  $region61: #{st_conv_block_forward.1} parent=0 // pred_fallthru
    _

</llo_original>
